<compile_context>
chip_gen: v6e
topology: v6e:2x2x1
jax: 0.10.0
libtpu: 0.0.40
codegen_flags: <defaults>
</compile_context>

<pallas_src>
import functools
import jax
import jax.numpy as jnp
from jax.experimental import pallas as pl
from jax.experimental.pallas import tpu as pltpu

D_MODEL = 32
NHEAD = 4
DIM_FF = 64
QUANT_GRID_LENGTH = 4
GRID_SIZE = 0.5
LN_EPS = 1e-5
RPE_T = 3 * 2 * QUANT_GRID_LENGTH


# ----------------------------- fused Pallas kernel -----------------------------

def _decoder_layer_kernel(
    tgt_ref, qpos_ref, qsine_ref, mem_ref, pos_ref, idx_ref,
    w_sa_ref, b_sa_ref, w_sao_ref, b_sao_ref,
    w_caq_ref, b_caq_ref, w_cak_ref, b_cak_ref, w_cao_ref, b_cao_ref,
    tq_ref, tk_ref, tv_ref,
    w1_ref, b1_ref, w2_ref, b2_ref,
    ln_g_ref, ln_b_ref,
    o_ref):
    f32 = jnp.float32
    d = D_MODEL
    nh = NHEAD
    hd = d // nh
    nq = tgt_ref.shape[0]
    hw = mem_ref.shape[0]
    T = tq_ref.shape[2]

    def dot_nn(a, b):                      # (M,K) @ (K,N)
        return jnp.dot(a, b, preferred_element_type=f32)

    def dot_nt(a, b):                      # (M,K), (N,K) -> (M,N); contract last dims
        return jax.lax.dot_general(a, b, (((1,), (1,)), ((), ())),
                                   preferred_element_type=f32)

    def softmax_rows(s):
        s = s - jnp.max(s, axis=-1, keepdims=True)
        p = jnp.exp(s)
        return p * pl.reciprocal(jnp.sum(p, axis=-1, keepdims=True), approx=True)

    ln_g = ln_g_ref[...]                   # (3, d)
    ln_b = ln_b_ref[...]

    def layer_norm(x, i):
        mu = jnp.mean(x, axis=-1, keepdims=True)
        xc = x - mu
        var = jnp.mean(xc * xc, axis=-1, keepdims=True)
        return xc * jax.lax.rsqrt(var + LN_EPS) * ln_g[i:i + 1, :] + ln_b[i:i + 1, :]

    tgt = tgt_ref[...].astype(f32)         # (nq, d)
    qpos = qpos_ref[...].astype(f32)       # (nq, d)
    qsine = qsine_ref[...].astype(f32)     # (nq, d)
    mem = mem_ref[...].astype(f32)         # (hw, d)
    pos = pos_ref[...].astype(f32)         # (hw, d)

    # ------------------------- self attention -------------------------
    # fused projection: rows = [tgt ; query_pos], cols = [q(scaled) | k | v]
    w_sa = w_sa_ref[...]                                        # (2d, 3d)
    proj = dot_nn(tgt, w_sa[:d, :]) + dot_nn(qpos, w_sa[d:, :]) + b_sa_ref[...]
    q_sa = proj[:, 0:d]                                         # hd**-0.5 folded in
    k_sa = proj[:, d:2 * d]
    v_sa = proj[:, 2 * d:3 * d]
    w_sao = w_sao_ref[...]                                      # (d, d) = W_out.T
    acc = jnp.zeros((nq, d), f32)
    for h in range(nh):
        sl = slice(h * hd, (h + 1) * hd)
        p = softmax_rows(dot_nt(q_sa[:, sl], k_sa[:, sl]))      # (nq, nq)
        acc = acc + dot_nn(dot_nn(p, v_sa[:, sl]), w_sao[sl, :])
    tgt = layer_norm(tgt + acc + b_sao_ref[...], 0)             # dropout1 = identity

    # --------------------- cross attention + RPE ---------------------
    # fused q projection: rows = [tgt ; query_pos ; query_sine], cols = [q | qse] (scaled)
    w_caq = w_caq_ref[...]                                      # (3d, 2d)
    projq = (dot_nn(tgt, w_caq[0:d, :]) + dot_nn(qpos, w_caq[d:2 * d, :])
             + dot_nn(qsine, w_caq[2 * d:3 * d, :]) + b_caq_ref[...])     # (nq, 2d)
    # fused k projection: rows = [memory ; pos], cols = [k | v | k_pos]
    w_cak = w_cak_ref[...]                                      # (2d, 3d)
    projk = dot_nn(mem, w_cak[:d, :]) + dot_nn(pos, w_cak[d:, :]) + b_cak_ref[...]
    q_ca = projq[:, 0:d]
    q_se = projq[:, d:2 * d]
    k_ca = projk[:, 0:d]
    v_ca = projk[:, d:2 * d]
    k_pos = projk[:, 2 * d:3 * d]

    # Head-invariant one-hot of the flattened relative index (gather -> contraction),
    # computed ONCE per batch and reused by all heads / all three RPE terms.
    # The three coord ranges [c*2L, (c+1)*2L) are disjoint, so OR == sum of one-hots.
    iota_t = jax.lax.broadcasted_iota(jnp.int32, (nq, hw, T), 2)
    m = ((idx_ref[0][:, :, None] == iota_t)
         | (idx_ref[1][:, :, None] == iota_t)
         | (idx_ref[2][:, :, None] == iota_t)).astype(f32)      # (nq, hw, T)

    tq = tq_ref[...]                                            # (nh, hd, T)
    tk = tk_ref[...]
    tv = tv_ref[...]
    w_cao = w_cao_ref[...]                                      # (d, d) = W_out.T
    acc = jnp.zeros((nq, d), f32)
    for h in range(nh):
        sl = slice(h * hd, (h + 1) * hd)
        qh, qsh = q_ca[:, sl], q_se[:, sl]                      # (nq, hd), scaled
        kh, kph, vh = k_ca[:, sl], k_pos[:, sl], v_ca[:, sl]    # (hw, hd)
        s = dot_nt(qh, kh) + dot_nt(qsh, kph)                   # (nq, hw)
        # TODO(synk): MultiheadAttentionRPE source unavailable; the RPE bias uses the
        # content half of the (scaled) per-head q and of k, matching the table's
        # d_model//nhead feature dim.
        aq = dot_nn(qh, tq[h])                                  # (nq, T)
        ak = dot_nn(kh, tk[h])                                  # (hw, T)
        s = (s + jnp.sum(aq[:, None, :] * m, axis=-1)
               + jnp.sum(ak[None, :, :] * m, axis=-1))
        p = softmax_rows(s)                                     # (nq, hw)
        oh = dot_nn(p, vh)                                      # (nq, hd)
        bv = jnp.sum(p[:, :, None] * m, axis=1)                 # (nq, T)
        oh = oh + dot_nt(bv, tv[h])                             # += attn . table_v[rel_idx]
        acc = acc + dot_nn(oh, w_cao[sl, :])
    tgt = layer_norm(tgt + acc + b_cao_ref[...], 1)             # dropout2 = identity

    # ----------------------------- FFN -----------------------------
    h1 = jnp.maximum(dot_nn(tgt, w1_ref[...]) + b1_ref[...], 0.0)
    tgt = layer_norm(tgt + dot_nn(h1, w2_ref[...]) + b2_ref[...], 2)   # dropout3 = identity
    o_ref[...] = tgt.astype(o_ref.dtype)


# ----------------------------- host-side weight fusion -----------------------------

def fuse_decoder_params(params, is_first):
    d = D_MODEL
    nh = NHEAD
    hd = d // nh
    s_sa = float(hd) ** -0.5            # self-attn scale  (d_model // nhead) ** -0.5
    s_ca = float(2 * hd) ** -0.5        # cross-attn scale (2*d_model // nhead) ** -0.5
    first = 1.0 if is_first else 0.0
    zero = jnp.zeros((d, d), jnp.float32)

    def wt(n):
        return params[n]["w"].T         # (in, out), so the kernel computes x @ W

    def bb(n):
        return params[n]["b"]

    # self-attn: [tgt ; query_pos] -> [q(scaled) | k | v]
    w_sa = jnp.concatenate([
        jnp.concatenate([wt("sa_qcontent_proj") * s_sa, wt("sa_kcontent_proj"),
                         wt("sa_v_proj")], axis=1),
        jnp.concatenate([wt("sa_qpos_proj") * s_sa, wt("sa_kpos_proj"), zero], axis=1),
    ], axis=0)
    b_sa = jnp.concatenate([
        (bb("sa_qcontent_proj") + bb("sa_qpos_proj")) * s_sa,
        bb("sa_kcontent_proj") + bb("sa_kpos_proj"),
        bb("sa_v_proj")]).reshape(1, 3 * d)

    # cross-attn q side: [tgt ; query_pos ; query_sine] -> [q | qse] (both scaled)
    w_caq = jnp.concatenate([
        jnp.concatenate([wt("ca_qcontent_proj") * s_ca, zero], axis=1),
        jnp.concatenate([wt("ca_qpos_proj") * (s_ca * first), zero], axis=1),
        jnp.concatenate([zero, wt("ca_qpos_sine_proj") * s_ca], axis=1),
    ], axis=0)
    b_caq = jnp.concatenate([
        (bb("ca_qcontent_proj") + first * bb("ca_qpos_proj")) * s_ca,
        bb("ca_qpos_sine_proj") * s_ca]).reshape(1, 2 * d)

    # cross-attn k side: [memory ; pos] -> [k | v | k_pos]
    w_cak = jnp.concatenate([
        jnp.concatenate([wt("ca_kcontent_proj"), wt("ca_v_proj"), zero], axis=1),
        jnp.concatenate([wt("ca_kpos_proj") * first, zero, wt("ca_kpos_proj")], axis=1),
    ], axis=0)
    b_cak = jnp.concatenate([
        bb("ca_kcontent_proj") + first * bb("ca_kpos_proj"),
        bb("ca_v_proj"),
        bb("ca_kpos_proj")]).reshape(1, 3 * d)

    return dict(
        w_sa=w_sa, b_sa=b_sa,
        w_sao=wt("sa_out_proj"), b_sao=bb("sa_out_proj").reshape(1, d),
        w_caq=w_caq, b_caq=b_caq, w_cak=w_cak, b_cak=b_cak,
        w_cao=wt("ca_out_proj"), b_cao=bb("ca_out_proj").reshape(1, d),
        tq=params["relative_pos_query_table"],
        tk=params["relative_pos_key_table"],
        tv=params["relative_pos_value_table"],
        w1=wt("linear1"), b1=bb("linear1").reshape(1, DIM_FF),
        w2=wt("linear2"), b2=bb("linear2").reshape(1, d),
        ln_g=jnp.stack([params["norm1"]["g"], params["norm2"]["g"], params["norm3"]["g"]]),
        ln_b=jnp.stack([params["norm1"]["b"], params["norm2"]["b"], params["norm3"]["b"]]),
    )


_FUSED_ORDER = ("w_sa", "b_sa", "w_sao", "b_sao", "w_caq", "b_caq", "w_cak", "b_cak",
                "w_cao", "b_cao", "tq", "tk", "tv", "w1", "b1", "w2", "b2",
                "ln_g", "ln_b")


def _full_spec(a):
    nd = a.ndim
    return pl.BlockSpec(a.shape, lambda b: (0,) * nd)


def transformer_decoder_layer(fused, tgt, memory, query_coords_float, key_coords_float,
                              pos, query_pos, query_sine_embed):
    nq, bs, d = tgt.shape
    hw = memory.shape[0]
    L = QUANT_GRID_LENGTH

    # quantized relative position index (same arithmetic as the torch reference)
    rel_pos = query_coords_float[:, None, :, :] - key_coords_float[None, :, :, :]
    rel_idx = jnp.floor(rel_pos / GRID_SIZE).astype(jnp.int32)
    rel_idx = jnp.clip(rel_idx, -L, L - 1) + L                      # in [0, 2L)
    flat_idx = rel_idx + jnp.arange(3, dtype=jnp.int32) * (2 * L)   # disjoint per-coord ranges
    flat_idx = flat_idx.transpose(2, 3, 0, 1)                       # (bs, 3, nq, hw)

    bm = lambda x: x.transpose(1, 0, 2)                             # seq-first -> batch-first
    tensor_args = (bm(tgt), bm(query_pos), bm(query_sine_embed), bm(memory), bm(pos),
                   flat_idx)
    weight_args = tuple(fused[k] for k in _FUSED_ORDER)

    spec_nq = pl.BlockSpec((None, nq, d), lambda b: (b, 0, 0))
    spec_hw = pl.BlockSpec((None, hw, d), lambda b: (b, 0, 0))
    in_specs = ([spec_nq, spec_nq, spec_nq, spec_hw, spec_hw,
                 pl.BlockSpec((None, 3, nq, hw), lambda b: (b, 0, 0, 0))]
                + [_full_spec(a) for a in weight_args])

    out = pl.pallas_call(
        _decoder_layer_kernel,
        out_shape=jax.ShapeDtypeStruct((bs, nq, d), tgt.dtype),
        grid=(bs,),
        in_specs=in_specs,
        out_specs=pl.BlockSpec((None, nq, d), lambda b: (b, 0, 0)),
        compiler_params=pltpu.CompilerParams(dimension_semantics=("parallel",)),
    )(*tensor_args, *weight_args)
    return out.transpose(1, 0, 2)


@functools.partial(jax.jit, static_argnames=("is_first",))
def decoder_layer_forward(params, tgt, memory, query_coords_float, key_coords_float,
                          pos, query_pos, query_sine_embed, is_first=True):
    fused = fuse_decoder_params(params, is_first)
    return transformer_decoder_layer(fused, tgt, memory, query_coords_float,
                                     key_coords_float, pos, query_pos, query_sine_embed)


# ----------------------------- parameters -----------------------------

def init_params(key):
    d, ff, nh = D_MODEL, DIM_FF, NHEAD
    hd = d // nh
    T = RPE_T
    names_dd = ["sa_qcontent_proj", "sa_qpos_proj", "sa_kcontent_proj", "sa_kpos_proj",
                "sa_v_proj", "sa_out_proj",
                "ca_qcontent_proj", "ca_qpos_proj", "ca_kcontent_proj", "ca_kpos_proj",
                "ca_v_proj", "ca_qpos_sine_proj", "ca_out_proj"]
    params = {}
    keys = jax.random.split(key, len(names_dd) + 5)
    ki = iter(keys)
    for n in names_dd:
        params[n] = {"w": 0.05 * jax.random.normal(next(ki), (d, d), jnp.float32),
                     "b": jnp.zeros((d,), jnp.float32)}
    params["linear1"] = {"w": 0.05 * jax.random.normal(next(ki), (ff, d), jnp.float32),
                         "b": jnp.zeros((ff,), jnp.float32)}
    params["linear2"] = {"w": 0.05 * jax.random.normal(next(ki), (d, ff), jnp.float32),
                         "b": jnp.zeros((d,), jnp.float32)}
    for n in ["norm1", "norm2", "norm3"]:
        params[n] = {"g": jnp.ones((d,), jnp.float32), "b": jnp.zeros((d,), jnp.float32)}
    for n in ["relative_pos_query_table", "relative_pos_key_table",
              "relative_pos_value_table"]:
        # trunc_normal_(std=0.02) approximated by normal*0.02 (synthetic init)
        params[n] = 0.02 * jax.random.normal(next(ki), (nh, hd, T), jnp.float32)
    return params


# ----------------------------- pure-JAX reference (for validation) -----------------------------

def _reference_forward(params, tgt, memory, qcf, kcf, pos, query_pos, qse_in, is_first):
    d, nh = D_MODEL, NHEAD
    hd = d // nh
    L = QUANT_GRID_LENGTH
    nq, bs, _ = tgt.shape
    hw = memory.shape[0]
    ein = functools.partial(jnp.einsum, precision="highest")
    lin = lambda n, x: ein("...k,nk->...n", x, params[n]["w"]) + params[n]["b"]

    def ln(n, x):
        mu = x.mean(-1, keepdims=True)
        xc = x - mu
        v = (xc * xc).mean(-1, keepdims=True)
        return xc / jnp.sqrt(v + LN_EPS) * params[n]["g"] + params[n]["b"]

    def split(x, dh):                               # (S, bs, nh*dh) -> (bs, nh, S, dh)
        return x.reshape(x.shape[0], bs, nh, dh).transpose(1, 2, 0, 3)

    # self attention
    q = lin("sa_qcontent_proj", tgt) + lin("sa_qpos_proj", query_pos)
    k = lin("sa_kcontent_proj", tgt) + lin("sa_kpos_proj", query_pos)
    v = lin("sa_v_proj", tgt)
    s = ein("bhqd,bhkd->bhqk", split(q, hd) * hd ** -0.5, split(k, hd))
    p = jax.nn.softmax(s, axis=-1)
    a = ein("bhqk,bhkd->bhqd", p, split(v, hd)).transpose(2, 0, 1, 3).reshape(nq, bs, d)
    tgt = ln("norm1", tgt + lin("sa_out_proj", a))

    # cross attention with RPE
    qc = lin("ca_qcontent_proj", tgt)
    kc = lin("ca_kcontent_proj", memory)
    v = lin("ca_v_proj", memory)
    kp = lin("ca_kpos_proj", pos)
    if is_first:
        qq = qc + lin("ca_qpos_proj", query_pos)
        kk = kc + kp
    else:
        qq, kk = qc, kc
    qs = lin("ca_qpos_sine_proj", qse_in)
    q2 = jnp.concatenate([qq.reshape(nq, bs, nh, hd), qs.reshape(nq, bs, nh, hd)], -1)
    k2 = jnp.concatenate([kk.reshape(hw, bs, nh, hd), kp.reshape(hw, bs, nh, hd)], -1)
    qh = q2.transpose(1, 2, 0, 3) * (2 * hd) ** -0.5
    kh = k2.transpose(1, 2, 0, 3)
    vh = split(v, hd)
    rel = qcf[:, None] - kcf[None]
    ridx = jnp.clip(jnp.floor(rel / GRID_SIZE).astype(jnp.int32), -L, L - 1) + L
    fidx = ridx + jnp.arange(3) * 2 * L
    m = jax.nn.one_hot(fidx, RPE_T, dtype=jnp.float32).sum(3).transpose(2, 0, 1, 3)
    tq = params["relative_pos_query_table"]
    tk = params["relative_pos_key_table"]
    tv = params["relative_pos_value_table"]
    s = ein("bhqd,bhkd->bhqk", qh, kh)
    aq = ein("bhqd,hdt->bhqt", qh[..., :hd], tq)
    ak = ein("bhkd,hdt->bhkt", kh[..., :hd], tk)
    s = s + ein("bhqt,bqkt->bhqk", aq, m) + ein("bhkt,bqkt->bhqk", ak, m)
    p = jax.nn.softmax(s, -1)
    a = ein("bhqk,bhkd->bhqd", p, vh)
    bv = ein("bhqk,bqkt->bhqt", p, m)
    a = a + ein("bhqt,hdt->bhqd", bv, tv)
    a = a.transpose(2, 0, 1, 3).reshape(nq, bs, d)
    tgt = ln("norm2", tgt + lin("ca_out_proj", a))

    # FFN
    h1 = jax.nn.relu(lin("linear1", tgt))
    tgt = ln("norm3", tgt + lin("linear2", h1))
    return tgt


# ----------------------------- main -----------------------------

if __name__ == "__main__":
    key = jax.random.PRNGKey(0)
    kp, k1, k2, k3, k4, k5, k6, k7 = jax.random.split(key, 8)
    params = init_params(kp)

    nq, hw, bs, d = 8, 16, 2, D_MODEL
    tgt = jax.random.normal(k1, (nq, bs, d), jnp.float32)
    memory = jax.random.normal(k2, (hw, bs, d), jnp.float32)
    query_coords = 2.0 * jax.random.normal(k3, (nq, bs, 3), jnp.float32)
    key_coords = 2.0 * jax.random.normal(k4, (hw, bs, 3), jnp.float32)
    pos = jax.random.normal(k5, (hw, bs, d), jnp.float32)
    query_pos = jax.random.normal(k6, (nq, bs, d), jnp.float32)
    query_sine_embed = jax.random.normal(k7, (nq, bs, d), jnp.float32)

    out = decoder_layer_forward(params, tgt, memory, query_coords, key_coords,
                                pos, query_pos, query_sine_embed, is_first=True)
    out = jax.block_until_ready(out)
    assert out.shape == (nq, bs, d), out.shape
    assert bool(jnp.all(jnp.isfinite(out)))

    ref = _reference_forward(params, tgt, memory, query_coords, key_coords,
                             pos, query_pos, query_sine_embed, True)
    max_err = float(jnp.max(jnp.abs(out - ref)))
    assert bool(jnp.allclose(out, ref, atol=5e-2, rtol=5e-2)), max_err
    print("KERNEL_OK")
</pallas_src>

<mosaic_0001>
module attributes {stable_mosaic.version = 11 : i64} {
  func.func @_decoder_layer_kernel(%arg0: i32, %arg1: memref<1x8x32xf32, #tpu.memory_space<vmem>>, %arg2: memref<1x8x32xf32, #tpu.memory_space<vmem>>, %arg3: memref<1x8x32xf32, #tpu.memory_space<vmem>>, %arg4: memref<1x16x32xf32, #tpu.memory_space<vmem>>, %arg5: memref<1x16x32xf32, #tpu.memory_space<vmem>>, %arg6: memref<1x3x8x16xi32, #tpu.memory_space<vmem>>, %arg7: memref<64x96xf32, #tpu.memory_space<vmem>>, %arg8: memref<1x96xf32, #tpu.memory_space<vmem>>, %arg9: memref<32x32xf32, #tpu.memory_space<vmem>>, %arg10: memref<1x32xf32, #tpu.memory_space<vmem>>, %arg11: memref<96x64xf32, #tpu.memory_space<vmem>>, %arg12: memref<1x64xf32, #tpu.memory_space<vmem>>, %arg13: memref<64x96xf32, #tpu.memory_space<vmem>>, %arg14: memref<1x96xf32, #tpu.memory_space<vmem>>, %arg15: memref<32x32xf32, #tpu.memory_space<vmem>>, %arg16: memref<1x32xf32, #tpu.memory_space<vmem>>, %arg17: memref<4x8x24xf32, #tpu.memory_space<vmem>>, %arg18: memref<4x8x24xf32, #tpu.memory_space<vmem>>, %arg19: memref<4x8x24xf32, #tpu.memory_space<vmem>>, %arg20: memref<32x64xf32, #tpu.memory_space<vmem>>, %arg21: memref<1x64xf32, #tpu.memory_space<vmem>>, %arg22: memref<64x32xf32, #tpu.memory_space<vmem>>, %arg23: memref<1x32xf32, #tpu.memory_space<vmem>>, %arg24: memref<3x32xf32, #tpu.memory_space<vmem>>, %arg25: memref<3x32xf32, #tpu.memory_space<vmem>>, %arg26: memref<1x8x32xf32, #tpu.memory_space<vmem>>) attributes {dimension_semantics = [#tpu.dimension_semantics<parallel>], iteration_bounds = array<i64: 2>, scalar_prefetch = 0 : i64, scratch_operands = 0 : i64, tpu.core_type = #tpu.core_type<tc>, window_params = [{transform_indices = @transform_0, window_bounds = array<i64: 1, 8, 32>}, {transform_indices = @transform_1, window_bounds = array<i64: 1, 8, 32>}, {transform_indices = @transform_2, window_bounds = array<i64: 1, 8, 32>}, {transform_indices = @transform_3, window_bounds = array<i64: 1, 16, 32>}, {transform_indices = @transform_4, window_bounds = array<i64: 1, 16, 32>}, {transform_indices = @transform_5, window_bounds = array<i64: 1, 3, 8, 16>}, {pipeline_mode = #tpu.pipeline_mode<synchronous>, transform_indices = @transform_6, window_bounds = array<i64: 64, 96>}, {pipeline_mode = #tpu.pipeline_mode<synchronous>, transform_indices = @transform_7, window_bounds = array<i64: 1, 96>}, {pipeline_mode = #tpu.pipeline_mode<synchronous>, transform_indices = @transform_8, window_bounds = array<i64: 32, 32>}, {pipeline_mode = #tpu.pipeline_mode<synchronous>, transform_indices = @transform_9, window_bounds = array<i64: 1, 32>}, {pipeline_mode = #tpu.pipeline_mode<synchronous>, transform_indices = @transform_10, window_bounds = array<i64: 96, 64>}, {pipeline_mode = #tpu.pipeline_mode<synchronous>, transform_indices = @transform_11, window_bounds = array<i64: 1, 64>}, {pipeline_mode = #tpu.pipeline_mode<synchronous>, transform_indices = @transform_12, window_bounds = array<i64: 64, 96>}, {pipeline_mode = #tpu.pipeline_mode<synchronous>, transform_indices = @transform_13, window_bounds = array<i64: 1, 96>}, {pipeline_mode = #tpu.pipeline_mode<synchronous>, transform_indices = @transform_14, window_bounds = array<i64: 32, 32>}, {pipeline_mode = #tpu.pipeline_mode<synchronous>, transform_indices = @transform_15, window_bounds = array<i64: 1, 32>}, {pipeline_mode = #tpu.pipeline_mode<synchronous>, transform_indices = @transform_16, window_bounds = array<i64: 4, 8, 24>}, {pipeline_mode = #tpu.pipeline_mode<synchronous>, transform_indices = @transform_17, window_bounds = array<i64: 4, 8, 24>}, {pipeline_mode = #tpu.pipeline_mode<synchronous>, transform_indices = @transform_18, window_bounds = array<i64: 4, 8, 24>}, {pipeline_mode = #tpu.pipeline_mode<synchronous>, transform_indices = @transform_19, window_bounds = array<i64: 32, 64>}, {pipeline_mode = #tpu.pipeline_mode<synchronous>, transform_indices = @transform_20, window_bounds = array<i64: 1, 64>}, {pipeline_mode = #tpu.pipeline_mode<synchronous>, transform_indices = @transform_21, window_bounds = array<i64: 64, 32>}, {pipeline_mode = #tpu.pipeline_mode<synchronous>, transform_indices = @transform_22, window_bounds = array<i64: 1, 32>}, {pipeline_mode = #tpu.pipeline_mode<synchronous>, transform_indices = @transform_23, window_bounds = array<i64: 3, 32>}, {pipeline_mode = #tpu.pipeline_mode<synchronous>, transform_indices = @transform_24, window_bounds = array<i64: 3, 32>}, {transform_indices = @transform_25, window_bounds = array<i64: 1, 8, 32>}]} {
    %c0 = arith.constant 0 : index
    %c0_0 = arith.constant 0 : index
    %0 = vector.load %arg24[%c0, %c0_0] : memref<3x32xf32, #tpu.memory_space<vmem>>, vector<3x32xf32>
    %c0_1 = arith.constant 0 : index
    %c0_2 = arith.constant 0 : index
    %1 = vector.load %arg25[%c0_1, %c0_2] : memref<3x32xf32, #tpu.memory_space<vmem>>, vector<3x32xf32>
    %c0_3 = arith.constant 0 : index
    %c0_4 = arith.constant 0 : index
    %c0_5 = arith.constant 0 : index
    %2 = vector.load %arg1[%c0_3, %c0_4, %c0_5] : memref<1x8x32xf32, #tpu.memory_space<vmem>>, vector<1x8x32xf32>
    %3 = vector.shape_cast %2 : vector<1x8x32xf32> to vector<8x32xf32>
    %c0_6 = arith.constant 0 : index
    %c0_7 = arith.constant 0 : index
    %c0_8 = arith.constant 0 : index
    %4 = vector.load %arg2[%c0_6, %c0_7, %c0_8] : memref<1x8x32xf32, #tpu.memory_space<vmem>>, vector<1x8x32xf32>
    %5 = vector.shape_cast %4 : vector<1x8x32xf32> to vector<8x32xf32>
    %c0_9 = arith.constant 0 : index
    %c0_10 = arith.constant 0 : index
    %c0_11 = arith.constant 0 : index
    %6 = vector.load %arg3[%c0_9, %c0_10, %c0_11] : memref<1x8x32xf32, #tpu.memory_space<vmem>>, vector<1x8x32xf32>
    %7 = vector.shape_cast %6 : vector<1x8x32xf32> to vector<8x32xf32>
    %c0_12 = arith.constant 0 : index
    %c0_13 = arith.constant 0 : index
    %c0_14 = arith.constant 0 : index
    %8 = vector.load %arg4[%c0_12, %c0_13, %c0_14] : memref<1x16x32xf32, #tpu.memory_space<vmem>>, vector<1x16x32xf32>
    %9 = vector.shape_cast %8 : vector<1x16x32xf32> to vector<16x32xf32>
    %c0_15 = arith.constant 0 : index
    %c0_16 = arith.constant 0 : index
    %c0_17 = arith.constant 0 : index
    %10 = vector.load %arg5[%c0_15, %c0_16, %c0_17] : memref<1x16x32xf32, #tpu.memory_space<vmem>>, vector<1x16x32xf32>
    %11 = vector.shape_cast %10 : vector<1x16x32xf32> to vector<16x32xf32>
    %c0_18 = arith.constant 0 : index
    %c0_19 = arith.constant 0 : index
    %12 = vector.load %arg7[%c0_18, %c0_19] : memref<64x96xf32, #tpu.memory_space<vmem>>, vector<64x96xf32>
    %13 = vector.extract_strided_slice %12 {offsets = [0, 0], sizes = [32, 96], strides = [1, 1]} : vector<64x96xf32> to vector<32x96xf32>
    %cst = arith.constant dense<0.000000e+00> : vector<8x96xf32>
    %14 = tpu.matmul %3, %13, %cst {dimension_numbers = #tpu.dot_dimension_numbers<[1], [0], [0], [1], [0, 0, 1, 1], [], []>} : vector<8x32xf32>, vector<32x96xf32>, vector<8x96xf32> -> vector<8x96xf32>
    %15 = vector.extract_strided_slice %12 {offsets = [32, 0], sizes = [32, 96], strides = [1, 1]} : vector<64x96xf32> to vector<32x96xf32>
    %cst_20 = arith.constant dense<0.000000e+00> : vector<8x96xf32>
    %16 = tpu.matmul %5, %15, %cst_20 {dimension_numbers = #tpu.dot_dimension_numbers<[1], [0], [0], [1], [0, 0, 1, 1], [], []>} : vector<8x32xf32>, vector<32x96xf32>, vector<8x96xf32> -> vector<8x96xf32>
    %17 = arith.addf %14, %16 : vector<8x96xf32>
    %c0_21 = arith.constant 0 : index
    %c0_22 = arith.constant 0 : index
    %18 = vector.load %arg8[%c0_21, %c0_22] : memref<1x96xf32, #tpu.memory_space<vmem>>, vector<1x96xf32>
    %19 = vector.broadcast %18 : vector<1x96xf32> to vector<8x96xf32>
    %20 = arith.addf %17, %19 : vector<8x96xf32>
    %21 = vector.extract_strided_slice %20 {offsets = [0, 0], sizes = [8, 32], strides = [1, 1]} : vector<8x96xf32> to vector<8x32xf32>
    %22 = vector.extract_strided_slice %20 {offsets = [0, 32], sizes = [8, 32], strides = [1, 1]} : vector<8x96xf32> to vector<8x32xf32>
    %23 = vector.extract_strided_slice %20 {offsets = [0, 64], sizes = [8, 32], strides = [1, 1]} : vector<8x96xf32> to vector<8x32xf32>
    %c0_23 = arith.constant 0 : index
    %c0_24 = arith.constant 0 : index
    %24 = vector.load %arg9[%c0_23, %c0_24] : memref<32x32xf32, #tpu.memory_space<vmem>>, vector<32x32xf32>
    %cst_25 = arith.constant 0.000000e+00 : f32
    %25 = vector.broadcast %cst_25 : f32 to vector<8x32xf32>
    %26 = vector.extract_strided_slice %21 {offsets = [0, 0], sizes = [8, 8], strides = [1, 1]} : vector<8x32xf32> to vector<8x8xf32>
    %27 = vector.extract_strided_slice %22 {offsets = [0, 0], sizes = [8, 8], strides = [1, 1]} : vector<8x32xf32> to vector<8x8xf32>
    %cst_26 = arith.constant dense<0.000000e+00> : vector<8x8xf32>
    %28 = tpu.matmul %26, %27, %cst_26 {dimension_numbers = #tpu.dot_dimension_numbers<[1], [1], [0], [0], [0, 0, 1, 0], [], []>} : vector<8x8xf32>, vector<8x8xf32>, vector<8x8xf32> -> vector<8x8xf32>
    %cst_27 = arith.constant dense<0xFF800000> : vector<8xf32>
    %29 = vector.multi_reduction <maximumf>, %28, %cst_27 [1] : vector<8x8xf32> to vector<8xf32>
    %30 = vector.shape_cast %29 : vector<8xf32> to vector<8x1xf32>
    %31 = vector.broadcast %30 : vector<8x1xf32> to vector<8x8xf32>
    %32 = arith.subf %28, %31 : vector<8x8xf32>
    %33 = math.exp %32 : vector<8x8xf32>
    %cst_28 = arith.constant dense<0.000000e+00> : vector<8xf32>
    %34 = vector.multi_reduction <add>, %33, %cst_28 [1] : vector<8x8xf32> to vector<8xf32>
    %35 = vector.shape_cast %34 : vector<8xf32> to vector<8x1xf32>
    %36 = tpu.reciprocal %35 {approx = true} : vector<8x1xf32> -> vector<8x1xf32>
    %37 = vector.broadcast %36 : vector<8x1xf32> to vector<8x8xf32>
    %38 = arith.mulf %33, %37 : vector<8x8xf32>
    %39 = vector.extract_strided_slice %23 {offsets = [0, 0], sizes = [8, 8], strides = [1, 1]} : vector<8x32xf32> to vector<8x8xf32>
    %cst_29 = arith.constant dense<0.000000e+00> : vector<8x8xf32>
    %40 = tpu.matmul %38, %39, %cst_29 {dimension_numbers = #tpu.dot_dimension_numbers<[1], [0], [0], [1], [0, 0, 1, 1], [], []>} : vector<8x8xf32>, vector<8x8xf32>, vector<8x8xf32> -> vector<8x8xf32>
    %41 = vector.extract_strided_slice %24 {offsets = [0, 0], sizes = [8, 32], strides = [1, 1]} : vector<32x32xf32> to vector<8x32xf32>
    %cst_30 = arith.constant dense<0.000000e+00> : vector<8x32xf32>
    %42 = tpu.matmul %40, %41, %cst_30 {dimension_numbers = #tpu.dot_dimension_numbers<[1], [0], [0], [1], [0, 0, 1, 1], [], []>} : vector<8x8xf32>, vector<8x32xf32>, vector<8x32xf32> -> vector<8x32xf32>
    %43 = arith.addf %25, %42 : vector<8x32xf32>
    %44 = vector.extract_strided_slice %21 {offsets = [0, 8], sizes = [8, 8], strides = [1, 1]} : vector<8x32xf32> to vector<8x8xf32>
    %45 = vector.extract_strided_slice %22 {offsets = [0, 8], sizes = [8, 8], strides = [1, 1]} : vector<8x32xf32> to vector<8x8xf32>
    %cst_31 = arith.constant dense<0.000000e+00> : vector<8x8xf32>
    %46 = tpu.matmul %44, %45, %cst_31 {dimension_numbers = #tpu.dot_dimension_numbers<[1], [1], [0], [0], [0, 0, 1, 0], [], []>} : vector<8x8xf32>, vector<8x8xf32>, vector<8x8xf32> -> vector<8x8xf32>
    %cst_32 = arith.constant dense<0xFF800000> : vector<8xf32>
    %47 = vector.multi_reduction <maximumf>, %46, %cst_32 [1] : vector<8x8xf32> to vector<8xf32>
    %48 = vector.shape_cast %47 : vector<8xf32> to vector<8x1xf32>
    %49 = vector.broadcast %48 : vector<8x1xf32> to vector<8x8xf32>
    %50 = arith.subf %46, %49 : vector<8x8xf32>
    %51 = math.exp %50 : vector<8x8xf32>
    %cst_33 = arith.constant dense<0.000000e+00> : vector<8xf32>
    %52 = vector.multi_reduction <add>, %51, %cst_33 [1] : vector<8x8xf32> to vector<8xf32>
    %53 = vector.shape_cast %52 : vector<8xf32> to vector<8x1xf32>
    %54 = tpu.reciprocal %53 {approx = true} : vector<8x1xf32> -> vector<8x1xf32>
    %55 = vector.broadcast %54 : vector<8x1xf32> to vector<8x8xf32>
    %56 = arith.mulf %51, %55 : vector<8x8xf32>
    %57 = vector.extract_strided_slice %23 {offsets = [0, 8], sizes = [8, 8], strides = [1, 1]} : vector<8x32xf32> to vector<8x8xf32>
    %cst_34 = arith.constant dense<0.000000e+00> : vector<8x8xf32>
    %58 = tpu.matmul %56, %57, %cst_34 {dimension_numbers = #tpu.dot_dimension_numbers<[1], [0], [0], [1], [0, 0, 1, 1], [], []>} : vector<8x8xf32>, vector<8x8xf32>, vector<8x8xf32> -> vector<8x8xf32>
    %59 = vector.extract_strided_slice %24 {offsets = [8, 0], sizes = [8, 32], strides = [1, 1]} : vector<32x32xf32> to vector<8x32xf32>
    %cst_35 = arith.constant dense<0.000000e+00> : vector<8x32xf32>
    %60 = tpu.matmul %58, %59, %cst_35 {dimension_numbers = #tpu.dot_dimension_numbers<[1], [0], [0], [1], [0, 0, 1, 1], [], []>} : vector<8x8xf32>, vector<8x32xf32>, vector<8x32xf32> -> vector<8x32xf32>
    %61 = arith.addf %43, %60 : vector<8x32xf32>
    %62 = vector.extract_strided_slice %21 {offsets = [0, 16], sizes = [8, 8], strides = [1, 1]} : vector<8x32xf32> to vector<8x8xf32>
    %63 = vector.extract_strided_slice %22 {offsets = [0, 16], sizes = [8, 8], strides = [1, 1]} : vector<8x32xf32> to vector<8x8xf32>
    %cst_36 = arith.constant dense<0.000000e+00> : vector<8x8xf32>
    %64 = tpu.matmul %62, %63, %cst_36 {dimension_numbers = #tpu.dot_dimension_numbers<[1], [1], [0], [0], [0, 0, 1, 0], [], []>} : vector<8x8xf32>, vector<8x8xf32>, vector<8x8xf32> -> vector<8x8xf32>
    %cst_37 = arith.constant dense<0xFF800000> : vector<8xf32>
    %65 = vector.multi_reduction <maximumf>, %64, %cst_37 [1] : vector<8x8xf32> to vector<8xf32>
    %66 = vector.shape_cast %65 : vector<8xf32> to vector<8x1xf32>
    %67 = vector.broadcast %66 : vector<8x1xf32> to vector<8x8xf32>
    %68 = arith.subf %64, %67 : vector<8x8xf32>
    %69 = math.exp %68 : vector<8x8xf32>
    %cst_38 = arith.constant dense<0.000000e+00> : vector<8xf32>
    %70 = vector.multi_reduction <add>, %69, %cst_38 [1] : vector<8x8xf32> to vector<8xf32>
    %71 = vector.shape_cast %70 : vector<8xf32> to vector<8x1xf32>
    %72 = tpu.reciprocal %71 {approx = true} : vector<8x1xf32> -> vector<8x1xf32>
    %73 = vector.broadcast %72 : vector<8x1xf32> to vector<8x8xf32>
    %74 = arith.mulf %69, %73 : vector<8x8xf32>
    %75 = vector.extract_strided_slice %23 {offsets = [0, 16], sizes = [8, 8], strides = [1, 1]} : vector<8x32xf32> to vector<8x8xf32>
    %cst_39 = arith.constant dense<0.000000e+00> : vector<8x8xf32>
    %76 = tpu.matmul %74, %75, %cst_39 {dimension_numbers = #tpu.dot_dimension_numbers<[1], [0], [0], [1], [0, 0, 1, 1], [], []>} : vector<8x8xf32>, vector<8x8xf32>, vector<8x8xf32> -> vector<8x8xf32>
    %77 = vector.extract_strided_slice %24 {offsets = [16, 0], sizes = [8, 32], strides = [1, 1]} : vector<32x32xf32> to vector<8x32xf32>
    %cst_40 = arith.constant dense<0.000000e+00> : vector<8x32xf32>
    %78 = tpu.matmul %76, %77, %cst_40 {dimension_numbers = #tpu.dot_dimension_numbers<[1], [0], [0], [1], [0, 0, 1, 1], [], []>} : vector<8x8xf32>, vector<8x32xf32>, vector<8x32xf32> -> vector<8x32xf32>
    %79 = arith.addf %61, %78 : vector<8x32xf32>
    %80 = vector.extract_strided_slice %21 {offsets = [0, 24], sizes = [8, 8], strides = [1, 1]} : vector<8x32xf32> to vector<8x8xf32>
    %81 = vector.extract_strided_slice %22 {offsets = [0, 24], sizes = [8, 8], strides = [1, 1]} : vector<8x32xf32> to vector<8x8xf32>
    %cst_41 = arith.constant dense<0.000000e+00> : vector<8x8xf32>
    %82 = tpu.matmul %80, %81, %cst_41 {dimension_numbers = #tpu.dot_dimension_numbers<[1], [1], [0], [0], [0, 0, 1, 0], [], []>} : vector<8x8xf32>, vector<8x8xf32>, vector<8x8xf32> -> vector<8x8xf32>
    %cst_42 = arith.constant dense<0xFF800000> : vector<8xf32>
    %83 = vector.multi_reduction <maximumf>, %82, %cst_42 [1] : vector<8x8xf32> to vector<8xf32>
    %84 = vector.shape_cast %83 : vector<8xf32> to vector<8x1xf32>
    %85 = vector.broadcast %84 : vector<8x1xf32> to vector<8x8xf32>
    %86 = arith.subf %82, %85 : vector<8x8xf32>
    %87 = math.exp %86 : vector<8x8xf32>
    %cst_43 = arith.constant dense<0.000000e+00> : vector<8xf32>
    %88 = vector.multi_reduction <add>, %87, %cst_43 [1] : vector<8x8xf32> to vector<8xf32>
    %89 = vector.shape_cast %88 : vector<8xf32> to vector<8x1xf32>
    %90 = tpu.reciprocal %89 {approx = true} : vector<8x1xf32> -> vector<8x1xf32>
    %91 = vector.broadcast %90 : vector<8x1xf32> to vector<8x8xf32>
    %92 = arith.mulf %87, %91 : vector<8x8xf32>
    %93 = vector.extract_strided_slice %23 {offsets = [0, 24], sizes = [8, 8], strides = [1, 1]} : vector<8x32xf32> to vector<8x8xf32>
    %cst_44 = arith.constant dense<0.000000e+00> : vector<8x8xf32>
    %94 = tpu.matmul %92, %93, %cst_44 {dimension_numbers = #tpu.dot_dimension_numbers<[1], [0], [0], [1], [0, 0, 1, 1], [], []>} : vector<8x8xf32>, vector<8x8xf32>, vector<8x8xf32> -> vector<8x8xf32>
    %95 = vector.extract_strided_slice %24 {offsets = [24, 0], sizes = [8, 32], strides = [1, 1]} : vector<32x32xf32> to vector<8x32xf32>
    %cst_45 = arith.constant dense<0.000000e+00> : vector<8x32xf32>
    %96 = tpu.matmul %94, %95, %cst_45 {dimension_numbers = #tpu.dot_dimension_numbers<[1], [0], [0], [1], [0, 0, 1, 1], [], []>} : vector<8x8xf32>, vector<8x32xf32>, vector<8x32xf32> -> vector<8x32xf32>
    %97 = arith.addf %79, %96 : vector<8x32xf32>
    %98 = arith.addf %3, %97 : vector<8x32xf32>
    %c0_46 = arith.constant 0 : index
    %c0_47 = arith.constant 0 : index
    %99 = vector.load %arg10[%c0_46, %c0_47] : memref<1x32xf32, #tpu.memory_space<vmem>>, vector<1x32xf32>
    %100 = vector.broadcast %99 : vector<1x32xf32> to vector<8x32xf32>
    %101 = arith.addf %98, %100 : vector<8x32xf32>
    %cst_48 = arith.constant dense<0.000000e+00> : vector<8xf32>
    %102 = vector.multi_reduction <add>, %101, %cst_48 [1] : vector<8x32xf32> to vector<8xf32>
    %103 = vector.shape_cast %102 : vector<8xf32> to vector<8x1xf32>
    %cst_49 = arith.constant 3.200000e+01 : f32
    %104 = vector.broadcast %cst_49 : f32 to vector<8x1xf32>
    %105 = arith.divf %103, %104 : vector<8x1xf32>
    %106 = vector.broadcast %105 : vector<8x1xf32> to vector<8x32xf32>
    %107 = arith.subf %101, %106 : vector<8x32xf32>
    %108 = arith.mulf %107, %107 : vector<8x32xf32>
    %cst_50 = arith.constant dense<0.000000e+00> : vector<8xf32>
    %109 = vector.multi_reduction <add>, %108, %cst_50 [1] : vector<8x32xf32> to vector<8xf32>
    %110 = vector.shape_cast %109 : vector<8xf32> to vector<8x1xf32>
    %cst_51 = arith.constant 3.200000e+01 : f32
    %111 = vector.broadcast %cst_51 : f32 to vector<8x1xf32>
    %112 = arith.divf %110, %111 : vector<8x1xf32>
    %cst_52 = arith.constant 9.99999974E-6 : f32
    %113 = vector.broadcast %cst_52 : f32 to vector<8x1xf32>
    %114 = arith.addf %112, %113 : vector<8x1xf32>
    %115 = math.rsqrt %114 : vector<8x1xf32>
    %116 = vector.broadcast %115 : vector<8x1xf32> to vector<8x32xf32>
    %117 = arith.mulf %107, %116 : vector<8x32xf32>
    %118 = vector.extract_strided_slice %0 {offsets = [0, 0], sizes = [1, 32], strides = [1, 1]} : vector<3x32xf32> to vector<1x32xf32>
    %119 = vector.broadcast %118 : vector<1x32xf32> to vector<8x32xf32>
    %120 = arith.mulf %117, %119 : vector<8x32xf32>
    %121 = vector.extract_strided_slice %1 {offsets = [0, 0], sizes = [1, 32], strides = [1, 1]} : vector<3x32xf32> to vector<1x32xf32>
    %122 = vector.broadcast %121 : vector<1x32xf32> to vector<8x32xf32>
    %123 = arith.addf %120, %122 : vector<8x32xf32>
    %c0_53 = arith.constant 0 : index
    %c0_54 = arith.constant 0 : index
    %124 = vector.load %arg11[%c0_53, %c0_54] : memref<96x64xf32, #tpu.memory_space<vmem>>, vector<96x64xf32>
    %125 = vector.extract_strided_slice %124 {offsets = [0, 0], sizes = [32, 64], strides = [1, 1]} : vector<96x64xf32> to vector<32x64xf32>
    %cst_55 = arith.constant dense<0.000000e+00> : vector<8x64xf32>
    %126 = tpu.matmul %123, %125, %cst_55 {dimension_numbers = #tpu.dot_dimension_numbers<[1], [0], [0], [1], [0, 0, 1, 1], [], []>} : vector<8x32xf32>, vector<32x64xf32>, vector<8x64xf32> -> vector<8x64xf32>
    %127 = vector.extract_strided_slice %124 {offsets = [32, 0], sizes = [32, 64], strides = [1, 1]} : vector<96x64xf32> to vector<32x64xf32>
    %cst_56 = arith.constant dense<0.000000e+00> : vector<8x64xf32>
    %128 = tpu.matmul %5, %127, %cst_56 {dimension_numbers = #tpu.dot_dimension_numbers<[1], [0], [0], [1], [0, 0, 1, 1], [], []>} : vector<8x32xf32>, vector<32x64xf32>, vector<8x64xf32> -> vector<8x64xf32>
    %129 = arith.addf %126, %128 : vector<8x64xf32>
    %130 = vector.extract_strided_slice %124 {offsets = [64, 0], sizes = [32, 64], strides = [1, 1]} : vector<96x64xf32> to vector<32x64xf32>
    %cst_57 = arith.constant dense<0.000000e+00> : vector<8x64xf32>
    %131 = tpu.matmul %7, %130, %cst_57 {dimension_numbers = #tpu.dot_dimension_numbers<[1], [0], [0], [1], [0, 0, 1, 1], [], []>} : vector<8x32xf32>, vector<32x64xf32>, vector<8x64xf32> -> vector<8x64xf32>
    %132 = arith.addf %129, %131 : vector<8x64xf32>
    %c0_58 = arith.constant 0 : index
    %c0_59 = arith.constant 0 : index
    %133 = vector.load %arg12[%c0_58, %c0_59] : memref<1x64xf32, #tpu.memory_space<vmem>>, vector<1x64xf32>
    %134 = vector.broadcast %133 : vector<1x64xf32> to vector<8x64xf32>
    %135 = arith.addf %132, %134 : vector<8x64xf32>
    %c0_60 = arith.constant 0 : index
    %c0_61 = arith.constant 0 : index
    %136 = vector.load %arg13[%c0_60, %c0_61] : memref<64x96xf32, #tpu.memory_space<vmem>>, vector<64x96xf32>
    %137 = vector.extract_strided_slice %136 {offsets = [0, 0], sizes = [32, 96], strides = [1, 1]} : vector<64x96xf32> to vector<32x96xf32>
    %cst_62 = arith.constant dense<0.000000e+00> : vector<16x96xf32>
    %138 = tpu.matmul %9, %137, %cst_62 {dimension_numbers = #tpu.dot_dimension_numbers<[1], [0], [0], [1], [0, 0, 1, 1], [], []>} : vector<16x32xf32>, vector<32x96xf32>, vector<16x96xf32> -> vector<16x96xf32>
    %139 = vector.extract_strided_slice %136 {offsets = [32, 0], sizes = [32, 96], strides = [1, 1]} : vector<64x96xf32> to vector<32x96xf32>
    %cst_63 = arith.constant dense<0.000000e+00> : vector<16x96xf32>
    %140 = tpu.matmul %11, %139, %cst_63 {dimension_numbers = #tpu.dot_dimension_numbers<[1], [0], [0], [1], [0, 0, 1, 1], [], []>} : vector<16x32xf32>, vector<32x96xf32>, vector<16x96xf32> -> vector<16x96xf32>
    %141 = arith.addf %138, %140 : vector<16x96xf32>
    %c0_64 = arith.constant 0 : index
    %c0_65 = arith.constant 0 : index
    %142 = vector.load %arg14[%c0_64, %c0_65] : memref<1x96xf32, #tpu.memory_space<vmem>>, vector<1x96xf32>
    %143 = vector.broadcast %142 : vector<1x96xf32> to vector<16x96xf32>
    %144 = arith.addf %141, %143 : vector<16x96xf32>
    %145 = vector.extract_strided_slice %135 {offsets = [0, 0], sizes = [8, 32], strides = [1, 1]} : vector<8x64xf32> to vector<8x32xf32>
    %146 = vector.extract_strided_slice %135 {offsets = [0, 32], sizes = [8, 32], strides = [1, 1]} : vector<8x64xf32> to vector<8x32xf32>
    %147 = vector.extract_strided_slice %144 {offsets = [0, 0], sizes = [16, 32], strides = [1, 1]} : vector<16x96xf32> to vector<16x32xf32>
    %148 = vector.extract_strided_slice %144 {offsets = [0, 32], sizes = [16, 32], strides = [1, 1]} : vector<16x96xf32> to vector<16x32xf32>
    %149 = vector.extract_strided_slice %144 {offsets = [0, 64], sizes = [16, 32], strides = [1, 1]} : vector<16x96xf32> to vector<16x32xf32>
    %150 = tpu.iota {dimensions = array<i32: 2>} : vector<8x16x24xi32>
    %c0_66 = arith.constant 0 : index
    %c0_67 = arith.constant 0 : index
    %c0_68 = arith.constant 0 : index
    %c0_69 = arith.constant 0 : index
    %151 = vector.load %arg6[%c0_66, %c0_67, %c0_68, %c0_69] : memref<1x3x8x16xi32, #tpu.memory_space<vmem>>, vector<1x1x8x16xi32>
    %152 = vector.shape_cast %151 : vector<1x1x8x16xi32> to vector<8x16xi32>
    %153 = vector.shape_cast %152 : vector<8x16xi32> to vector<8x16x1xi32>
    %154 = vector.broadcast %153 : vector<8x16x1xi32> to vector<8x16x24xi32>
    %155 = arith.cmpi eq, %154, %150 : vector<8x16x24xi32>
    %c0_70 = arith.constant 0 : index
    %c1 = arith.constant 1 : index
    %c0_71 = arith.constant 0 : index
    %c0_72 = arith.constant 0 : index
    %156 = vector.load %arg6[%c0_70, %c1, %c0_71, %c0_72] : memref<1x3x8x16xi32, #tpu.memory_space<vmem>>, vector<1x1x8x16xi32>
    %157 = vector.shape_cast %156 : vector<1x1x8x16xi32> to vector<8x16xi32>
    %158 = vector.shape_cast %157 : vector<8x16xi32> to vector<8x16x1xi32>
    %159 = vector.broadcast %158 : vector<8x16x1xi32> to vector<8x16x24xi32>
    %160 = arith.cmpi eq, %159, %150 : vector<8x16x24xi32>
    %161 = arith.ori %155, %160 : vector<8x16x24xi1>
    %c0_73 = arith.constant 0 : index
    %c2 = arith.constant 2 : index
    %c0_74 = arith.constant 0 : index
    %c0_75 = arith.constant 0 : index
    %162 = vector.load %arg6[%c0_73, %c2, %c0_74, %c0_75] : memref<1x3x8x16xi32, #tpu.memory_space<vmem>>, vector<1x1x8x16xi32>
    %163 = vector.shape_cast %162 : vector<1x1x8x16xi32> to vector<8x16xi32>
    %164 = vector.shape_cast %163 : vector<8x16xi32> to vector<8x16x1xi32>
    %165 = vector.broadcast %164 : vector<8x16x1xi32> to vector<8x16x24xi32>
    %166 = arith.cmpi eq, %165, %150 : vector<8x16x24xi32>
    %167 = arith.ori %161, %166 : vector<8x16x24xi1>
    %168 = arith.extui %167 : vector<8x16x24xi1> to vector<8x16x24xi32>
    %169 = arith.sitofp %168 : vector<8x16x24xi32> to vector<8x16x24xf32>
    %c0_76 = arith.constant 0 : index
    %c0_77 = arith.constant 0 : index
    %c0_78 = arith.constant 0 : index
    %170 = vector.load %arg17[%c0_76, %c0_77, %c0_78] : memref<4x8x24xf32, #tpu.memory_space<vmem>>, vector<4x8x24xf32>
    %c0_79 = arith.constant 0 : index
    %c0_80 = arith.constant 0 : index
    %c0_81 = arith.constant 0 : index
    %171 = vector.load %arg18[%c0_79, %c0_80, %c0_81] : memref<4x8x24xf32, #tpu.memory_space<vmem>>, vector<4x8x24xf32>
    %c0_82 = arith.constant 0 : index
    %c0_83 = arith.constant 0 : index
    %c0_84 = arith.constant 0 : index
    %172 = vector.load %arg19[%c0_82, %c0_83, %c0_84] : memref<4x8x24xf32, #tpu.memory_space<vmem>>, vector<4x8x24xf32>
    %c0_85 = arith.constant 0 : index
    %c0_86 = arith.constant 0 : index
    %173 = vector.load %arg15[%c0_85, %c0_86] : memref<32x32xf32, #tpu.memory_space<vmem>>, vector<32x32xf32>
    %cst_87 = arith.constant 0.000000e+00 : f32
    %174 = vector.broadcast %cst_87 : f32 to vector<8x32xf32>
    %175 = vector.extract_strided_slice %145 {offsets = [0, 0], sizes = [8, 8], strides = [1, 1]} : vector<8x32xf32> to vector<8x8xf32>
    %176 = vector.extract_strided_slice %146 {offsets = [0, 0], sizes = [8, 8], strides = [1, 1]} : vector<8x32xf32> to vector<8x8xf32>
    %177 = vector.extract_strided_slice %147 {offsets = [0, 0], sizes = [16, 8], strides = [1, 1]} : vector<16x32xf32> to vector<16x8xf32>
    %178 = vector.extract_strided_slice %149 {offsets = [0, 0], sizes = [16, 8], strides = [1, 1]} : vector<16x32xf32> to vector<16x8xf32>
    %179 = vector.extract_strided_slice %148 {offsets = [0, 0], sizes = [16, 8], strides = [1, 1]} : vector<16x32xf32> to vector<16x8xf32>
    %cst_88 = arith.constant dense<0.000000e+00> : vector<8x16xf32>
    %180 = tpu.matmul %175, %177, %cst_88 {dimension_numbers = #tpu.dot_dimension_numbers<[1], [1], [0], [0], [0, 0, 1, 0], [], []>} : vector<8x8xf32>, vector<16x8xf32>, vector<8x16xf32> -> vector<8x16xf32>
    %cst_89 = arith.constant dense<0.000000e+00> : vector<8x16xf32>
    %181 = tpu.matmul %176, %178, %cst_89 {dimension_numbers = #tpu.dot_dimension_numbers<[1], [1], [0], [0], [0, 0, 1, 0], [], []>} : vector<8x8xf32>, vector<16x8xf32>, vector<8x16xf32> -> vector<8x16xf32>
    %182 = arith.addf %180, %181 : vector<8x16xf32>
    %183 = vector.extract_strided_slice %170 {offsets = [0, 0, 0], sizes = [1, 8, 24], strides = [1, 1, 1]} : vector<4x8x24xf32> to vector<1x8x24xf32>
    %184 = vector.shape_cast %183 : vector<1x8x24xf32> to vector<8x24xf32>
    %cst_90 = arith.constant dense<0.000000e+00> : vector<8x24xf32>
    %185 = tpu.matmul %175, %184, %cst_90 {dimension_numbers = #tpu.dot_dimension_numbers<[1], [0], [0], [1], [0, 0, 1, 1], [], []>} : vector<8x8xf32>, vector<8x24xf32>, vector<8x24xf32> -> vector<8x24xf32>
    %186 = vector.extract_strided_slice %171 {offsets = [0, 0, 0], sizes = [1, 8, 24], strides = [1, 1, 1]} : vector<4x8x24xf32> to vector<1x8x24xf32>
    %187 = vector.shape_cast %186 : vector<1x8x24xf32> to vector<8x24xf32>
    %cst_91 = arith.constant dense<0.000000e+00> : vector<16x24xf32>
    %188 = tpu.matmul %177, %187, %cst_91 {dimension_numbers = #tpu.dot_dimension_numbers<[1], [0], [0], [1], [0, 0, 1, 1], [], []>} : vector<16x8xf32>, vector<8x24xf32>, vector<16x24xf32> -> vector<16x24xf32>
    %189 = vector.shape_cast %185 : vector<8x24xf32> to vector<8x1x24xf32>
    %190 = vector.broadcast %189 : vector<8x1x24xf32> to vector<8x16x24xf32>
    %191 = arith.mulf %190, %169 : vector<8x16x24xf32>
    %cst_92 = arith.constant dense<0.000000e+00> : vector<8x16xf32>
    %192 = vector.multi_reduction <add>, %191, %cst_92 [2] : vector<8x16x24xf32> to vector<8x16xf32>
    %193 = arith.addf %182, %192 : vector<8x16xf32>
    %194 = vector.shape_cast %188 : vector<16x24xf32> to vector<1x16x24xf32>
    %195 = vector.broadcast %194 : vector<1x16x24xf32> to vector<8x16x24xf32>
    %196 = arith.mulf %195, %169 : vector<8x16x24xf32>
    %cst_93 = arith.constant dense<0.000000e+00> : vector<8x16xf32>
    %197 = vector.multi_reduction <add>, %196, %cst_93 [2] : vector<8x16x24xf32> to vector<8x16xf32>
    %198 = arith.addf %193, %197 : vector<8x16xf32>
    %cst_94 = arith.constant dense<0xFF800000> : vector<8xf32>
    %199 = vector.multi_reduction <maximumf>, %198, %cst_94 [1] : vector<8x16xf32> to vector<8xf32>
    %200 = vector.shape_cast %199 : vector<8xf32> to vector<8x1xf32>
    %201 = vector.broadcast %200 : vector<8x1xf32> to vector<8x16xf32>
    %202 = arith.subf %198, %201 : vector<8x16xf32>
    %203 = math.exp %202 : vector<8x16xf32>
    %cst_95 = arith.constant dense<0.000000e+00> : vector<8xf32>
    %204 = vector.multi_reduction <add>, %203, %cst_95 [1] : vector<8x16xf32> to vector<8xf32>
    %205 = vector.shape_cast %204 : vector<8xf32> to vector<8x1xf32>
    %206 = tpu.reciprocal %205 {approx = true} : vector<8x1xf32> -> vector<8x1xf32>
    %207 = vector.broadcast %206 : vector<8x1xf32> to vector<8x16xf32>
    %208 = arith.mulf %203, %207 : vector<8x16xf32>
    %cst_96 = arith.constant dense<0.000000e+00> : vector<8x8xf32>
    %209 = tpu.matmul %208, %179, %cst_96 {dimension_numbers = #tpu.dot_dimension_numbers<[1], [0], [0], [1], [0, 0, 1, 1], [], []>} : vector<8x16xf32>, vector<16x8xf32>, vector<8x8xf32> -> vector<8x8xf32>
    %210 = vector.shape_cast %208 : vector<8x16xf32> to vector<8x16x1xf32>
    %211 = vector.broadcast %210 : vector<8x16x1xf32> to vector<8x16x24xf32>
    %212 = arith.mulf %211, %169 : vector<8x16x24xf32>
    %cst_97 = arith.constant dense<0.000000e+00> : vector<8x24xf32>
    %213 = vector.multi_reduction <add>, %212, %cst_97 [1] : vector<8x16x24xf32> to vector<8x24xf32>
    %214 = vector.extract_strided_slice %172 {offsets = [0, 0, 0], sizes = [1, 8, 24], strides = [1, 1, 1]} : vector<4x8x24xf32> to vector<1x8x24xf32>
    %215 = vector.shape_cast %214 : vector<1x8x24xf32> to vector<8x24xf32>
    %cst_98 = arith.constant dense<0.000000e+00> : vector<8x8xf32>
    %216 = tpu.matmul %213, %215, %cst_98 {dimension_numbers = #tpu.dot_dimension_numbers<[1], [1], [0], [0], [0, 0, 1, 0], [], []>} : vector<8x24xf32>, vector<8x24xf32>, vector<8x8xf32> -> vector<8x8xf32>
    %217 = arith.addf %209, %216 : vector<8x8xf32>
    %218 = vector.extract_strided_slice %173 {offsets = [0, 0], sizes = [8, 32], strides = [1, 1]} : vector<32x32xf32> to vector<8x32xf32>
    %cst_99 = arith.constant dense<0.000000e+00> : vector<8x32xf32>
    %219 = tpu.matmul %217, %218, %cst_99 {dimension_numbers = #tpu.dot_dimension_numbers<[1], [0], [0], [1], [0, 0, 1, 1], [], []>} : vector<8x8xf32>, vector<8x32xf32>, vector<8x32xf32> -> vector<8x32xf32>
    %220 = arith.addf %174, %219 : vector<8x32xf32>
    %221 = vector.extract_strided_slice %145 {offsets = [0, 8], sizes = [8, 8], strides = [1, 1]} : vector<8x32xf32> to vector<8x8xf32>
    %222 = vector.extract_strided_slice %146 {offsets = [0, 8], sizes = [8, 8], strides = [1, 1]} : vector<8x32xf32> to vector<8x8xf32>
    %223 = vector.extract_strided_slice %147 {offsets = [0, 8], sizes = [16, 8], strides = [1, 1]} : vector<16x32xf32> to vector<16x8xf32>
    %224 = vector.extract_strided_slice %149 {offsets = [0, 8], sizes = [16, 8], strides = [1, 1]} : vector<16x32xf32> to vector<16x8xf32>
    %225 = vector.extract_strided_slice %148 {offsets = [0, 8], sizes = [16, 8], strides = [1, 1]} : vector<16x32xf32> to vector<16x8xf32>
    %cst_100 = arith.constant dense<0.000000e+00> : vector<8x16xf32>
    %226 = tpu.matmul %221, %223, %cst_100 {dimension_numbers = #tpu.dot_dimension_numbers<[1], [1], [0], [0], [0, 0, 1, 0], [], []>} : vector<8x8xf32>, vector<16x8xf32>, vector<8x16xf32> -> vector<8x16xf32>
    %cst_101 = arith.constant dense<0.000000e+00> : vector<8x16xf32>
    %227 = tpu.matmul %222, %224, %cst_101 {dimension_numbers = #tpu.dot_dimension_numbers<[1], [1], [0], [0], [0, 0, 1, 0], [], []>} : vector<8x8xf32>, vector<16x8xf32>, vector<8x16xf32> -> vector<8x16xf32>
    %228 = arith.addf %226, %227 : vector<8x16xf32>
    %229 = vector.extract_strided_slice %170 {offsets = [1, 0, 0], sizes = [1, 8, 24], strides = [1, 1, 1]} : vector<4x8x24xf32> to vector<1x8x24xf32>
    %230 = vector.shape_cast %229 : vector<1x8x24xf32> to vector<8x24xf32>
    %cst_102 = arith.constant dense<0.000000e+00> : vector<8x24xf32>
    %231 = tpu.matmul %221, %230, %cst_102 {dimension_numbers = #tpu.dot_dimension_numbers<[1], [0], [0], [1], [0, 0, 1, 1], [], []>} : vector<8x8xf32>, vector<8x24xf32>, vector<8x24xf32> -> vector<8x24xf32>
    %232 = vector.extract_strided_slice %171 {offsets = [1, 0, 0], sizes = [1, 8, 24], strides = [1, 1, 1]} : vector<4x8x24xf32> to vector<1x8x24xf32>
    %233 = vector.shape_cast %232 : vector<1x8x24xf32> to vector<8x24xf32>
    %cst_103 = arith.constant dense<0.000000e+00> : vector<16x24xf32>
    %234 = tpu.matmul %223, %233, %cst_103 {dimension_numbers = #tpu.dot_dimension_numbers<[1], [0], [0], [1], [0, 0, 1, 1], [], []>} : vector<16x8xf32>, vector<8x24xf32>, vector<16x24xf32> -> vector<16x24xf32>
    %235 = vector.shape_cast %231 : vector<8x24xf32> to vector<8x1x24xf32>
    %236 = vector.broadcast %235 : vector<8x1x24xf32> to vector<8x16x24xf32>
    %237 = arith.mulf %236, %169 : vector<8x16x24xf32>
    %cst_104 = arith.constant dense<0.000000e+00> : vector<8x16xf32>
    %238 = vector.multi_reduction <add>, %237, %cst_104 [2] : vector<8x16x24xf32> to vector<8x16xf32>
    %239 = arith.addf %228, %238 : vector<8x16xf32>
    %240 = vector.shape_cast %234 : vector<16x24xf32> to vector<1x16x24xf32>
    %241 = vector.broadcast %240 : vector<1x16x24xf32> to vector<8x16x24xf32>
    %242 = arith.mulf %241, %169 : vector<8x16x24xf32>
    %cst_105 = arith.constant dense<0.000000e+00> : vector<8x16xf32>
    %243 = vector.multi_reduction <add>, %242, %cst_105 [2] : vector<8x16x24xf32> to vector<8x16xf32>
    %244 = arith.addf %239, %243 : vector<8x16xf32>
    %cst_106 = arith.constant dense<0xFF800000> : vector<8xf32>
    %245 = vector.multi_reduction <maximumf>, %244, %cst_106 [1] : vector<8x16xf32> to vector<8xf32>
    %246 = vector.shape_cast %245 : vector<8xf32> to vector<8x1xf32>
    %247 = vector.broadcast %246 : vector<8x1xf32> to vector<8x16xf32>
    %248 = arith.subf %244, %247 : vector<8x16xf32>
    %249 = math.exp %248 : vector<8x16xf32>
    %cst_107 = arith.constant dense<0.000000e+00> : vector<8xf32>
    %250 = vector.multi_reduction <add>, %249, %cst_107 [1] : vector<8x16xf32> to vector<8xf32>
    %251 = vector.shape_cast %250 : vector<8xf32> to vector<8x1xf32>
    %252 = tpu.reciprocal %251 {approx = true} : vector<8x1xf32> -> vector<8x1xf32>
    %253 = vector.broadcast %252 : vector<8x1xf32> to vector<8x16xf32>
    %254 = arith.mulf %249, %253 : vector<8x16xf32>
    %cst_108 = arith.constant dense<0.000000e+00> : vector<8x8xf32>
    %255 = tpu.matmul %254, %225, %cst_108 {dimension_numbers = #tpu.dot_dimension_numbers<[1], [0], [0], [1], [0, 0, 1, 1], [], []>} : vector<8x16xf32>, vector<16x8xf32>, vector<8x8xf32> -> vector<8x8xf32>
    %256 = vector.shape_cast %254 : vector<8x16xf32> to vector<8x16x1xf32>
    %257 = vector.broadcast %256 : vector<8x16x1xf32> to vector<8x16x24xf32>
    %258 = arith.mulf %257, %169 : vector<8x16x24xf32>
    %cst_109 = arith.constant dense<0.000000e+00> : vector<8x24xf32>
    %259 = vector.multi_reduction <add>, %258, %cst_109 [1] : vector<8x16x24xf32> to vector<8x24xf32>
    %260 = vector.extract_strided_slice %172 {offsets = [1, 0, 0], sizes = [1, 8, 24], strides = [1, 1, 1]} : vector<4x8x24xf32> to vector<1x8x24xf32>
    %261 = vector.shape_cast %260 : vector<1x8x24xf32> to vector<8x24xf32>
    %cst_110 = arith.constant dense<0.000000e+00> : vector<8x8xf32>
    %262 = tpu.matmul %259, %261, %cst_110 {dimension_numbers = #tpu.dot_dimension_numbers<[1], [1], [0], [0], [0, 0, 1, 0], [], []>} : vector<8x24xf32>, vector<8x24xf32>, vector<8x8xf32> -> vector<8x8xf32>
    %263 = arith.addf %255, %262 : vector<8x8xf32>
    %264 = vector.extract_strided_slice %173 {offsets = [8, 0], sizes = [8, 32], strides = [1, 1]} : vector<32x32xf32> to vector<8x32xf32>
    %cst_111 = arith.constant dense<0.000000e+00> : vector<8x32xf32>
    %265 = tpu.matmul %263, %264, %cst_111 {dimension_numbers = #tpu.dot_dimension_numbers<[1], [0], [0], [1], [0, 0, 1, 1], [], []>} : vector<8x8xf32>, vector<8x32xf32>, vector<8x32xf32> -> vector<8x32xf32>
    %266 = arith.addf %220, %265 : vector<8x32xf32>
    %267 = vector.extract_strided_slice %145 {offsets = [0, 16], sizes = [8, 8], strides = [1, 1]} : vector<8x32xf32> to vector<8x8xf32>
    %268 = vector.extract_strided_slice %146 {offsets = [0, 16], sizes = [8, 8], strides = [1, 1]} : vector<8x32xf32> to vector<8x8xf32>
    %269 = vector.extract_strided_slice %147 {offsets = [0, 16], sizes = [16, 8], strides = [1, 1]} : vector<16x32xf32> to vector<16x8xf32>
    %270 = vector.extract_strided_slice %149 {offsets = [0, 16], sizes = [16, 8], strides = [1, 1]} : vector<16x32xf32> to vector<16x8xf32>
    %271 = vector.extract_strided_slice %148 {offsets = [0, 16], sizes = [16, 8], strides = [1, 1]} : vector<16x32xf32> to vector<16x8xf32>
    %cst_112 = arith.constant dense<0.000000e+00> : vector<8x16xf32>
    %272 = tpu.matmul %267, %269, %cst_112 {dimension_numbers = #tpu.dot_dimension_numbers<[1], [1], [0], [0], [0, 0, 1, 0], [], []>} : vector<8x8xf32>, vector<16x8xf32>, vector<8x16xf32> -> vector<8x16xf32>
    %cst_113 = arith.constant dense<0.000000e+00> : vector<8x16xf32>
    %273 = tpu.matmul %268, %270, %cst_113 {dimension_numbers = #tpu.dot_dimension_numbers<[1], [1], [0], [0], [0, 0, 1, 0], [], []>} : vector<8x8xf32>, vector<16x8xf32>, vector<8x16xf32> -> vector<8x16xf32>
    %274 = arith.addf %272, %273 : vector<8x16xf32>
    %275 = vector.extract_strided_slice %170 {offsets = [2, 0, 0], sizes = [1, 8, 24], strides = [1, 1, 1]} : vector<4x8x24xf32> to vector<1x8x24xf32>
    %276 = vector.shape_cast %275 : vector<1x8x24xf32> to vector<8x24xf32>
    %cst_114 = arith.constant dense<0.000000e+00> : vector<8x24xf32>
    %277 = tpu.matmul %267, %276, %cst_114 {dimension_numbers = #tpu.dot_dimension_numbers<[1], [0], [0], [1], [0, 0, 1, 1], [], []>} : vector<8x8xf32>, vector<8x24xf32>, vector<8x24xf32> -> vector<8x24xf32>
    %278 = vector.extract_strided_slice %171 {offsets = [2, 0, 0], sizes = [1, 8, 24], strides = [1, 1, 1]} : vector<4x8x24xf32> to vector<1x8x24xf32>
    %279 = vector.shape_cast %278 : vector<1x8x24xf32> to vector<8x24xf32>
    %cst_115 = arith.constant dense<0.000000e+00> : vector<16x24xf32>
    %280 = tpu.matmul %269, %279, %cst_115 {dimension_numbers = #tpu.dot_dimension_numbers<[1], [0], [0], [1], [0, 0, 1, 1], [], []>} : vector<16x8xf32>, vector<8x24xf32>, vector<16x24xf32> -> vector<16x24xf32>
    %281 = vector.shape_cast %277 : vector<8x24xf32> to vector<8x1x24xf32>
    %282 = vector.broadcast %281 : vector<8x1x24xf32> to vector<8x16x24xf32>
    %283 = arith.mulf %282, %169 : vector<8x16x24xf32>
    %cst_116 = arith.constant dense<0.000000e+00> : vector<8x16xf32>
    %284 = vector.multi_reduction <add>, %283, %cst_116 [2] : vector<8x16x24xf32> to vector<8x16xf32>
    %285 = arith.addf %274, %284 : vector<8x16xf32>
    %286 = vector.shape_cast %280 : vector<16x24xf32> to vector<1x16x24xf32>
    %287 = vector.broadcast %286 : vector<1x16x24xf32> to vector<8x16x24xf32>
    %288 = arith.mulf %287, %169 : vector<8x16x24xf32>
    %cst_117 = arith.constant dense<0.000000e+00> : vector<8x16xf32>
    %289 = vector.multi_reduction <add>, %288, %cst_117 [2] : vector<8x16x24xf32> to vector<8x16xf32>
    %290 = arith.addf %285, %289 : vector<8x16xf32>
    %cst_118 = arith.constant dense<0xFF800000> : vector<8xf32>
    %291 = vector.multi_reduction <maximumf>, %290, %cst_118 [1] : vector<8x16xf32> to vector<8xf32>
    %292 = vector.shape_cast %291 : vector<8xf32> to vector<8x1xf32>
    %293 = vector.broadcast %292 : vector<8x1xf32> to vector<8x16xf32>
    %294 = arith.subf %290, %293 : vector<8x16xf32>
    %295 = math.exp %294 : vector<8x16xf32>
    %cst_119 = arith.constant dense<0.000000e+00> : vector<8xf32>
    %296 = vector.multi_reduction <add>, %295, %cst_119 [1] : vector<8x16xf32> to vector<8xf32>
    %297 = vector.shape_cast %296 : vector<8xf32> to vector<8x1xf32>
    %298 = tpu.reciprocal %297 {approx = true} : vector<8x1xf32> -> vector<8x1xf32>
    %299 = vector.broadcast %298 : vector<8x1xf32> to vector<8x16xf32>
    %300 = arith.mulf %295, %299 : vector<8x16xf32>
    %cst_120 = arith.constant dense<0.000000e+00> : vector<8x8xf32>
    %301 = tpu.matmul %300, %271, %cst_120 {dimension_numbers = #tpu.dot_dimension_numbers<[1], [0], [0], [1], [0, 0, 1, 1], [], []>} : vector<8x16xf32>, vector<16x8xf32>, vector<8x8xf32> -> vector<8x8xf32>
    %302 = vector.shape_cast %300 : vector<8x16xf32> to vector<8x16x1xf32>
    %303 = vector.broadcast %302 : vector<8x16x1xf32> to vector<8x16x24xf32>
    %304 = arith.mulf %303, %169 : vector<8x16x24xf32>
    %cst_121 = arith.constant dense<0.000000e+00> : vector<8x24xf32>
    %305 = vector.multi_reduction <add>, %304, %cst_121 [1] : vector<8x16x24xf32> to vector<8x24xf32>
    %306 = vector.extract_strided_slice %172 {offsets = [2, 0, 0], sizes = [1, 8, 24], strides = [1, 1, 1]} : vector<4x8x24xf32> to vector<1x8x24xf32>
    %307 = vector.shape_cast %306 : vector<1x8x24xf32> to vector<8x24xf32>
    %cst_122 = arith.constant dense<0.000000e+00> : vector<8x8xf32>
    %308 = tpu.matmul %305, %307, %cst_122 {dimension_numbers = #tpu.dot_dimension_numbers<[1], [1], [0], [0], [0, 0, 1, 0], [], []>} : vector<8x24xf32>, vector<8x24xf32>, vector<8x8xf32> -> vector<8x8xf32>
    %309 = arith.addf %301, %308 : vector<8x8xf32>
    %310 = vector.extract_strided_slice %173 {offsets = [16, 0], sizes = [8, 32], strides = [1, 1]} : vector<32x32xf32> to vector<8x32xf32>
    %cst_123 = arith.constant dense<0.000000e+00> : vector<8x32xf32>
    %311 = tpu.matmul %309, %310, %cst_123 {dimension_numbers = #tpu.dot_dimension_numbers<[1], [0], [0], [1], [0, 0, 1, 1], [], []>} : vector<8x8xf32>, vector<8x32xf32>, vector<8x32xf32> -> vector<8x32xf32>
    %312 = arith.addf %266, %311 : vector<8x32xf32>
    %313 = vector.extract_strided_slice %145 {offsets = [0, 24], sizes = [8, 8], strides = [1, 1]} : vector<8x32xf32> to vector<8x8xf32>
    %314 = vector.extract_strided_slice %146 {offsets = [0, 24], sizes = [8, 8], strides = [1, 1]} : vector<8x32xf32> to vector<8x8xf32>
    %315 = vector.extract_strided_slice %147 {offsets = [0, 24], sizes = [16, 8], strides = [1, 1]} : vector<16x32xf32> to vector<16x8xf32>
    %316 = vector.extract_strided_slice %149 {offsets = [0, 24], sizes = [16, 8], strides = [1, 1]} : vector<16x32xf32> to vector<16x8xf32>
    %317 = vector.extract_strided_slice %148 {offsets = [0, 24], sizes = [16, 8], strides = [1, 1]} : vector<16x32xf32> to vector<16x8xf32>
    %cst_124 = arith.constant dense<0.000000e+00> : vector<8x16xf32>
    %318 = tpu.matmul %313, %315, %cst_124 {dimension_numbers = #tpu.dot_dimension_numbers<[1], [1], [0], [0], [0, 0, 1, 0], [], []>} : vector<8x8xf32>, vector<16x8xf32>, vector<8x16xf32> -> vector<8x16xf32>
    %cst_125 = arith.constant dense<0.000000e+00> : vector<8x16xf32>
    %319 = tpu.matmul %314, %316, %cst_125 {dimension_numbers = #tpu.dot_dimension_numbers<[1], [1], [0], [0], [0, 0, 1, 0], [], []>} : vector<8x8xf32>, vector<16x8xf32>, vector<8x16xf32> -> vector<8x16xf32>
    %320 = arith.addf %318, %319 : vector<8x16xf32>
    %321 = vector.extract_strided_slice %170 {offsets = [3, 0, 0], sizes = [1, 8, 24], strides = [1, 1, 1]} : vector<4x8x24xf32> to vector<1x8x24xf32>
    %322 = vector.shape_cast %321 : vector<1x8x24xf32> to vector<8x24xf32>
    %cst_126 = arith.constant dense<0.000000e+00> : vector<8x24xf32>
    %323 = tpu.matmul %313, %322, %cst_126 {dimension_numbers = #tpu.dot_dimension_numbers<[1], [0], [0], [1], [0, 0, 1, 1], [], []>} : vector<8x8xf32>, vector<8x24xf32>, vector<8x24xf32> -> vector<8x24xf32>
    %324 = vector.extract_strided_slice %171 {offsets = [3, 0, 0], sizes = [1, 8, 24], strides = [1, 1, 1]} : vector<4x8x24xf32> to vector<1x8x24xf32>
    %325 = vector.shape_cast %324 : vector<1x8x24xf32> to vector<8x24xf32>
    %cst_127 = arith.constant dense<0.000000e+00> : vector<16x24xf32>
    %326 = tpu.matmul %315, %325, %cst_127 {dimension_numbers = #tpu.dot_dimension_numbers<[1], [0], [0], [1], [0, 0, 1, 1], [], []>} : vector<16x8xf32>, vector<8x24xf32>, vector<16x24xf32> -> vector<16x24xf32>
    %327 = vector.shape_cast %323 : vector<8x24xf32> to vector<8x1x24xf32>
    %328 = vector.broadcast %327 : vector<8x1x24xf32> to vector<8x16x24xf32>
    %329 = arith.mulf %328, %169 : vector<8x16x24xf32>
    %cst_128 = arith.constant dense<0.000000e+00> : vector<8x16xf32>
    %330 = vector.multi_reduction <add>, %329, %cst_128 [2] : vector<8x16x24xf32> to vector<8x16xf32>
    %331 = arith.addf %320, %330 : vector<8x16xf32>
    %332 = vector.shape_cast %326 : vector<16x24xf32> to vector<1x16x24xf32>
    %333 = vector.broadcast %332 : vector<1x16x24xf32> to vector<8x16x24xf32>
    %334 = arith.mulf %333, %169 : vector<8x16x24xf32>
    %cst_129 = arith.constant dense<0.000000e+00> : vector<8x16xf32>
    %335 = vector.multi_reduction <add>, %334, %cst_129 [2] : vector<8x16x24xf32> to vector<8x16xf32>
    %336 = arith.addf %331, %335 : vector<8x16xf32>
    %cst_130 = arith.constant dense<0xFF800000> : vector<8xf32>
    %337 = vector.multi_reduction <maximumf>, %336, %cst_130 [1] : vector<8x16xf32> to vector<8xf32>
    %338 = vector.shape_cast %337 : vector<8xf32> to vector<8x1xf32>
    %339 = vector.broadcast %338 : vector<8x1xf32> to vector<8x16xf32>
    %340 = arith.subf %336, %339 : vector<8x16xf32>
    %341 = math.exp %340 : vector<8x16xf32>
    %cst_131 = arith.constant dense<0.000000e+00> : vector<8xf32>
    %342 = vector.multi_reduction <add>, %341, %cst_131 [1] : vector<8x16xf32> to vector<8xf32>
    %343 = vector.shape_cast %342 : vector<8xf32> to vector<8x1xf32>
    %344 = tpu.reciprocal %343 {approx = true} : vector<8x1xf32> -> vector<8x1xf32>
    %345 = vector.broadcast %344 : vector<8x1xf32> to vector<8x16xf32>
    %346 = arith.mulf %341, %345 : vector<8x16xf32>
    %cst_132 = arith.constant dense<0.000000e+00> : vector<8x8xf32>
    %347 = tpu.matmul %346, %317, %cst_132 {dimension_numbers = #tpu.dot_dimension_numbers<[1], [0], [0], [1], [0, 0, 1, 1], [], []>} : vector<8x16xf32>, vector<16x8xf32>, vector<8x8xf32> -> vector<8x8xf32>
    %348 = vector.shape_cast %346 : vector<8x16xf32> to vector<8x16x1xf32>
    %349 = vector.broadcast %348 : vector<8x16x1xf32> to vector<8x16x24xf32>
    %350 = arith.mulf %349, %169 : vector<8x16x24xf32>
    %cst_133 = arith.constant dense<0.000000e+00> : vector<8x24xf32>
    %351 = vector.multi_reduction <add>, %350, %cst_133 [1] : vector<8x16x24xf32> to vector<8x24xf32>
    %352 = vector.extract_strided_slice %172 {offsets = [3, 0, 0], sizes = [1, 8, 24], strides = [1, 1, 1]} : vector<4x8x24xf32> to vector<1x8x24xf32>
    %353 = vector.shape_cast %352 : vector<1x8x24xf32> to vector<8x24xf32>
    %cst_134 = arith.constant dense<0.000000e+00> : vector<8x8xf32>
    %354 = tpu.matmul %351, %353, %cst_134 {dimension_numbers = #tpu.dot_dimension_numbers<[1], [1], [0], [0], [0, 0, 1, 0], [], []>} : vector<8x24xf32>, vector<8x24xf32>, vector<8x8xf32> -> vector<8x8xf32>
    %355 = arith.addf %347, %354 : vector<8x8xf32>
    %356 = vector.extract_strided_slice %173 {offsets = [24, 0], sizes = [8, 32], strides = [1, 1]} : vector<32x32xf32> to vector<8x32xf32>
    %cst_135 = arith.constant dense<0.000000e+00> : vector<8x32xf32>
    %357 = tpu.matmul %355, %356, %cst_135 {dimension_numbers = #tpu.dot_dimension_numbers<[1], [0], [0], [1], [0, 0, 1, 1], [], []>} : vector<8x8xf32>, vector<8x32xf32>, vector<8x32xf32> -> vector<8x32xf32>
    %358 = arith.addf %312, %357 : vector<8x32xf32>
    %359 = arith.addf %123, %358 : vector<8x32xf32>
    %c0_136 = arith.constant 0 : index
    %c0_137 = arith.constant 0 : index
    %360 = vector.load %arg16[%c0_136, %c0_137] : memref<1x32xf32, #tpu.memory_space<vmem>>, vector<1x32xf32>
    %361 = vector.broadcast %360 : vector<1x32xf32> to vector<8x32xf32>
    %362 = arith.addf %359, %361 : vector<8x32xf32>
    %cst_138 = arith.constant dense<0.000000e+00> : vector<8xf32>
    %363 = vector.multi_reduction <add>, %362, %cst_138 [1] : vector<8x32xf32> to vector<8xf32>
    %364 = vector.shape_cast %363 : vector<8xf32> to vector<8x1xf32>
    %cst_139 = arith.constant 3.200000e+01 : f32
    %365 = vector.broadcast %cst_139 : f32 to vector<8x1xf32>
    %366 = arith.divf %364, %365 : vector<8x1xf32>
    %367 = vector.broadcast %366 : vector<8x1xf32> to vector<8x32xf32>
    %368 = arith.subf %362, %367 : vector<8x32xf32>
    %369 = arith.mulf %368, %368 : vector<8x32xf32>
    %cst_140 = arith.constant dense<0.000000e+00> : vector<8xf32>
    %370 = vector.multi_reduction <add>, %369, %cst_140 [1] : vector<8x32xf32> to vector<8xf32>
    %371 = vector.shape_cast %370 : vector<8xf32> to vector<8x1xf32>
    %cst_141 = arith.constant 3.200000e+01 : f32
    %372 = vector.broadcast %cst_141 : f32 to vector<8x1xf32>
    %373 = arith.divf %371, %372 : vector<8x1xf32>
    %cst_142 = arith.constant 9.99999974E-6 : f32
    %374 = vector.broadcast %cst_142 : f32 to vector<8x1xf32>
    %375 = arith.addf %373, %374 : vector<8x1xf32>
    %376 = math.rsqrt %375 : vector<8x1xf32>
    %377 = vector.broadcast %376 : vector<8x1xf32> to vector<8x32xf32>
    %378 = arith.mulf %368, %377 : vector<8x32xf32>
    %379 = vector.extract_strided_slice %0 {offsets = [1, 0], sizes = [1, 32], strides = [1, 1]} : vector<3x32xf32> to vector<1x32xf32>
    %380 = vector.broadcast %379 : vector<1x32xf32> to vector<8x32xf32>
    %381 = arith.mulf %378, %380 : vector<8x32xf32>
    %382 = vector.extract_strided_slice %1 {offsets = [1, 0], sizes = [1, 32], strides = [1, 1]} : vector<3x32xf32> to vector<1x32xf32>
    %383 = vector.broadcast %382 : vector<1x32xf32> to vector<8x32xf32>
    %384 = arith.addf %381, %383 : vector<8x32xf32>
    %c0_143 = arith.constant 0 : index
    %c0_144 = arith.constant 0 : index
    %385 = vector.load %arg20[%c0_143, %c0_144] : memref<32x64xf32, #tpu.memory_space<vmem>>, vector<32x64xf32>
    %cst_145 = arith.constant dense<0.000000e+00> : vector<8x64xf32>
    %386 = tpu.matmul %384, %385, %cst_145 {dimension_numbers = #tpu.dot_dimension_numbers<[1], [0], [0], [1], [0, 0, 1, 1], [], []>} : vector<8x32xf32>, vector<32x64xf32>, vector<8x64xf32> -> vector<8x64xf32>
    %c0_146 = arith.constant 0 : index
    %c0_147 = arith.constant 0 : index
    %387 = vector.load %arg21[%c0_146, %c0_147] : memref<1x64xf32, #tpu.memory_space<vmem>>, vector<1x64xf32>
    %388 = vector.broadcast %387 : vector<1x64xf32> to vector<8x64xf32>
    %389 = arith.addf %386, %388 : vector<8x64xf32>
    %cst_148 = arith.constant 0.000000e+00 : f32
    %390 = vector.broadcast %cst_148 : f32 to vector<8x64xf32>
    %391 = arith.maximumf %389, %390 : vector<8x64xf32>
    %c0_149 = arith.constant 0 : index
    %c0_150 = arith.constant 0 : index
    %392 = vector.load %arg22[%c0_149, %c0_150] : memref<64x32xf32, #tpu.memory_space<vmem>>, vector<64x32xf32>
    %cst_151 = arith.constant dense<0.000000e+00> : vector<8x32xf32>
    %393 = tpu.matmul %391, %392, %cst_151 {dimension_numbers = #tpu.dot_dimension_numbers<[1], [0], [0], [1], [0, 0, 1, 1], [], []>} : vector<8x64xf32>, vector<64x32xf32>, vector<8x32xf32> -> vector<8x32xf32>
    %394 = arith.addf %384, %393 : vector<8x32xf32>
    %c0_152 = arith.constant 0 : index
    %c0_153 = arith.constant 0 : index
    %395 = vector.load %arg23[%c0_152, %c0_153] : memref<1x32xf32, #tpu.memory_space<vmem>>, vector<1x32xf32>
    %396 = vector.broadcast %395 : vector<1x32xf32> to vector<8x32xf32>
    %397 = arith.addf %394, %396 : vector<8x32xf32>
    %cst_154 = arith.constant dense<0.000000e+00> : vector<8xf32>
    %398 = vector.multi_reduction <add>, %397, %cst_154 [1] : vector<8x32xf32> to vector<8xf32>
    %399 = vector.shape_cast %398 : vector<8xf32> to vector<8x1xf32>
    %cst_155 = arith.constant 3.200000e+01 : f32
    %400 = vector.broadcast %cst_155 : f32 to vector<8x1xf32>
    %401 = arith.divf %399, %400 : vector<8x1xf32>
    %402 = vector.broadcast %401 : vector<8x1xf32> to vector<8x32xf32>
    %403 = arith.subf %397, %402 : vector<8x32xf32>
    %404 = arith.mulf %403, %403 : vector<8x32xf32>
    %cst_156 = arith.constant dense<0.000000e+00> : vector<8xf32>
    %405 = vector.multi_reduction <add>, %404, %cst_156 [1] : vector<8x32xf32> to vector<8xf32>
    %406 = vector.shape_cast %405 : vector<8xf32> to vector<8x1xf32>
    %cst_157 = arith.constant 3.200000e+01 : f32
    %407 = vector.broadcast %cst_157 : f32 to vector<8x1xf32>
    %408 = arith.divf %406, %407 : vector<8x1xf32>
    %cst_158 = arith.constant 9.99999974E-6 : f32
    %409 = vector.broadcast %cst_158 : f32 to vector<8x1xf32>
    %410 = arith.addf %408, %409 : vector<8x1xf32>
    %411 = math.rsqrt %410 : vector<8x1xf32>
    %412 = vector.broadcast %411 : vector<8x1xf32> to vector<8x32xf32>
    %413 = arith.mulf %403, %412 : vector<8x32xf32>
    %414 = vector.extract_strided_slice %0 {offsets = [2, 0], sizes = [1, 32], strides = [1, 1]} : vector<3x32xf32> to vector<1x32xf32>
    %415 = vector.broadcast %414 : vector<1x32xf32> to vector<8x32xf32>
    %416 = arith.mulf %413, %415 : vector<8x32xf32>
    %417 = vector.extract_strided_slice %1 {offsets = [2, 0], sizes = [1, 32], strides = [1, 1]} : vector<3x32xf32> to vector<1x32xf32>
    %418 = vector.broadcast %417 : vector<1x32xf32> to vector<8x32xf32>
    %419 = arith.addf %416, %418 : vector<8x32xf32>
    %c0_159 = arith.constant 0 : index
    %c0_160 = arith.constant 0 : index
    %c0_161 = arith.constant 0 : index
    %420 = vector.load %arg26[%c0_159, %c0_160, %c0_161] : memref<1x8x32xf32, #tpu.memory_space<vmem>>, vector<1x8x32xf32>
    %421 = vector.shape_cast %420 : vector<1x8x32xf32> to vector<8x32xf32>
    %422 = vector.shape_cast %419 : vector<8x32xf32> to vector<1x8x32xf32>
    tpu.vector_store %arg26[%c0_159, %c0_160, %c0_161], %422 {strides = array<i32>} : memref<1x8x32xf32, #tpu.memory_space<vmem>>, vector<1x8x32xf32>,
    return
  }
  func.func @transform_0(%arg0: i32) -> (i32, i32, i32) {
    %c0_i32 = arith.constant 0 : i32
    %c0_i32_0 = arith.constant 0 : i32
    %c0_i32_1 = arith.constant 0 : i32
    return %arg0, %c0_i32, %c0_i32_0 : i32, i32, i32
  }
  func.func @transform_1(%arg0: i32) -> (i32, i32, i32) {
    %c0_i32 = arith.constant 0 : i32
    %c0_i32_0 = arith.constant 0 : i32
    %c0_i32_1 = arith.constant 0 : i32
    return %arg0, %c0_i32, %c0_i32_0 : i32, i32, i32
  }
  func.func @transform_2(%arg0: i32) -> (i32, i32, i32) {
    %c0_i32 = arith.constant 0 : i32
    %c0_i32_0 = arith.constant 0 : i32
    %c0_i32_1 = arith.constant 0 : i32
    return %arg0, %c0_i32, %c0_i32_0 : i32, i32, i32
  }
  func.func @transform_3(%arg0: i32) -> (i32, i32, i32) {
    %c0_i32 = arith.constant 0 : i32
    %c0_i32_0 = arith.constant 0 : i32
    %c0_i32_1 = arith.constant 0 : i32
    return %arg0, %c0_i32, %c0_i32_0 : i32, i32, i32
  }
  func.func @transform_4(%arg0: i32) -> (i32, i32, i32) {
    %c0_i32 = arith.constant 0 : i32
    %c0_i32_0 = arith.constant 0 : i32
    %c0_i32_1 = arith.constant 0 : i32
    return %arg0, %c0_i32, %c0_i32_0 : i32, i32, i32
  }
  func.func @transform_5(%arg0: i32) -> (i32, i32, i32, i32) {
    %c0_i32 = arith.constant 0 : i32
    %c0_i32_0 = arith.constant 0 : i32
    %c0_i32_1 = arith.constant 0 : i32
    %c0_i32_2 = arith.constant 0 : i32
    return %arg0, %c0_i32, %c0_i32_0, %c0_i32_1 : i32, i32, i32, i32
  }
  func.func @transform_6(%arg0: i32) -> (i32, i32) {
    %c0_i32 = arith.constant 0 : i32
    %c0_i32_0 = arith.constant 0 : i32
    %c0_i32_1 = arith.constant 0 : i32
    return %c0_i32, %c0_i32_0 : i32, i32
  }
  func.func @transform_7(%arg0: i32) -> (i32, i32) {
    %c0_i32 = arith.constant 0 : i32
    %c0_i32_0 = arith.constant 0 : i32
    %c0_i32_1 = arith.constant 0 : i32
    return %c0_i32, %c0_i32_0 : i32, i32
  }
  func.func @transform_8(%arg0: i32) -> (i32, i32) {
    %c0_i32 = arith.constant 0 : i32
    %c0_i32_0 = arith.constant 0 : i32
    %c0_i32_1 = arith.constant 0 : i32
    return %c0_i32, %c0_i32_0 : i32, i32
  }
  func.func @transform_9(%arg0: i32) -> (i32, i32) {
    %c0_i32 = arith.constant 0 : i32
    %c0_i32_0 = arith.constant 0 : i32
    %c0_i32_1 = arith.constant 0 : i32
    return %c0_i32, %c0_i32_0 : i32, i32
  }
  func.func @transform_10(%arg0: i32) -> (i32, i32) {
    %c0_i32 = arith.constant 0 : i32
    %c0_i32_0 = arith.constant 0 : i32
    %c0_i32_1 = arith.constant 0 : i32
    return %c0_i32, %c0_i32_0 : i32, i32
  }
  func.func @transform_11(%arg0: i32) -> (i32, i32) {
    %c0_i32 = arith.constant 0 : i32
    %c0_i32_0 = arith.constant 0 : i32
    %c0_i32_1 = arith.constant 0 : i32
    return %c0_i32, %c0_i32_0 : i32, i32
  }
  func.func @transform_12(%arg0: i32) -> (i32, i32) {
    %c0_i32 = arith.constant 0 : i32
    %c0_i32_0 = arith.constant 0 : i32
    %c0_i32_1 = arith.constant 0 : i32
    return %c0_i32, %c0_i32_0 : i32, i32
  }
  func.func @transform_13(%arg0: i32) -> (i32, i32) {
    %c0_i32 = arith.constant 0 : i32
    %c0_i32_0 = arith.constant 0 : i32
    %c0_i32_1 = arith.constant 0 : i32
    return %c0_i32, %c0_i32_0 : i32, i32
  }
  func.func @transform_14(%arg0: i32) -> (i32, i32) {
    %c0_i32 = arith.constant 0 : i32
    %c0_i32_0 = arith.constant 0 : i32
    %c0_i32_1 = arith.constant 0 : i32
    return %c0_i32, %c0_i32_0 : i32, i32
  }
  func.func @transform_15(%arg0: i32) -> (i32, i32) {
    %c0_i32 = arith.constant 0 : i32
    %c0_i32_0 = arith.constant 0 : i32
    %c0_i32_1 = arith.constant 0 : i32
    return %c0_i32, %c0_i32_0 : i32, i32
  }
  func.func @transform_16(%arg0: i32) -> (i32, i32, i32) {
    %c0_i32 = arith.constant 0 : i32
    %c0_i32_0 = arith.constant 0 : i32
    %c0_i32_1 = arith.constant 0 : i32
    %c0_i32_2 = arith.constant 0 : i32
    return %c0_i32, %c0_i32_0, %c0_i32_1 : i32, i32, i32
  }
  func.func @transform_17(%arg0: i32) -> (i32, i32, i32) {
    %c0_i32 = arith.constant 0 : i32
    %c0_i32_0 = arith.constant 0 : i32
    %c0_i32_1 = arith.constant 0 : i32
    %c0_i32_2 = arith.constant 0 : i32
    return %c0_i32, %c0_i32_0, %c0_i32_1 : i32, i32, i32
  }
  func.func @transform_18(%arg0: i32) -> (i32, i32, i32) {
    %c0_i32 = arith.constant 0 : i32
    %c0_i32_0 = arith.constant 0 : i32
    %c0_i32_1 = arith.constant 0 : i32
    %c0_i32_2 = arith.constant 0 : i32
    return %c0_i32, %c0_i32_0, %c0_i32_1 : i32, i32, i32
  }
  func.func @transform_19(%arg0: i32) -> (i32, i32) {
    %c0_i32 = arith.constant 0 : i32
    %c0_i32_0 = arith.constant 0 : i32
    %c0_i32_1 = arith.constant 0 : i32
    return %c0_i32, %c0_i32_0 : i32, i32
  }
  func.func @transform_20(%arg0: i32) -> (i32, i32) {
    %c0_i32 = arith.constant 0 : i32
    %c0_i32_0 = arith.constant 0 : i32
    %c0_i32_1 = arith.constant 0 : i32
    return %c0_i32, %c0_i32_0 : i32, i32
  }
  func.func @transform_21(%arg0: i32) -> (i32, i32) {
    %c0_i32 = arith.constant 0 : i32
    %c0_i32_0 = arith.constant 0 : i32
    %c0_i32_1 = arith.constant 0 : i32
    return %c0_i32, %c0_i32_0 : i32, i32
  }
  func.func @transform_22(%arg0: i32) -> (i32, i32) {
    %c0_i32 = arith.constant 0 : i32
    %c0_i32_0 = arith.constant 0 : i32
    %c0_i32_1 = arith.constant 0 : i32
    return %c0_i32, %c0_i32_0 : i32, i32
  }
  func.func @transform_23(%arg0: i32) -> (i32, i32) {
    %c0_i32 = arith.constant 0 : i32
    %c0_i32_0 = arith.constant 0 : i32
    %c0_i32_1 = arith.constant 0 : i32
    return %c0_i32, %c0_i32_0 : i32, i32
  }
  func.func @transform_24(%arg0: i32) -> (i32, i32) {
    %c0_i32 = arith.constant 0 : i32
    %c0_i32_0 = arith.constant 0 : i32
    %c0_i32_1 = arith.constant 0 : i32
    return %c0_i32, %c0_i32_0 : i32, i32
  }
  func.func @transform_25(%arg0: i32) -> (i32, i32, i32) {
    %c0_i32 = arith.constant 0 : i32
    %c0_i32_0 = arith.constant 0 : i32
    %c0_i32_1 = arith.constant 0 : i32
    return %arg0, %c0_i32, %c0_i32_0 : i32, i32, i32
  }
}

</mosaic_0001>

<llo_original>
// kernel: decoder_layer_forward.1
$region0: #{decoder_layer_forward.1}
  #allocation0 [shape = 'u32[]', space=smem, size = 0x4, offset = 0x4, fixed_abs, tag = 'smem constant byte address 0x4 - core index']
  #allocation1 [shape = 'u32[144,128]{1,0:T(1,128)}', space=vmem, size = 0x12000, scoped, tag = 'internal scratch']
  %s0 = inlined_call_operand.vmem [shape: f32[2,8,32], index: 0, kind: input, shape index: {}]
  %s1 = inlined_call_operand.vmem [shape: f32[2,8,32], index: 1, kind: input, shape index: {}]
  %s2 = inlined_call_operand.vmem [shape: f32[2,8,32], index: 2, kind: input, shape index: {}]
  %s3 = inlined_call_operand.vmem [shape: f32[2,16,32], index: 3, kind: input, shape index: {}]
  %s4 = inlined_call_operand.vmem [shape: f32[2,16,32], index: 4, kind: input, shape index: {}]
  %s5 = inlined_call_operand.vmem [shape: s32[2,3,8,16], index: 5, kind: input, shape index: {}]
  %s6 = inlined_call_operand.vmem [shape: f32[64,96], index: 6, kind: input, shape index: {}]
  %s7 = inlined_call_operand.vmem [shape: f32[1,96], index: 7, kind: input, shape index: {}]
  %s8 = inlined_call_operand.vmem [shape: f32[32,32], index: 8, kind: input, shape index: {}]
  %s9 = inlined_call_operand.vmem [shape: f32[1,32], index: 9, kind: input, shape index: {}]
  %s10 = inlined_call_operand.vmem [shape: f32[96,64], index: 10, kind: input, shape index: {}]
  %s11 = inlined_call_operand.vmem [shape: f32[1,64], index: 11, kind: input, shape index: {}]
  %s12 = inlined_call_operand.vmem [shape: f32[64,96], index: 12, kind: input, shape index: {}]
  %s13 = inlined_call_operand.vmem [shape: f32[1,96], index: 13, kind: input, shape index: {}]
  %s14 = inlined_call_operand.vmem [shape: f32[32,32], index: 14, kind: input, shape index: {}]
  %s15 = inlined_call_operand.vmem [shape: f32[1,32], index: 15, kind: input, shape index: {}]
  %s16 = inlined_call_operand.vmem [shape: f32[4,8,24], index: 16, kind: input, shape index: {}]
  %s17 = inlined_call_operand.vmem [shape: f32[4,8,24], index: 17, kind: input, shape index: {}]
  %s18 = inlined_call_operand.vmem [shape: f32[4,8,24], index: 18, kind: input, shape index: {}]
  %s19 = inlined_call_operand.vmem [shape: f32[32,64], index: 19, kind: input, shape index: {}]
  %s20 = inlined_call_operand.vmem [shape: f32[1,64], index: 20, kind: input, shape index: {}]
  %s21 = inlined_call_operand.vmem [shape: f32[64,32], index: 21, kind: input, shape index: {}]
  %s22 = inlined_call_operand.vmem [shape: f32[1,32], index: 22, kind: input, shape index: {}]
  %s23 = inlined_call_operand.vmem [shape: f32[3,32], index: 23, kind: input, shape index: {}]
  %s24 = inlined_call_operand.vmem [shape: f32[3,32], index: 24, kind: input, shape index: {}]
  %s25 = inlined_call_operand.vmem [shape: f32[2,8,32], index: 25, kind: output, shape index: {}]
  %s26 = sld [smem:[#allocation0]]
  $region133: #{decoder_layer_forward.1} parent=0
    _
  %s28 = ssub.s32 1, %s26
  %s29 = scalar_select 0, %s28, %s26
  loop: start=0, step=1, limit=4
  $region2: #{decoder_layer_forward.1} parent=0 // loop_pre_header
    _
  $region3: #{decoder_layer_forward.1} parent=0 // loop_header
    %s31 = sphi 0, %s35
    %p32 = scmp.ge.s32.totalorder %s31, 4
    %s41 = sphi 0, %s43
    %s44 = sphi 0, %s41
    %s45 = sphi 0, %s44
    %s61 = sphi 0, %s45
    %s67 = sphi 0, %s69
    %s70 = sphi 0, %s67
    %s71 = sphi 0, %s70
    %s87 = sphi 0, %s71
    %s93 = sphi 0, %s95
    %s96 = sphi 0, %s93
    %s97 = sphi 0, %s96
    %s113 = sphi 0, %s97
    %s119 = sphi 0, %s121
    %s122 = sphi 0, %s119
    %s123 = sphi 0, %s122
    %s139 = sphi 0, %s123
    %s145 = sphi 0, %s147
    %s148 = sphi 0, %s145
    %s149 = sphi 0, %s148
    %s165 = sphi 0, %s149
    %s171 = sphi 0, %s173
    %s174 = sphi 0, %s171
    %s175 = sphi 0, %s174
    %s191 = sphi 0, %s175
    %s195 = sphi 0, %s195
    %s197 = sphi 0, %s195
    %s198 = sphi 0, %s197
    %s212 = sphi 0, %s198
    %s216 = sphi 0, %s216
    %s218 = sphi 0, %s216
    %s219 = sphi 0, %s218
    %s233 = sphi 0, %s219
    %s237 = sphi 0, %s237
    %s239 = sphi 0, %s237
    %s240 = sphi 0, %s239
    %s254 = sphi 0, %s240
    %s258 = sphi 0, %s258
    %s260 = sphi 0, %s258
    %s261 = sphi 0, %s260
    %s275 = sphi 0, %s261
    %s279 = sphi 0, %s279
    %s281 = sphi 0, %s279
    %s282 = sphi 0, %s281
    %s296 = sphi 0, %s282
    %s300 = sphi 0, %s300
    %s302 = sphi 0, %s300
    %s303 = sphi 0, %s302
    %s317 = sphi 0, %s303
    %s321 = sphi 0, %s321
    %s323 = sphi 0, %s321
    %s324 = sphi 0, %s323
    %s338 = sphi 0, %s324
    %s342 = sphi 0, %s342
    %s344 = sphi 0, %s342
    %s345 = sphi 0, %s344
    %s359 = sphi 0, %s345
    %s363 = sphi 0, %s363
    %s365 = sphi 0, %s363
    %s366 = sphi 0, %s365
    %s380 = sphi 0, %s366
    %s384 = sphi 0, %s384
    %s386 = sphi 0, %s384
    %s387 = sphi 0, %s386
    %s401 = sphi 0, %s387
    %s405 = sphi 0, %s405
    %s407 = sphi 0, %s405
    %s408 = sphi 0, %s407
    %s422 = sphi 0, %s408
    %s426 = sphi 0, %s426
    %s428 = sphi 0, %s426
    %s429 = sphi 0, %s428
    %s443 = sphi 0, %s429
    %s447 = sphi 0, %s447
    %s449 = sphi 0, %s447
    %s450 = sphi 0, %s449
    %s464 = sphi 0, %s450
    %s468 = sphi 0, %s468
    %s470 = sphi 0, %s468
    %s471 = sphi 0, %s470
    %s485 = sphi 0, %s471
    %s489 = sphi 0, %s489
    %s491 = sphi 0, %s489
    %s492 = sphi 0, %s491
    %s506 = sphi 0, %s492
    %s510 = sphi 0, %s510
    %s512 = sphi 0, %s510
    %s513 = sphi 0, %s512
    %s527 = sphi 0, %s513
    %s531 = sphi 0, %s531
    %s533 = sphi 0, %s531
    %s534 = sphi 0, %s533
    %s548 = sphi 0, %s534
    %s552 = sphi 0, %s552
    %s554 = sphi 0, %s552
    %s555 = sphi 0, %s554
    %s569 = sphi 0, %s555
    %s573 = sphi 0, %s573
    %s575 = sphi 0, %s573
    %s576 = sphi 0, %s575
    %s590 = sphi 0, %s576
    %s596 = sphi 0, %s598
    %s599 = sphi 0, %s596
    %s600 = sphi 0, %s599
    %s616 = sphi 0, %s600
  $region4: #{decoder_layer_forward.1} parent=0 // loop_header_branch
    %34 = sbr.rel (%p32) target = $region8
  $region5: #{decoder_layer_forward.1} parent=0 // loop_body
    %s36 = ssub.s32 %s31, 1
    %s37 = ssub.s32 %s31, 2
    %s38 = sadd.s32 %s31, 1
    %s39 = ssub.s32 %s31, %s38
    %p40 = scmp.eq.s32.totalorder %s39, 0
    %s42 = sadd.s32 %s41, 1
    %s43 = scalar_select %p40, %s41, %s42
    %p46 = pneg %p40
    %p47 = scmp.eq.s32.totalorder %s31, 1
    %p48 = por %p46, %p47
    %p49 = scmp.ne.s32.totalorder %s41, %s44
    %p50 = scmp.eq.s32.totalorder %s31, 0
    %p51 = por %p49, %p50
    %p52 = scmp.ne.s32.totalorder %s41, %s44
    %p53 = scmp.eq.s32.totalorder %s36, 1
    %p54 = por %p52, %p53
    %p55 = scmp.ne.s32.totalorder %s44, %s45
    %p56 = scmp.eq.s32.totalorder %s36, 0
    %p57 = por %p55, %p56
    %p58 = scmp.ne.s32.totalorder %s44, %s45
    %p59 = scmp.eq.s32.totalorder %s37, 1
    %p60 = por %p58, %p59
    %p62 = scmp.ne.s32.totalorder %s45, %s61
    %p63 = scmp.eq.s32.totalorder %s37, 0
    %p64 = por %p62, %p63
    %s65 = ssub.s32 %s31, %s38
    %p66 = scmp.eq.s32.totalorder %s65, 0
    %s68 = sadd.s32 %s67, 1
    %s69 = scalar_select %p66, %s67, %s68
    %p72 = pneg %p66
    %p73 = scmp.eq.s32.totalorder %s31, 1
    %p74 = por %p72, %p73
    %p75 = scmp.ne.s32.totalorder %s67, %s70
    %p76 = scmp.eq.s32.totalorder %s31, 0
    %p77 = por %p75, %p76
    %p78 = scmp.ne.s32.totalorder %s67, %s70
    %p79 = scmp.eq.s32.totalorder %s36, 1
    %p80 = por %p78, %p79
    %p81 = scmp.ne.s32.totalorder %s70, %s71
    %p82 = scmp.eq.s32.totalorder %s36, 0
    %p83 = por %p81, %p82
    %p84 = scmp.ne.s32.totalorder %s70, %s71
    %p85 = scmp.eq.s32.totalorder %s37, 1
    %p86 = por %p84, %p85
    %p88 = scmp.ne.s32.totalorder %s71, %s87
    %p89 = scmp.eq.s32.totalorder %s37, 0
    %p90 = por %p88, %p89
    %s91 = ssub.s32 %s31, %s38
    %p92 = scmp.eq.s32.totalorder %s91, 0
    %s94 = sadd.s32 %s93, 1
    %s95 = scalar_select %p92, %s93, %s94
    %p98 = pneg %p92
    %p99 = scmp.eq.s32.totalorder %s31, 1
    %p100 = por %p98, %p99
    %p101 = scmp.ne.s32.totalorder %s93, %s96
    %p102 = scmp.eq.s32.totalorder %s31, 0
    %p103 = por %p101, %p102
    %p104 = scmp.ne.s32.totalorder %s93, %s96
    %p105 = scmp.eq.s32.totalorder %s36, 1
    %p106 = por %p104, %p105
    %p107 = scmp.ne.s32.totalorder %s96, %s97
    %p108 = scmp.eq.s32.totalorder %s36, 0
    %p109 = por %p107, %p108
    %p110 = scmp.ne.s32.totalorder %s96, %s97
    %p111 = scmp.eq.s32.totalorder %s37, 1
    %p112 = por %p110, %p111
    %p114 = scmp.ne.s32.totalorder %s97, %s113
    %p115 = scmp.eq.s32.totalorder %s37, 0
    %p116 = por %p114, %p115
    %s117 = ssub.s32 %s31, %s38
    %p118 = scmp.eq.s32.totalorder %s117, 0
    %s120 = sadd.s32 %s119, 1
    %s121 = scalar_select %p118, %s119, %s120
    %p124 = pneg %p118
    %p125 = scmp.eq.s32.totalorder %s31, 1
    %p126 = por %p124, %p125
    %p127 = scmp.ne.s32.totalorder %s119, %s122
    %p128 = scmp.eq.s32.totalorder %s31, 0
    %p129 = por %p127, %p128
    %p130 = scmp.ne.s32.totalorder %s119, %s122
    %p131 = scmp.eq.s32.totalorder %s36, 1
    %p132 = por %p130, %p131
    %p133 = scmp.ne.s32.totalorder %s122, %s123
    %p134 = scmp.eq.s32.totalorder %s36, 0
    %p135 = por %p133, %p134
    %p136 = scmp.ne.s32.totalorder %s122, %s123
    %p137 = scmp.eq.s32.totalorder %s37, 1
    %p138 = por %p136, %p137
    %p140 = scmp.ne.s32.totalorder %s123, %s139
    %p141 = scmp.eq.s32.totalorder %s37, 0
    %p142 = por %p140, %p141
    %s143 = ssub.s32 %s31, %s38
    %p144 = scmp.eq.s32.totalorder %s143, 0
    %s146 = sadd.s32 %s145, 1
    %s147 = scalar_select %p144, %s145, %s146
    %p150 = pneg %p144
    %p151 = scmp.eq.s32.totalorder %s31, 1
    %p152 = por %p150, %p151
    %p153 = scmp.ne.s32.totalorder %s145, %s148
    %p154 = scmp.eq.s32.totalorder %s31, 0
    %p155 = por %p153, %p154
    %p156 = scmp.ne.s32.totalorder %s145, %s148
    %p157 = scmp.eq.s32.totalorder %s36, 1
    %p158 = por %p156, %p157
    %p159 = scmp.ne.s32.totalorder %s148, %s149
    %p160 = scmp.eq.s32.totalorder %s36, 0
    %p161 = por %p159, %p160
    %p162 = scmp.ne.s32.totalorder %s148, %s149
    %p163 = scmp.eq.s32.totalorder %s37, 1
    %p164 = por %p162, %p163
    %p166 = scmp.ne.s32.totalorder %s149, %s165
    %p167 = scmp.eq.s32.totalorder %s37, 0
    %p168 = por %p166, %p167
    %s169 = ssub.s32 %s31, %s38
    %p170 = scmp.eq.s32.totalorder %s169, 0
    %s172 = sadd.s32 %s171, 1
    %s173 = scalar_select %p170, %s171, %s172
    %p176 = pneg %p170
    %p177 = scmp.eq.s32.totalorder %s31, 1
    %p178 = por %p176, %p177
    %p179 = scmp.ne.s32.totalorder %s171, %s174
    %p180 = scmp.eq.s32.totalorder %s31, 0
    %p181 = por %p179, %p180
    %p182 = scmp.ne.s32.totalorder %s171, %s174
    %p183 = scmp.eq.s32.totalorder %s36, 1
    %p184 = por %p182, %p183
    %p185 = scmp.ne.s32.totalorder %s174, %s175
    %p186 = scmp.eq.s32.totalorder %s36, 0
    %p187 = por %p185, %p186
    %p188 = scmp.ne.s32.totalorder %s174, %s175
    %p189 = scmp.eq.s32.totalorder %s37, 1
    %p190 = por %p188, %p189
    %p192 = scmp.ne.s32.totalorder %s175, %s191
    %p193 = scmp.eq.s32.totalorder %s37, 0
    %p194 = por %p192, %p193
    %s196 = sadd.s32 %s195, 1
    %p199 = scmp.eq.s32.totalorder %s31, 1
    %p200 = scmp.ne.s32.totalorder %s195, %s197
    %p201 = scmp.eq.s32.totalorder %s31, 0
    %p202 = por %p200, %p201
    %p203 = scmp.ne.s32.totalorder %s195, %s197
    %p204 = scmp.eq.s32.totalorder %s36, 1
    %p205 = por %p203, %p204
    %p206 = scmp.ne.s32.totalorder %s197, %s198
    %p207 = scmp.eq.s32.totalorder %s36, 0
    %p208 = por %p206, %p207
    %p209 = scmp.ne.s32.totalorder %s197, %s198
    %p210 = scmp.eq.s32.totalorder %s37, 1
    %p211 = por %p209, %p210
    %p213 = scmp.ne.s32.totalorder %s198, %s212
    %p214 = scmp.eq.s32.totalorder %s37, 0
    %p215 = por %p213, %p214
    %s217 = sadd.s32 %s216, 1
    %p220 = scmp.eq.s32.totalorder %s31, 1
    %p221 = scmp.ne.s32.totalorder %s216, %s218
    %p222 = scmp.eq.s32.totalorder %s31, 0
    %p223 = por %p221, %p222
    %p224 = scmp.ne.s32.totalorder %s216, %s218
    %p225 = scmp.eq.s32.totalorder %s36, 1
    %p226 = por %p224, %p225
    %p227 = scmp.ne.s32.totalorder %s218, %s219
    %p228 = scmp.eq.s32.totalorder %s36, 0
    %p229 = por %p227, %p228
    %p230 = scmp.ne.s32.totalorder %s218, %s219
    %p231 = scmp.eq.s32.totalorder %s37, 1
    %p232 = por %p230, %p231
    %p234 = scmp.ne.s32.totalorder %s219, %s233
    %p235 = scmp.eq.s32.totalorder %s37, 0
    %p236 = por %p234, %p235
    %s238 = sadd.s32 %s237, 1
    %p241 = scmp.eq.s32.totalorder %s31, 1
    %p242 = scmp.ne.s32.totalorder %s237, %s239
    %p243 = scmp.eq.s32.totalorder %s31, 0
    %p244 = por %p242, %p243
    %p245 = scmp.ne.s32.totalorder %s237, %s239
    %p246 = scmp.eq.s32.totalorder %s36, 1
    %p247 = por %p245, %p246
    %p248 = scmp.ne.s32.totalorder %s239, %s240
    %p249 = scmp.eq.s32.totalorder %s36, 0
    %p250 = por %p248, %p249
    %p251 = scmp.ne.s32.totalorder %s239, %s240
    %p252 = scmp.eq.s32.totalorder %s37, 1
    %p253 = por %p251, %p252
    %p255 = scmp.ne.s32.totalorder %s240, %s254
    %p256 = scmp.eq.s32.totalorder %s37, 0
    %p257 = por %p255, %p256
    %s259 = sadd.s32 %s258, 1
    %p262 = scmp.eq.s32.totalorder %s31, 1
    %p263 = scmp.ne.s32.totalorder %s258, %s260
    %p264 = scmp.eq.s32.totalorder %s31, 0
    %p265 = por %p263, %p264
    %p266 = scmp.ne.s32.totalorder %s258, %s260
    %p267 = scmp.eq.s32.totalorder %s36, 1
    %p268 = por %p266, %p267
    %p269 = scmp.ne.s32.totalorder %s260, %s261
    %p270 = scmp.eq.s32.totalorder %s36, 0
    %p271 = por %p269, %p270
    %p272 = scmp.ne.s32.totalorder %s260, %s261
    %p273 = scmp.eq.s32.totalorder %s37, 1
    %p274 = por %p272, %p273
    %p276 = scmp.ne.s32.totalorder %s261, %s275
    %p277 = scmp.eq.s32.totalorder %s37, 0
    %p278 = por %p276, %p277
    %s280 = sadd.s32 %s279, 1
    %p283 = scmp.eq.s32.totalorder %s31, 1
    %p284 = scmp.ne.s32.totalorder %s279, %s281
    %p285 = scmp.eq.s32.totalorder %s31, 0
    %p286 = por %p284, %p285
    %p287 = scmp.ne.s32.totalorder %s279, %s281
    %p288 = scmp.eq.s32.totalorder %s36, 1
    %p289 = por %p287, %p288
    %p290 = scmp.ne.s32.totalorder %s281, %s282
    %p291 = scmp.eq.s32.totalorder %s36, 0
    %p292 = por %p290, %p291
    %p293 = scmp.ne.s32.totalorder %s281, %s282
    %p294 = scmp.eq.s32.totalorder %s37, 1
    %p295 = por %p293, %p294
    %p297 = scmp.ne.s32.totalorder %s282, %s296
    %p298 = scmp.eq.s32.totalorder %s37, 0
    %p299 = por %p297, %p298
    %s301 = sadd.s32 %s300, 1
    %p304 = scmp.eq.s32.totalorder %s31, 1
    %p305 = scmp.ne.s32.totalorder %s300, %s302
    %p306 = scmp.eq.s32.totalorder %s31, 0
    %p307 = por %p305, %p306
    %p308 = scmp.ne.s32.totalorder %s300, %s302
    %p309 = scmp.eq.s32.totalorder %s36, 1
    %p310 = por %p308, %p309
    %p311 = scmp.ne.s32.totalorder %s302, %s303
    %p312 = scmp.eq.s32.totalorder %s36, 0
    %p313 = por %p311, %p312
    %p314 = scmp.ne.s32.totalorder %s302, %s303
    %p315 = scmp.eq.s32.totalorder %s37, 1
    %p316 = por %p314, %p315
    %p318 = scmp.ne.s32.totalorder %s303, %s317
    %p319 = scmp.eq.s32.totalorder %s37, 0
    %p320 = por %p318, %p319
    %s322 = sadd.s32 %s321, 1
    %p325 = scmp.eq.s32.totalorder %s31, 1
    %p326 = scmp.ne.s32.totalorder %s321, %s323
    %p327 = scmp.eq.s32.totalorder %s31, 0
    %p328 = por %p326, %p327
    %p329 = scmp.ne.s32.totalorder %s321, %s323
    %p330 = scmp.eq.s32.totalorder %s36, 1
    %p331 = por %p329, %p330
    %p332 = scmp.ne.s32.totalorder %s323, %s324
    %p333 = scmp.eq.s32.totalorder %s36, 0
    %p334 = por %p332, %p333
    %p335 = scmp.ne.s32.totalorder %s323, %s324
    %p336 = scmp.eq.s32.totalorder %s37, 1
    %p337 = por %p335, %p336
    %p339 = scmp.ne.s32.totalorder %s324, %s338
    %p340 = scmp.eq.s32.totalorder %s37, 0
    %p341 = por %p339, %p340
    %s343 = sadd.s32 %s342, 1
    %p346 = scmp.eq.s32.totalorder %s31, 1
    %p347 = scmp.ne.s32.totalorder %s342, %s344
    %p348 = scmp.eq.s32.totalorder %s31, 0
    %p349 = por %p347, %p348
    %p350 = scmp.ne.s32.totalorder %s342, %s344
    %p351 = scmp.eq.s32.totalorder %s36, 1
    %p352 = por %p350, %p351
    %p353 = scmp.ne.s32.totalorder %s344, %s345
    %p354 = scmp.eq.s32.totalorder %s36, 0
    %p355 = por %p353, %p354
    %p356 = scmp.ne.s32.totalorder %s344, %s345
    %p357 = scmp.eq.s32.totalorder %s37, 1
    %p358 = por %p356, %p357
    %p360 = scmp.ne.s32.totalorder %s345, %s359
    %p361 = scmp.eq.s32.totalorder %s37, 0
    %p362 = por %p360, %p361
    %s364 = sadd.s32 %s363, 1
    %p367 = scmp.eq.s32.totalorder %s31, 1
    %p368 = scmp.ne.s32.totalorder %s363, %s365
    %p369 = scmp.eq.s32.totalorder %s31, 0
    %p370 = por %p368, %p369
    %p371 = scmp.ne.s32.totalorder %s363, %s365
    %p372 = scmp.eq.s32.totalorder %s36, 1
    %p373 = por %p371, %p372
    %p374 = scmp.ne.s32.totalorder %s365, %s366
    %p375 = scmp.eq.s32.totalorder %s36, 0
    %p376 = por %p374, %p375
    %p377 = scmp.ne.s32.totalorder %s365, %s366
    %p378 = scmp.eq.s32.totalorder %s37, 1
    %p379 = por %p377, %p378
    %p381 = scmp.ne.s32.totalorder %s366, %s380
    %p382 = scmp.eq.s32.totalorder %s37, 0
    %p383 = por %p381, %p382
    %s385 = sadd.s32 %s384, 1
    %p388 = scmp.eq.s32.totalorder %s31, 1
    %p389 = scmp.ne.s32.totalorder %s384, %s386
    %p390 = scmp.eq.s32.totalorder %s31, 0
    %p391 = por %p389, %p390
    %p392 = scmp.ne.s32.totalorder %s384, %s386
    %p393 = scmp.eq.s32.totalorder %s36, 1
    %p394 = por %p392, %p393
    %p395 = scmp.ne.s32.totalorder %s386, %s387
    %p396 = scmp.eq.s32.totalorder %s36, 0
    %p397 = por %p395, %p396
    %p398 = scmp.ne.s32.totalorder %s386, %s387
    %p399 = scmp.eq.s32.totalorder %s37, 1
    %p400 = por %p398, %p399
    %p402 = scmp.ne.s32.totalorder %s387, %s401
    %p403 = scmp.eq.s32.totalorder %s37, 0
    %p404 = por %p402, %p403
    %s406 = sadd.s32 %s405, 1
    %p409 = scmp.eq.s32.totalorder %s31, 1
    %p410 = scmp.ne.s32.totalorder %s405, %s407
    %p411 = scmp.eq.s32.totalorder %s31, 0
    %p412 = por %p410, %p411
    %p413 = scmp.ne.s32.totalorder %s405, %s407
    %p414 = scmp.eq.s32.totalorder %s36, 1
    %p415 = por %p413, %p414
    %p416 = scmp.ne.s32.totalorder %s407, %s408
    %p417 = scmp.eq.s32.totalorder %s36, 0
    %p418 = por %p416, %p417
    %p419 = scmp.ne.s32.totalorder %s407, %s408
    %p420 = scmp.eq.s32.totalorder %s37, 1
    %p421 = por %p419, %p420
    %p423 = scmp.ne.s32.totalorder %s408, %s422
    %p424 = scmp.eq.s32.totalorder %s37, 0
    %p425 = por %p423, %p424
    %s427 = sadd.s32 %s426, 1
    %p430 = scmp.eq.s32.totalorder %s31, 1
    %p431 = scmp.ne.s32.totalorder %s426, %s428
    %p432 = scmp.eq.s32.totalorder %s31, 0
    %p433 = por %p431, %p432
    %p434 = scmp.ne.s32.totalorder %s426, %s428
    %p435 = scmp.eq.s32.totalorder %s36, 1
    %p436 = por %p434, %p435
    %p437 = scmp.ne.s32.totalorder %s428, %s429
    %p438 = scmp.eq.s32.totalorder %s36, 0
    %p439 = por %p437, %p438
    %p440 = scmp.ne.s32.totalorder %s428, %s429
    %p441 = scmp.eq.s32.totalorder %s37, 1
    %p442 = por %p440, %p441
    %p444 = scmp.ne.s32.totalorder %s429, %s443
    %p445 = scmp.eq.s32.totalorder %s37, 0
    %p446 = por %p444, %p445
    %s448 = sadd.s32 %s447, 1
    %p451 = scmp.eq.s32.totalorder %s31, 1
    %p452 = scmp.ne.s32.totalorder %s447, %s449
    %p453 = scmp.eq.s32.totalorder %s31, 0
    %p454 = por %p452, %p453
    %p455 = scmp.ne.s32.totalorder %s447, %s449
    %p456 = scmp.eq.s32.totalorder %s36, 1
    %p457 = por %p455, %p456
    %p458 = scmp.ne.s32.totalorder %s449, %s450
    %p459 = scmp.eq.s32.totalorder %s36, 0
    %p460 = por %p458, %p459
    %p461 = scmp.ne.s32.totalorder %s449, %s450
    %p462 = scmp.eq.s32.totalorder %s37, 1
    %p463 = por %p461, %p462
    %p465 = scmp.ne.s32.totalorder %s450, %s464
    %p466 = scmp.eq.s32.totalorder %s37, 0
    %p467 = por %p465, %p466
    %s469 = sadd.s32 %s468, 1
    %p472 = scmp.eq.s32.totalorder %s31, 1
    %p473 = scmp.ne.s32.totalorder %s468, %s470
    %p474 = scmp.eq.s32.totalorder %s31, 0
    %p475 = por %p473, %p474
    %p476 = scmp.ne.s32.totalorder %s468, %s470
    %p477 = scmp.eq.s32.totalorder %s36, 1
    %p478 = por %p476, %p477
    %p479 = scmp.ne.s32.totalorder %s470, %s471
    %p480 = scmp.eq.s32.totalorder %s36, 0
    %p481 = por %p479, %p480
    %p482 = scmp.ne.s32.totalorder %s470, %s471
    %p483 = scmp.eq.s32.totalorder %s37, 1
    %p484 = por %p482, %p483
    %p486 = scmp.ne.s32.totalorder %s471, %s485
    %p487 = scmp.eq.s32.totalorder %s37, 0
    %p488 = por %p486, %p487
    %s490 = sadd.s32 %s489, 1
    %p493 = scmp.eq.s32.totalorder %s31, 1
    %p494 = scmp.ne.s32.totalorder %s489, %s491
    %p495 = scmp.eq.s32.totalorder %s31, 0
    %p496 = por %p494, %p495
    %p497 = scmp.ne.s32.totalorder %s489, %s491
    %p498 = scmp.eq.s32.totalorder %s36, 1
    %p499 = por %p497, %p498
    %p500 = scmp.ne.s32.totalorder %s491, %s492
    %p501 = scmp.eq.s32.totalorder %s36, 0
    %p502 = por %p500, %p501
    %p503 = scmp.ne.s32.totalorder %s491, %s492
    %p504 = scmp.eq.s32.totalorder %s37, 1
    %p505 = por %p503, %p504
    %p507 = scmp.ne.s32.totalorder %s492, %s506
    %p508 = scmp.eq.s32.totalorder %s37, 0
    %p509 = por %p507, %p508
    %s511 = sadd.s32 %s510, 1
    %p514 = scmp.eq.s32.totalorder %s31, 1
    %p515 = scmp.ne.s32.totalorder %s510, %s512
    %p516 = scmp.eq.s32.totalorder %s31, 0
    %p517 = por %p515, %p516
    %p518 = scmp.ne.s32.totalorder %s510, %s512
    %p519 = scmp.eq.s32.totalorder %s36, 1
    %p520 = por %p518, %p519
    %p521 = scmp.ne.s32.totalorder %s512, %s513
    %p522 = scmp.eq.s32.totalorder %s36, 0
    %p523 = por %p521, %p522
    %p524 = scmp.ne.s32.totalorder %s512, %s513
    %p525 = scmp.eq.s32.totalorder %s37, 1
    %p526 = por %p524, %p525
    %p528 = scmp.ne.s32.totalorder %s513, %s527
    %p529 = scmp.eq.s32.totalorder %s37, 0
    %p530 = por %p528, %p529
    %s532 = sadd.s32 %s531, 1
    %p535 = scmp.eq.s32.totalorder %s31, 1
    %p536 = scmp.ne.s32.totalorder %s531, %s533
    %p537 = scmp.eq.s32.totalorder %s31, 0
    %p538 = por %p536, %p537
    %p539 = scmp.ne.s32.totalorder %s531, %s533
    %p540 = scmp.eq.s32.totalorder %s36, 1
    %p541 = por %p539, %p540
    %p542 = scmp.ne.s32.totalorder %s533, %s534
    %p543 = scmp.eq.s32.totalorder %s36, 0
    %p544 = por %p542, %p543
    %p545 = scmp.ne.s32.totalorder %s533, %s534
    %p546 = scmp.eq.s32.totalorder %s37, 1
    %p547 = por %p545, %p546
    %p549 = scmp.ne.s32.totalorder %s534, %s548
    %p550 = scmp.eq.s32.totalorder %s37, 0
    %p551 = por %p549, %p550
    %s553 = sadd.s32 %s552, 1
    %p556 = scmp.eq.s32.totalorder %s31, 1
    %p557 = scmp.ne.s32.totalorder %s552, %s554
    %p558 = scmp.eq.s32.totalorder %s31, 0
    %p559 = por %p557, %p558
    %p560 = scmp.ne.s32.totalorder %s552, %s554
    %p561 = scmp.eq.s32.totalorder %s36, 1
    %p562 = por %p560, %p561
    %p563 = scmp.ne.s32.totalorder %s554, %s555
    %p564 = scmp.eq.s32.totalorder %s36, 0
    %p565 = por %p563, %p564
    %p566 = scmp.ne.s32.totalorder %s554, %s555
    %p567 = scmp.eq.s32.totalorder %s37, 1
    %p568 = por %p566, %p567
    %p570 = scmp.ne.s32.totalorder %s555, %s569
    %p571 = scmp.eq.s32.totalorder %s37, 0
    %p572 = por %p570, %p571
    %s574 = sadd.s32 %s573, 1
    %p577 = scmp.eq.s32.totalorder %s31, 1
    %p578 = scmp.ne.s32.totalorder %s573, %s575
    %p579 = scmp.eq.s32.totalorder %s31, 0
    %p580 = por %p578, %p579
    %p581 = scmp.ne.s32.totalorder %s573, %s575
    %p582 = scmp.eq.s32.totalorder %s36, 1
    %p583 = por %p581, %p582
    %p584 = scmp.ne.s32.totalorder %s575, %s576
    %p585 = scmp.eq.s32.totalorder %s36, 0
    %p586 = por %p584, %p585
    %p587 = scmp.ne.s32.totalorder %s575, %s576
    %p588 = scmp.eq.s32.totalorder %s37, 1
    %p589 = por %p587, %p588
    %p591 = scmp.ne.s32.totalorder %s576, %s590
    %p592 = scmp.eq.s32.totalorder %s37, 0
    %p593 = por %p591, %p592
    %s594 = ssub.s32 %s31, %s38
    %p595 = scmp.eq.s32.totalorder %s594, 0
    %s597 = sadd.s32 %s596, 1
    %s598 = scalar_select %p595, %s596, %s597
    %p601 = pneg %p595
    %p602 = scmp.eq.s32.totalorder %s31, 1
    %p603 = por %p601, %p602
    %p604 = scmp.ne.s32.totalorder %s596, %s599
    %p605 = scmp.eq.s32.totalorder %s31, 0
    %p606 = por %p604, %p605
    %p607 = scmp.ne.s32.totalorder %s596, %s599
    %p608 = scmp.eq.s32.totalorder %s36, 1
    %p609 = por %p607, %p608
    %p610 = scmp.ne.s32.totalorder %s599, %s600
    %p611 = scmp.eq.s32.totalorder %s36, 0
    %p612 = por %p610, %p611
    %p613 = scmp.ne.s32.totalorder %s599, %s600
    %p614 = scmp.eq.s32.totalorder %s37, 1
    %p615 = por %p613, %p614
    %p617 = scmp.ne.s32.totalorder %s600, %s616
    %p618 = scmp.eq.s32.totalorder %s37, 0
    %p619 = por %p617, %p618
    %p620 = scmp.le.s32.totalorder 1, %s31
    %p621 = scmp.lt.s32.totalorder %s31, 3
    %p622 = pnand %p620, %p621
    %p623 = pneg %p622
    // Predicated region
    $region9: #{decoder_layer_forward.1} parent=5 // pred_check
      _
    $region10: #{decoder_layer_forward.1} parent=5 // pred_check_branch
      %625 = sbr.rel (%p622) target = $region12
    $region11: #{decoder_layer_forward.1} parent=5 // pred_region
      %s626 = ssub.s32 %s31, 1
      // Predicated region
      $region13: #{decoder_layer_forward.1} parent=11 // pred_check
        %p627 = pneg %p208
      $region14: #{decoder_layer_forward.1} parent=11 // pred_check_branch
        %629 = sbr.rel (%p627) target = $region16
      $region15: #{decoder_layer_forward.1} parent=11 // pred_region
        _
      $region16: #{decoder_layer_forward.1} parent=11 // pred_fallthru
        _
      // Predicated region
      $region17: #{decoder_layer_forward.1} parent=11 // pred_check
        %p630 = pneg %p229
      $region18: #{decoder_layer_forward.1} parent=11 // pred_check_branch
        %632 = sbr.rel (%p630) target = $region20
      $region19: #{decoder_layer_forward.1} parent=11 // pred_region
        _
      $region20: #{decoder_layer_forward.1} parent=11 // pred_fallthru
        _
      // Predicated region
      $region21: #{decoder_layer_forward.1} parent=11 // pred_check
        %p633 = pneg %p250
      $region22: #{decoder_layer_forward.1} parent=11 // pred_check_branch
        %635 = sbr.rel (%p633) target = $region24
      $region23: #{decoder_layer_forward.1} parent=11 // pred_region
        _
      $region24: #{decoder_layer_forward.1} parent=11 // pred_fallthru
        _
      // Predicated region
      $region25: #{decoder_layer_forward.1} parent=11 // pred_check
        %p636 = pneg %p271
      $region26: #{decoder_layer_forward.1} parent=11 // pred_check_branch
        %638 = sbr.rel (%p636) target = $region28
      $region27: #{decoder_layer_forward.1} parent=11 // pred_region
        _
      $region28: #{decoder_layer_forward.1} parent=11 // pred_fallthru
        _
      // Predicated region
      $region29: #{decoder_layer_forward.1} parent=11 // pred_check
        %p639 = pneg %p292
      $region30: #{decoder_layer_forward.1} parent=11 // pred_check_branch
        %641 = sbr.rel (%p639) target = $region32
      $region31: #{decoder_layer_forward.1} parent=11 // pred_region
        _
      $region32: #{decoder_layer_forward.1} parent=11 // pred_fallthru
        _
      // Predicated region
      $region33: #{decoder_layer_forward.1} parent=11 // pred_check
        %p642 = pneg %p313
      $region34: #{decoder_layer_forward.1} parent=11 // pred_check_branch
        %644 = sbr.rel (%p642) target = $region36
      $region35: #{decoder_layer_forward.1} parent=11 // pred_region
        _
      $region36: #{decoder_layer_forward.1} parent=11 // pred_fallthru
        _
      // Predicated region
      $region37: #{decoder_layer_forward.1} parent=11 // pred_check
        %p645 = pneg %p334
      $region38: #{decoder_layer_forward.1} parent=11 // pred_check_branch
        %647 = sbr.rel (%p645) target = $region40
      $region39: #{decoder_layer_forward.1} parent=11 // pred_region
        _
      $region40: #{decoder_layer_forward.1} parent=11 // pred_fallthru
        _
      // Predicated region
      $region41: #{decoder_layer_forward.1} parent=11 // pred_check
        %p648 = pneg %p355
      $region42: #{decoder_layer_forward.1} parent=11 // pred_check_branch
        %650 = sbr.rel (%p648) target = $region44
      $region43: #{decoder_layer_forward.1} parent=11 // pred_region
        _
      $region44: #{decoder_layer_forward.1} parent=11 // pred_fallthru
        _
      // Predicated region
      $region45: #{decoder_layer_forward.1} parent=11 // pred_check
        %p651 = pneg %p376
      $region46: #{decoder_layer_forward.1} parent=11 // pred_check_branch
        %653 = sbr.rel (%p651) target = $region48
      $region47: #{decoder_layer_forward.1} parent=11 // pred_region
        _
      $region48: #{decoder_layer_forward.1} parent=11 // pred_fallthru
        _
      // Predicated region
      $region49: #{decoder_layer_forward.1} parent=11 // pred_check
        %p654 = pneg %p397
      $region50: #{decoder_layer_forward.1} parent=11 // pred_check_branch
        %656 = sbr.rel (%p654) target = $region52
      $region51: #{decoder_layer_forward.1} parent=11 // pred_region
        _
      $region52: #{decoder_layer_forward.1} parent=11 // pred_fallthru
        _
      // Predicated region
      $region53: #{decoder_layer_forward.1} parent=11 // pred_check
        %p657 = pneg %p418
      $region54: #{decoder_layer_forward.1} parent=11 // pred_check_branch
        %659 = sbr.rel (%p657) target = $region56
      $region55: #{decoder_layer_forward.1} parent=11 // pred_region
        _
      $region56: #{decoder_layer_forward.1} parent=11 // pred_fallthru
        _
      // Predicated region
      $region57: #{decoder_layer_forward.1} parent=11 // pred_check
        %p660 = pneg %p439
      $region58: #{decoder_layer_forward.1} parent=11 // pred_check_branch
        %662 = sbr.rel (%p660) target = $region60
      $region59: #{decoder_layer_forward.1} parent=11 // pred_region
        _
      $region60: #{decoder_layer_forward.1} parent=11 // pred_fallthru
        _
      // Predicated region
      $region61: #{decoder_layer_forward.1} parent=11 // pred_check
        %p663 = pneg %p460
      $region62: #{decoder_layer_forward.1} parent=11 // pred_check_branch
        %665 = sbr.rel (%p663) target = $region64
      $region63: #{decoder_layer_forward.1} parent=11 // pred_region
        _
      $region64: #{decoder_layer_forward.1} parent=11 // pred_fallthru
        _
      // Predicated region
      $region65: #{decoder_layer_forward.1} parent=11 // pred_check
        %p666 = pneg %p481
      $region66: #{decoder_layer_forward.1} parent=11 // pred_check_branch
        %668 = sbr.rel (%p666) target = $region68
      $region67: #{decoder_layer_forward.1} parent=11 // pred_region
        _
      $region68: #{decoder_layer_forward.1} parent=11 // pred_fallthru
        _
      // Predicated region
      $region69: #{decoder_layer_forward.1} parent=11 // pred_check
        %p669 = pneg %p502
      $region70: #{decoder_layer_forward.1} parent=11 // pred_check_branch
        %671 = sbr.rel (%p669) target = $region72
      $region71: #{decoder_layer_forward.1} parent=11 // pred_region
        _
      $region72: #{decoder_layer_forward.1} parent=11 // pred_fallthru
        _
      // Predicated region
      $region73: #{decoder_layer_forward.1} parent=11 // pred_check
        %p672 = pneg %p523
      $region74: #{decoder_layer_forward.1} parent=11 // pred_check_branch
        %674 = sbr.rel (%p672) target = $region76
      $region75: #{decoder_layer_forward.1} parent=11 // pred_region
        _
      $region76: #{decoder_layer_forward.1} parent=11 // pred_fallthru
        _
      // Predicated region
      $region77: #{decoder_layer_forward.1} parent=11 // pred_check
        %p675 = pneg %p544
      $region78: #{decoder_layer_forward.1} parent=11 // pred_check_branch
        %677 = sbr.rel (%p675) target = $region80
      $region79: #{decoder_layer_forward.1} parent=11 // pred_region
        _
      $region80: #{decoder_layer_forward.1} parent=11 // pred_fallthru
        _
      // Predicated region
      $region81: #{decoder_layer_forward.1} parent=11 // pred_check
        %p678 = pneg %p565
      $region82: #{decoder_layer_forward.1} parent=11 // pred_check_branch
        %680 = sbr.rel (%p678) target = $region84
      $region83: #{decoder_layer_forward.1} parent=11 // pred_region
        _
      $region84: #{decoder_layer_forward.1} parent=11 // pred_fallthru
        _
      // Predicated region
      $region85: #{decoder_layer_forward.1} parent=11 // pred_check
        %p681 = pneg %p586
      $region86: #{decoder_layer_forward.1} parent=11 // pred_check_branch
        %683 = sbr.rel (%p681) target = $region88
      $region87: #{decoder_layer_forward.1} parent=11 // pred_region
        _
      $region88: #{decoder_layer_forward.1} parent=11 // pred_fallthru
        _
    $region12: #{decoder_layer_forward.1} parent=5 // pred_fallthru
      _
    %p684 = scmp.lt.s32.totalorder %s31, 2
    // Predicated region
    $region89: #{decoder_layer_forward.1} parent=5 // pred_check
      %p685 = pneg %p684
    $region90: #{decoder_layer_forward.1} parent=5 // pred_check_branch
      %687 = sbr.rel (%p685) target = $region92
    $region91: #{decoder_layer_forward.1} parent=5 // pred_region
      // Predicated region
      $region93: #{decoder_layer_forward.1} parent=91 // pred_check
        %p688 = pneg %p51
      $region94: #{decoder_layer_forward.1} parent=91 // pred_check_branch
        %690 = sbr.rel (%p688) target = $region96
      $region95: #{decoder_layer_forward.1} parent=91 // pred_region
        %p691 = scmp.lt.s32.totalorder %s31, 1
        %s692 = scalar_select %p691, %s31, 1
        %s693 = smul.addr %s692, 8
        %s694 = scalar_lea.vmem %s0, %s693
      $region96: #{decoder_layer_forward.1} parent=91 // pred_fallthru
        _
      // Predicated region
      $region97: #{decoder_layer_forward.1} parent=91 // pred_check
        %p695 = pneg %p77
      $region98: #{decoder_layer_forward.1} parent=91 // pred_check_branch
        %697 = sbr.rel (%p695) target = $region100
      $region99: #{decoder_layer_forward.1} parent=91 // pred_region
        %p698 = scmp.lt.s32.totalorder %s31, 1
        %s699 = scalar_select %p698, %s31, 1
        %s700 = smul.addr %s699, 8
        %s701 = scalar_lea.vmem %s1, %s700
      $region100: #{decoder_layer_forward.1} parent=91 // pred_fallthru
        _
      // Predicated region
      $region101: #{decoder_layer_forward.1} parent=91 // pred_check
        %p702 = pneg %p103
      $region102: #{decoder_layer_forward.1} parent=91 // pred_check_branch
        %704 = sbr.rel (%p702) target = $region104
      $region103: #{decoder_layer_forward.1} parent=91 // pred_region
        %p705 = scmp.lt.s32.totalorder %s31, 1
        %s706 = scalar_select %p705, %s31, 1
        %s707 = smul.addr %s706, 8
        %s708 = scalar_lea.vmem %s2, %s707
      $region104: #{decoder_layer_forward.1} parent=91 // pred_fallthru
        _
      // Predicated region
      $region105: #{decoder_layer_forward.1} parent=91 // pred_check
        %p709 = pneg %p129
      $region106: #{decoder_layer_forward.1} parent=91 // pred_check_branch
        %711 = sbr.rel (%p709) target = $region108
      $region107: #{decoder_layer_forward.1} parent=91 // pred_region
        %p712 = scmp.lt.s32.totalorder %s31, 1
        %s713 = scalar_select %p712, %s31, 1
        %s714 = smul.addr %s713, 2
        %s715 = smul.addr %s714, 8
        %s716 = scalar_lea.vmem %s3, %s715
      $region108: #{decoder_layer_forward.1} parent=91 // pred_fallthru
        _
      // Predicated region
      $region109: #{decoder_layer_forward.1} parent=91 // pred_check
        %p717 = pneg %p155
      $region110: #{decoder_layer_forward.1} parent=91 // pred_check_branch
        %719 = sbr.rel (%p717) target = $region112
      $region111: #{decoder_layer_forward.1} parent=91 // pred_region
        %p720 = scmp.lt.s32.totalorder %s31, 1
        %s721 = scalar_select %p720, %s31, 1
        %s722 = smul.addr %s721, 2
        %s723 = smul.addr %s722, 8
        %s724 = scalar_lea.vmem %s4, %s723
      $region112: #{decoder_layer_forward.1} parent=91 // pred_fallthru
        _
      // Predicated region
      $region113: #{decoder_layer_forward.1} parent=91 // pred_check
        %p725 = pneg %p181
      $region114: #{decoder_layer_forward.1} parent=91 // pred_check_branch
        %727 = sbr.rel (%p725) target = $region116
      $region115: #{decoder_layer_forward.1} parent=91 // pred_region
        %p728 = scmp.lt.s32.totalorder %s31, 1
        %s729 = scalar_select %p728, %s31, 1
        %s730 = smul.addr %s729, 3
        %s731 = smul.addr %s730, 8
        %s732 = scalar_lea.vmem %s5, %s731
      $region116: #{decoder_layer_forward.1} parent=91 // pred_fallthru
        _
    $region92: #{decoder_layer_forward.1} parent=5 // pred_fallthru
      _
    %p733 = scmp.le.s32.totalorder 1, %s31
    %p734 = scmp.lt.s32.totalorder %s31, 3
    %p735 = pnand %p733, %p734
    %p736 = pneg %p735
    // Predicated region
    $region117: #{decoder_layer_forward.1} parent=5 // pred_check
      _
    $region118: #{decoder_layer_forward.1} parent=5 // pred_check_branch
      %738 = sbr.rel (%p735) target = $region120
    $region119: #{decoder_layer_forward.1} parent=5 // pred_region
      %s739 = ssub.s32 %s31, 1
      %p740 = scmp.lt.s32.totalorder %s36, 1
      %s741 = scalar_select %p740, %s36, 1
      %s742 = smul.addr %s741, 8
      %s743 = scalar_lea.vmem %s0, %s742
      %p744 = pneg %p57
      %p745 = pneg %p54
      %p746 = scmp.lt.s32.totalorder %s36, 1
      %s747 = scalar_select %p746, %s36, 1
      %s748 = smul.addr %s747, 8
      %s749 = scalar_lea.vmem %s1, %s748
      %p750 = pneg %p83
      %p751 = pneg %p80
      %p752 = scmp.lt.s32.totalorder %s36, 1
      %s753 = scalar_select %p752, %s36, 1
      %s754 = smul.addr %s753, 8
      %s755 = scalar_lea.vmem %s2, %s754
      %p756 = pneg %p109
      %p757 = pneg %p106
      %p758 = scmp.lt.s32.totalorder %s36, 1
      %s759 = scalar_select %p758, %s36, 1
      %s760 = smul.addr %s759, 2
      %s761 = smul.addr %s760, 8
      %s762 = scalar_lea.vmem %s3, %s761
      %p763 = pneg %p135
      %p764 = pneg %p132
      %p765 = scmp.lt.s32.totalorder %s36, 1
      %s766 = scalar_select %p765, %s36, 1
      %s767 = smul.addr %s766, 2
      %s768 = smul.addr %s767, 8
      %s769 = scalar_lea.vmem %s4, %s768
      %p770 = pneg %p161
      %p771 = pneg %p158
      %p772 = scmp.lt.s32.totalorder %s36, 1
      %s773 = scalar_select %p772, %s36, 1
      %s774 = smul.addr %s773, 3
      %s775 = smul.addr %s774, 8
      %s776 = scalar_lea.vmem %s5, %s775
      %p777 = pneg %p187
      %p778 = pneg %p184
      %p779 = pneg %p208
      %p780 = pneg %p205
      %p781 = pneg %p229
      %p782 = pneg %p226
      %p783 = pneg %p250
      %p784 = pneg %p247
      %p785 = pneg %p271
      %p786 = pneg %p268
      %p787 = pneg %p292
      %p788 = pneg %p289
      %p789 = pneg %p313
      %p790 = pneg %p310
      %p791 = pneg %p334
      %p792 = pneg %p331
      %p793 = pneg %p355
      %p794 = pneg %p352
      %p795 = pneg %p376
      %p796 = pneg %p373
      %p797 = pneg %p397
      %p798 = pneg %p394
      %p799 = pneg %p418
      %p800 = pneg %p415
      %p801 = pneg %p439
      %p802 = pneg %p436
      %p803 = pneg %p460
      %p804 = pneg %p457
      %p805 = pneg %p481
      %p806 = pneg %p478
      %p807 = pneg %p502
      %p808 = pneg %p499
      %p809 = pneg %p523
      %p810 = pneg %p520
      %p811 = pneg %p544
      %p812 = pneg %p541
      %p813 = pneg %p565
      %p814 = pneg %p562
      %p815 = pneg %p586
      %p816 = pneg %p583
      %p817 = pneg %p612
      %p818 = pneg %p609
      %p819 = scmp.lt.s32.totalorder %s36, 1
      %s820 = scalar_select %p819, %s36, 1
      %s821 = smul.addr %s820, 8
      %s822 = scalar_lea.vmem %s25, %s821
      %p823 = scmp.lt.s32.totalorder %s36, 1
      %s824 = scalar_select %p823, %s36, 1
      %s825 = smul.addr %s824, 8
      %s826 = scalar_lea.vmem %s0, %s825
      %p827 = scmp.lt.s32.totalorder %s36, 1
      %s828 = scalar_select %p827, %s36, 1
      %s829 = smul.addr %s828, 8
      %s830 = scalar_lea.vmem %s1, %s829
      %p831 = scmp.lt.s32.totalorder %s36, 1
      %s832 = scalar_select %p831, %s36, 1
      %s833 = smul.addr %s832, 8
      %s834 = scalar_lea.vmem %s2, %s833
      %p835 = scmp.lt.s32.totalorder %s36, 1
      %s836 = scalar_select %p835, %s36, 1
      %s837 = smul.addr %s836, 2
      %s838 = smul.addr %s837, 8
      %s839 = scalar_lea.vmem %s3, %s838
      %p840 = scmp.lt.s32.totalorder %s36, 1
      %s841 = scalar_select %p840, %s36, 1
      %s842 = smul.addr %s841, 2
      %s843 = smul.addr %s842, 8
      %s844 = scalar_lea.vmem %s4, %s843
      %p845 = scmp.lt.s32.totalorder %s36, 1
      %s846 = scalar_select %p845, %s36, 1
      %s847 = smul.addr %s846, 3
      %s848 = smul.addr %s847, 8
      %s849 = scalar_lea.vmem %s5, %s848
      %p850 = scmp.lt.s32.totalorder %s36, 1
      %s851 = scalar_select %p850, %s36, 1
      %s852 = smul.addr %s851, 8
      %s853 = scalar_lea.vmem %s25, %s852
      %v854 = vld [vmem:[%s23] sm:$0x7]
      %v855 = vld [vmem:[%s24] sm:$0x7]
      %v856 = vld [vmem:[%s826] sm:$0xff]
      %v857 = vld [vmem:[%s830] sm:$0xff]
      %v858 = vld [vmem:[%s834] sm:$0xff]
      %v859 = vld [vmem:[%s839] sm:$0xff]
      %v860 = vld [vmem:[%s839 + $0x8] sm:$0xff]
      %v861 = vld [vmem:[%s844] sm:$0xff]
      %v862 = vld [vmem:[%s844 + $0x8] sm:$0xff]
      %v863 = vld [vmem:[%s6] sm:$0xff]
      %v864 = vld [vmem:[%s6 + $0x8] sm:$0xff]
      %v865 = vld [vmem:[%s6 + $0x10] sm:$0xff]
      %v866 = vld [vmem:[%s6 + $0x18] sm:$0xff]
      %v867 = vld [vmem:[%s6 + $0x20] sm:$0xff]
      %v868 = vld [vmem:[%s6 + $0x28] sm:$0xff]
      %v869 = vld [vmem:[%s6 + $0x30] sm:$0xff]
      %v870 = vld [vmem:[%s6 + $0x38] sm:$0xff]
      %vm871 = vcmask 261120
      %v873 = vsel %vm871, %v857, 0
      %875 = vmatprep.subr.mxu0 0.0
      %876 = vmatpush1.msra.mxu0 0.0
      %877 = vmatprep.subr.mxu0 0.0
      %878 = vmatpush1.msra.mxu0 0.0
      %879 = vmatprep.subr.mxu0 0.0
      %880 = vmatpush1.msra.mxu0 0.0
      %881 = vmatprep.subr.mxu0 0.0
      %882 = vmatpush1.msra.mxu0 0.0
      %883 = vmatprep.subr.mxu0 0.0
      %884 = vmatpush1.msra.mxu0 0.0
      %885 = vmatprep.subr.mxu0 0.0
      %886 = vmatpush1.msra.mxu0 0.0
      %887 = vmatprep.subr.mxu0 0.0
      %888 = vmatpush1.msra.mxu0 0.0
      %889 = vmatprep.subr.mxu0 0.0
      %890 = vmatpush1.msra.mxu0 0.0
      %891 = vmatprep.subr.mxu0 0.0
      %892 = vmatpush1.msra.mxu0 0.0
      %893 = vmatprep.subr.mxu0 0.0
      %894 = vmatpush1.msra.mxu0 0.0
      %895 = vmatprep.subr.mxu0 0.0
      %896 = vmatpush1.msra.mxu0 0.0
      %897 = vmatprep.subr.mxu0 0.0
      %898 = vmatpush1.msra.mxu0 0.0
      %899 = vmatprep.subr.mxu0 0.0
      %900 = vmatpush1.msra.mxu0 %v870
      %901 = vmatprep.subr.mxu0 0.0
      %902 = vmatpush1.msra.mxu0 %v869
      %903 = vmatprep.subr.mxu0 0.0
      %904 = vmatpush1.msra.mxu0 %v868
      %905 = vmatprep.subr.mxu0 0.0
      %906 = vmatpush1.msra.mxu0 %v867
      %907 = vmatprep.subr.mxu0 0.0
      %908 = vmatpush2.msra.mxu0 0.0
      %909 = vmatprep.subr.mxu0 0.0
      %910 = vmatpush2.msra.mxu0 0.0
      %911 = vmatprep.subr.mxu0 0.0
      %912 = vmatpush2.msra.mxu0 0.0
      %913 = vmatprep.subr.mxu0 0.0
      %914 = vmatpush2.msra.mxu0 0.0
      %915 = vmatprep.subr.mxu0 0.0
      %916 = vmatpush2.msra.mxu0 0.0
      %917 = vmatprep.subr.mxu0 0.0
      %918 = vmatpush2.msra.mxu0 0.0
      %919 = vmatprep.subr.mxu0 0.0
      %920 = vmatpush2.msra.mxu0 0.0
      %921 = vmatprep.subr.mxu0 0.0
      %922 = vmatpush2.msra.mxu0 0.0
      %923 = vmatprep.subr.mxu0 0.0
      %924 = vmatpush2.msra.mxu0 0.0
      %925 = vmatprep.subr.mxu0 0.0
      %926 = vmatpush2.msra.mxu0 0.0
      %927 = vmatprep.subr.mxu0 0.0
      %928 = vmatpush2.msra.mxu0 0.0
      %929 = vmatprep.subr.mxu0 0.0
      %930 = vmatpush2.msra.mxu0 0.0
      %931 = vmatprep.subr.mxu0 0.0
      %932 = vmatpush2.msra.mxu0 0.0
      %933 = vmatprep.subr.mxu0 0.0
      %934 = vmatpush2.msra.mxu0 0.0
      %935 = vmatprep.subr.mxu0 0.0
      %936 = vmatpush2.msra.mxu0 0.0
      %937 = vmatprep.subr.mxu0 0.0
      %938 = vmatpush2.msra.mxu0 0.0
      %939 = vmatprep.mubr.f32.mxu0 0.0
      %940 = vmatmul.mubr.f32.gmra.mxu0 %v873
      %v941 = vpop.f32.mrf.mxu0
      %v942 = vadd.f32 0.0, %v941
      %v943 = vpop.f32.mrf.mxu0
      %944 = vdwg.mxu0
      %v946 = vsel %vm871, %v856, 0
      %948 = vmatprep.subr.mxu0 0.0
      %949 = vmatpush1.msra.mxu0 0.0
      %950 = vmatprep.subr.mxu0 0.0
      %951 = vmatpush1.msra.mxu0 0.0
      %952 = vmatprep.subr.mxu0 0.0
      %953 = vmatpush1.msra.mxu0 0.0
      %954 = vmatprep.subr.mxu0 0.0
      %955 = vmatpush1.msra.mxu0 0.0
      %956 = vmatprep.subr.mxu0 0.0
      %957 = vmatpush1.msra.mxu0 0.0
      %958 = vmatprep.subr.mxu0 0.0
      %959 = vmatpush1.msra.mxu0 0.0
      %960 = vmatprep.subr.mxu0 0.0
      %961 = vmatpush1.msra.mxu0 0.0
      %962 = vmatprep.subr.mxu0 0.0
      %963 = vmatpush1.msra.mxu0 0.0
      %964 = vmatprep.subr.mxu0 0.0
      %965 = vmatpush1.msra.mxu0 0.0
      %966 = vmatprep.subr.mxu0 0.0
      %967 = vmatpush1.msra.mxu0 0.0
      %968 = vmatprep.subr.mxu0 0.0
      %969 = vmatpush1.msra.mxu0 0.0
      %970 = vmatprep.subr.mxu0 0.0
      %971 = vmatpush1.msra.mxu0 0.0
      %972 = vmatprep.subr.mxu0 0.0
      %973 = vmatpush1.msra.mxu0 %v866
      %974 = vmatprep.subr.mxu0 0.0
      %975 = vmatpush1.msra.mxu0 %v865
      %976 = vmatprep.subr.mxu0 0.0
      %977 = vmatpush1.msra.mxu0 %v864
      %978 = vmatprep.subr.mxu0 0.0
      %979 = vmatpush1.msra.mxu0 %v863
      %980 = vmatprep.subr.mxu0 0.0
      %981 = vmatpush2.msra.mxu0 0.0
      %982 = vmatprep.subr.mxu0 0.0
      %983 = vmatpush2.msra.mxu0 0.0
      %984 = vmatprep.subr.mxu0 0.0
      %985 = vmatpush2.msra.mxu0 0.0
      %986 = vmatprep.subr.mxu0 0.0
      %987 = vmatpush2.msra.mxu0 0.0
      %988 = vmatprep.subr.mxu0 0.0
      %989 = vmatpush2.msra.mxu0 0.0
      %990 = vmatprep.subr.mxu0 0.0
      %991 = vmatpush2.msra.mxu0 0.0
      %992 = vmatprep.subr.mxu0 0.0
      %993 = vmatpush2.msra.mxu0 0.0
      %994 = vmatprep.subr.mxu0 0.0
      %995 = vmatpush2.msra.mxu0 0.0
      %996 = vmatprep.subr.mxu0 0.0
      %997 = vmatpush2.msra.mxu0 0.0
      %998 = vmatprep.subr.mxu0 0.0
      %999 = vmatpush2.msra.mxu0 0.0
      %1000 = vmatprep.subr.mxu0 0.0
      %1001 = vmatpush2.msra.mxu0 0.0
      %1002 = vmatprep.subr.mxu0 0.0
      %1003 = vmatpush2.msra.mxu0 0.0
      %1004 = vmatprep.subr.mxu0 0.0
      %1005 = vmatpush2.msra.mxu0 0.0
      %1006 = vmatprep.subr.mxu0 0.0
      %1007 = vmatpush2.msra.mxu0 0.0
      %1008 = vmatprep.subr.mxu0 0.0
      %1009 = vmatpush2.msra.mxu0 0.0
      %1010 = vmatprep.subr.mxu0 0.0
      %1011 = vmatpush2.msra.mxu0 0.0
      %1012 = vmatprep.mubr.f32.mxu0 0.0
      %1013 = vmatmul.mubr.f32.gmra.mxu0 %v946
      %v1014 = vpop.f32.mrf.mxu0
      %v1015 = vadd.f32 %v942, %v1014
      %v1016 = vpop.f32.mrf.mxu0
      %1017 = vdwg.mxu0
      %v1018 = vld [vmem:[%s7] sm:$0x1]
      %v1020 = vlaneseq
      %v1021 = vshrl.u32 %v1020, 7
      %v1022 = vsub.s32 0, %v1021
      %v1023 = vrot.slane %v1018, %v1022
      %v1025 = vadd.f32 %v1015, %v1023
      %v1026 = vld [vmem:[%s8] sm:$0xff]
      %v1027 = vld [vmem:[%s8 + $0x8] sm:$0xff]
      %v1028 = vld [vmem:[%s8 + $0x10] sm:$0xff]
      %v1029 = vld [vmem:[%s8 + $0x18] sm:$0xff]
      %1031 = vrot.lane.b32.xlu0 %v1025, 96
      %v1032 = vpop.permute.xlu0 %1031
      %vm1033 = vcmask 64512
      %v1034 = vsel %vm1033, %v1025, 0
      %v1036 = vsel %vm1033, %v1032, 0
      %1038 = vmatprep.subr.mxu0 0.0
      %1039 = vmatpush1.xpose.msra.mxu0 0.0
      %1040 = vmatprep.subr.mxu0 0.0
      %1041 = vmatpush1.xpose.msra.mxu0 0.0
      %1042 = vmatprep.subr.mxu0 0.0
      %1043 = vmatpush1.xpose.msra.mxu0 0.0
      %1044 = vmatprep.subr.mxu0 0.0
      %1045 = vmatpush1.xpose.msra.mxu0 0.0
      %1046 = vmatprep.subr.mxu0 0.0
      %1047 = vmatpush1.xpose.msra.mxu0 0.0
      %1048 = vmatprep.subr.mxu0 0.0
      %1049 = vmatpush1.xpose.msra.mxu0 0.0
      %1050 = vmatprep.subr.mxu0 0.0
      %1051 = vmatpush1.xpose.msra.mxu0 0.0
      %1052 = vmatprep.subr.mxu0 0.0
      %1053 = vmatpush1.xpose.msra.mxu0 0.0
      %1054 = vmatprep.subr.mxu0 0.0
      %1055 = vmatpush1.xpose.msra.mxu0 0.0
      %1056 = vmatprep.subr.mxu0 0.0
      %1057 = vmatpush1.xpose.msra.mxu0 0.0
      %1058 = vmatprep.subr.mxu0 0.0
      %1059 = vmatpush1.xpose.msra.mxu0 0.0
      %1060 = vmatprep.subr.mxu0 0.0
      %1061 = vmatpush1.xpose.msra.mxu0 0.0
      %1062 = vmatprep.subr.mxu0 0.0
      %1063 = vmatpush1.xpose.msra.mxu0 0.0
      %1064 = vmatprep.subr.mxu0 0.0
      %1065 = vmatpush1.xpose.msra.mxu0 0.0
      %1066 = vmatprep.subr.mxu0 0.0
      %1067 = vmatpush1.xpose.msra.mxu0 0.0
      %1068 = vmatprep.subr.mxu0 0.0
      %1069 = vmatpush1.xpose.msra.mxu0 %v1036
      %1070 = vmatprep.subr.mxu0 0.0
      %1071 = vmatpush2.xpose.msra.mxu0 0.0
      %1072 = vmatprep.subr.mxu0 0.0
      %1073 = vmatpush2.xpose.msra.mxu0 0.0
      %1074 = vmatprep.subr.mxu0 0.0
      %1075 = vmatpush2.xpose.msra.mxu0 0.0
      %1076 = vmatprep.subr.mxu0 0.0
      %1077 = vmatpush2.xpose.msra.mxu0 0.0
      %1078 = vmatprep.subr.mxu0 0.0
      %1079 = vmatpush2.xpose.msra.mxu0 0.0
      %1080 = vmatprep.subr.mxu0 0.0
      %1081 = vmatpush2.xpose.msra.mxu0 0.0
      %1082 = vmatprep.subr.mxu0 0.0
      %1083 = vmatpush2.xpose.msra.mxu0 0.0
      %1084 = vmatprep.subr.mxu0 0.0
      %1085 = vmatpush2.xpose.msra.mxu0 0.0
      %1086 = vmatprep.subr.mxu0 0.0
      %1087 = vmatpush2.xpose.msra.mxu0 0.0
      %1088 = vmatprep.subr.mxu0 0.0
      %1089 = vmatpush2.xpose.msra.mxu0 0.0
      %1090 = vmatprep.subr.mxu0 0.0
      %1091 = vmatpush2.xpose.msra.mxu0 0.0
      %1092 = vmatprep.subr.mxu0 0.0
      %1093 = vmatpush2.xpose.msra.mxu0 0.0
      %1094 = vmatprep.subr.mxu0 0.0
      %1095 = vmatpush2.xpose.msra.mxu0 0.0
      %1096 = vmatprep.subr.mxu0 0.0
      %1097 = vmatpush2.xpose.msra.mxu0 0.0
      %1098 = vmatprep.subr.mxu0 0.0
      %1099 = vmatpush2.xpose.msra.mxu0 0.0
      %1100 = vmatprep.subr.mxu0 0.0
      %1101 = vmatpush2.xpose.msra.mxu0 0.0
      %1102 = vmatprep.mubr.f32.mxu0 0.0
      %1103 = vmatmul.mubr.f32.gmra.mxu0 %v1034
      %v1104 = vpop.f32.mrf.mxu0
      %v1105 = vadd.f32 0.0, %v1104
      %v1106 = vpop.f32.mrf.mxu0
      %1107 = vdwg.mxu0
      %v1108 = vsel %vm1033, %v1105, -inf
      %1109 = vmax.xlane.f32.xlu0 %v1108
      %v1110 = vpop.xlane.xlu0 %1109
      %v1111 = vsub.f32 %v1105, %v1110
      %v1112 = vmul.f32 %v1111, 1.442695
      %v1113 = vpow.pop %v1112
      %v1114 = vsel %vm1033, %v1113, 0.0
      %1115 = vadd.xlane.f32.xlu0 %v1114
      %v1116 = vpop.xlane.xlu0 %1115
      %v1117 = vrcp.pop %v1116
      %v1118 = vmul.f32 %v1113, %v1117
      %1119 = vrot.lane.b32.xlu0 %v1025, 64
      %v1120 = vpop.permute.xlu0 %1119
      %v1123 = vsel %vm1033, %v1118, 0
      %1125 = vmatprep.subr.mxu0 0.0
      %1126 = vmatpush1.msra.mxu0 0.0
      %1127 = vmatprep.subr.mxu0 0.0
      %1128 = vmatpush1.msra.mxu0 0.0
      %1129 = vmatprep.subr.mxu0 0.0
      %1130 = vmatpush1.msra.mxu0 0.0
      %1131 = vmatprep.subr.mxu0 0.0
      %1132 = vmatpush1.msra.mxu0 0.0
      %1133 = vmatprep.subr.mxu0 0.0
      %1134 = vmatpush1.msra.mxu0 0.0
      %1135 = vmatprep.subr.mxu0 0.0
      %1136 = vmatpush1.msra.mxu0 0.0
      %1137 = vmatprep.subr.mxu0 0.0
      %1138 = vmatpush1.msra.mxu0 0.0
      %1139 = vmatprep.subr.mxu0 0.0
      %1140 = vmatpush1.msra.mxu0 0.0
      %1141 = vmatprep.subr.mxu0 0.0
      %1142 = vmatpush1.msra.mxu0 0.0
      %1143 = vmatprep.subr.mxu0 0.0
      %1144 = vmatpush1.msra.mxu0 0.0
      %1145 = vmatprep.subr.mxu0 0.0
      %1146 = vmatpush1.msra.mxu0 0.0
      %1147 = vmatprep.subr.mxu0 0.0
      %1148 = vmatpush1.msra.mxu0 0.0
      %1149 = vmatprep.subr.mxu0 0.0
      %1150 = vmatpush1.msra.mxu0 0.0
      %1151 = vmatprep.subr.mxu0 0.0
      %1152 = vmatpush1.msra.mxu0 0.0
      %1153 = vmatprep.subr.mxu0 0.0
      %1154 = vmatpush1.msra.mxu0 0.0
      %1155 = vmatprep.subr.mxu0 0.0
      %1156 = vmatpush1.msra.mxu0 %v1120
      %1157 = vmatprep.subr.mxu0 0.0
      %1158 = vmatpush2.msra.mxu0 0.0
      %1159 = vmatprep.subr.mxu0 0.0
      %1160 = vmatpush2.msra.mxu0 0.0
      %1161 = vmatprep.subr.mxu0 0.0
      %1162 = vmatpush2.msra.mxu0 0.0
      %1163 = vmatprep.subr.mxu0 0.0
      %1164 = vmatpush2.msra.mxu0 0.0
      %1165 = vmatprep.subr.mxu0 0.0
      %1166 = vmatpush2.msra.mxu0 0.0
      %1167 = vmatprep.subr.mxu0 0.0
      %1168 = vmatpush2.msra.mxu0 0.0
      %1169 = vmatprep.subr.mxu0 0.0
      %1170 = vmatpush2.msra.mxu0 0.0
      %1171 = vmatprep.subr.mxu0 0.0
      %1172 = vmatpush2.msra.mxu0 0.0
      %1173 = vmatprep.subr.mxu0 0.0
      %1174 = vmatpush2.msra.mxu0 0.0
      %1175 = vmatprep.subr.mxu0 0.0
      %1176 = vmatpush2.msra.mxu0 0.0
      %1177 = vmatprep.subr.mxu0 0.0
      %1178 = vmatpush2.msra.mxu0 0.0
      %1179 = vmatprep.subr.mxu0 0.0
      %1180 = vmatpush2.msra.mxu0 0.0
      %1181 = vmatprep.subr.mxu0 0.0
      %1182 = vmatpush2.msra.mxu0 0.0
      %1183 = vmatprep.subr.mxu0 0.0
      %1184 = vmatpush2.msra.mxu0 0.0
      %1185 = vmatprep.subr.mxu0 0.0
      %1186 = vmatpush2.msra.mxu0 0.0
      %1187 = vmatprep.subr.mxu0 0.0
      %1188 = vmatpush2.msra.mxu0 0.0
      %1189 = vmatprep.mubr.f32.mxu0 0.0
      %1190 = vmatmul.mubr.f32.gmra.mxu0 %v1123
      %v1191 = vpop.f32.mrf.mxu0
      %v1192 = vadd.f32 0.0, %v1191
      %v1193 = vpop.f32.mrf.mxu0
      %1194 = vdwg.mxu0
      %1195 = vrot.lane.b32.xlu0 %v1025, 120
      %v1196 = vpop.permute.xlu0 %1195
      %1197 = vrot.lane.b32.xlu0 %v1025, 88
      %v1198 = vpop.permute.xlu0 %1197
      %v1199 = vsel %vm1033, %v1196, 0
      %v1201 = vsel %vm1033, %v1198, 0
      %1203 = vmatprep.subr.mxu0 0.0
      %1204 = vmatpush1.xpose.msra.mxu0 0.0
      %1205 = vmatprep.subr.mxu0 0.0
      %1206 = vmatpush1.xpose.msra.mxu0 0.0
      %1207 = vmatprep.subr.mxu0 0.0
      %1208 = vmatpush1.xpose.msra.mxu0 0.0
      %1209 = vmatprep.subr.mxu0 0.0
      %1210 = vmatpush1.xpose.msra.mxu0 0.0
      %1211 = vmatprep.subr.mxu0 0.0
      %1212 = vmatpush1.xpose.msra.mxu0 0.0
      %1213 = vmatprep.subr.mxu0 0.0
      %1214 = vmatpush1.xpose.msra.mxu0 0.0
      %1215 = vmatprep.subr.mxu0 0.0
      %1216 = vmatpush1.xpose.msra.mxu0 0.0
      %1217 = vmatprep.subr.mxu0 0.0
      %1218 = vmatpush1.xpose.msra.mxu0 0.0
      %1219 = vmatprep.subr.mxu0 0.0
      %1220 = vmatpush1.xpose.msra.mxu0 0.0
      %1221 = vmatprep.subr.mxu0 0.0
      %1222 = vmatpush1.xpose.msra.mxu0 0.0
      %1223 = vmatprep.subr.mxu0 0.0
      %1224 = vmatpush1.xpose.msra.mxu0 0.0
      %1225 = vmatprep.subr.mxu0 0.0
      %1226 = vmatpush1.xpose.msra.mxu0 0.0
      %1227 = vmatprep.subr.mxu0 0.0
      %1228 = vmatpush1.xpose.msra.mxu0 0.0
      %1229 = vmatprep.subr.mxu0 0.0
      %1230 = vmatpush1.xpose.msra.mxu0 0.0
      %1231 = vmatprep.subr.mxu0 0.0
      %1232 = vmatpush1.xpose.msra.mxu0 0.0
      %1233 = vmatprep.subr.mxu0 0.0
      %1234 = vmatpush1.xpose.msra.mxu0 %v1201
      %1235 = vmatprep.subr.mxu0 0.0
      %1236 = vmatpush2.xpose.msra.mxu0 0.0
      %1237 = vmatprep.subr.mxu0 0.0
      %1238 = vmatpush2.xpose.msra.mxu0 0.0
      %1239 = vmatprep.subr.mxu0 0.0
      %1240 = vmatpush2.xpose.msra.mxu0 0.0
      %1241 = vmatprep.subr.mxu0 0.0
      %1242 = vmatpush2.xpose.msra.mxu0 0.0
      %1243 = vmatprep.subr.mxu0 0.0
      %1244 = vmatpush2.xpose.msra.mxu0 0.0
      %1245 = vmatprep.subr.mxu0 0.0
      %1246 = vmatpush2.xpose.msra.mxu0 0.0
      %1247 = vmatprep.subr.mxu0 0.0
      %1248 = vmatpush2.xpose.msra.mxu0 0.0
      %1249 = vmatprep.subr.mxu0 0.0
      %1250 = vmatpush2.xpose.msra.mxu0 0.0
      %1251 = vmatprep.subr.mxu0 0.0
      %1252 = vmatpush2.xpose.msra.mxu0 0.0
      %1253 = vmatprep.subr.mxu0 0.0
      %1254 = vmatpush2.xpose.msra.mxu0 0.0
      %1255 = vmatprep.subr.mxu0 0.0
      %1256 = vmatpush2.xpose.msra.mxu0 0.0
      %1257 = vmatprep.subr.mxu0 0.0
      %1258 = vmatpush2.xpose.msra.mxu0 0.0
      %1259 = vmatprep.subr.mxu0 0.0
      %1260 = vmatpush2.xpose.msra.mxu0 0.0
      %1261 = vmatprep.subr.mxu0 0.0
      %1262 = vmatpush2.xpose.msra.mxu0 0.0
      %1263 = vmatprep.subr.mxu0 0.0
      %1264 = vmatpush2.xpose.msra.mxu0 0.0
      %1265 = vmatprep.subr.mxu0 0.0
      %1266 = vmatpush2.xpose.msra.mxu0 0.0
      %1267 = vmatprep.mubr.f32.mxu0 0.0
      %1268 = vmatmul.mubr.f32.gmra.mxu0 %v1199
      %v1269 = vpop.f32.mrf.mxu0
      %v1270 = vadd.f32 0.0, %v1269
      %v1271 = vpop.f32.mrf.mxu0
      %1272 = vdwg.mxu0
      %v1273 = vsel %vm1033, %v1270, -inf
      %1274 = vmax.xlane.f32.xlu0 %v1273
      %v1275 = vpop.xlane.xlu0 %1274
      %v1276 = vsub.f32 %v1270, %v1275
      %v1277 = vmul.f32 %v1276, 1.442695
      %v1278 = vpow.pop %v1277
      %v1279 = vsel %vm1033, %v1278, 0.0
      %1280 = vadd.xlane.f32.xlu0 %v1279
      %v1281 = vpop.xlane.xlu0 %1280
      %v1282 = vrcp.pop %v1281
      %v1283 = vmul.f32 %v1278, %v1282
      %1284 = vrot.lane.b32.xlu0 %v1025, 56
      %v1285 = vpop.permute.xlu0 %1284
      %v1288 = vsel %vm1033, %v1283, 0
      %1290 = vmatprep.subr.mxu0 0.0
      %1291 = vmatpush1.msra.mxu0 0.0
      %1292 = vmatprep.subr.mxu0 0.0
      %1293 = vmatpush1.msra.mxu0 0.0
      %1294 = vmatprep.subr.mxu0 0.0
      %1295 = vmatpush1.msra.mxu0 0.0
      %1296 = vmatprep.subr.mxu0 0.0
      %1297 = vmatpush1.msra.mxu0 0.0
      %1298 = vmatprep.subr.mxu0 0.0
      %1299 = vmatpush1.msra.mxu0 0.0
      %1300 = vmatprep.subr.mxu0 0.0
      %1301 = vmatpush1.msra.mxu0 0.0
      %1302 = vmatprep.subr.mxu0 0.0
      %1303 = vmatpush1.msra.mxu0 0.0
      %1304 = vmatprep.subr.mxu0 0.0
      %1305 = vmatpush1.msra.mxu0 0.0
      %1306 = vmatprep.subr.mxu0 0.0
      %1307 = vmatpush1.msra.mxu0 0.0
      %1308 = vmatprep.subr.mxu0 0.0
      %1309 = vmatpush1.msra.mxu0 0.0
      %1310 = vmatprep.subr.mxu0 0.0
      %1311 = vmatpush1.msra.mxu0 0.0
      %1312 = vmatprep.subr.mxu0 0.0
      %1313 = vmatpush1.msra.mxu0 0.0
      %1314 = vmatprep.subr.mxu0 0.0
      %1315 = vmatpush1.msra.mxu0 0.0
      %1316 = vmatprep.subr.mxu0 0.0
      %1317 = vmatpush1.msra.mxu0 0.0
      %1318 = vmatprep.subr.mxu0 0.0
      %1319 = vmatpush1.msra.mxu0 0.0
      %1320 = vmatprep.subr.mxu0 0.0
      %1321 = vmatpush1.msra.mxu0 %v1285
      %1322 = vmatprep.subr.mxu0 0.0
      %1323 = vmatpush2.msra.mxu0 0.0
      %1324 = vmatprep.subr.mxu0 0.0
      %1325 = vmatpush2.msra.mxu0 0.0
      %1326 = vmatprep.subr.mxu0 0.0
      %1327 = vmatpush2.msra.mxu0 0.0
      %1328 = vmatprep.subr.mxu0 0.0
      %1329 = vmatpush2.msra.mxu0 0.0
      %1330 = vmatprep.subr.mxu0 0.0
      %1331 = vmatpush2.msra.mxu0 0.0
      %1332 = vmatprep.subr.mxu0 0.0
      %1333 = vmatpush2.msra.mxu0 0.0
      %1334 = vmatprep.subr.mxu0 0.0
      %1335 = vmatpush2.msra.mxu0 0.0
      %1336 = vmatprep.subr.mxu0 0.0
      %1337 = vmatpush2.msra.mxu0 0.0
      %1338 = vmatprep.subr.mxu0 0.0
      %1339 = vmatpush2.msra.mxu0 0.0
      %1340 = vmatprep.subr.mxu0 0.0
      %1341 = vmatpush2.msra.mxu0 0.0
      %1342 = vmatprep.subr.mxu0 0.0
      %1343 = vmatpush2.msra.mxu0 0.0
      %1344 = vmatprep.subr.mxu0 0.0
      %1345 = vmatpush2.msra.mxu0 0.0
      %1346 = vmatprep.subr.mxu0 0.0
      %1347 = vmatpush2.msra.mxu0 0.0
      %1348 = vmatprep.subr.mxu0 0.0
      %1349 = vmatpush2.msra.mxu0 0.0
      %1350 = vmatprep.subr.mxu0 0.0
      %1351 = vmatpush2.msra.mxu0 0.0
      %1352 = vmatprep.subr.mxu0 0.0
      %1353 = vmatpush2.msra.mxu0 0.0
      %1354 = vmatprep.mubr.f32.mxu0 0.0
      %1355 = vmatmul.mubr.f32.gmra.mxu0 %v1288
      %v1356 = vpop.f32.mrf.mxu0
      %v1357 = vadd.f32 0.0, %v1356
      %v1358 = vpop.f32.mrf.mxu0
      %1359 = vdwg.mxu0
      %v1361 = vsel %vm1033, %v1357, 0
      %1363 = vmatprep.subr.mxu0 0.0
      %1364 = vmatpush1.msra.mxu0 0.0
      %1365 = vmatprep.subr.mxu0 0.0
      %1366 = vmatpush1.msra.mxu0 0.0
      %1367 = vmatprep.subr.mxu0 0.0
      %1368 = vmatpush1.msra.mxu0 0.0
      %1369 = vmatprep.subr.mxu0 0.0
      %1370 = vmatpush1.msra.mxu0 0.0
      %1371 = vmatprep.subr.mxu0 0.0
      %1372 = vmatpush1.msra.mxu0 0.0
      %1373 = vmatprep.subr.mxu0 0.0
      %1374 = vmatpush1.msra.mxu0 0.0
      %1375 = vmatprep.subr.mxu0 0.0
      %1376 = vmatpush1.msra.mxu0 0.0
      %1377 = vmatprep.subr.mxu0 0.0
      %1378 = vmatpush1.msra.mxu0 0.0
      %1379 = vmatprep.subr.mxu0 0.0
      %1380 = vmatpush1.msra.mxu0 0.0
      %1381 = vmatprep.subr.mxu0 0.0
      %1382 = vmatpush1.msra.mxu0 0.0
      %1383 = vmatprep.subr.mxu0 0.0
      %1384 = vmatpush1.msra.mxu0 0.0
      %1385 = vmatprep.subr.mxu0 0.0
      %1386 = vmatpush1.msra.mxu0 0.0
      %1387 = vmatprep.subr.mxu0 0.0
      %1388 = vmatpush1.msra.mxu0 0.0
      %1389 = vmatprep.subr.mxu0 0.0
      %1390 = vmatpush1.msra.mxu0 0.0
      %1391 = vmatprep.subr.mxu0 0.0
      %1392 = vmatpush1.msra.mxu0 0.0
      %1393 = vmatprep.subr.mxu0 0.0
      %1394 = vmatpush1.msra.mxu0 %v1027
      %1395 = vmatprep.subr.mxu0 0.0
      %1396 = vmatpush2.msra.mxu0 0.0
      %1397 = vmatprep.subr.mxu0 0.0
      %1398 = vmatpush2.msra.mxu0 0.0
      %1399 = vmatprep.subr.mxu0 0.0
      %1400 = vmatpush2.msra.mxu0 0.0
      %1401 = vmatprep.subr.mxu0 0.0
      %1402 = vmatpush2.msra.mxu0 0.0
      %1403 = vmatprep.subr.mxu0 0.0
      %1404 = vmatpush2.msra.mxu0 0.0
      %1405 = vmatprep.subr.mxu0 0.0
      %1406 = vmatpush2.msra.mxu0 0.0
      %1407 = vmatprep.subr.mxu0 0.0
      %1408 = vmatpush2.msra.mxu0 0.0
      %1409 = vmatprep.subr.mxu0 0.0
      %1410 = vmatpush2.msra.mxu0 0.0
      %1411 = vmatprep.subr.mxu0 0.0
      %1412 = vmatpush2.msra.mxu0 0.0
      %1413 = vmatprep.subr.mxu0 0.0
      %1414 = vmatpush2.msra.mxu0 0.0
      %1415 = vmatprep.subr.mxu0 0.0
      %1416 = vmatpush2.msra.mxu0 0.0
      %1417 = vmatprep.subr.mxu0 0.0
      %1418 = vmatpush2.msra.mxu0 0.0
      %1419 = vmatprep.subr.mxu0 0.0
      %1420 = vmatpush2.msra.mxu0 0.0
      %1421 = vmatprep.subr.mxu0 0.0
      %1422 = vmatpush2.msra.mxu0 0.0
      %1423 = vmatprep.subr.mxu0 0.0
      %1424 = vmatpush2.msra.mxu0 0.0
      %1425 = vmatprep.subr.mxu0 0.0
      %1426 = vmatpush2.msra.mxu0 0.0
      %1427 = vmatprep.mubr.f32.mxu0 0.0
      %1428 = vmatmul.mubr.f32.gmra.mxu0 %v1361
      %v1429 = vpop.f32.mrf.mxu0
      %v1430 = vadd.f32 0.0, %v1429
      %v1431 = vpop.f32.mrf.mxu0
      %1432 = vdwg.mxu0
      %v1434 = vsel %vm1033, %v1192, 0
      %1436 = vmatprep.subr.mxu0 0.0
      %1437 = vmatpush1.msra.mxu0 0.0
      %1438 = vmatprep.subr.mxu0 0.0
      %1439 = vmatpush1.msra.mxu0 0.0
      %1440 = vmatprep.subr.mxu0 0.0
      %1441 = vmatpush1.msra.mxu0 0.0
      %1442 = vmatprep.subr.mxu0 0.0
      %1443 = vmatpush1.msra.mxu0 0.0
      %1444 = vmatprep.subr.mxu0 0.0
      %1445 = vmatpush1.msra.mxu0 0.0
      %1446 = vmatprep.subr.mxu0 0.0
      %1447 = vmatpush1.msra.mxu0 0.0
      %1448 = vmatprep.subr.mxu0 0.0
      %1449 = vmatpush1.msra.mxu0 0.0
      %1450 = vmatprep.subr.mxu0 0.0
      %1451 = vmatpush1.msra.mxu0 0.0
      %1452 = vmatprep.subr.mxu0 0.0
      %1453 = vmatpush1.msra.mxu0 0.0
      %1454 = vmatprep.subr.mxu0 0.0
      %1455 = vmatpush1.msra.mxu0 0.0
      %1456 = vmatprep.subr.mxu0 0.0
      %1457 = vmatpush1.msra.mxu0 0.0
      %1458 = vmatprep.subr.mxu0 0.0
      %1459 = vmatpush1.msra.mxu0 0.0
      %1460 = vmatprep.subr.mxu0 0.0
      %1461 = vmatpush1.msra.mxu0 0.0
      %1462 = vmatprep.subr.mxu0 0.0
      %1463 = vmatpush1.msra.mxu0 0.0
      %1464 = vmatprep.subr.mxu0 0.0
      %1465 = vmatpush1.msra.mxu0 0.0
      %1466 = vmatprep.subr.mxu0 0.0
      %1467 = vmatpush1.msra.mxu0 %v1026
      %1468 = vmatprep.subr.mxu0 0.0
      %1469 = vmatpush2.msra.mxu0 0.0
      %1470 = vmatprep.subr.mxu0 0.0
      %1471 = vmatpush2.msra.mxu0 0.0
      %1472 = vmatprep.subr.mxu0 0.0
      %1473 = vmatpush2.msra.mxu0 0.0
      %1474 = vmatprep.subr.mxu0 0.0
      %1475 = vmatpush2.msra.mxu0 0.0
      %1476 = vmatprep.subr.mxu0 0.0
      %1477 = vmatpush2.msra.mxu0 0.0
      %1478 = vmatprep.subr.mxu0 0.0
      %1479 = vmatpush2.msra.mxu0 0.0
      %1480 = vmatprep.subr.mxu0 0.0
      %1481 = vmatpush2.msra.mxu0 0.0
      %1482 = vmatprep.subr.mxu0 0.0
      %1483 = vmatpush2.msra.mxu0 0.0
      %1484 = vmatprep.subr.mxu0 0.0
      %1485 = vmatpush2.msra.mxu0 0.0
      %1486 = vmatprep.subr.mxu0 0.0
      %1487 = vmatpush2.msra.mxu0 0.0
      %1488 = vmatprep.subr.mxu0 0.0
      %1489 = vmatpush2.msra.mxu0 0.0
      %1490 = vmatprep.subr.mxu0 0.0
      %1491 = vmatpush2.msra.mxu0 0.0
      %1492 = vmatprep.subr.mxu0 0.0
      %1493 = vmatpush2.msra.mxu0 0.0
      %1494 = vmatprep.subr.mxu0 0.0
      %1495 = vmatpush2.msra.mxu0 0.0
      %1496 = vmatprep.subr.mxu0 0.0
      %1497 = vmatpush2.msra.mxu0 0.0
      %1498 = vmatprep.subr.mxu0 0.0
      %1499 = vmatpush2.msra.mxu0 0.0
      %1500 = vmatprep.mubr.f32.mxu0 0.0
      %1501 = vmatmul.mubr.f32.gmra.mxu0 %v1434
      %v1502 = vpop.f32.mrf.mxu0
      %v1503 = vadd.f32 %v1430, %v1502
      %v1504 = vpop.f32.mrf.mxu0
      %1505 = vdwg.mxu0
      %1506 = vrot.lane.b32.xlu0 %v1025, 112
      %v1507 = vpop.permute.xlu0 %1506
      %1508 = vrot.lane.b32.xlu0 %v1025, 80
      %v1509 = vpop.permute.xlu0 %1508
      %v1510 = vsel %vm1033, %v1507, 0
      %v1512 = vsel %vm1033, %v1509, 0
      %1514 = vmatprep.subr.mxu0 0.0
      %1515 = vmatpush1.xpose.msra.mxu0 0.0
      %1516 = vmatprep.subr.mxu0 0.0
      %1517 = vmatpush1.xpose.msra.mxu0 0.0
      %1518 = vmatprep.subr.mxu0 0.0
      %1519 = vmatpush1.xpose.msra.mxu0 0.0
      %1520 = vmatprep.subr.mxu0 0.0
      %1521 = vmatpush1.xpose.msra.mxu0 0.0
      %1522 = vmatprep.subr.mxu0 0.0
      %1523 = vmatpush1.xpose.msra.mxu0 0.0
      %1524 = vmatprep.subr.mxu0 0.0
      %1525 = vmatpush1.xpose.msra.mxu0 0.0
      %1526 = vmatprep.subr.mxu0 0.0
      %1527 = vmatpush1.xpose.msra.mxu0 0.0
      %1528 = vmatprep.subr.mxu0 0.0
      %1529 = vmatpush1.xpose.msra.mxu0 0.0
      %1530 = vmatprep.subr.mxu0 0.0
      %1531 = vmatpush1.xpose.msra.mxu0 0.0
      %1532 = vmatprep.subr.mxu0 0.0
      %1533 = vmatpush1.xpose.msra.mxu0 0.0
      %1534 = vmatprep.subr.mxu0 0.0
      %1535 = vmatpush1.xpose.msra.mxu0 0.0
      %1536 = vmatprep.subr.mxu0 0.0
      %1537 = vmatpush1.xpose.msra.mxu0 0.0
      %1538 = vmatprep.subr.mxu0 0.0
      %1539 = vmatpush1.xpose.msra.mxu0 0.0
      %1540 = vmatprep.subr.mxu0 0.0
      %1541 = vmatpush1.xpose.msra.mxu0 0.0
      %1542 = vmatprep.subr.mxu0 0.0
      %1543 = vmatpush1.xpose.msra.mxu0 0.0
      %1544 = vmatprep.subr.mxu0 0.0
      %1545 = vmatpush1.xpose.msra.mxu0 %v1512
      %1546 = vmatprep.subr.mxu0 0.0
      %1547 = vmatpush2.xpose.msra.mxu0 0.0
      %1548 = vmatprep.subr.mxu0 0.0
      %1549 = vmatpush2.xpose.msra.mxu0 0.0
      %1550 = vmatprep.subr.mxu0 0.0
      %1551 = vmatpush2.xpose.msra.mxu0 0.0
      %1552 = vmatprep.subr.mxu0 0.0
      %1553 = vmatpush2.xpose.msra.mxu0 0.0
      %1554 = vmatprep.subr.mxu0 0.0
      %1555 = vmatpush2.xpose.msra.mxu0 0.0
      %1556 = vmatprep.subr.mxu0 0.0
      %1557 = vmatpush2.xpose.msra.mxu0 0.0
      %1558 = vmatprep.subr.mxu0 0.0
      %1559 = vmatpush2.xpose.msra.mxu0 0.0
      %1560 = vmatprep.subr.mxu0 0.0
      %1561 = vmatpush2.xpose.msra.mxu0 0.0
      %1562 = vmatprep.subr.mxu0 0.0
      %1563 = vmatpush2.xpose.msra.mxu0 0.0
      %1564 = vmatprep.subr.mxu0 0.0
      %1565 = vmatpush2.xpose.msra.mxu0 0.0
      %1566 = vmatprep.subr.mxu0 0.0
      %1567 = vmatpush2.xpose.msra.mxu0 0.0
      %1568 = vmatprep.subr.mxu0 0.0
      %1569 = vmatpush2.xpose.msra.mxu0 0.0
      %1570 = vmatprep.subr.mxu0 0.0
      %1571 = vmatpush2.xpose.msra.mxu0 0.0
      %1572 = vmatprep.subr.mxu0 0.0
      %1573 = vmatpush2.xpose.msra.mxu0 0.0
      %1574 = vmatprep.subr.mxu0 0.0
      %1575 = vmatpush2.xpose.msra.mxu0 0.0
      %1576 = vmatprep.subr.mxu0 0.0
      %1577 = vmatpush2.xpose.msra.mxu0 0.0
      %1578 = vmatprep.mubr.f32.mxu0 0.0
      %1579 = vmatmul.mubr.f32.gmra.mxu0 %v1510
      %v1580 = vpop.f32.mrf.mxu0
      %v1581 = vadd.f32 0.0, %v1580
      %v1582 = vpop.f32.mrf.mxu0
      %1583 = vdwg.mxu0
      %v1584 = vsel %vm1033, %v1581, -inf
      %1585 = vmax.xlane.f32.xlu0 %v1584
      %v1586 = vpop.xlane.xlu0 %1585
      %v1587 = vsub.f32 %v1581, %v1586
      %v1588 = vmul.f32 %v1587, 1.442695
      %v1589 = vpow.pop %v1588
      %v1590 = vsel %vm1033, %v1589, 0.0
      %1591 = vadd.xlane.f32.xlu0 %v1590
      %v1592 = vpop.xlane.xlu0 %1591
      %v1593 = vrcp.pop %v1592
      %v1594 = vmul.f32 %v1589, %v1593
      %1595 = vrot.lane.b32.xlu0 %v1025, 48
      %v1596 = vpop.permute.xlu0 %1595
      %v1599 = vsel %vm1033, %v1594, 0
      %1601 = vmatprep.subr.mxu0 0.0
      %1602 = vmatpush1.msra.mxu0 0.0
      %1603 = vmatprep.subr.mxu0 0.0
      %1604 = vmatpush1.msra.mxu0 0.0
      %1605 = vmatprep.subr.mxu0 0.0
      %1606 = vmatpush1.msra.mxu0 0.0
      %1607 = vmatprep.subr.mxu0 0.0
      %1608 = vmatpush1.msra.mxu0 0.0
      %1609 = vmatprep.subr.mxu0 0.0
      %1610 = vmatpush1.msra.mxu0 0.0
      %1611 = vmatprep.subr.mxu0 0.0
      %1612 = vmatpush1.msra.mxu0 0.0
      %1613 = vmatprep.subr.mxu0 0.0
      %1614 = vmatpush1.msra.mxu0 0.0
      %1615 = vmatprep.subr.mxu0 0.0
      %1616 = vmatpush1.msra.mxu0 0.0
      %1617 = vmatprep.subr.mxu0 0.0
      %1618 = vmatpush1.msra.mxu0 0.0
      %1619 = vmatprep.subr.mxu0 0.0
      %1620 = vmatpush1.msra.mxu0 0.0
      %1621 = vmatprep.subr.mxu0 0.0
      %1622 = vmatpush1.msra.mxu0 0.0
      %1623 = vmatprep.subr.mxu0 0.0
      %1624 = vmatpush1.msra.mxu0 0.0
      %1625 = vmatprep.subr.mxu0 0.0
      %1626 = vmatpush1.msra.mxu0 0.0
      %1627 = vmatprep.subr.mxu0 0.0
      %1628 = vmatpush1.msra.mxu0 0.0
      %1629 = vmatprep.subr.mxu0 0.0
      %1630 = vmatpush1.msra.mxu0 0.0
      %1631 = vmatprep.subr.mxu0 0.0
      %1632 = vmatpush1.msra.mxu0 %v1596
      %1633 = vmatprep.subr.mxu0 0.0
      %1634 = vmatpush2.msra.mxu0 0.0
      %1635 = vmatprep.subr.mxu0 0.0
      %1636 = vmatpush2.msra.mxu0 0.0
      %1637 = vmatprep.subr.mxu0 0.0
      %1638 = vmatpush2.msra.mxu0 0.0
      %1639 = vmatprep.subr.mxu0 0.0
      %1640 = vmatpush2.msra.mxu0 0.0
      %1641 = vmatprep.subr.mxu0 0.0
      %1642 = vmatpush2.msra.mxu0 0.0
      %1643 = vmatprep.subr.mxu0 0.0
      %1644 = vmatpush2.msra.mxu0 0.0
      %1645 = vmatprep.subr.mxu0 0.0
      %1646 = vmatpush2.msra.mxu0 0.0
      %1647 = vmatprep.subr.mxu0 0.0
      %1648 = vmatpush2.msra.mxu0 0.0
      %1649 = vmatprep.subr.mxu0 0.0
      %1650 = vmatpush2.msra.mxu0 0.0
      %1651 = vmatprep.subr.mxu0 0.0
      %1652 = vmatpush2.msra.mxu0 0.0
      %1653 = vmatprep.subr.mxu0 0.0
      %1654 = vmatpush2.msra.mxu0 0.0
      %1655 = vmatprep.subr.mxu0 0.0
      %1656 = vmatpush2.msra.mxu0 0.0
      %1657 = vmatprep.subr.mxu0 0.0
      %1658 = vmatpush2.msra.mxu0 0.0
      %1659 = vmatprep.subr.mxu0 0.0
      %1660 = vmatpush2.msra.mxu0 0.0
      %1661 = vmatprep.subr.mxu0 0.0
      %1662 = vmatpush2.msra.mxu0 0.0
      %1663 = vmatprep.subr.mxu0 0.0
      %1664 = vmatpush2.msra.mxu0 0.0
      %1665 = vmatprep.mubr.f32.mxu0 0.0
      %1666 = vmatmul.mubr.f32.gmra.mxu0 %v1599
      %v1667 = vpop.f32.mrf.mxu0
      %v1668 = vadd.f32 0.0, %v1667
      %v1669 = vpop.f32.mrf.mxu0
      %1670 = vdwg.mxu0
      %v1672 = vsel %vm1033, %v1668, 0
      %1674 = vmatprep.subr.mxu0 0.0
      %1675 = vmatpush1.msra.mxu0 0.0
      %1676 = vmatprep.subr.mxu0 0.0
      %1677 = vmatpush1.msra.mxu0 0.0
      %1678 = vmatprep.subr.mxu0 0.0
      %1679 = vmatpush1.msra.mxu0 0.0
      %1680 = vmatprep.subr.mxu0 0.0
      %1681 = vmatpush1.msra.mxu0 0.0
      %1682 = vmatprep.subr.mxu0 0.0
      %1683 = vmatpush1.msra.mxu0 0.0
      %1684 = vmatprep.subr.mxu0 0.0
      %1685 = vmatpush1.msra.mxu0 0.0
      %1686 = vmatprep.subr.mxu0 0.0
      %1687 = vmatpush1.msra.mxu0 0.0
      %1688 = vmatprep.subr.mxu0 0.0
      %1689 = vmatpush1.msra.mxu0 0.0
      %1690 = vmatprep.subr.mxu0 0.0
      %1691 = vmatpush1.msra.mxu0 0.0
      %1692 = vmatprep.subr.mxu0 0.0
      %1693 = vmatpush1.msra.mxu0 0.0
      %1694 = vmatprep.subr.mxu0 0.0
      %1695 = vmatpush1.msra.mxu0 0.0
      %1696 = vmatprep.subr.mxu0 0.0
      %1697 = vmatpush1.msra.mxu0 0.0
      %1698 = vmatprep.subr.mxu0 0.0
      %1699 = vmatpush1.msra.mxu0 0.0
      %1700 = vmatprep.subr.mxu0 0.0
      %1701 = vmatpush1.msra.mxu0 0.0
      %1702 = vmatprep.subr.mxu0 0.0
      %1703 = vmatpush1.msra.mxu0 0.0
      %1704 = vmatprep.subr.mxu0 0.0
      %1705 = vmatpush1.msra.mxu0 %v1028
      %1706 = vmatprep.subr.mxu0 0.0
      %1707 = vmatpush2.msra.mxu0 0.0
      %1708 = vmatprep.subr.mxu0 0.0
      %1709 = vmatpush2.msra.mxu0 0.0
      %1710 = vmatprep.subr.mxu0 0.0
      %1711 = vmatpush2.msra.mxu0 0.0
      %1712 = vmatprep.subr.mxu0 0.0
      %1713 = vmatpush2.msra.mxu0 0.0
      %1714 = vmatprep.subr.mxu0 0.0
      %1715 = vmatpush2.msra.mxu0 0.0
      %1716 = vmatprep.subr.mxu0 0.0
      %1717 = vmatpush2.msra.mxu0 0.0
      %1718 = vmatprep.subr.mxu0 0.0
      %1719 = vmatpush2.msra.mxu0 0.0
      %1720 = vmatprep.subr.mxu0 0.0
      %1721 = vmatpush2.msra.mxu0 0.0
      %1722 = vmatprep.subr.mxu0 0.0
      %1723 = vmatpush2.msra.mxu0 0.0
      %1724 = vmatprep.subr.mxu0 0.0
      %1725 = vmatpush2.msra.mxu0 0.0
      %1726 = vmatprep.subr.mxu0 0.0
      %1727 = vmatpush2.msra.mxu0 0.0
      %1728 = vmatprep.subr.mxu0 0.0
      %1729 = vmatpush2.msra.mxu0 0.0
      %1730 = vmatprep.subr.mxu0 0.0
      %1731 = vmatpush2.msra.mxu0 0.0
      %1732 = vmatprep.subr.mxu0 0.0
      %1733 = vmatpush2.msra.mxu0 0.0
      %1734 = vmatprep.subr.mxu0 0.0
      %1735 = vmatpush2.msra.mxu0 0.0
      %1736 = vmatprep.subr.mxu0 0.0
      %1737 = vmatpush2.msra.mxu0 0.0
      %1738 = vmatprep.mubr.f32.mxu0 0.0
      %1739 = vmatmul.mubr.f32.gmra.mxu0 %v1672
      %v1740 = vpop.f32.mrf.mxu0
      %v1741 = vadd.f32 0.0, %v1740
      %v1742 = vpop.f32.mrf.mxu0
      %1743 = vdwg.mxu0
      %v1744 = vadd.f32 %v1503, %v1741
      %1745 = vrot.lane.b32.xlu0 %v1025, 104
      %v1746 = vpop.permute.xlu0 %1745
      %1747 = vrot.lane.b32.xlu0 %v1025, 72
      %v1748 = vpop.permute.xlu0 %1747
      %v1749 = vsel %vm1033, %v1746, 0
      %v1751 = vsel %vm1033, %v1748, 0
      %1753 = vmatprep.subr.mxu0 0.0
      %1754 = vmatpush1.xpose.msra.mxu0 0.0
      %1755 = vmatprep.subr.mxu0 0.0
      %1756 = vmatpush1.xpose.msra.mxu0 0.0
      %1757 = vmatprep.subr.mxu0 0.0
      %1758 = vmatpush1.xpose.msra.mxu0 0.0
      %1759 = vmatprep.subr.mxu0 0.0
      %1760 = vmatpush1.xpose.msra.mxu0 0.0
      %1761 = vmatprep.subr.mxu0 0.0
      %1762 = vmatpush1.xpose.msra.mxu0 0.0
      %1763 = vmatprep.subr.mxu0 0.0
      %1764 = vmatpush1.xpose.msra.mxu0 0.0
      %1765 = vmatprep.subr.mxu0 0.0
      %1766 = vmatpush1.xpose.msra.mxu0 0.0
      %1767 = vmatprep.subr.mxu0 0.0
      %1768 = vmatpush1.xpose.msra.mxu0 0.0
      %1769 = vmatprep.subr.mxu0 0.0
      %1770 = vmatpush1.xpose.msra.mxu0 0.0
      %1771 = vmatprep.subr.mxu0 0.0
      %1772 = vmatpush1.xpose.msra.mxu0 0.0
      %1773 = vmatprep.subr.mxu0 0.0
      %1774 = vmatpush1.xpose.msra.mxu0 0.0
      %1775 = vmatprep.subr.mxu0 0.0
      %1776 = vmatpush1.xpose.msra.mxu0 0.0
      %1777 = vmatprep.subr.mxu0 0.0
      %1778 = vmatpush1.xpose.msra.mxu0 0.0
      %1779 = vmatprep.subr.mxu0 0.0
      %1780 = vmatpush1.xpose.msra.mxu0 0.0
      %1781 = vmatprep.subr.mxu0 0.0
      %1782 = vmatpush1.xpose.msra.mxu0 0.0
      %1783 = vmatprep.subr.mxu0 0.0
      %1784 = vmatpush1.xpose.msra.mxu0 %v1751
      %1785 = vmatprep.subr.mxu0 0.0
      %1786 = vmatpush2.xpose.msra.mxu0 0.0
      %1787 = vmatprep.subr.mxu0 0.0
      %1788 = vmatpush2.xpose.msra.mxu0 0.0
      %1789 = vmatprep.subr.mxu0 0.0
      %1790 = vmatpush2.xpose.msra.mxu0 0.0
      %1791 = vmatprep.subr.mxu0 0.0
      %1792 = vmatpush2.xpose.msra.mxu0 0.0
      %1793 = vmatprep.subr.mxu0 0.0
      %1794 = vmatpush2.xpose.msra.mxu0 0.0
      %1795 = vmatprep.subr.mxu0 0.0
      %1796 = vmatpush2.xpose.msra.mxu0 0.0
      %1797 = vmatprep.subr.mxu0 0.0
      %1798 = vmatpush2.xpose.msra.mxu0 0.0
      %1799 = vmatprep.subr.mxu0 0.0
      %1800 = vmatpush2.xpose.msra.mxu0 0.0
      %1801 = vmatprep.subr.mxu0 0.0
      %1802 = vmatpush2.xpose.msra.mxu0 0.0
      %1803 = vmatprep.subr.mxu0 0.0
      %1804 = vmatpush2.xpose.msra.mxu0 0.0
      %1805 = vmatprep.subr.mxu0 0.0
      %1806 = vmatpush2.xpose.msra.mxu0 0.0
      %1807 = vmatprep.subr.mxu0 0.0
      %1808 = vmatpush2.xpose.msra.mxu0 0.0
      %1809 = vmatprep.subr.mxu0 0.0
      %1810 = vmatpush2.xpose.msra.mxu0 0.0
      %1811 = vmatprep.subr.mxu0 0.0
      %1812 = vmatpush2.xpose.msra.mxu0 0.0
      %1813 = vmatprep.subr.mxu0 0.0
      %1814 = vmatpush2.xpose.msra.mxu0 0.0
      %1815 = vmatprep.subr.mxu0 0.0
      %1816 = vmatpush2.xpose.msra.mxu0 0.0
      %1817 = vmatprep.mubr.f32.mxu0 0.0
      %1818 = vmatmul.mubr.f32.gmra.mxu0 %v1749
      %v1819 = vpop.f32.mrf.mxu0
      %v1820 = vadd.f32 0.0, %v1819
      %v1821 = vpop.f32.mrf.mxu0
      %1822 = vdwg.mxu0
      %v1823 = vsel %vm1033, %v1820, -inf
      %1824 = vmax.xlane.f32.xlu0 %v1823
      %v1825 = vpop.xlane.xlu0 %1824
      %v1826 = vsub.f32 %v1820, %v1825
      %v1827 = vmul.f32 %v1826, 1.442695
      %v1828 = vpow.pop %v1827
      %v1829 = vsel %vm1033, %v1828, 0.0
      %1830 = vadd.xlane.f32.xlu0 %v1829
      %v1831 = vpop.xlane.xlu0 %1830
      %v1832 = vrcp.pop %v1831
      %v1833 = vmul.f32 %v1828, %v1832
      %1834 = vrot.lane.b32.xlu0 %v1025, 40
      %v1835 = vpop.permute.xlu0 %1834
      %v1838 = vsel %vm1033, %v1833, 0
      %1840 = vmatprep.subr.mxu0 0.0
      %1841 = vmatpush1.msra.mxu0 0.0
      %1842 = vmatprep.subr.mxu0 0.0
      %1843 = vmatpush1.msra.mxu0 0.0
      %1844 = vmatprep.subr.mxu0 0.0
      %1845 = vmatpush1.msra.mxu0 0.0
      %1846 = vmatprep.subr.mxu0 0.0
      %1847 = vmatpush1.msra.mxu0 0.0
      %1848 = vmatprep.subr.mxu0 0.0
      %1849 = vmatpush1.msra.mxu0 0.0
      %1850 = vmatprep.subr.mxu0 0.0
      %1851 = vmatpush1.msra.mxu0 0.0
      %1852 = vmatprep.subr.mxu0 0.0
      %1853 = vmatpush1.msra.mxu0 0.0
      %1854 = vmatprep.subr.mxu0 0.0
      %1855 = vmatpush1.msra.mxu0 0.0
      %1856 = vmatprep.subr.mxu0 0.0
      %1857 = vmatpush1.msra.mxu0 0.0
      %1858 = vmatprep.subr.mxu0 0.0
      %1859 = vmatpush1.msra.mxu0 0.0
      %1860 = vmatprep.subr.mxu0 0.0
      %1861 = vmatpush1.msra.mxu0 0.0
      %1862 = vmatprep.subr.mxu0 0.0
      %1863 = vmatpush1.msra.mxu0 0.0
      %1864 = vmatprep.subr.mxu0 0.0
      %1865 = vmatpush1.msra.mxu0 0.0
      %1866 = vmatprep.subr.mxu0 0.0
      %1867 = vmatpush1.msra.mxu0 0.0
      %1868 = vmatprep.subr.mxu0 0.0
      %1869 = vmatpush1.msra.mxu0 0.0
      %1870 = vmatprep.subr.mxu0 0.0
      %1871 = vmatpush1.msra.mxu0 %v1835
      %1872 = vmatprep.subr.mxu0 0.0
      %1873 = vmatpush2.msra.mxu0 0.0
      %1874 = vmatprep.subr.mxu0 0.0
      %1875 = vmatpush2.msra.mxu0 0.0
      %1876 = vmatprep.subr.mxu0 0.0
      %1877 = vmatpush2.msra.mxu0 0.0
      %1878 = vmatprep.subr.mxu0 0.0
      %1879 = vmatpush2.msra.mxu0 0.0
      %1880 = vmatprep.subr.mxu0 0.0
      %1881 = vmatpush2.msra.mxu0 0.0
      %1882 = vmatprep.subr.mxu0 0.0
      %1883 = vmatpush2.msra.mxu0 0.0
      %1884 = vmatprep.subr.mxu0 0.0
      %1885 = vmatpush2.msra.mxu0 0.0
      %1886 = vmatprep.subr.mxu0 0.0
      %1887 = vmatpush2.msra.mxu0 0.0
      %1888 = vmatprep.subr.mxu0 0.0
      %1889 = vmatpush2.msra.mxu0 0.0
      %1890 = vmatprep.subr.mxu0 0.0
      %1891 = vmatpush2.msra.mxu0 0.0
      %1892 = vmatprep.subr.mxu0 0.0
      %1893 = vmatpush2.msra.mxu0 0.0
      %1894 = vmatprep.subr.mxu0 0.0
      %1895 = vmatpush2.msra.mxu0 0.0
      %1896 = vmatprep.subr.mxu0 0.0
      %1897 = vmatpush2.msra.mxu0 0.0
      %1898 = vmatprep.subr.mxu0 0.0
      %1899 = vmatpush2.msra.mxu0 0.0
      %1900 = vmatprep.subr.mxu0 0.0
      %1901 = vmatpush2.msra.mxu0 0.0
      %1902 = vmatprep.subr.mxu0 0.0
      %1903 = vmatpush2.msra.mxu0 0.0
      %1904 = vmatprep.mubr.f32.mxu0 0.0
      %1905 = vmatmul.mubr.f32.gmra.mxu0 %v1838
      %v1906 = vpop.f32.mrf.mxu0
      %v1907 = vadd.f32 0.0, %v1906
      %v1908 = vpop.f32.mrf.mxu0
      %1909 = vdwg.mxu0
      %v1911 = vsel %vm1033, %v1907, 0
      %1913 = vmatprep.subr.mxu0 0.0
      %1914 = vmatpush1.msra.mxu0 0.0
      %1915 = vmatprep.subr.mxu0 0.0
      %1916 = vmatpush1.msra.mxu0 0.0
      %1917 = vmatprep.subr.mxu0 0.0
      %1918 = vmatpush1.msra.mxu0 0.0
      %1919 = vmatprep.subr.mxu0 0.0
      %1920 = vmatpush1.msra.mxu0 0.0
      %1921 = vmatprep.subr.mxu0 0.0
      %1922 = vmatpush1.msra.mxu0 0.0
      %1923 = vmatprep.subr.mxu0 0.0
      %1924 = vmatpush1.msra.mxu0 0.0
      %1925 = vmatprep.subr.mxu0 0.0
      %1926 = vmatpush1.msra.mxu0 0.0
      %1927 = vmatprep.subr.mxu0 0.0
      %1928 = vmatpush1.msra.mxu0 0.0
      %1929 = vmatprep.subr.mxu0 0.0
      %1930 = vmatpush1.msra.mxu0 0.0
      %1931 = vmatprep.subr.mxu0 0.0
      %1932 = vmatpush1.msra.mxu0 0.0
      %1933 = vmatprep.subr.mxu0 0.0
      %1934 = vmatpush1.msra.mxu0 0.0
      %1935 = vmatprep.subr.mxu0 0.0
      %1936 = vmatpush1.msra.mxu0 0.0
      %1937 = vmatprep.subr.mxu0 0.0
      %1938 = vmatpush1.msra.mxu0 0.0
      %1939 = vmatprep.subr.mxu0 0.0
      %1940 = vmatpush1.msra.mxu0 0.0
      %1941 = vmatprep.subr.mxu0 0.0
      %1942 = vmatpush1.msra.mxu0 0.0
      %1943 = vmatprep.subr.mxu0 0.0
      %1944 = vmatpush1.msra.mxu0 %v1029
      %1945 = vmatprep.subr.mxu0 0.0
      %1946 = vmatpush2.msra.mxu0 0.0
      %1947 = vmatprep.subr.mxu0 0.0
      %1948 = vmatpush2.msra.mxu0 0.0
      %1949 = vmatprep.subr.mxu0 0.0
      %1950 = vmatpush2.msra.mxu0 0.0
      %1951 = vmatprep.subr.mxu0 0.0
      %1952 = vmatpush2.msra.mxu0 0.0
      %1953 = vmatprep.subr.mxu0 0.0
      %1954 = vmatpush2.msra.mxu0 0.0
      %1955 = vmatprep.subr.mxu0 0.0
      %1956 = vmatpush2.msra.mxu0 0.0
      %1957 = vmatprep.subr.mxu0 0.0
      %1958 = vmatpush2.msra.mxu0 0.0
      %1959 = vmatprep.subr.mxu0 0.0
      %1960 = vmatpush2.msra.mxu0 0.0
      %1961 = vmatprep.subr.mxu0 0.0
      %1962 = vmatpush2.msra.mxu0 0.0
      %1963 = vmatprep.subr.mxu0 0.0
      %1964 = vmatpush2.msra.mxu0 0.0
      %1965 = vmatprep.subr.mxu0 0.0
      %1966 = vmatpush2.msra.mxu0 0.0
      %1967 = vmatprep.subr.mxu0 0.0
      %1968 = vmatpush2.msra.mxu0 0.0
      %1969 = vmatprep.subr.mxu0 0.0
      %1970 = vmatpush2.msra.mxu0 0.0
      %1971 = vmatprep.subr.mxu0 0.0
      %1972 = vmatpush2.msra.mxu0 0.0
      %1973 = vmatprep.subr.mxu0 0.0
      %1974 = vmatpush2.msra.mxu0 0.0
      %1975 = vmatprep.subr.mxu0 0.0
      %1976 = vmatpush2.msra.mxu0 0.0
      %1977 = vmatprep.mubr.f32.mxu0 0.0
      %1978 = vmatmul.mubr.f32.gmra.mxu0 %v1911
      %v1979 = vpop.f32.mrf.mxu0
      %v1980 = vadd.f32 0.0, %v1979
      %v1981 = vpop.f32.mrf.mxu0
      %1982 = vdwg.mxu0
      %v1983 = vadd.f32 %v1744, %v1980
      %v1984 = vadd.f32 %v856, %v1983
      %v1985 = vld [vmem:[%s9] sm:$0x1]
      %v1987 = vlaneseq
      %v1988 = vshrl.u32 %v1987, 7
      %v1989 = vsub.s32 0, %v1988
      %v1990 = vrot.slane %v1985, %v1989
      %v1992 = vadd.f32 %v1984, %v1990
      %v1993 = vsel %vm871, %v1992, 0.0
      %1994 = vadd.xlane.f32.xlu0 %v1993
      %v1995 = vpop.xlane.xlu0 %1994
      %v1996 = vrcp.pop 32.0
      %v1997 = vmul.f32 %v1995, %v1996
      %v1998 = vsub.f32 %v1992, %v1997
      %v1999 = vmul.f32 %v1998, %v1998
      %v2000 = vsel %vm871, %v1999, 0.0
      %2001 = vadd.xlane.f32.xlu0 %v2000
      %v2002 = vpop.xlane.xlu0 %2001
      %v2003 = vmul.f32 %v2002, %v1996
      %v2004 = vadd.f32 %v2003, 1e-05
      %v2005 = vrsqrt.pop %v2004
      %v2006 = vmul.f32 %v1998, %v2005
      %v2007 = vlaneseq
      %v2008 = vshrl.u32 %v2007, 7
      %v2009 = vsub.s32 0, %v2008
      %v2010 = vrot.slane %v854, %v2009
      %v2011 = vmul.f32 %v2006, %v2010
      %v2012 = vlaneseq
      %v2013 = vshrl.u32 %v2012, 7
      %v2014 = vsub.s32 0, %v2013
      %v2015 = vrot.slane %v855, %v2014
      %v2016 = vadd.f32 %v2011, %v2015
      %v2017 = vld [vmem:[%s10] sm:$0xff]
      %v2018 = vld [vmem:[%s10 + $0x8] sm:$0xff]
      %v2019 = vld [vmem:[%s10 + $0x10] sm:$0xff]
      %v2020 = vld [vmem:[%s10 + $0x18] sm:$0xff]
      %v2021 = vld [vmem:[%s10 + $0x20] sm:$0xff]
      %v2022 = vld [vmem:[%s10 + $0x28] sm:$0xff]
      %v2023 = vld [vmem:[%s10 + $0x30] sm:$0xff]
      %v2024 = vld [vmem:[%s10 + $0x38] sm:$0xff]
      %v2025 = vld [vmem:[%s10 + $0x40] sm:$0xff]
      %v2026 = vld [vmem:[%s10 + $0x48] sm:$0xff]
      %v2027 = vld [vmem:[%s10 + $0x50] sm:$0xff]
      %v2028 = vld [vmem:[%s10 + $0x58] sm:$0xff]
      %2029 = vmatprep.subr.mxu0 0.0
      %2030 = vmatpush1.msra.mxu0 0.0
      %2031 = vmatprep.subr.mxu0 0.0
      %2032 = vmatpush1.msra.mxu0 0.0
      %2033 = vmatprep.subr.mxu0 0.0
      %2034 = vmatpush1.msra.mxu0 0.0
      %2035 = vmatprep.subr.mxu0 0.0
      %2036 = vmatpush1.msra.mxu0 0.0
      %2037 = vmatprep.subr.mxu0 0.0
      %2038 = vmatpush1.msra.mxu0 0.0
      %2039 = vmatprep.subr.mxu0 0.0
      %2040 = vmatpush1.msra.mxu0 0.0
      %2041 = vmatprep.subr.mxu0 0.0
      %2042 = vmatpush1.msra.mxu0 0.0
      %2043 = vmatprep.subr.mxu0 0.0
      %2044 = vmatpush1.msra.mxu0 0.0
      %2045 = vmatprep.subr.mxu0 0.0
      %2046 = vmatpush1.msra.mxu0 0.0
      %2047 = vmatprep.subr.mxu0 0.0
      %2048 = vmatpush1.msra.mxu0 0.0
      %2049 = vmatprep.subr.mxu0 0.0
      %2050 = vmatpush1.msra.mxu0 0.0
      %2051 = vmatprep.subr.mxu0 0.0
      %2052 = vmatpush1.msra.mxu0 0.0
      %2053 = vmatprep.subr.mxu0 0.0
      %2054 = vmatpush1.msra.mxu0 %v2024
      %2055 = vmatprep.subr.mxu0 0.0
      %2056 = vmatpush1.msra.mxu0 %v2023
      %2057 = vmatprep.subr.mxu0 0.0
      %2058 = vmatpush1.msra.mxu0 %v2022
      %2059 = vmatprep.subr.mxu0 0.0
      %2060 = vmatpush1.msra.mxu0 %v2021
      %2061 = vmatprep.subr.mxu0 0.0
      %2062 = vmatpush2.msra.mxu0 0.0
      %2063 = vmatprep.subr.mxu0 0.0
      %2064 = vmatpush2.msra.mxu0 0.0
      %2065 = vmatprep.subr.mxu0 0.0
      %2066 = vmatpush2.msra.mxu0 0.0
      %2067 = vmatprep.subr.mxu0 0.0
      %2068 = vmatpush2.msra.mxu0 0.0
      %2069 = vmatprep.subr.mxu0 0.0
      %2070 = vmatpush2.msra.mxu0 0.0
      %2071 = vmatprep.subr.mxu0 0.0
      %2072 = vmatpush2.msra.mxu0 0.0
      %2073 = vmatprep.subr.mxu0 0.0
      %2074 = vmatpush2.msra.mxu0 0.0
      %2075 = vmatprep.subr.mxu0 0.0
      %2076 = vmatpush2.msra.mxu0 0.0
      %2077 = vmatprep.subr.mxu0 0.0
      %2078 = vmatpush2.msra.mxu0 0.0
      %2079 = vmatprep.subr.mxu0 0.0
      %2080 = vmatpush2.msra.mxu0 0.0
      %2081 = vmatprep.subr.mxu0 0.0
      %2082 = vmatpush2.msra.mxu0 0.0
      %2083 = vmatprep.subr.mxu0 0.0
      %2084 = vmatpush2.msra.mxu0 0.0
      %2085 = vmatprep.subr.mxu0 0.0
      %2086 = vmatpush2.msra.mxu0 0.0
      %2087 = vmatprep.subr.mxu0 0.0
      %2088 = vmatpush2.msra.mxu0 0.0
      %2089 = vmatprep.subr.mxu0 0.0
      %2090 = vmatpush2.msra.mxu0 0.0
      %2091 = vmatprep.subr.mxu0 0.0
      %2092 = vmatpush2.msra.mxu0 0.0
      %2093 = vmatprep.mubr.f32.mxu0 0.0
      %2094 = vmatmul.mubr.f32.gmra.mxu0 %v873
      %v2095 = vpop.f32.mrf.mxu0
      %v2096 = vadd.f32 0.0, %v2095
      %v2097 = vpop.f32.mrf.mxu0
      %2098 = vdwg.mxu0
      %v2100 = vsel %vm871, %v2016, 0
      %2102 = vmatprep.subr.mxu0 0.0
      %2103 = vmatpush1.msra.mxu0 0.0
      %2104 = vmatprep.subr.mxu0 0.0
      %2105 = vmatpush1.msra.mxu0 0.0
      %2106 = vmatprep.subr.mxu0 0.0
      %2107 = vmatpush1.msra.mxu0 0.0
      %2108 = vmatprep.subr.mxu0 0.0
      %2109 = vmatpush1.msra.mxu0 0.0
      %2110 = vmatprep.subr.mxu0 0.0
      %2111 = vmatpush1.msra.mxu0 0.0
      %2112 = vmatprep.subr.mxu0 0.0
      %2113 = vmatpush1.msra.mxu0 0.0
      %2114 = vmatprep.subr.mxu0 0.0
      %2115 = vmatpush1.msra.mxu0 0.0
      %2116 = vmatprep.subr.mxu0 0.0
      %2117 = vmatpush1.msra.mxu0 0.0
      %2118 = vmatprep.subr.mxu0 0.0
      %2119 = vmatpush1.msra.mxu0 0.0
      %2120 = vmatprep.subr.mxu0 0.0
      %2121 = vmatpush1.msra.mxu0 0.0
      %2122 = vmatprep.subr.mxu0 0.0
      %2123 = vmatpush1.msra.mxu0 0.0
      %2124 = vmatprep.subr.mxu0 0.0
      %2125 = vmatpush1.msra.mxu0 0.0
      %2126 = vmatprep.subr.mxu0 0.0
      %2127 = vmatpush1.msra.mxu0 %v2020
      %2128 = vmatprep.subr.mxu0 0.0
      %2129 = vmatpush1.msra.mxu0 %v2019
      %2130 = vmatprep.subr.mxu0 0.0
      %2131 = vmatpush1.msra.mxu0 %v2018
      %2132 = vmatprep.subr.mxu0 0.0
      %2133 = vmatpush1.msra.mxu0 %v2017
      %2134 = vmatprep.subr.mxu0 0.0
      %2135 = vmatpush2.msra.mxu0 0.0
      %2136 = vmatprep.subr.mxu0 0.0
      %2137 = vmatpush2.msra.mxu0 0.0
      %2138 = vmatprep.subr.mxu0 0.0
      %2139 = vmatpush2.msra.mxu0 0.0
      %2140 = vmatprep.subr.mxu0 0.0
      %2141 = vmatpush2.msra.mxu0 0.0
      %2142 = vmatprep.subr.mxu0 0.0
      %2143 = vmatpush2.msra.mxu0 0.0
      %2144 = vmatprep.subr.mxu0 0.0
      %2145 = vmatpush2.msra.mxu0 0.0
      %2146 = vmatprep.subr.mxu0 0.0
      %2147 = vmatpush2.msra.mxu0 0.0
      %2148 = vmatprep.subr.mxu0 0.0
      %2149 = vmatpush2.msra.mxu0 0.0
      %2150 = vmatprep.subr.mxu0 0.0
      %2151 = vmatpush2.msra.mxu0 0.0
      %2152 = vmatprep.subr.mxu0 0.0
      %2153 = vmatpush2.msra.mxu0 0.0
      %2154 = vmatprep.subr.mxu0 0.0
      %2155 = vmatpush2.msra.mxu0 0.0
      %2156 = vmatprep.subr.mxu0 0.0
      %2157 = vmatpush2.msra.mxu0 0.0
      %2158 = vmatprep.subr.mxu0 0.0
      %2159 = vmatpush2.msra.mxu0 0.0
      %2160 = vmatprep.subr.mxu0 0.0
      %2161 = vmatpush2.msra.mxu0 0.0
      %2162 = vmatprep.subr.mxu0 0.0
      %2163 = vmatpush2.msra.mxu0 0.0
      %2164 = vmatprep.subr.mxu0 0.0
      %2165 = vmatpush2.msra.mxu0 0.0
      %2166 = vmatprep.mubr.f32.mxu0 0.0
      %2167 = vmatmul.mubr.f32.gmra.mxu0 %v2100
      %v2168 = vpop.f32.mrf.mxu0
      %v2169 = vadd.f32 %v2096, %v2168
      %v2170 = vpop.f32.mrf.mxu0
      %2171 = vdwg.mxu0
      %v2173 = vsel %vm871, %v858, 0
      %2175 = vmatprep.subr.mxu0 0.0
      %2176 = vmatpush1.msra.mxu0 0.0
      %2177 = vmatprep.subr.mxu0 0.0
      %2178 = vmatpush1.msra.mxu0 0.0
      %2179 = vmatprep.subr.mxu0 0.0
      %2180 = vmatpush1.msra.mxu0 0.0
      %2181 = vmatprep.subr.mxu0 0.0
      %2182 = vmatpush1.msra.mxu0 0.0
      %2183 = vmatprep.subr.mxu0 0.0
      %2184 = vmatpush1.msra.mxu0 0.0
      %2185 = vmatprep.subr.mxu0 0.0
      %2186 = vmatpush1.msra.mxu0 0.0
      %2187 = vmatprep.subr.mxu0 0.0
      %2188 = vmatpush1.msra.mxu0 0.0
      %2189 = vmatprep.subr.mxu0 0.0
      %2190 = vmatpush1.msra.mxu0 0.0
      %2191 = vmatprep.subr.mxu0 0.0
      %2192 = vmatpush1.msra.mxu0 0.0
      %2193 = vmatprep.subr.mxu0 0.0
      %2194 = vmatpush1.msra.mxu0 0.0
      %2195 = vmatprep.subr.mxu0 0.0
      %2196 = vmatpush1.msra.mxu0 0.0
      %2197 = vmatprep.subr.mxu0 0.0
      %2198 = vmatpush1.msra.mxu0 0.0
      %2199 = vmatprep.subr.mxu0 0.0
      %2200 = vmatpush1.msra.mxu0 %v2028
      %2201 = vmatprep.subr.mxu0 0.0
      %2202 = vmatpush1.msra.mxu0 %v2027
      %2203 = vmatprep.subr.mxu0 0.0
      %2204 = vmatpush1.msra.mxu0 %v2026
      %2205 = vmatprep.subr.mxu0 0.0
      %2206 = vmatpush1.msra.mxu0 %v2025
      %2207 = vmatprep.subr.mxu0 0.0
      %2208 = vmatpush2.msra.mxu0 0.0
      %2209 = vmatprep.subr.mxu0 0.0
      %2210 = vmatpush2.msra.mxu0 0.0
      %2211 = vmatprep.subr.mxu0 0.0
      %2212 = vmatpush2.msra.mxu0 0.0
      %2213 = vmatprep.subr.mxu0 0.0
      %2214 = vmatpush2.msra.mxu0 0.0
      %2215 = vmatprep.subr.mxu0 0.0
      %2216 = vmatpush2.msra.mxu0 0.0
      %2217 = vmatprep.subr.mxu0 0.0
      %2218 = vmatpush2.msra.mxu0 0.0
      %2219 = vmatprep.subr.mxu0 0.0
      %2220 = vmatpush2.msra.mxu0 0.0
      %2221 = vmatprep.subr.mxu0 0.0
      %2222 = vmatpush2.msra.mxu0 0.0
      %2223 = vmatprep.subr.mxu0 0.0
      %2224 = vmatpush2.msra.mxu0 0.0
      %2225 = vmatprep.subr.mxu0 0.0
      %2226 = vmatpush2.msra.mxu0 0.0
      %2227 = vmatprep.subr.mxu0 0.0
      %2228 = vmatpush2.msra.mxu0 0.0
      %2229 = vmatprep.subr.mxu0 0.0
      %2230 = vmatpush2.msra.mxu0 0.0
      %2231 = vmatprep.subr.mxu0 0.0
      %2232 = vmatpush2.msra.mxu0 0.0
      %2233 = vmatprep.subr.mxu0 0.0
      %2234 = vmatpush2.msra.mxu0 0.0
      %2235 = vmatprep.subr.mxu0 0.0
      %2236 = vmatpush2.msra.mxu0 0.0
      %2237 = vmatprep.subr.mxu0 0.0
      %2238 = vmatpush2.msra.mxu0 0.0
      %2239 = vmatprep.mubr.f32.mxu0 0.0
      %2240 = vmatmul.mubr.f32.gmra.mxu0 %v2173
      %v2241 = vpop.f32.mrf.mxu0
      %v2242 = vadd.f32 0.0, %v2241
      %v2243 = vpop.f32.mrf.mxu0
      %2244 = vdwg.mxu0
      %v2245 = vadd.f32 %v2169, %v2242
      %v2246 = vld [vmem:[%s11] sm:$0x1]
      %v2248 = vlaneseq
      %v2249 = vshrl.u32 %v2248, 7
      %v2250 = vsub.s32 0, %v2249
      %v2251 = vrot.slane %v2246, %v2250
      %v2253 = vadd.f32 %v2245, %v2251
      %v2254 = vld [vmem:[%s12] sm:$0xff]
      %v2255 = vld [vmem:[%s12 + $0x8] sm:$0xff]
      %v2256 = vld [vmem:[%s12 + $0x10] sm:$0xff]
      %v2257 = vld [vmem:[%s12 + $0x18] sm:$0xff]
      %v2258 = vld [vmem:[%s12 + $0x20] sm:$0xff]
      %v2259 = vld [vmem:[%s12 + $0x28] sm:$0xff]
      %v2260 = vld [vmem:[%s12 + $0x30] sm:$0xff]
      %v2261 = vld [vmem:[%s12 + $0x38] sm:$0xff]
      %v2263 = vsel %vm871, %v861, 0
      %v2266 = vsel %vm871, %v862, 0
      %2268 = vmatprep.subr.mxu0 0.0
      %2269 = vmatpush1.msra.mxu0 0.0
      %2270 = vmatprep.subr.mxu0 0.0
      %2271 = vmatpush1.msra.mxu0 0.0
      %2272 = vmatprep.subr.mxu0 0.0
      %2273 = vmatpush1.msra.mxu0 0.0
      %2274 = vmatprep.subr.mxu0 0.0
      %2275 = vmatpush1.msra.mxu0 0.0
      %2276 = vmatprep.subr.mxu0 0.0
      %2277 = vmatpush1.msra.mxu0 0.0
      %2278 = vmatprep.subr.mxu0 0.0
      %2279 = vmatpush1.msra.mxu0 0.0
      %2280 = vmatprep.subr.mxu0 0.0
      %2281 = vmatpush1.msra.mxu0 0.0
      %2282 = vmatprep.subr.mxu0 0.0
      %2283 = vmatpush1.msra.mxu0 0.0
      %2284 = vmatprep.subr.mxu0 0.0
      %2285 = vmatpush1.msra.mxu0 0.0
      %2286 = vmatprep.subr.mxu0 0.0
      %2287 = vmatpush1.msra.mxu0 0.0
      %2288 = vmatprep.subr.mxu0 0.0
      %2289 = vmatpush1.msra.mxu0 0.0
      %2290 = vmatprep.subr.mxu0 0.0
      %2291 = vmatpush1.msra.mxu0 0.0
      %2292 = vmatprep.subr.mxu0 0.0
      %2293 = vmatpush1.msra.mxu0 %v2261
      %2294 = vmatprep.subr.mxu0 0.0
      %2295 = vmatpush1.msra.mxu0 %v2260
      %2296 = vmatprep.subr.mxu0 0.0
      %2297 = vmatpush1.msra.mxu0 %v2259
      %2298 = vmatprep.subr.mxu0 0.0
      %2299 = vmatpush1.msra.mxu0 %v2258
      %2300 = vmatprep.subr.mxu0 0.0
      %2301 = vmatpush2.msra.mxu0 0.0
      %2302 = vmatprep.subr.mxu0 0.0
      %2303 = vmatpush2.msra.mxu0 0.0
      %2304 = vmatprep.subr.mxu0 0.0
      %2305 = vmatpush2.msra.mxu0 0.0
      %2306 = vmatprep.subr.mxu0 0.0
      %2307 = vmatpush2.msra.mxu0 0.0
      %2308 = vmatprep.subr.mxu0 0.0
      %2309 = vmatpush2.msra.mxu0 0.0
      %2310 = vmatprep.subr.mxu0 0.0
      %2311 = vmatpush2.msra.mxu0 0.0
      %2312 = vmatprep.subr.mxu0 0.0
      %2313 = vmatpush2.msra.mxu0 0.0
      %2314 = vmatprep.subr.mxu0 0.0
      %2315 = vmatpush2.msra.mxu0 0.0
      %2316 = vmatprep.subr.mxu0 0.0
      %2317 = vmatpush2.msra.mxu0 0.0
      %2318 = vmatprep.subr.mxu0 0.0
      %2319 = vmatpush2.msra.mxu0 0.0
      %2320 = vmatprep.subr.mxu0 0.0
      %2321 = vmatpush2.msra.mxu0 0.0
      %2322 = vmatprep.subr.mxu0 0.0
      %2323 = vmatpush2.msra.mxu0 0.0
      %2324 = vmatprep.subr.mxu0 0.0
      %2325 = vmatpush2.msra.mxu0 0.0
      %2326 = vmatprep.subr.mxu0 0.0
      %2327 = vmatpush2.msra.mxu0 0.0
      %2328 = vmatprep.subr.mxu0 0.0
      %2329 = vmatpush2.msra.mxu0 0.0
      %2330 = vmatprep.subr.mxu0 0.0
      %2331 = vmatpush2.msra.mxu0 0.0
      %2332 = vmatprep.mubr.f32.mxu0 0.0
      %2333 = vmatmul.mubr.f32.gmra.mxu0 %v2263
      %v2334 = vpop.f32.mrf.mxu0
      %v2335 = vadd.f32 0.0, %v2334
      %v2336 = vpop.f32.mrf.mxu0
      %2337 = vmatprep.mubr.f32.mxu0 0.0
      %2338 = vmatmul.mubr.f32.gmra.mxu0 %v2266
      %v2339 = vpop.f32.mrf.mxu0
      %v2340 = vadd.f32 0.0, %v2339
      %v2341 = vpop.f32.mrf.mxu0
      %2342 = vdwg.mxu0
      %v2344 = vsel %vm871, %v859, 0
      %v2347 = vsel %vm871, %v860, 0
      %2349 = vmatprep.subr.mxu0 0.0
      %2350 = vmatpush1.msra.mxu0 0.0
      %2351 = vmatprep.subr.mxu0 0.0
      %2352 = vmatpush1.msra.mxu0 0.0
      %2353 = vmatprep.subr.mxu0 0.0
      %2354 = vmatpush1.msra.mxu0 0.0
      %2355 = vmatprep.subr.mxu0 0.0
      %2356 = vmatpush1.msra.mxu0 0.0
      %2357 = vmatprep.subr.mxu0 0.0
      %2358 = vmatpush1.msra.mxu0 0.0
      %2359 = vmatprep.subr.mxu0 0.0
      %2360 = vmatpush1.msra.mxu0 0.0
      %2361 = vmatprep.subr.mxu0 0.0
      %2362 = vmatpush1.msra.mxu0 0.0
      %2363 = vmatprep.subr.mxu0 0.0
      %2364 = vmatpush1.msra.mxu0 0.0
      %2365 = vmatprep.subr.mxu0 0.0
      %2366 = vmatpush1.msra.mxu0 0.0
      %2367 = vmatprep.subr.mxu0 0.0
      %2368 = vmatpush1.msra.mxu0 0.0
      %2369 = vmatprep.subr.mxu0 0.0
      %2370 = vmatpush1.msra.mxu0 0.0
      %2371 = vmatprep.subr.mxu0 0.0
      %2372 = vmatpush1.msra.mxu0 0.0
      %2373 = vmatprep.subr.mxu0 0.0
      %2374 = vmatpush1.msra.mxu0 %v2257
      %2375 = vmatprep.subr.mxu0 0.0
      %2376 = vmatpush1.msra.mxu0 %v2256
      %2377 = vmatprep.subr.mxu0 0.0
      %2378 = vmatpush1.msra.mxu0 %v2255
      %2379 = vmatprep.subr.mxu0 0.0
      %2380 = vmatpush1.msra.mxu0 %v2254
      %2381 = vmatprep.subr.mxu0 0.0
      %2382 = vmatpush2.msra.mxu0 0.0
      %2383 = vmatprep.subr.mxu0 0.0
      %2384 = vmatpush2.msra.mxu0 0.0
      %2385 = vmatprep.subr.mxu0 0.0
      %2386 = vmatpush2.msra.mxu0 0.0
      %2387 = vmatprep.subr.mxu0 0.0
      %2388 = vmatpush2.msra.mxu0 0.0
      %2389 = vmatprep.subr.mxu0 0.0
      %2390 = vmatpush2.msra.mxu0 0.0
      %2391 = vmatprep.subr.mxu0 0.0
      %2392 = vmatpush2.msra.mxu0 0.0
      %2393 = vmatprep.subr.mxu0 0.0
      %2394 = vmatpush2.msra.mxu0 0.0
      %2395 = vmatprep.subr.mxu0 0.0
      %2396 = vmatpush2.msra.mxu0 0.0
      %2397 = vmatprep.subr.mxu0 0.0
      %2398 = vmatpush2.msra.mxu0 0.0
      %2399 = vmatprep.subr.mxu0 0.0
      %2400 = vmatpush2.msra.mxu0 0.0
      %2401 = vmatprep.subr.mxu0 0.0
      %2402 = vmatpush2.msra.mxu0 0.0
      %2403 = vmatprep.subr.mxu0 0.0
      %2404 = vmatpush2.msra.mxu0 0.0
      %2405 = vmatprep.subr.mxu0 0.0
      %2406 = vmatpush2.msra.mxu0 0.0
      %2407 = vmatprep.subr.mxu0 0.0
      %2408 = vmatpush2.msra.mxu0 0.0
      %2409 = vmatprep.subr.mxu0 0.0
      %2410 = vmatpush2.msra.mxu0 0.0
      %2411 = vmatprep.subr.mxu0 0.0
      %2412 = vmatpush2.msra.mxu0 0.0
      %2413 = vmatprep.mubr.f32.mxu0 0.0
      %2414 = vmatmul.mubr.f32.gmra.mxu0 %v2344
      %v2415 = vpop.f32.mrf.mxu0
      %v2416 = vadd.f32 %v2335, %v2415
      %v2417 = vpop.f32.mrf.mxu0
      %2418 = vmatprep.mubr.f32.mxu0 0.0
      %2419 = vmatmul.mubr.f32.gmra.mxu0 %v2347
      %v2420 = vpop.f32.mrf.mxu0
      %v2421 = vadd.f32 %v2340, %v2420
      %v2422 = vpop.f32.mrf.mxu0
      %2423 = vdwg.mxu0
      %v2424 = vld [vmem:[%s13] sm:$0x1]
      %v2426 = vlaneseq
      %v2427 = vshrl.u32 %v2426, 7
      %v2428 = vsub.s32 0, %v2427
      %v2429 = vrot.slane %v2424, %v2428
      %v2431 = vadd.f32 %v2416, %v2429
      %v2432 = vadd.f32 %v2421, %v2429
      %v2433 = vlaneseq
      %v2434 = vand.u32 %v2433, 127
      %v2435 = vld [vmem:[%s849] sm:$0xff]
      %v2436 = vlaneseq
      %v2437 = vshrl.u32 %v2436, 7
      %v2438 = vsub.s32 0, %v2437
      %v2439 = vrot.slane %v2435, %v2438
      %2441 = vbcast.lane.b32.xlu0 %v2439, 256
      %v2442 = vpop.permute.xlu0 %2441
      %s2444 = sor.u32 256, 8
      %2445 = vbcast.lane.b32.xlu0 %v2439, %s2444
      %v2446 = vpop.permute.xlu0 %2445
      %v2447 = vlaneseq
      %v2448 = vshrl.u32 %v2447, 7
      %v2449 = vsub.s32 1, %v2448
      %v2450 = vrot.slane %v2435, %v2449
      %2452 = vbcast.lane.b32.xlu0 %v2450, 256
      %v2453 = vpop.permute.xlu0 %2452
      %s2455 = sor.u32 256, 8
      %2456 = vbcast.lane.b32.xlu0 %v2450, %s2455
      %v2457 = vpop.permute.xlu0 %2456
      %v2458 = vlaneseq
      %v2459 = vshrl.u32 %v2458, 7
      %v2460 = vsub.s32 2, %v2459
      %v2461 = vrot.slane %v2435, %v2460
      %2463 = vbcast.lane.b32.xlu0 %v2461, 256
      %v2464 = vpop.permute.xlu0 %2463
      %s2466 = sor.u32 256, 8
      %2467 = vbcast.lane.b32.xlu0 %v2461, %s2466
      %v2468 = vpop.permute.xlu0 %2467
      %v2469 = vlaneseq
      %v2470 = vshrl.u32 %v2469, 7
      %v2471 = vsub.s32 3, %v2470
      %v2472 = vrot.slane %v2435, %v2471
      %2474 = vbcast.lane.b32.xlu0 %v2472, 256
      %v2475 = vpop.permute.xlu0 %2474
      %s2477 = sor.u32 256, 8
      %2478 = vbcast.lane.b32.xlu0 %v2472, %s2477
      %v2479 = vpop.permute.xlu0 %2478
      %v2480 = vlaneseq
      %v2481 = vshrl.u32 %v2480, 7
      %v2482 = vsub.s32 4, %v2481
      %v2483 = vrot.slane %v2435, %v2482
      %2485 = vbcast.lane.b32.xlu0 %v2483, 256
      %v2486 = vpop.permute.xlu0 %2485
      %s2488 = sor.u32 256, 8
      %2489 = vbcast.lane.b32.xlu0 %v2483, %s2488
      %v2490 = vpop.permute.xlu0 %2489
      %v2491 = vlaneseq
      %v2492 = vshrl.u32 %v2491, 7
      %v2493 = vsub.s32 5, %v2492
      %v2494 = vrot.slane %v2435, %v2493
      %2496 = vbcast.lane.b32.xlu0 %v2494, 256
      %v2497 = vpop.permute.xlu0 %2496
      %s2499 = sor.u32 256, 8
      %2500 = vbcast.lane.b32.xlu0 %v2494, %s2499
      %v2501 = vpop.permute.xlu0 %2500
      %v2502 = vlaneseq
      %v2503 = vshrl.u32 %v2502, 7
      %v2504 = vsub.s32 6, %v2503
      %v2505 = vrot.slane %v2435, %v2504
      %2507 = vbcast.lane.b32.xlu0 %v2505, 256
      %v2508 = vpop.permute.xlu0 %2507
      %s2510 = sor.u32 256, 8
      %2511 = vbcast.lane.b32.xlu0 %v2505, %s2510
      %v2512 = vpop.permute.xlu0 %2511
      %v2513 = vlaneseq
      %v2514 = vshrl.u32 %v2513, 7
      %v2515 = vsub.s32 7, %v2514
      %v2516 = vrot.slane %v2435, %v2515
      %2518 = vbcast.lane.b32.xlu0 %v2516, 256
      %v2519 = vpop.permute.xlu0 %2518
      %s2521 = sor.u32 256, 8
      %2522 = vbcast.lane.b32.xlu0 %v2516, %s2521
      %v2523 = vpop.permute.xlu0 %2522
      %vm2524 = vcmp.eq.s32.totalorder %v2442, %v2434
      %vm2525 = vcmp.eq.s32.totalorder %v2446, %v2434
      %vm2526 = vcmp.eq.s32.totalorder %v2453, %v2434
      %vm2527 = vcmp.eq.s32.totalorder %v2457, %v2434
      %vm2528 = vcmp.eq.s32.totalorder %v2464, %v2434
      %vm2529 = vcmp.eq.s32.totalorder %v2468, %v2434
      %vm2530 = vcmp.eq.s32.totalorder %v2475, %v2434
      %vm2531 = vcmp.eq.s32.totalorder %v2479, %v2434
      %vm2532 = vcmp.eq.s32.totalorder %v2486, %v2434
      %vm2533 = vcmp.eq.s32.totalorder %v2490, %v2434
      %vm2534 = vcmp.eq.s32.totalorder %v2497, %v2434
      %vm2535 = vcmp.eq.s32.totalorder %v2501, %v2434
      %vm2536 = vcmp.eq.s32.totalorder %v2508, %v2434
      %vm2537 = vcmp.eq.s32.totalorder %v2512, %v2434
      %vm2538 = vcmp.eq.s32.totalorder %v2519, %v2434
      %vm2539 = vcmp.eq.s32.totalorder %v2523, %v2434
      %s2540 = scalar_lea.vmem %s849, 8
      %v2541 = vld [vmem:[%s2540] sm:$0xff]
      %v2542 = vlaneseq
      %v2543 = vshrl.u32 %v2542, 7
      %v2544 = vsub.s32 0, %v2543
      %v2545 = vrot.slane %v2541, %v2544
      %2547 = vbcast.lane.b32.xlu0 %v2545, 256
      %v2548 = vpop.permute.xlu0 %2547
      %s2550 = sor.u32 256, 8
      %2551 = vbcast.lane.b32.xlu0 %v2545, %s2550
      %v2552 = vpop.permute.xlu0 %2551
      %v2553 = vlaneseq
      %v2554 = vshrl.u32 %v2553, 7
      %v2555 = vsub.s32 1, %v2554
      %v2556 = vrot.slane %v2541, %v2555
      %2558 = vbcast.lane.b32.xlu0 %v2556, 256
      %v2559 = vpop.permute.xlu0 %2558
      %s2561 = sor.u32 256, 8
      %2562 = vbcast.lane.b32.xlu0 %v2556, %s2561
      %v2563 = vpop.permute.xlu0 %2562
      %v2564 = vlaneseq
      %v2565 = vshrl.u32 %v2564, 7
      %v2566 = vsub.s32 2, %v2565
      %v2567 = vrot.slane %v2541, %v2566
      %2569 = vbcast.lane.b32.xlu0 %v2567, 256
      %v2570 = vpop.permute.xlu0 %2569
      %s2572 = sor.u32 256, 8
      %2573 = vbcast.lane.b32.xlu0 %v2567, %s2572
      %v2574 = vpop.permute.xlu0 %2573
      %v2575 = vlaneseq
      %v2576 = vshrl.u32 %v2575, 7
      %v2577 = vsub.s32 3, %v2576
      %v2578 = vrot.slane %v2541, %v2577
      %2580 = vbcast.lane.b32.xlu0 %v2578, 256
      %v2581 = vpop.permute.xlu0 %2580
      %s2583 = sor.u32 256, 8
      %2584 = vbcast.lane.b32.xlu0 %v2578, %s2583
      %v2585 = vpop.permute.xlu0 %2584
      %v2586 = vlaneseq
      %v2587 = vshrl.u32 %v2586, 7
      %v2588 = vsub.s32 4, %v2587
      %v2589 = vrot.slane %v2541, %v2588
      %2591 = vbcast.lane.b32.xlu0 %v2589, 256
      %v2592 = vpop.permute.xlu0 %2591
      %s2594 = sor.u32 256, 8
      %2595 = vbcast.lane.b32.xlu0 %v2589, %s2594
      %v2596 = vpop.permute.xlu0 %2595
      %v2597 = vlaneseq
      %v2598 = vshrl.u32 %v2597, 7
      %v2599 = vsub.s32 5, %v2598
      %v2600 = vrot.slane %v2541, %v2599
      %2602 = vbcast.lane.b32.xlu0 %v2600, 256
      %v2603 = vpop.permute.xlu0 %2602
      %s2605 = sor.u32 256, 8
      %2606 = vbcast.lane.b32.xlu0 %v2600, %s2605
      %v2607 = vpop.permute.xlu0 %2606
      %v2608 = vlaneseq
      %v2609 = vshrl.u32 %v2608, 7
      %v2610 = vsub.s32 6, %v2609
      %v2611 = vrot.slane %v2541, %v2610
      %2613 = vbcast.lane.b32.xlu0 %v2611, 256
      %v2614 = vpop.permute.xlu0 %2613
      %s2616 = sor.u32 256, 8
      %2617 = vbcast.lane.b32.xlu0 %v2611, %s2616
      %v2618 = vpop.permute.xlu0 %2617
      %v2619 = vlaneseq
      %v2620 = vshrl.u32 %v2619, 7
      %v2621 = vsub.s32 7, %v2620
      %v2622 = vrot.slane %v2541, %v2621
      %2624 = vbcast.lane.b32.xlu0 %v2622, 256
      %v2625 = vpop.permute.xlu0 %2624
      %s2627 = sor.u32 256, 8
      %2628 = vbcast.lane.b32.xlu0 %v2622, %s2627
      %v2629 = vpop.permute.xlu0 %2628
      %vm2630 = vcmp.eq.s32.totalorder %v2548, %v2434
      %vm2631 = vcmp.eq.s32.totalorder %v2552, %v2434
      %vm2632 = vcmp.eq.s32.totalorder %v2559, %v2434
      %vm2633 = vcmp.eq.s32.totalorder %v2563, %v2434
      %vm2634 = vcmp.eq.s32.totalorder %v2570, %v2434
      %vm2635 = vcmp.eq.s32.totalorder %v2574, %v2434
      %vm2636 = vcmp.eq.s32.totalorder %v2581, %v2434
      %vm2637 = vcmp.eq.s32.totalorder %v2585, %v2434
      %vm2638 = vcmp.eq.s32.totalorder %v2592, %v2434
      %vm2639 = vcmp.eq.s32.totalorder %v2596, %v2434
      %vm2640 = vcmp.eq.s32.totalorder %v2603, %v2434
      %vm2641 = vcmp.eq.s32.totalorder %v2607, %v2434
      %vm2642 = vcmp.eq.s32.totalorder %v2614, %v2434
      %vm2643 = vcmp.eq.s32.totalorder %v2618, %v2434
      %vm2644 = vcmp.eq.s32.totalorder %v2625, %v2434
      %vm2645 = vcmp.eq.s32.totalorder %v2629, %v2434
      %vm2646 = vmor %vm2524, %vm2630
      %vm2647 = vmor %vm2525, %vm2631
      %vm2648 = vmor %vm2526, %vm2632
      %vm2649 = vmor %vm2527, %vm2633
      %vm2650 = vmor %vm2528, %vm2634
      %vm2651 = vmor %vm2529, %vm2635
      %vm2652 = vmor %vm2530, %vm2636
      %vm2653 = vmor %vm2531, %vm2637
      %vm2654 = vmor %vm2532, %vm2638
      %vm2655 = vmor %vm2533, %vm2639
      %vm2656 = vmor %vm2534, %vm2640
      %vm2657 = vmor %vm2535, %vm2641
      %vm2658 = vmor %vm2536, %vm2642
      %vm2659 = vmor %vm2537, %vm2643
      %vm2660 = vmor %vm2538, %vm2644
      %vm2661 = vmor %vm2539, %vm2645
      %s2662 = scalar_lea.vmem %s849, 16
      %v2663 = vld [vmem:[%s2662] sm:$0xff]
      %v2664 = vlaneseq
      %v2665 = vshrl.u32 %v2664, 7
      %v2666 = vsub.s32 0, %v2665
      %v2667 = vrot.slane %v2663, %v2666
      %2669 = vbcast.lane.b32.xlu0 %v2667, 256
      %v2670 = vpop.permute.xlu0 %2669
      %s2672 = sor.u32 256, 8
      %2673 = vbcast.lane.b32.xlu0 %v2667, %s2672
      %v2674 = vpop.permute.xlu0 %2673
      %v2675 = vlaneseq
      %v2676 = vshrl.u32 %v2675, 7
      %v2677 = vsub.s32 1, %v2676
      %v2678 = vrot.slane %v2663, %v2677
      %2680 = vbcast.lane.b32.xlu0 %v2678, 256
      %v2681 = vpop.permute.xlu0 %2680
      %s2683 = sor.u32 256, 8
      %2684 = vbcast.lane.b32.xlu0 %v2678, %s2683
      %v2685 = vpop.permute.xlu0 %2684
      %v2686 = vlaneseq
      %v2687 = vshrl.u32 %v2686, 7
      %v2688 = vsub.s32 2, %v2687
      %v2689 = vrot.slane %v2663, %v2688
      %2691 = vbcast.lane.b32.xlu0 %v2689, 256
      %v2692 = vpop.permute.xlu0 %2691
      %s2694 = sor.u32 256, 8
      %2695 = vbcast.lane.b32.xlu0 %v2689, %s2694
      %v2696 = vpop.permute.xlu0 %2695
      %v2697 = vlaneseq
      %v2698 = vshrl.u32 %v2697, 7
      %v2699 = vsub.s32 3, %v2698
      %v2700 = vrot.slane %v2663, %v2699
      %2702 = vbcast.lane.b32.xlu0 %v2700, 256
      %v2703 = vpop.permute.xlu0 %2702
      %s2705 = sor.u32 256, 8
      %2706 = vbcast.lane.b32.xlu0 %v2700, %s2705
      %v2707 = vpop.permute.xlu0 %2706
      %v2708 = vlaneseq
      %v2709 = vshrl.u32 %v2708, 7
      %v2710 = vsub.s32 4, %v2709
      %v2711 = vrot.slane %v2663, %v2710
      %2713 = vbcast.lane.b32.xlu0 %v2711, 256
      %v2714 = vpop.permute.xlu0 %2713
      %s2716 = sor.u32 256, 8
      %2717 = vbcast.lane.b32.xlu0 %v2711, %s2716
      %v2718 = vpop.permute.xlu0 %2717
      %v2719 = vlaneseq
      %v2720 = vshrl.u32 %v2719, 7
      %v2721 = vsub.s32 5, %v2720
      %v2722 = vrot.slane %v2663, %v2721
      %2724 = vbcast.lane.b32.xlu0 %v2722, 256
      %v2725 = vpop.permute.xlu0 %2724
      %s2727 = sor.u32 256, 8
      %2728 = vbcast.lane.b32.xlu0 %v2722, %s2727
      %v2729 = vpop.permute.xlu0 %2728
      %v2730 = vlaneseq
      %v2731 = vshrl.u32 %v2730, 7
      %v2732 = vsub.s32 6, %v2731
      %v2733 = vrot.slane %v2663, %v2732
      %2735 = vbcast.lane.b32.xlu0 %v2733, 256
      %v2736 = vpop.permute.xlu0 %2735
      %s2738 = sor.u32 256, 8
      %2739 = vbcast.lane.b32.xlu0 %v2733, %s2738
      %v2740 = vpop.permute.xlu0 %2739
      %v2741 = vlaneseq
      %v2742 = vshrl.u32 %v2741, 7
      %v2743 = vsub.s32 7, %v2742
      %v2744 = vrot.slane %v2663, %v2743
      %2746 = vbcast.lane.b32.xlu0 %v2744, 256
      %v2747 = vpop.permute.xlu0 %2746
      %s2749 = sor.u32 256, 8
      %2750 = vbcast.lane.b32.xlu0 %v2744, %s2749
      %v2751 = vpop.permute.xlu0 %2750
      %vm2752 = vcmp.eq.s32.totalorder %v2670, %v2434
      %vm2753 = vcmp.eq.s32.totalorder %v2674, %v2434
      %vm2754 = vcmp.eq.s32.totalorder %v2681, %v2434
      %vm2755 = vcmp.eq.s32.totalorder %v2685, %v2434
      %vm2756 = vcmp.eq.s32.totalorder %v2692, %v2434
      %vm2757 = vcmp.eq.s32.totalorder %v2696, %v2434
      %vm2758 = vcmp.eq.s32.totalorder %v2703, %v2434
      %vm2759 = vcmp.eq.s32.totalorder %v2707, %v2434
      %vm2760 = vcmp.eq.s32.totalorder %v2714, %v2434
      %vm2761 = vcmp.eq.s32.totalorder %v2718, %v2434
      %vm2762 = vcmp.eq.s32.totalorder %v2725, %v2434
      %vm2763 = vcmp.eq.s32.totalorder %v2729, %v2434
      %vm2764 = vcmp.eq.s32.totalorder %v2736, %v2434
      %vm2765 = vcmp.eq.s32.totalorder %v2740, %v2434
      %vm2766 = vcmp.eq.s32.totalorder %v2747, %v2434
      %vm2767 = vcmp.eq.s32.totalorder %v2751, %v2434
      %vm2768 = vmor %vm2646, %vm2752
      %vm2769 = vmor %vm2647, %vm2753
      %vm2770 = vmor %vm2648, %vm2754
      %vm2771 = vmor %vm2649, %vm2755
      %vm2772 = vmor %vm2650, %vm2756
      %vm2773 = vmor %vm2651, %vm2757
      %vm2774 = vmor %vm2652, %vm2758
      %vm2775 = vmor %vm2653, %vm2759
      %vm2776 = vmor %vm2654, %vm2760
      %vm2777 = vmor %vm2655, %vm2761
      %vm2778 = vmor %vm2656, %vm2762
      %vm2779 = vmor %vm2657, %vm2763
      %vm2780 = vmor %vm2658, %vm2764
      %vm2781 = vmor %vm2659, %vm2765
      %vm2782 = vmor %vm2660, %vm2766
      %vm2783 = vmor %vm2661, %vm2767
      %v2784 = vsel %vm2768, 1, 0
      %v2785 = vsel %vm2769, 1, 0
      %v2786 = vsel %vm2770, 1, 0
      %v2787 = vsel %vm2771, 1, 0
      %v2788 = vsel %vm2772, 1, 0
      %v2789 = vsel %vm2773, 1, 0
      %v2790 = vsel %vm2774, 1, 0
      %v2791 = vsel %vm2775, 1, 0
      %v2792 = vsel %vm2776, 1, 0
      %v2793 = vsel %vm2777, 1, 0
      %v2794 = vsel %vm2778, 1, 0
      %v2795 = vsel %vm2779, 1, 0
      %v2796 = vsel %vm2780, 1, 0
      %v2797 = vsel %vm2781, 1, 0
      %v2798 = vsel %vm2782, 1, 0
      %v2799 = vsel %vm2783, 1, 0
      %v2800 = vcvt.s32.f32 %v2784
      %v2801 = vcvt.s32.f32 %v2785
      %v2802 = vcvt.s32.f32 %v2786
      %v2803 = vcvt.s32.f32 %v2787
      %v2804 = vcvt.s32.f32 %v2788
      %v2805 = vcvt.s32.f32 %v2789
      %v2806 = vcvt.s32.f32 %v2790
      %v2807 = vcvt.s32.f32 %v2791
      %v2808 = vcvt.s32.f32 %v2792
      %v2809 = vcvt.s32.f32 %v2793
      %v2810 = vcvt.s32.f32 %v2794
      %v2811 = vcvt.s32.f32 %v2795
      %v2812 = vcvt.s32.f32 %v2796
      %v2813 = vcvt.s32.f32 %v2797
      %v2814 = vcvt.s32.f32 %v2798
      %v2815 = vcvt.s32.f32 %v2799
      %v2816 = vld [vmem:[%s16] sm:$0xff]
      %v2817 = vld [vmem:[%s16 + $0x8] sm:$0xff]
      %v2818 = vld [vmem:[%s16 + $0x10] sm:$0xff]
      %v2819 = vld [vmem:[%s16 + $0x18] sm:$0xff]
      %v2820 = vld [vmem:[%s17] sm:$0xff]
      %v2821 = vld [vmem:[%s17 + $0x8] sm:$0xff]
      %v2822 = vld [vmem:[%s17 + $0x10] sm:$0xff]
      %v2823 = vld [vmem:[%s17 + $0x18] sm:$0xff]
      %v2824 = vld [vmem:[%s18] sm:$0xff]
      %v2825 = vld [vmem:[%s18 + $0x8] sm:$0xff]
      %v2826 = vld [vmem:[%s18 + $0x10] sm:$0xff]
      %v2827 = vld [vmem:[%s18 + $0x18] sm:$0xff]
      %v2828 = vld [vmem:[%s14] sm:$0xff]
      %v2829 = vld [vmem:[%s14 + $0x8] sm:$0xff]
      %v2830 = vld [vmem:[%s14 + $0x10] sm:$0xff]
      %v2831 = vld [vmem:[%s14 + $0x18] sm:$0xff]
      %2833 = vrot.lane.b32.xlu0 %v2253, 96
      %v2834 = vpop.permute.xlu0 %2833
      %2837 = vrot.lane.b32.xlu0 %v2431, 64
      %v2838 = vpop.permute.xlu0 %2837
      %2839 = vrot.lane.b32.xlu0 %v2432, 64
      %v2840 = vpop.permute.xlu0 %2839
      %v2841 = vsel %vm1033, %v2834, 0
      %v2843 = vsel %vm1033, %v2838, 0
      %v2845 = vsel %vm1033, %v2840, 0
      %2847 = vmatprep.subr.mxu0 0.0
      %2848 = vmatpush1.xpose.msra.mxu0 0.0
      %2849 = vmatprep.subr.mxu0 0.0
      %2850 = vmatpush1.xpose.msra.mxu0 0.0
      %2851 = vmatprep.subr.mxu0 0.0
      %2852 = vmatpush1.xpose.msra.mxu0 0.0
      %2853 = vmatprep.subr.mxu0 0.0
      %2854 = vmatpush1.xpose.msra.mxu0 0.0
      %2855 = vmatprep.subr.mxu0 0.0
      %2856 = vmatpush1.xpose.msra.mxu0 0.0
      %2857 = vmatprep.subr.mxu0 0.0
      %2858 = vmatpush1.xpose.msra.mxu0 0.0
      %2859 = vmatprep.subr.mxu0 0.0
      %2860 = vmatpush1.xpose.msra.mxu0 0.0
      %2861 = vmatprep.subr.mxu0 0.0
      %2862 = vmatpush1.xpose.msra.mxu0 0.0
      %2863 = vmatprep.subr.mxu0 0.0
      %2864 = vmatpush1.xpose.msra.mxu0 0.0
      %2865 = vmatprep.subr.mxu0 0.0
      %2866 = vmatpush1.xpose.msra.mxu0 0.0
      %2867 = vmatprep.subr.mxu0 0.0
      %2868 = vmatpush1.xpose.msra.mxu0 0.0
      %2869 = vmatprep.subr.mxu0 0.0
      %2870 = vmatpush1.xpose.msra.mxu0 0.0
      %2871 = vmatprep.subr.mxu0 0.0
      %2872 = vmatpush1.xpose.msra.mxu0 0.0
      %2873 = vmatprep.subr.mxu0 0.0
      %2874 = vmatpush1.xpose.msra.mxu0 0.0
      %2875 = vmatprep.subr.mxu0 0.0
      %2876 = vmatpush1.xpose.msra.mxu0 %v2845
      %2877 = vmatprep.subr.mxu0 0.0
      %2878 = vmatpush1.xpose.msra.mxu0 %v2843
      %2879 = vmatprep.subr.mxu0 0.0
      %2880 = vmatpush2.xpose.msra.mxu0 0.0
      %2881 = vmatprep.subr.mxu0 0.0
      %2882 = vmatpush2.xpose.msra.mxu0 0.0
      %2883 = vmatprep.subr.mxu0 0.0
      %2884 = vmatpush2.xpose.msra.mxu0 0.0
      %2885 = vmatprep.subr.mxu0 0.0
      %2886 = vmatpush2.xpose.msra.mxu0 0.0
      %2887 = vmatprep.subr.mxu0 0.0
      %2888 = vmatpush2.xpose.msra.mxu0 0.0
      %2889 = vmatprep.subr.mxu0 0.0
      %2890 = vmatpush2.xpose.msra.mxu0 0.0
      %2891 = vmatprep.subr.mxu0 0.0
      %2892 = vmatpush2.xpose.msra.mxu0 0.0
      %2893 = vmatprep.subr.mxu0 0.0
      %2894 = vmatpush2.xpose.msra.mxu0 0.0
      %2895 = vmatprep.subr.mxu0 0.0
      %2896 = vmatpush2.xpose.msra.mxu0 0.0
      %2897 = vmatprep.subr.mxu0 0.0
      %2898 = vmatpush2.xpose.msra.mxu0 0.0
      %2899 = vmatprep.subr.mxu0 0.0
      %2900 = vmatpush2.xpose.msra.mxu0 0.0
      %2901 = vmatprep.subr.mxu0 0.0
      %2902 = vmatpush2.xpose.msra.mxu0 0.0
      %2903 = vmatprep.subr.mxu0 0.0
      %2904 = vmatpush2.xpose.msra.mxu0 0.0
      %2905 = vmatprep.subr.mxu0 0.0
      %2906 = vmatpush2.xpose.msra.mxu0 0.0
      %2907 = vmatprep.subr.mxu0 0.0
      %2908 = vmatpush2.xpose.msra.mxu0 0.0
      %2909 = vmatprep.subr.mxu0 0.0
      %2910 = vmatpush2.xpose.msra.mxu0 0.0
      %2911 = vmatprep.mubr.f32.mxu0 0.0
      %2912 = vmatmul.mubr.f32.gmra.mxu0 %v2841
      %v2913 = vpop.f32.mrf.mxu0
      %v2914 = vadd.f32 0.0, %v2913
      %v2915 = vpop.f32.mrf.mxu0
      %2916 = vdwg.mxu0
      %v2917 = vsel %vm1033, %v2253, 0
      %v2919 = vsel %vm1033, %v2431, 0
      %v2921 = vsel %vm1033, %v2432, 0
      %2923 = vmatprep.subr.mxu0 0.0
      %2924 = vmatpush1.xpose.msra.mxu0 0.0
      %2925 = vmatprep.subr.mxu0 0.0
      %2926 = vmatpush1.xpose.msra.mxu0 0.0
      %2927 = vmatprep.subr.mxu0 0.0
      %2928 = vmatpush1.xpose.msra.mxu0 0.0
      %2929 = vmatprep.subr.mxu0 0.0
      %2930 = vmatpush1.xpose.msra.mxu0 0.0
      %2931 = vmatprep.subr.mxu0 0.0
      %2932 = vmatpush1.xpose.msra.mxu0 0.0
      %2933 = vmatprep.subr.mxu0 0.0
      %2934 = vmatpush1.xpose.msra.mxu0 0.0
      %2935 = vmatprep.subr.mxu0 0.0
      %2936 = vmatpush1.xpose.msra.mxu0 0.0
      %2937 = vmatprep.subr.mxu0 0.0
      %2938 = vmatpush1.xpose.msra.mxu0 0.0
      %2939 = vmatprep.subr.mxu0 0.0
      %2940 = vmatpush1.xpose.msra.mxu0 0.0
      %2941 = vmatprep.subr.mxu0 0.0
      %2942 = vmatpush1.xpose.msra.mxu0 0.0
      %2943 = vmatprep.subr.mxu0 0.0
      %2944 = vmatpush1.xpose.msra.mxu0 0.0
      %2945 = vmatprep.subr.mxu0 0.0
      %2946 = vmatpush1.xpose.msra.mxu0 0.0
      %2947 = vmatprep.subr.mxu0 0.0
      %2948 = vmatpush1.xpose.msra.mxu0 0.0
      %2949 = vmatprep.subr.mxu0 0.0
      %2950 = vmatpush1.xpose.msra.mxu0 0.0
      %2951 = vmatprep.subr.mxu0 0.0
      %2952 = vmatpush1.xpose.msra.mxu0 %v2921
      %2953 = vmatprep.subr.mxu0 0.0
      %2954 = vmatpush1.xpose.msra.mxu0 %v2919
      %2955 = vmatprep.subr.mxu0 0.0
      %2956 = vmatpush2.xpose.msra.mxu0 0.0
      %2957 = vmatprep.subr.mxu0 0.0
      %2958 = vmatpush2.xpose.msra.mxu0 0.0
      %2959 = vmatprep.subr.mxu0 0.0
      %2960 = vmatpush2.xpose.msra.mxu0 0.0
      %2961 = vmatprep.subr.mxu0 0.0
      %2962 = vmatpush2.xpose.msra.mxu0 0.0
      %2963 = vmatprep.subr.mxu0 0.0
      %2964 = vmatpush2.xpose.msra.mxu0 0.0
      %2965 = vmatprep.subr.mxu0 0.0
      %2966 = vmatpush2.xpose.msra.mxu0 0.0
      %2967 = vmatprep.subr.mxu0 0.0
      %2968 = vmatpush2.xpose.msra.mxu0 0.0
      %2969 = vmatprep.subr.mxu0 0.0
      %2970 = vmatpush2.xpose.msra.mxu0 0.0
      %2971 = vmatprep.subr.mxu0 0.0
      %2972 = vmatpush2.xpose.msra.mxu0 0.0
      %2973 = vmatprep.subr.mxu0 0.0
      %2974 = vmatpush2.xpose.msra.mxu0 0.0
      %2975 = vmatprep.subr.mxu0 0.0
      %2976 = vmatpush2.xpose.msra.mxu0 0.0
      %2977 = vmatprep.subr.mxu0 0.0
      %2978 = vmatpush2.xpose.msra.mxu0 0.0
      %2979 = vmatprep.subr.mxu0 0.0
      %2980 = vmatpush2.xpose.msra.mxu0 0.0
      %2981 = vmatprep.subr.mxu0 0.0
      %2982 = vmatpush2.xpose.msra.mxu0 0.0
      %2983 = vmatprep.subr.mxu0 0.0
      %2984 = vmatpush2.xpose.msra.mxu0 0.0
      %2985 = vmatprep.subr.mxu0 0.0
      %2986 = vmatpush2.xpose.msra.mxu0 0.0
      %2987 = vmatprep.mubr.f32.mxu0 0.0
      %2988 = vmatmul.mubr.f32.gmra.mxu0 %v2917
      %v2989 = vpop.f32.mrf.mxu0
      %v2990 = vadd.f32 %v2914, %v2989
      %v2991 = vpop.f32.mrf.mxu0
      %2992 = vdwg.mxu0
      %2993 = vmatprep.subr.mxu0 0.0
      %2994 = vmatpush1.msra.mxu0 0.0
      %2995 = vmatprep.subr.mxu0 0.0
      %2996 = vmatpush1.msra.mxu0 0.0
      %2997 = vmatprep.subr.mxu0 0.0
      %2998 = vmatpush1.msra.mxu0 0.0
      %2999 = vmatprep.subr.mxu0 0.0
      %3000 = vmatpush1.msra.mxu0 0.0
      %3001 = vmatprep.subr.mxu0 0.0
      %3002 = vmatpush1.msra.mxu0 0.0
      %3003 = vmatprep.subr.mxu0 0.0
      %3004 = vmatpush1.msra.mxu0 0.0
      %3005 = vmatprep.subr.mxu0 0.0
      %3006 = vmatpush1.msra.mxu0 0.0
      %3007 = vmatprep.subr.mxu0 0.0
      %3008 = vmatpush1.msra.mxu0 0.0
      %3009 = vmatprep.subr.mxu0 0.0
      %3010 = vmatpush1.msra.mxu0 0.0
      %3011 = vmatprep.subr.mxu0 0.0
      %3012 = vmatpush1.msra.mxu0 0.0
      %3013 = vmatprep.subr.mxu0 0.0
      %3014 = vmatpush1.msra.mxu0 0.0
      %3015 = vmatprep.subr.mxu0 0.0
      %3016 = vmatpush1.msra.mxu0 0.0
      %3017 = vmatprep.subr.mxu0 0.0
      %3018 = vmatpush1.msra.mxu0 0.0
      %3019 = vmatprep.subr.mxu0 0.0
      %3020 = vmatpush1.msra.mxu0 0.0
      %3021 = vmatprep.subr.mxu0 0.0
      %3022 = vmatpush1.msra.mxu0 0.0
      %3023 = vmatprep.subr.mxu0 0.0
      %3024 = vmatpush1.msra.mxu0 %v2816
      %3025 = vmatprep.subr.mxu0 0.0
      %3026 = vmatpush2.msra.mxu0 0.0
      %3027 = vmatprep.subr.mxu0 0.0
      %3028 = vmatpush2.msra.mxu0 0.0
      %3029 = vmatprep.subr.mxu0 0.0
      %3030 = vmatpush2.msra.mxu0 0.0
      %3031 = vmatprep.subr.mxu0 0.0
      %3032 = vmatpush2.msra.mxu0 0.0
      %3033 = vmatprep.subr.mxu0 0.0
      %3034 = vmatpush2.msra.mxu0 0.0
      %3035 = vmatprep.subr.mxu0 0.0
      %3036 = vmatpush2.msra.mxu0 0.0
      %3037 = vmatprep.subr.mxu0 0.0
      %3038 = vmatpush2.msra.mxu0 0.0
      %3039 = vmatprep.subr.mxu0 0.0
      %3040 = vmatpush2.msra.mxu0 0.0
      %3041 = vmatprep.subr.mxu0 0.0
      %3042 = vmatpush2.msra.mxu0 0.0
      %3043 = vmatprep.subr.mxu0 0.0
      %3044 = vmatpush2.msra.mxu0 0.0
      %3045 = vmatprep.subr.mxu0 0.0
      %3046 = vmatpush2.msra.mxu0 0.0
      %3047 = vmatprep.subr.mxu0 0.0
      %3048 = vmatpush2.msra.mxu0 0.0
      %3049 = vmatprep.subr.mxu0 0.0
      %3050 = vmatpush2.msra.mxu0 0.0
      %3051 = vmatprep.subr.mxu0 0.0
      %3052 = vmatpush2.msra.mxu0 0.0
      %3053 = vmatprep.subr.mxu0 0.0
      %3054 = vmatpush2.msra.mxu0 0.0
      %3055 = vmatprep.subr.mxu0 0.0
      %3056 = vmatpush2.msra.mxu0 0.0
      %3057 = vmatprep.mubr.f32.mxu0 0.0
      %3058 = vmatmul.mubr.f32.gmra.mxu0 %v2917
      %v3059 = vpop.f32.mrf.mxu0
      %v3060 = vadd.f32 0.0, %v3059
      %v3061 = vpop.f32.mrf.mxu0
      %3062 = vdwg.mxu0
      %3063 = vmatprep.subr.mxu0 0.0
      %3064 = vmatpush1.msra.mxu0 0.0
      %3065 = vmatprep.subr.mxu0 0.0
      %3066 = vmatpush1.msra.mxu0 0.0
      %3067 = vmatprep.subr.mxu0 0.0
      %3068 = vmatpush1.msra.mxu0 0.0
      %3069 = vmatprep.subr.mxu0 0.0
      %3070 = vmatpush1.msra.mxu0 0.0
      %3071 = vmatprep.subr.mxu0 0.0
      %3072 = vmatpush1.msra.mxu0 0.0
      %3073 = vmatprep.subr.mxu0 0.0
      %3074 = vmatpush1.msra.mxu0 0.0
      %3075 = vmatprep.subr.mxu0 0.0
      %3076 = vmatpush1.msra.mxu0 0.0
      %3077 = vmatprep.subr.mxu0 0.0
      %3078 = vmatpush1.msra.mxu0 0.0
      %3079 = vmatprep.subr.mxu0 0.0
      %3080 = vmatpush1.msra.mxu0 0.0
      %3081 = vmatprep.subr.mxu0 0.0
      %3082 = vmatpush1.msra.mxu0 0.0
      %3083 = vmatprep.subr.mxu0 0.0
      %3084 = vmatpush1.msra.mxu0 0.0
      %3085 = vmatprep.subr.mxu0 0.0
      %3086 = vmatpush1.msra.mxu0 0.0
      %3087 = vmatprep.subr.mxu0 0.0
      %3088 = vmatpush1.msra.mxu0 0.0
      %3089 = vmatprep.subr.mxu0 0.0
      %3090 = vmatpush1.msra.mxu0 0.0
      %3091 = vmatprep.subr.mxu0 0.0
      %3092 = vmatpush1.msra.mxu0 0.0
      %3093 = vmatprep.subr.mxu0 0.0
      %3094 = vmatpush1.msra.mxu0 %v2820
      %3095 = vmatprep.subr.mxu0 0.0
      %3096 = vmatpush2.msra.mxu0 0.0
      %3097 = vmatprep.subr.mxu0 0.0
      %3098 = vmatpush2.msra.mxu0 0.0
      %3099 = vmatprep.subr.mxu0 0.0
      %3100 = vmatpush2.msra.mxu0 0.0
      %3101 = vmatprep.subr.mxu0 0.0
      %3102 = vmatpush2.msra.mxu0 0.0
      %3103 = vmatprep.subr.mxu0 0.0
      %3104 = vmatpush2.msra.mxu0 0.0
      %3105 = vmatprep.subr.mxu0 0.0
      %3106 = vmatpush2.msra.mxu0 0.0
      %3107 = vmatprep.subr.mxu0 0.0
      %3108 = vmatpush2.msra.mxu0 0.0
      %3109 = vmatprep.subr.mxu0 0.0
      %3110 = vmatpush2.msra.mxu0 0.0
      %3111 = vmatprep.subr.mxu0 0.0
      %3112 = vmatpush2.msra.mxu0 0.0
      %3113 = vmatprep.subr.mxu0 0.0
      %3114 = vmatpush2.msra.mxu0 0.0
      %3115 = vmatprep.subr.mxu0 0.0
      %3116 = vmatpush2.msra.mxu0 0.0
      %3117 = vmatprep.subr.mxu0 0.0
      %3118 = vmatpush2.msra.mxu0 0.0
      %3119 = vmatprep.subr.mxu0 0.0
      %3120 = vmatpush2.msra.mxu0 0.0
      %3121 = vmatprep.subr.mxu0 0.0
      %3122 = vmatpush2.msra.mxu0 0.0
      %3123 = vmatprep.subr.mxu0 0.0
      %3124 = vmatpush2.msra.mxu0 0.0
      %3125 = vmatprep.subr.mxu0 0.0
      %3126 = vmatpush2.msra.mxu0 0.0
      %3127 = vmatprep.mubr.f32.mxu0 0.0
      %3128 = vmatmul.mubr.f32.gmra.mxu0 %v2919
      %v3129 = vpop.f32.mrf.mxu0
      %v3130 = vadd.f32 0.0, %v3129
      %v3131 = vpop.f32.mrf.mxu0
      %3132 = vmatprep.mubr.f32.mxu0 0.0
      %3133 = vmatmul.mubr.f32.gmra.mxu0 %v2921
      %v3134 = vpop.f32.mrf.mxu0
      %v3135 = vadd.f32 0.0, %v3134
      %v3136 = vpop.f32.mrf.mxu0
      %3137 = vdwg.mxu0
      %v3139 = vcombine.high %v3060, %v3060
      %v3141 = vunpack.c.l.s4 1966171168
      %v3142 = vunpack.c.0.s8 %v3141
      %v3143 = vlaneseq
      %v3144 = vshrl.u32 %v3143, 7
      %v3145 = vsub.s32 %v3142, %v3144
      %v3146 = vrot.slane %v3060, %v3145
      %v3148 = vunpack.c.l.s4 1966171168
      %v3149 = vunpack.c.0.s8 %v3148
      %v3150 = vlaneseq
      %v3151 = vshrl.u32 %v3150, 7
      %v3152 = vsub.s32 %v3149, %v3151
      %v3153 = vrot.slane %v3139, %v3152
      %v3154 = vcombine.high %v3146, %v3146
      %v3155 = vcombine.high %v3153, %v3153
      %v3157 = vunpack.c.l.s4 1966171168
      %v3158 = vunpack.c.0.s8 %v3157
      %v3159 = vlaneseq
      %v3160 = vshrl.u32 %v3159, 7
      %v3161 = vsub.s32 %v3158, %v3160
      %v3162 = vrot.slane %v3146, %v3161
      %v3164 = vunpack.c.l.s4 1966171168
      %v3165 = vunpack.c.0.s8 %v3164
      %v3166 = vlaneseq
      %v3167 = vshrl.u32 %v3166, 7
      %v3168 = vsub.s32 %v3165, %v3167
      %v3169 = vrot.slane %v3153, %v3168
      %v3171 = vunpack.c.l.s4 1966171168
      %v3172 = vunpack.c.0.s8 %v3171
      %v3173 = vlaneseq
      %v3174 = vshrl.u32 %v3173, 7
      %v3175 = vsub.s32 %v3172, %v3174
      %v3176 = vrot.slane %v3154, %v3175
      %v3178 = vunpack.c.l.s4 1966171168
      %v3179 = vunpack.c.0.s8 %v3178
      %v3180 = vlaneseq
      %v3181 = vshrl.u32 %v3180, 7
      %v3182 = vsub.s32 %v3179, %v3181
      %v3183 = vrot.slane %v3155, %v3182
      %v3184 = vcombine.high %v3162, %v3162
      %v3185 = vcombine.high %v3169, %v3169
      %v3186 = vcombine.high %v3176, %v3176
      %v3187 = vcombine.high %v3183, %v3183
      %v3188 = vlaneseq
      %v3189 = vshrl.u32 %v3188, 7
      %v3190 = vsub.s32 0, %v3189
      %v3191 = vrot.slane %v3162, %v3190
      %v3192 = vlaneseq
      %v3193 = vshrl.u32 %v3192, 7
      %v3194 = vsub.s32 0, %v3193
      %v3195 = vrot.slane %v3176, %v3194
      %v3196 = vlaneseq
      %v3197 = vshrl.u32 %v3196, 7
      %v3198 = vsub.s32 0, %v3197
      %v3199 = vrot.slane %v3184, %v3198
      %v3200 = vlaneseq
      %v3201 = vshrl.u32 %v3200, 7
      %v3202 = vsub.s32 0, %v3201
      %v3203 = vrot.slane %v3186, %v3202
      %v3204 = vlaneseq
      %v3205 = vshrl.u32 %v3204, 7
      %v3206 = vsub.s32 0, %v3205
      %v3207 = vrot.slane %v3169, %v3206
      %v3208 = vlaneseq
      %v3209 = vshrl.u32 %v3208, 7
      %v3210 = vsub.s32 0, %v3209
      %v3211 = vrot.slane %v3183, %v3210
      %v3212 = vlaneseq
      %v3213 = vshrl.u32 %v3212, 7
      %v3214 = vsub.s32 0, %v3213
      %v3215 = vrot.slane %v3185, %v3214
      %v3216 = vlaneseq
      %v3217 = vshrl.u32 %v3216, 7
      %v3218 = vsub.s32 0, %v3217
      %v3219 = vrot.slane %v3187, %v3218
      %v3228 = vmul.f32 %v3191, %v2800
      %v3229 = vmul.f32 %v3191, %v2801
      %v3230 = vmul.f32 %v3195, %v2802
      %v3231 = vmul.f32 %v3195, %v2803
      %v3232 = vmul.f32 %v3199, %v2804
      %v3233 = vmul.f32 %v3199, %v2805
      %v3234 = vmul.f32 %v3203, %v2806
      %v3235 = vmul.f32 %v3203, %v2807
      %v3236 = vmul.f32 %v3207, %v2808
      %v3237 = vmul.f32 %v3207, %v2809
      %v3238 = vmul.f32 %v3211, %v2810
      %v3239 = vmul.f32 %v3211, %v2811
      %v3240 = vmul.f32 %v3215, %v2812
      %v3241 = vmul.f32 %v3215, %v2813
      %v3242 = vmul.f32 %v3219, %v2814
      %v3243 = vmul.f32 %v3219, %v2815
      %vm3244 = vcmask 195584
      %v3245 = vsel %vm3244, %v3228, 0.0
      %3246 = vadd.xlane.f32.xlu0 %v3245
      %v3247 = vpop.xlane.xlu0 %3246
      %v3248 = vsel %vm3244, %v3229, 0.0
      %3249 = vadd.xlane.f32.xlu0 %v3248
      %v3250 = vpop.xlane.xlu0 %3249
      %v3251 = vsel %vm3244, %v3230, 0.0
      %3252 = vadd.xlane.f32.xlu0 %v3251
      %v3253 = vpop.xlane.xlu0 %3252
      %v3254 = vsel %vm3244, %v3231, 0.0
      %3255 = vadd.xlane.f32.xlu0 %v3254
      %v3256 = vpop.xlane.xlu0 %3255
      %v3257 = vsel %vm3244, %v3232, 0.0
      %3258 = vadd.xlane.f32.xlu0 %v3257
      %v3259 = vpop.xlane.xlu0 %3258
      %v3260 = vsel %vm3244, %v3233, 0.0
      %3261 = vadd.xlane.f32.xlu0 %v3260
      %v3262 = vpop.xlane.xlu0 %3261
      %v3263 = vsel %vm3244, %v3234, 0.0
      %3264 = vadd.xlane.f32.xlu0 %v3263
      %v3265 = vpop.xlane.xlu0 %3264
      %v3266 = vsel %vm3244, %v3235, 0.0
      %3267 = vadd.xlane.f32.xlu0 %v3266
      %v3268 = vpop.xlane.xlu0 %3267
      %v3269 = vsel %vm3244, %v3236, 0.0
      %3270 = vadd.xlane.f32.xlu0 %v3269
      %v3271 = vpop.xlane.xlu0 %3270
      %v3272 = vsel %vm3244, %v3237, 0.0
      %3273 = vadd.xlane.f32.xlu0 %v3272
      %v3274 = vpop.xlane.xlu0 %3273
      %v3275 = vsel %vm3244, %v3238, 0.0
      %3276 = vadd.xlane.f32.xlu0 %v3275
      %v3277 = vpop.xlane.xlu0 %3276
      %v3278 = vsel %vm3244, %v3239, 0.0
      %3279 = vadd.xlane.f32.xlu0 %v3278
      %v3280 = vpop.xlane.xlu0 %3279
      %v3281 = vsel %vm3244, %v3240, 0.0
      %3282 = vadd.xlane.f32.xlu0 %v3281
      %v3283 = vpop.xlane.xlu0 %3282
      %v3284 = vsel %vm3244, %v3241, 0.0
      %3285 = vadd.xlane.f32.xlu0 %v3284
      %v3286 = vpop.xlane.xlu0 %3285
      %v3287 = vsel %vm3244, %v3242, 0.0
      %3288 = vadd.xlane.f32.xlu0 %v3287
      %v3289 = vpop.xlane.xlu0 %3288
      %v3290 = vsel %vm3244, %v3243, 0.0
      %3291 = vadd.xlane.f32.xlu0 %v3290
      %v3292 = vpop.xlane.xlu0 %3291
      %v3309 = vlaneseq
      %v3310 = vshrl.u32 %v3309, 7
      %v3311 = vsub.s32 %v2434, %v3310
      %v3312 = vrot.slane %v3247, %v3311
      %v3313 = vadd.s32 %v2434, 4294967288
      %v3314 = vlaneseq
      %v3315 = vshrl.u32 %v3314, 7
      %v3316 = vsub.s32 %v3313, %v3315
      %v3317 = vrot.slane %v3250, %v3316
      %vm3318 = vcmask 130112
      %v3319 = vsel %vm3318, %v3317, %v3312
      %v3320 = vlaneseq
      %v3321 = vshrl.u32 %v3320, 7
      %v3322 = vsub.s32 %v2434, %v3321
      %v3323 = vrot.slane %v3253, %v3322
      %v3324 = vlaneseq
      %v3325 = vshrl.u32 %v3324, 7
      %v3326 = vsub.s32 %v3313, %v3325
      %v3327 = vrot.slane %v3256, %v3326
      %v3328 = vsel %vm3318, %v3327, %v3323
      %v3329 = vlaneseq
      %v3330 = vshrl.u32 %v3329, 7
      %v3331 = vsub.s32 %v2434, %v3330
      %v3332 = vrot.slane %v3259, %v3331
      %v3333 = vlaneseq
      %v3334 = vshrl.u32 %v3333, 7
      %v3335 = vsub.s32 %v3313, %v3334
      %v3336 = vrot.slane %v3262, %v3335
      %v3337 = vsel %vm3318, %v3336, %v3332
      %v3338 = vlaneseq
      %v3339 = vshrl.u32 %v3338, 7
      %v3340 = vsub.s32 %v2434, %v3339
      %v3341 = vrot.slane %v3265, %v3340
      %v3342 = vlaneseq
      %v3343 = vshrl.u32 %v3342, 7
      %v3344 = vsub.s32 %v3313, %v3343
      %v3345 = vrot.slane %v3268, %v3344
      %v3346 = vsel %vm3318, %v3345, %v3341
      %v3347 = vlaneseq
      %v3348 = vshrl.u32 %v3347, 7
      %v3349 = vsub.s32 %v2434, %v3348
      %v3350 = vrot.slane %v3271, %v3349
      %v3351 = vlaneseq
      %v3352 = vshrl.u32 %v3351, 7
      %v3353 = vsub.s32 %v3313, %v3352
      %v3354 = vrot.slane %v3274, %v3353
      %v3355 = vsel %vm3318, %v3354, %v3350
      %v3356 = vlaneseq
      %v3357 = vshrl.u32 %v3356, 7
      %v3358 = vsub.s32 %v2434, %v3357
      %v3359 = vrot.slane %v3277, %v3358
      %v3360 = vlaneseq
      %v3361 = vshrl.u32 %v3360, 7
      %v3362 = vsub.s32 %v3313, %v3361
      %v3363 = vrot.slane %v3280, %v3362
      %v3364 = vsel %vm3318, %v3363, %v3359
      %v3365 = vlaneseq
      %v3366 = vshrl.u32 %v3365, 7
      %v3367 = vsub.s32 %v2434, %v3366
      %v3368 = vrot.slane %v3283, %v3367
      %v3369 = vlaneseq
      %v3370 = vshrl.u32 %v3369, 7
      %v3371 = vsub.s32 %v3313, %v3370
      %v3372 = vrot.slane %v3286, %v3371
      %v3373 = vsel %vm3318, %v3372, %v3368
      %v3374 = vlaneseq
      %v3375 = vshrl.u32 %v3374, 7
      %v3376 = vsub.s32 %v2434, %v3375
      %v3377 = vrot.slane %v3289, %v3376
      %v3378 = vlaneseq
      %v3379 = vshrl.u32 %v3378, 7
      %v3380 = vsub.s32 %v3313, %v3379
      %v3381 = vrot.slane %v3292, %v3380
      %v3382 = vsel %vm3318, %v3381, %v3377
      %vm3383 = vcmask 1041409
      %v3384 = vsel %vm3383, %v3328, %v3319
      %vm3385 = vcmask 1042434
      %v3386 = vsel %vm3385, %v3337, %v3384
      %vm3387 = vcmask 1043459
      %v3388 = vsel %vm3387, %v3346, %v3386
      %vm3389 = vcmask 1044484
      %v3390 = vsel %vm3389, %v3355, %v3388
      %vm3391 = vcmask 1045509
      %v3392 = vsel %vm3391, %v3364, %v3390
      %vm3393 = vcmask 1046534
      %v3394 = vsel %vm3393, %v3373, %v3392
      %vm3395 = vcmask 1047559
      %v3396 = vsel %vm3395, %v3382, %v3394
      %v3398 = vadd.f32 %v2990, %v3396
      %v3399 = vmul.f32 %v3130, %v2800
      %v3400 = vmul.f32 %v3135, %v2801
      %v3401 = vmul.f32 %v3130, %v2802
      %v3402 = vmul.f32 %v3135, %v2803
      %v3403 = vmul.f32 %v3130, %v2804
      %v3404 = vmul.f32 %v3135, %v2805
      %v3405 = vmul.f32 %v3130, %v2806
      %v3406 = vmul.f32 %v3135, %v2807
      %v3407 = vmul.f32 %v3130, %v2808
      %v3408 = vmul.f32 %v3135, %v2809
      %v3409 = vmul.f32 %v3130, %v2810
      %v3410 = vmul.f32 %v3135, %v2811
      %v3411 = vmul.f32 %v3130, %v2812
      %v3412 = vmul.f32 %v3135, %v2813
      %v3413 = vmul.f32 %v3130, %v2814
      %v3414 = vmul.f32 %v3135, %v2815
      %v3415 = vsel %vm3244, %v3399, 0.0
      %3416 = vadd.xlane.f32.xlu0 %v3415
      %v3417 = vpop.xlane.xlu0 %3416
      %v3418 = vsel %vm3244, %v3400, 0.0
      %3419 = vadd.xlane.f32.xlu0 %v3418
      %v3420 = vpop.xlane.xlu0 %3419
      %v3421 = vsel %vm3244, %v3401, 0.0
      %3422 = vadd.xlane.f32.xlu0 %v3421
      %v3423 = vpop.xlane.xlu0 %3422
      %v3424 = vsel %vm3244, %v3402, 0.0
      %3425 = vadd.xlane.f32.xlu0 %v3424
      %v3426 = vpop.xlane.xlu0 %3425
      %v3427 = vsel %vm3244, %v3403, 0.0
      %3428 = vadd.xlane.f32.xlu0 %v3427
      %v3429 = vpop.xlane.xlu0 %3428
      %v3430 = vsel %vm3244, %v3404, 0.0
      %3431 = vadd.xlane.f32.xlu0 %v3430
      %v3432 = vpop.xlane.xlu0 %3431
      %v3433 = vsel %vm3244, %v3405, 0.0
      %3434 = vadd.xlane.f32.xlu0 %v3433
      %v3435 = vpop.xlane.xlu0 %3434
      %v3436 = vsel %vm3244, %v3406, 0.0
      %3437 = vadd.xlane.f32.xlu0 %v3436
      %v3438 = vpop.xlane.xlu0 %3437
      %v3439 = vsel %vm3244, %v3407, 0.0
      %3440 = vadd.xlane.f32.xlu0 %v3439
      %v3441 = vpop.xlane.xlu0 %3440
      %v3442 = vsel %vm3244, %v3408, 0.0
      %3443 = vadd.xlane.f32.xlu0 %v3442
      %v3444 = vpop.xlane.xlu0 %3443
      %v3445 = vsel %vm3244, %v3409, 0.0
      %3446 = vadd.xlane.f32.xlu0 %v3445
      %v3447 = vpop.xlane.xlu0 %3446
      %v3448 = vsel %vm3244, %v3410, 0.0
      %3449 = vadd.xlane.f32.xlu0 %v3448
      %v3450 = vpop.xlane.xlu0 %3449
      %v3451 = vsel %vm3244, %v3411, 0.0
      %3452 = vadd.xlane.f32.xlu0 %v3451
      %v3453 = vpop.xlane.xlu0 %3452
      %v3454 = vsel %vm3244, %v3412, 0.0
      %3455 = vadd.xlane.f32.xlu0 %v3454
      %v3456 = vpop.xlane.xlu0 %3455
      %v3457 = vsel %vm3244, %v3413, 0.0
      %3458 = vadd.xlane.f32.xlu0 %v3457
      %v3459 = vpop.xlane.xlu0 %3458
      %v3460 = vsel %vm3244, %v3414, 0.0
      %3461 = vadd.xlane.f32.xlu0 %v3460
      %v3462 = vpop.xlane.xlu0 %3461
      %v3479 = vlaneseq
      %v3480 = vshrl.u32 %v3479, 7
      %v3481 = vsub.s32 %v2434, %v3480
      %v3482 = vrot.slane %v3417, %v3481
      %v3483 = vlaneseq
      %v3484 = vshrl.u32 %v3483, 7
      %v3485 = vsub.s32 %v3313, %v3484
      %v3486 = vrot.slane %v3420, %v3485
      %v3487 = vsel %vm3318, %v3486, %v3482
      %v3488 = vlaneseq
      %v3489 = vshrl.u32 %v3488, 7
      %v3490 = vsub.s32 %v2434, %v3489
      %v3491 = vrot.slane %v3423, %v3490
      %v3492 = vlaneseq
      %v3493 = vshrl.u32 %v3492, 7
      %v3494 = vsub.s32 %v3313, %v3493
      %v3495 = vrot.slane %v3426, %v3494
      %v3496 = vsel %vm3318, %v3495, %v3491
      %v3497 = vlaneseq
      %v3498 = vshrl.u32 %v3497, 7
      %v3499 = vsub.s32 %v2434, %v3498
      %v3500 = vrot.slane %v3429, %v3499
      %v3501 = vlaneseq
      %v3502 = vshrl.u32 %v3501, 7
      %v3503 = vsub.s32 %v3313, %v3502
      %v3504 = vrot.slane %v3432, %v3503
      %v3505 = vsel %vm3318, %v3504, %v3500
      %v3506 = vlaneseq
      %v3507 = vshrl.u32 %v3506, 7
      %v3508 = vsub.s32 %v2434, %v3507
      %v3509 = vrot.slane %v3435, %v3508
      %v3510 = vlaneseq
      %v3511 = vshrl.u32 %v3510, 7
      %v3512 = vsub.s32 %v3313, %v3511
      %v3513 = vrot.slane %v3438, %v3512
      %v3514 = vsel %vm3318, %v3513, %v3509
      %v3515 = vlaneseq
      %v3516 = vshrl.u32 %v3515, 7
      %v3517 = vsub.s32 %v2434, %v3516
      %v3518 = vrot.slane %v3441, %v3517
      %v3519 = vlaneseq
      %v3520 = vshrl.u32 %v3519, 7
      %v3521 = vsub.s32 %v3313, %v3520
      %v3522 = vrot.slane %v3444, %v3521
      %v3523 = vsel %vm3318, %v3522, %v3518
      %v3524 = vlaneseq
      %v3525 = vshrl.u32 %v3524, 7
      %v3526 = vsub.s32 %v2434, %v3525
      %v3527 = vrot.slane %v3447, %v3526
      %v3528 = vlaneseq
      %v3529 = vshrl.u32 %v3528, 7
      %v3530 = vsub.s32 %v3313, %v3529
      %v3531 = vrot.slane %v3450, %v3530
      %v3532 = vsel %vm3318, %v3531, %v3527
      %v3533 = vlaneseq
      %v3534 = vshrl.u32 %v3533, 7
      %v3535 = vsub.s32 %v2434, %v3534
      %v3536 = vrot.slane %v3453, %v3535
      %v3537 = vlaneseq
      %v3538 = vshrl.u32 %v3537, 7
      %v3539 = vsub.s32 %v3313, %v3538
      %v3540 = vrot.slane %v3456, %v3539
      %v3541 = vsel %vm3318, %v3540, %v3536
      %v3542 = vlaneseq
      %v3543 = vshrl.u32 %v3542, 7
      %v3544 = vsub.s32 %v2434, %v3543
      %v3545 = vrot.slane %v3459, %v3544
      %v3546 = vlaneseq
      %v3547 = vshrl.u32 %v3546, 7
      %v3548 = vsub.s32 %v3313, %v3547
      %v3549 = vrot.slane %v3462, %v3548
      %v3550 = vsel %vm3318, %v3549, %v3545
      %v3551 = vsel %vm3383, %v3496, %v3487
      %v3552 = vsel %vm3385, %v3505, %v3551
      %v3553 = vsel %vm3387, %v3514, %v3552
      %v3554 = vsel %vm3389, %v3523, %v3553
      %v3555 = vsel %vm3391, %v3532, %v3554
      %v3556 = vsel %vm3393, %v3541, %v3555
      %v3557 = vsel %vm3395, %v3550, %v3556
      %v3559 = vadd.f32 %v3398, %v3557
      %vm3560 = vcmask 130048
      %v3561 = vsel %vm3560, %v3559, -inf
      %3562 = vmax.xlane.f32.xlu0 %v3561
      %v3563 = vpop.xlane.xlu0 %3562
      %v3564 = vsub.f32 %v3559, %v3563
      %v3565 = vmul.f32 %v3564, 1.442695
      %v3566 = vpow.pop %v3565
      %v3567 = vsel %vm3560, %v3566, 0.0
      %3568 = vadd.xlane.f32.xlu0 %v3567
      %v3569 = vpop.xlane.xlu0 %3568
      %v3570 = vrcp.pop %v3569
      %v3571 = vmul.f32 %v3566, %v3570
      %v3572 = vlaneseq
      %v3573 = vshrl.u32 %v3572, 7
      %v3574 = vsub.s32 0, %v3573
      %v3575 = vrot.slane %v3571, %v3574
      %3577 = vbcast.lane.b32.xlu0 %v3575, 256
      %v3578 = vpop.permute.xlu0 %3577
      %s3580 = sor.u32 256, 8
      %3581 = vbcast.lane.b32.xlu0 %v3575, %s3580
      %v3582 = vpop.permute.xlu0 %3581
      %v3583 = vlaneseq
      %v3584 = vshrl.u32 %v3583, 7
      %v3585 = vsub.s32 1, %v3584
      %v3586 = vrot.slane %v3571, %v3585
      %3588 = vbcast.lane.b32.xlu0 %v3586, 256
      %v3589 = vpop.permute.xlu0 %3588
      %s3591 = sor.u32 256, 8
      %3592 = vbcast.lane.b32.xlu0 %v3586, %s3591
      %v3593 = vpop.permute.xlu0 %3592
      %v3594 = vlaneseq
      %v3595 = vshrl.u32 %v3594, 7
      %v3596 = vsub.s32 2, %v3595
      %v3597 = vrot.slane %v3571, %v3596
      %3599 = vbcast.lane.b32.xlu0 %v3597, 256
      %v3600 = vpop.permute.xlu0 %3599
      %s3602 = sor.u32 256, 8
      %3603 = vbcast.lane.b32.xlu0 %v3597, %s3602
      %v3604 = vpop.permute.xlu0 %3603
      %v3605 = vlaneseq
      %v3606 = vshrl.u32 %v3605, 7
      %v3607 = vsub.s32 3, %v3606
      %v3608 = vrot.slane %v3571, %v3607
      %3610 = vbcast.lane.b32.xlu0 %v3608, 256
      %v3611 = vpop.permute.xlu0 %3610
      %s3613 = sor.u32 256, 8
      %3614 = vbcast.lane.b32.xlu0 %v3608, %s3613
      %v3615 = vpop.permute.xlu0 %3614
      %v3616 = vlaneseq
      %v3617 = vshrl.u32 %v3616, 7
      %v3618 = vsub.s32 4, %v3617
      %v3619 = vrot.slane %v3571, %v3618
      %3621 = vbcast.lane.b32.xlu0 %v3619, 256
      %v3622 = vpop.permute.xlu0 %3621
      %s3624 = sor.u32 256, 8
      %3625 = vbcast.lane.b32.xlu0 %v3619, %s3624
      %v3626 = vpop.permute.xlu0 %3625
      %v3627 = vlaneseq
      %v3628 = vshrl.u32 %v3627, 7
      %v3629 = vsub.s32 5, %v3628
      %v3630 = vrot.slane %v3571, %v3629
      %3632 = vbcast.lane.b32.xlu0 %v3630, 256
      %v3633 = vpop.permute.xlu0 %3632
      %s3635 = sor.u32 256, 8
      %3636 = vbcast.lane.b32.xlu0 %v3630, %s3635
      %v3637 = vpop.permute.xlu0 %3636
      %v3638 = vlaneseq
      %v3639 = vshrl.u32 %v3638, 7
      %v3640 = vsub.s32 6, %v3639
      %v3641 = vrot.slane %v3571, %v3640
      %3643 = vbcast.lane.b32.xlu0 %v3641, 256
      %v3644 = vpop.permute.xlu0 %3643
      %s3646 = sor.u32 256, 8
      %3647 = vbcast.lane.b32.xlu0 %v3641, %s3646
      %v3648 = vpop.permute.xlu0 %3647
      %v3649 = vlaneseq
      %v3650 = vshrl.u32 %v3649, 7
      %v3651 = vsub.s32 7, %v3650
      %v3652 = vrot.slane %v3571, %v3651
      %3654 = vbcast.lane.b32.xlu0 %v3652, 256
      %v3655 = vpop.permute.xlu0 %3654
      %s3657 = sor.u32 256, 8
      %3658 = vbcast.lane.b32.xlu0 %v3652, %s3657
      %v3659 = vpop.permute.xlu0 %3658
      %v3660 = vmul.f32 %v3578, %v2800
      %v3661 = vmul.f32 %v3582, %v2801
      %v3662 = vmul.f32 %v3589, %v2802
      %v3663 = vmul.f32 %v3593, %v2803
      %v3664 = vmul.f32 %v3600, %v2804
      %v3665 = vmul.f32 %v3604, %v2805
      %v3666 = vmul.f32 %v3611, %v2806
      %v3667 = vmul.f32 %v3615, %v2807
      %v3668 = vmul.f32 %v3622, %v2808
      %v3669 = vmul.f32 %v3626, %v2809
      %v3670 = vmul.f32 %v3633, %v2810
      %v3671 = vmul.f32 %v3637, %v2811
      %v3672 = vmul.f32 %v3644, %v2812
      %v3673 = vmul.f32 %v3648, %v2813
      %v3674 = vmul.f32 %v3655, %v2814
      %v3675 = vmul.f32 %v3659, %v2815
      %v3676 = vsel %vm3244, %v3660, 0.0
      %v3677 = vsel %vm3244, %v3661, 0.0
      %v3678 = vadd.f32 %v3676, %v3677
      %v3679 = vrot.slane %v3678, 4
      %v3680 = vadd.f32 %v3678, %v3679
      %v3681 = vrot.slane %v3680, 2
      %v3682 = vadd.f32 %v3680, %v3681
      %v3683 = vrot.slane %v3682, 1
      %v3684 = vadd.f32 %v3682, %v3683
      %v3685 = vsel %vm3244, %v3662, 0.0
      %v3686 = vsel %vm3244, %v3663, 0.0
      %v3687 = vadd.f32 %v3685, %v3686
      %v3688 = vrot.slane %v3687, 4
      %v3689 = vadd.f32 %v3687, %v3688
      %v3690 = vrot.slane %v3689, 2
      %v3691 = vadd.f32 %v3689, %v3690
      %v3692 = vrot.slane %v3691, 1
      %v3693 = vadd.f32 %v3691, %v3692
      %v3694 = vsel %vm3244, %v3664, 0.0
      %v3695 = vsel %vm3244, %v3665, 0.0
      %v3696 = vadd.f32 %v3694, %v3695
      %v3697 = vrot.slane %v3696, 4
      %v3698 = vadd.f32 %v3696, %v3697
      %v3699 = vrot.slane %v3698, 2
      %v3700 = vadd.f32 %v3698, %v3699
      %v3701 = vrot.slane %v3700, 1
      %v3702 = vadd.f32 %v3700, %v3701
      %v3703 = vsel %vm3244, %v3666, 0.0
      %v3704 = vsel %vm3244, %v3667, 0.0
      %v3705 = vadd.f32 %v3703, %v3704
      %v3706 = vrot.slane %v3705, 4
      %v3707 = vadd.f32 %v3705, %v3706
      %v3708 = vrot.slane %v3707, 2
      %v3709 = vadd.f32 %v3707, %v3708
      %v3710 = vrot.slane %v3709, 1
      %v3711 = vadd.f32 %v3709, %v3710
      %v3712 = vsel %vm3244, %v3668, 0.0
      %v3713 = vsel %vm3244, %v3669, 0.0
      %v3714 = vadd.f32 %v3712, %v3713
      %v3715 = vrot.slane %v3714, 4
      %v3716 = vadd.f32 %v3714, %v3715
      %v3717 = vrot.slane %v3716, 2
      %v3718 = vadd.f32 %v3716, %v3717
      %v3719 = vrot.slane %v3718, 1
      %v3720 = vadd.f32 %v3718, %v3719
      %v3721 = vsel %vm3244, %v3670, 0.0
      %v3722 = vsel %vm3244, %v3671, 0.0
      %v3723 = vadd.f32 %v3721, %v3722
      %v3724 = vrot.slane %v3723, 4
      %v3725 = vadd.f32 %v3723, %v3724
      %v3726 = vrot.slane %v3725, 2
      %v3727 = vadd.f32 %v3725, %v3726
      %v3728 = vrot.slane %v3727, 1
      %v3729 = vadd.f32 %v3727, %v3728
      %v3730 = vsel %vm3244, %v3672, 0.0
      %v3731 = vsel %vm3244, %v3673, 0.0
      %v3732 = vadd.f32 %v3730, %v3731
      %v3733 = vrot.slane %v3732, 4
      %v3734 = vadd.f32 %v3732, %v3733
      %v3735 = vrot.slane %v3734, 2
      %v3736 = vadd.f32 %v3734, %v3735
      %v3737 = vrot.slane %v3736, 1
      %v3738 = vadd.f32 %v3736, %v3737
      %v3739 = vsel %vm3244, %v3674, 0.0
      %v3740 = vsel %vm3244, %v3675, 0.0
      %v3741 = vadd.f32 %v3739, %v3740
      %v3742 = vrot.slane %v3741, 4
      %v3743 = vadd.f32 %v3741, %v3742
      %v3744 = vrot.slane %v3743, 2
      %v3745 = vadd.f32 %v3743, %v3744
      %v3746 = vrot.slane %v3745, 1
      %v3747 = vadd.f32 %v3745, %v3746
      %v3756 = vsel %vm3383, %v3693, %v3684
      %v3757 = vsel %vm3385, %v3702, %v3756
      %v3758 = vsel %vm3387, %v3711, %v3757
      %v3759 = vsel %vm3389, %v3720, %v3758
      %v3760 = vsel %vm3391, %v3729, %v3759
      %v3761 = vsel %vm3393, %v3738, %v3760
      %v3762 = vsel %vm3395, %v3747, %v3761
      %v3763 = vsel %vm3244, %v3762, 0
      %v3766 = vsel %vm3244, %v2824, 0
      %3768 = vmatprep.subr.mxu0 0.0
      %3769 = vmatpush1.xpose.msra.mxu0 0.0
      %3770 = vmatprep.subr.mxu0 0.0
      %3771 = vmatpush1.xpose.msra.mxu0 0.0
      %3772 = vmatprep.subr.mxu0 0.0
      %3773 = vmatpush1.xpose.msra.mxu0 0.0
      %3774 = vmatprep.subr.mxu0 0.0
      %3775 = vmatpush1.xpose.msra.mxu0 0.0
      %3776 = vmatprep.subr.mxu0 0.0
      %3777 = vmatpush1.xpose.msra.mxu0 0.0
      %3778 = vmatprep.subr.mxu0 0.0
      %3779 = vmatpush1.xpose.msra.mxu0 0.0
      %3780 = vmatprep.subr.mxu0 0.0
      %3781 = vmatpush1.xpose.msra.mxu0 0.0
      %3782 = vmatprep.subr.mxu0 0.0
      %3783 = vmatpush1.xpose.msra.mxu0 0.0
      %3784 = vmatprep.subr.mxu0 0.0
      %3785 = vmatpush1.xpose.msra.mxu0 0.0
      %3786 = vmatprep.subr.mxu0 0.0
      %3787 = vmatpush1.xpose.msra.mxu0 0.0
      %3788 = vmatprep.subr.mxu0 0.0
      %3789 = vmatpush1.xpose.msra.mxu0 0.0
      %3790 = vmatprep.subr.mxu0 0.0
      %3791 = vmatpush1.xpose.msra.mxu0 0.0
      %3792 = vmatprep.subr.mxu0 0.0
      %3793 = vmatpush1.xpose.msra.mxu0 0.0
      %3794 = vmatprep.subr.mxu0 0.0
      %3795 = vmatpush1.xpose.msra.mxu0 0.0
      %3796 = vmatprep.subr.mxu0 0.0
      %3797 = vmatpush1.xpose.msra.mxu0 0.0
      %3798 = vmatprep.subr.mxu0 0.0
      %3799 = vmatpush1.xpose.msra.mxu0 %v3766
      %3800 = vmatprep.subr.mxu0 0.0
      %3801 = vmatpush2.xpose.msra.mxu0 0.0
      %3802 = vmatprep.subr.mxu0 0.0
      %3803 = vmatpush2.xpose.msra.mxu0 0.0
      %3804 = vmatprep.subr.mxu0 0.0
      %3805 = vmatpush2.xpose.msra.mxu0 0.0
      %3806 = vmatprep.subr.mxu0 0.0
      %3807 = vmatpush2.xpose.msra.mxu0 0.0
      %3808 = vmatprep.subr.mxu0 0.0
      %3809 = vmatpush2.xpose.msra.mxu0 0.0
      %3810 = vmatprep.subr.mxu0 0.0
      %3811 = vmatpush2.xpose.msra.mxu0 0.0
      %3812 = vmatprep.subr.mxu0 0.0
      %3813 = vmatpush2.xpose.msra.mxu0 0.0
      %3814 = vmatprep.subr.mxu0 0.0
      %3815 = vmatpush2.xpose.msra.mxu0 0.0
      %3816 = vmatprep.subr.mxu0 0.0
      %3817 = vmatpush2.xpose.msra.mxu0 0.0
      %3818 = vmatprep.subr.mxu0 0.0
      %3819 = vmatpush2.xpose.msra.mxu0 0.0
      %3820 = vmatprep.subr.mxu0 0.0
      %3821 = vmatpush2.xpose.msra.mxu0 0.0
      %3822 = vmatprep.subr.mxu0 0.0
      %3823 = vmatpush2.xpose.msra.mxu0 0.0
      %3824 = vmatprep.subr.mxu0 0.0
      %3825 = vmatpush2.xpose.msra.mxu0 0.0
      %3826 = vmatprep.subr.mxu0 0.0
      %3827 = vmatpush2.xpose.msra.mxu0 0.0
      %3828 = vmatprep.subr.mxu0 0.0
      %3829 = vmatpush2.xpose.msra.mxu0 0.0
      %3830 = vmatprep.subr.mxu0 0.0
      %3831 = vmatpush2.xpose.msra.mxu0 0.0
      %3832 = vmatprep.mubr.f32.mxu0 0.0
      %3833 = vmatmul.mubr.f32.gmra.mxu0 %v3763
      %v3834 = vpop.f32.mrf.mxu0
      %v3835 = vadd.f32 0.0, %v3834
      %v3836 = vpop.f32.mrf.mxu0
      %3837 = vdwg.mxu0
      %3838 = vrot.lane.b32.xlu0 %v2431, 96
      %v3839 = vpop.permute.xlu0 %3838
      %3840 = vrot.lane.b32.xlu0 %v2432, 96
      %v3841 = vpop.permute.xlu0 %3840
      %v3845 = vsel %vm3560, %v3571, 0
      %3847 = vmatprep.subr.mxu0 0.0
      %3848 = vmatpush1.msra.mxu0 0.0
      %3849 = vmatprep.subr.mxu0 0.0
      %3850 = vmatpush1.msra.mxu0 0.0
      %3851 = vmatprep.subr.mxu0 0.0
      %3852 = vmatpush1.msra.mxu0 0.0
      %3853 = vmatprep.subr.mxu0 0.0
      %3854 = vmatpush1.msra.mxu0 0.0
      %3855 = vmatprep.subr.mxu0 0.0
      %3856 = vmatpush1.msra.mxu0 0.0
      %3857 = vmatprep.subr.mxu0 0.0
      %3858 = vmatpush1.msra.mxu0 0.0
      %3859 = vmatprep.subr.mxu0 0.0
      %3860 = vmatpush1.msra.mxu0 0.0
      %3861 = vmatprep.subr.mxu0 0.0
      %3862 = vmatpush1.msra.mxu0 0.0
      %3863 = vmatprep.subr.mxu0 0.0
      %3864 = vmatpush1.msra.mxu0 0.0
      %3865 = vmatprep.subr.mxu0 0.0
      %3866 = vmatpush1.msra.mxu0 0.0
      %3867 = vmatprep.subr.mxu0 0.0
      %3868 = vmatpush1.msra.mxu0 0.0
      %3869 = vmatprep.subr.mxu0 0.0
      %3870 = vmatpush1.msra.mxu0 0.0
      %3871 = vmatprep.subr.mxu0 0.0
      %3872 = vmatpush1.msra.mxu0 0.0
      %3873 = vmatprep.subr.mxu0 0.0
      %3874 = vmatpush1.msra.mxu0 0.0
      %3875 = vmatprep.subr.mxu0 0.0
      %3876 = vmatpush1.msra.mxu0 %v3841
      %3877 = vmatprep.subr.mxu0 0.0
      %3878 = vmatpush1.msra.mxu0 %v3839
      %3879 = vmatprep.subr.mxu0 0.0
      %3880 = vmatpush2.msra.mxu0 0.0
      %3881 = vmatprep.subr.mxu0 0.0
      %3882 = vmatpush2.msra.mxu0 0.0
      %3883 = vmatprep.subr.mxu0 0.0
      %3884 = vmatpush2.msra.mxu0 0.0
      %3885 = vmatprep.subr.mxu0 0.0
      %3886 = vmatpush2.msra.mxu0 0.0
      %3887 = vmatprep.subr.mxu0 0.0
      %3888 = vmatpush2.msra.mxu0 0.0
      %3889 = vmatprep.subr.mxu0 0.0
      %3890 = vmatpush2.msra.mxu0 0.0
      %3891 = vmatprep.subr.mxu0 0.0
      %3892 = vmatpush2.msra.mxu0 0.0
      %3893 = vmatprep.subr.mxu0 0.0
      %3894 = vmatpush2.msra.mxu0 0.0
      %3895 = vmatprep.subr.mxu0 0.0
      %3896 = vmatpush2.msra.mxu0 0.0
      %3897 = vmatprep.subr.mxu0 0.0
      %3898 = vmatpush2.msra.mxu0 0.0
      %3899 = vmatprep.subr.mxu0 0.0
      %3900 = vmatpush2.msra.mxu0 0.0
      %3901 = vmatprep.subr.mxu0 0.0
      %3902 = vmatpush2.msra.mxu0 0.0
      %3903 = vmatprep.subr.mxu0 0.0
      %3904 = vmatpush2.msra.mxu0 0.0
      %3905 = vmatprep.subr.mxu0 0.0
      %3906 = vmatpush2.msra.mxu0 0.0
      %3907 = vmatprep.subr.mxu0 0.0
      %3908 = vmatpush2.msra.mxu0 0.0
      %3909 = vmatprep.subr.mxu0 0.0
      %3910 = vmatpush2.msra.mxu0 0.0
      %3911 = vmatprep.mubr.f32.mxu0 0.0
      %3912 = vmatmul.mubr.f32.gmra.mxu0 %v3845
      %v3913 = vpop.f32.mrf.mxu0
      %v3914 = vadd.f32 %v3835, %v3913
      %v3915 = vpop.f32.mrf.mxu0
      %3916 = vdwg.mxu0
      %3917 = vrot.lane.b32.xlu0 %v2253, 88
      %v3918 = vpop.permute.xlu0 %3917
      %3919 = vrot.lane.b32.xlu0 %v2431, 56
      %v3920 = vpop.permute.xlu0 %3919
      %3921 = vrot.lane.b32.xlu0 %v2432, 56
      %v3922 = vpop.permute.xlu0 %3921
      %v3923 = vsel %vm1033, %v3918, 0
      %v3925 = vsel %vm1033, %v3920, 0
      %v3927 = vsel %vm1033, %v3922, 0
      %3929 = vmatprep.subr.mxu0 0.0
      %3930 = vmatpush1.xpose.msra.mxu0 0.0
      %3931 = vmatprep.subr.mxu0 0.0
      %3932 = vmatpush1.xpose.msra.mxu0 0.0
      %3933 = vmatprep.subr.mxu0 0.0
      %3934 = vmatpush1.xpose.msra.mxu0 0.0
      %3935 = vmatprep.subr.mxu0 0.0
      %3936 = vmatpush1.xpose.msra.mxu0 0.0
      %3937 = vmatprep.subr.mxu0 0.0
      %3938 = vmatpush1.xpose.msra.mxu0 0.0
      %3939 = vmatprep.subr.mxu0 0.0
      %3940 = vmatpush1.xpose.msra.mxu0 0.0
      %3941 = vmatprep.subr.mxu0 0.0
      %3942 = vmatpush1.xpose.msra.mxu0 0.0
      %3943 = vmatprep.subr.mxu0 0.0
      %3944 = vmatpush1.xpose.msra.mxu0 0.0
      %3945 = vmatprep.subr.mxu0 0.0
      %3946 = vmatpush1.xpose.msra.mxu0 0.0
      %3947 = vmatprep.subr.mxu0 0.0
      %3948 = vmatpush1.xpose.msra.mxu0 0.0
      %3949 = vmatprep.subr.mxu0 0.0
      %3950 = vmatpush1.xpose.msra.mxu0 0.0
      %3951 = vmatprep.subr.mxu0 0.0
      %3952 = vmatpush1.xpose.msra.mxu0 0.0
      %3953 = vmatprep.subr.mxu0 0.0
      %3954 = vmatpush1.xpose.msra.mxu0 0.0
      %3955 = vmatprep.subr.mxu0 0.0
      %3956 = vmatpush1.xpose.msra.mxu0 0.0
      %3957 = vmatprep.subr.mxu0 0.0
      %3958 = vmatpush1.xpose.msra.mxu0 %v3927
      %3959 = vmatprep.subr.mxu0 0.0
      %3960 = vmatpush1.xpose.msra.mxu0 %v3925
      %3961 = vmatprep.subr.mxu0 0.0
      %3962 = vmatpush2.xpose.msra.mxu0 0.0
      %3963 = vmatprep.subr.mxu0 0.0
      %3964 = vmatpush2.xpose.msra.mxu0 0.0
      %3965 = vmatprep.subr.mxu0 0.0
      %3966 = vmatpush2.xpose.msra.mxu0 0.0
      %3967 = vmatprep.subr.mxu0 0.0
      %3968 = vmatpush2.xpose.msra.mxu0 0.0
      %3969 = vmatprep.subr.mxu0 0.0
      %3970 = vmatpush2.xpose.msra.mxu0 0.0
      %3971 = vmatprep.subr.mxu0 0.0
      %3972 = vmatpush2.xpose.msra.mxu0 0.0
      %3973 = vmatprep.subr.mxu0 0.0
      %3974 = vmatpush2.xpose.msra.mxu0 0.0
      %3975 = vmatprep.subr.mxu0 0.0
      %3976 = vmatpush2.xpose.msra.mxu0 0.0
      %3977 = vmatprep.subr.mxu0 0.0
      %3978 = vmatpush2.xpose.msra.mxu0 0.0
      %3979 = vmatprep.subr.mxu0 0.0
      %3980 = vmatpush2.xpose.msra.mxu0 0.0
      %3981 = vmatprep.subr.mxu0 0.0
      %3982 = vmatpush2.xpose.msra.mxu0 0.0
      %3983 = vmatprep.subr.mxu0 0.0
      %3984 = vmatpush2.xpose.msra.mxu0 0.0
      %3985 = vmatprep.subr.mxu0 0.0
      %3986 = vmatpush2.xpose.msra.mxu0 0.0
      %3987 = vmatprep.subr.mxu0 0.0
      %3988 = vmatpush2.xpose.msra.mxu0 0.0
      %3989 = vmatprep.subr.mxu0 0.0
      %3990 = vmatpush2.xpose.msra.mxu0 0.0
      %3991 = vmatprep.subr.mxu0 0.0
      %3992 = vmatpush2.xpose.msra.mxu0 0.0
      %3993 = vmatprep.mubr.f32.mxu0 0.0
      %3994 = vmatmul.mubr.f32.gmra.mxu0 %v3923
      %v3995 = vpop.f32.mrf.mxu0
      %v3996 = vadd.f32 0.0, %v3995
      %v3997 = vpop.f32.mrf.mxu0
      %3998 = vdwg.mxu0
      %3999 = vrot.lane.b32.xlu0 %v2253, 120
      %v4000 = vpop.permute.xlu0 %3999
      %4001 = vrot.lane.b32.xlu0 %v2431, 120
      %v4002 = vpop.permute.xlu0 %4001
      %4003 = vrot.lane.b32.xlu0 %v2432, 120
      %v4004 = vpop.permute.xlu0 %4003
      %v4005 = vsel %vm1033, %v4000, 0
      %v4007 = vsel %vm1033, %v4002, 0
      %v4009 = vsel %vm1033, %v4004, 0
      %4011 = vmatprep.subr.mxu0 0.0
      %4012 = vmatpush1.xpose.msra.mxu0 0.0
      %4013 = vmatprep.subr.mxu0 0.0
      %4014 = vmatpush1.xpose.msra.mxu0 0.0
      %4015 = vmatprep.subr.mxu0 0.0
      %4016 = vmatpush1.xpose.msra.mxu0 0.0
      %4017 = vmatprep.subr.mxu0 0.0
      %4018 = vmatpush1.xpose.msra.mxu0 0.0
      %4019 = vmatprep.subr.mxu0 0.0
      %4020 = vmatpush1.xpose.msra.mxu0 0.0
      %4021 = vmatprep.subr.mxu0 0.0
      %4022 = vmatpush1.xpose.msra.mxu0 0.0
      %4023 = vmatprep.subr.mxu0 0.0
      %4024 = vmatpush1.xpose.msra.mxu0 0.0
      %4025 = vmatprep.subr.mxu0 0.0
      %4026 = vmatpush1.xpose.msra.mxu0 0.0
      %4027 = vmatprep.subr.mxu0 0.0
      %4028 = vmatpush1.xpose.msra.mxu0 0.0
      %4029 = vmatprep.subr.mxu0 0.0
      %4030 = vmatpush1.xpose.msra.mxu0 0.0
      %4031 = vmatprep.subr.mxu0 0.0
      %4032 = vmatpush1.xpose.msra.mxu0 0.0
      %4033 = vmatprep.subr.mxu0 0.0
      %4034 = vmatpush1.xpose.msra.mxu0 0.0
      %4035 = vmatprep.subr.mxu0 0.0
      %4036 = vmatpush1.xpose.msra.mxu0 0.0
      %4037 = vmatprep.subr.mxu0 0.0
      %4038 = vmatpush1.xpose.msra.mxu0 0.0
      %4039 = vmatprep.subr.mxu0 0.0
      %4040 = vmatpush1.xpose.msra.mxu0 %v4009
      %4041 = vmatprep.subr.mxu0 0.0
      %4042 = vmatpush1.xpose.msra.mxu0 %v4007
      %4043 = vmatprep.subr.mxu0 0.0
      %4044 = vmatpush2.xpose.msra.mxu0 0.0
      %4045 = vmatprep.subr.mxu0 0.0
      %4046 = vmatpush2.xpose.msra.mxu0 0.0
      %4047 = vmatprep.subr.mxu0 0.0
      %4048 = vmatpush2.xpose.msra.mxu0 0.0
      %4049 = vmatprep.subr.mxu0 0.0
      %4050 = vmatpush2.xpose.msra.mxu0 0.0
      %4051 = vmatprep.subr.mxu0 0.0
      %4052 = vmatpush2.xpose.msra.mxu0 0.0
      %4053 = vmatprep.subr.mxu0 0.0
      %4054 = vmatpush2.xpose.msra.mxu0 0.0
      %4055 = vmatprep.subr.mxu0 0.0
      %4056 = vmatpush2.xpose.msra.mxu0 0.0
      %4057 = vmatprep.subr.mxu0 0.0
      %4058 = vmatpush2.xpose.msra.mxu0 0.0
      %4059 = vmatprep.subr.mxu0 0.0
      %4060 = vmatpush2.xpose.msra.mxu0 0.0
      %4061 = vmatprep.subr.mxu0 0.0
      %4062 = vmatpush2.xpose.msra.mxu0 0.0
      %4063 = vmatprep.subr.mxu0 0.0
      %4064 = vmatpush2.xpose.msra.mxu0 0.0
      %4065 = vmatprep.subr.mxu0 0.0
      %4066 = vmatpush2.xpose.msra.mxu0 0.0
      %4067 = vmatprep.subr.mxu0 0.0
      %4068 = vmatpush2.xpose.msra.mxu0 0.0
      %4069 = vmatprep.subr.mxu0 0.0
      %4070 = vmatpush2.xpose.msra.mxu0 0.0
      %4071 = vmatprep.subr.mxu0 0.0
      %4072 = vmatpush2.xpose.msra.mxu0 0.0
      %4073 = vmatprep.subr.mxu0 0.0
      %4074 = vmatpush2.xpose.msra.mxu0 0.0
      %4075 = vmatprep.mubr.f32.mxu0 0.0
      %4076 = vmatmul.mubr.f32.gmra.mxu0 %v4005
      %v4077 = vpop.f32.mrf.mxu0
      %v4078 = vadd.f32 %v3996, %v4077
      %v4079 = vpop.f32.mrf.mxu0
      %4080 = vdwg.mxu0
      %4081 = vmatprep.subr.mxu0 0.0
      %4082 = vmatpush1.msra.mxu0 0.0
      %4083 = vmatprep.subr.mxu0 0.0
      %4084 = vmatpush1.msra.mxu0 0.0
      %4085 = vmatprep.subr.mxu0 0.0
      %4086 = vmatpush1.msra.mxu0 0.0
      %4087 = vmatprep.subr.mxu0 0.0
      %4088 = vmatpush1.msra.mxu0 0.0
      %4089 = vmatprep.subr.mxu0 0.0
      %4090 = vmatpush1.msra.mxu0 0.0
      %4091 = vmatprep.subr.mxu0 0.0
      %4092 = vmatpush1.msra.mxu0 0.0
      %4093 = vmatprep.subr.mxu0 0.0
      %4094 = vmatpush1.msra.mxu0 0.0
      %4095 = vmatprep.subr.mxu0 0.0
      %4096 = vmatpush1.msra.mxu0 0.0
      %4097 = vmatprep.subr.mxu0 0.0
      %4098 = vmatpush1.msra.mxu0 0.0
      %4099 = vmatprep.subr.mxu0 0.0
      %4100 = vmatpush1.msra.mxu0 0.0
      %4101 = vmatprep.subr.mxu0 0.0
      %4102 = vmatpush1.msra.mxu0 0.0
      %4103 = vmatprep.subr.mxu0 0.0
      %4104 = vmatpush1.msra.mxu0 0.0
      %4105 = vmatprep.subr.mxu0 0.0
      %4106 = vmatpush1.msra.mxu0 0.0
      %4107 = vmatprep.subr.mxu0 0.0
      %4108 = vmatpush1.msra.mxu0 0.0
      %4109 = vmatprep.subr.mxu0 0.0
      %4110 = vmatpush1.msra.mxu0 0.0
      %4111 = vmatprep.subr.mxu0 0.0
      %4112 = vmatpush1.msra.mxu0 %v2817
      %4113 = vmatprep.subr.mxu0 0.0
      %4114 = vmatpush2.msra.mxu0 0.0
      %4115 = vmatprep.subr.mxu0 0.0
      %4116 = vmatpush2.msra.mxu0 0.0
      %4117 = vmatprep.subr.mxu0 0.0
      %4118 = vmatpush2.msra.mxu0 0.0
      %4119 = vmatprep.subr.mxu0 0.0
      %4120 = vmatpush2.msra.mxu0 0.0
      %4121 = vmatprep.subr.mxu0 0.0
      %4122 = vmatpush2.msra.mxu0 0.0
      %4123 = vmatprep.subr.mxu0 0.0
      %4124 = vmatpush2.msra.mxu0 0.0
      %4125 = vmatprep.subr.mxu0 0.0
      %4126 = vmatpush2.msra.mxu0 0.0
      %4127 = vmatprep.subr.mxu0 0.0
      %4128 = vmatpush2.msra.mxu0 0.0
      %4129 = vmatprep.subr.mxu0 0.0
      %4130 = vmatpush2.msra.mxu0 0.0
      %4131 = vmatprep.subr.mxu0 0.0
      %4132 = vmatpush2.msra.mxu0 0.0
      %4133 = vmatprep.subr.mxu0 0.0
      %4134 = vmatpush2.msra.mxu0 0.0
      %4135 = vmatprep.subr.mxu0 0.0
      %4136 = vmatpush2.msra.mxu0 0.0
      %4137 = vmatprep.subr.mxu0 0.0
      %4138 = vmatpush2.msra.mxu0 0.0
      %4139 = vmatprep.subr.mxu0 0.0
      %4140 = vmatpush2.msra.mxu0 0.0
      %4141 = vmatprep.subr.mxu0 0.0
      %4142 = vmatpush2.msra.mxu0 0.0
      %4143 = vmatprep.subr.mxu0 0.0
      %4144 = vmatpush2.msra.mxu0 0.0
      %4145 = vmatprep.mubr.f32.mxu0 0.0
      %4146 = vmatmul.mubr.f32.gmra.mxu0 %v4005
      %v4147 = vpop.f32.mrf.mxu0
      %v4148 = vadd.f32 0.0, %v4147
      %v4149 = vpop.f32.mrf.mxu0
      %4150 = vdwg.mxu0
      %4151 = vmatprep.subr.mxu0 0.0
      %4152 = vmatpush1.msra.mxu0 0.0
      %4153 = vmatprep.subr.mxu0 0.0
      %4154 = vmatpush1.msra.mxu0 0.0
      %4155 = vmatprep.subr.mxu0 0.0
      %4156 = vmatpush1.msra.mxu0 0.0
      %4157 = vmatprep.subr.mxu0 0.0
      %4158 = vmatpush1.msra.mxu0 0.0
      %4159 = vmatprep.subr.mxu0 0.0
      %4160 = vmatpush1.msra.mxu0 0.0
      %4161 = vmatprep.subr.mxu0 0.0
      %4162 = vmatpush1.msra.mxu0 0.0
      %4163 = vmatprep.subr.mxu0 0.0
      %4164 = vmatpush1.msra.mxu0 0.0
      %4165 = vmatprep.subr.mxu0 0.0
      %4166 = vmatpush1.msra.mxu0 0.0
      %4167 = vmatprep.subr.mxu0 0.0
      %4168 = vmatpush1.msra.mxu0 0.0
      %4169 = vmatprep.subr.mxu0 0.0
      %4170 = vmatpush1.msra.mxu0 0.0
      %4171 = vmatprep.subr.mxu0 0.0
      %4172 = vmatpush1.msra.mxu0 0.0
      %4173 = vmatprep.subr.mxu0 0.0
      %4174 = vmatpush1.msra.mxu0 0.0
      %4175 = vmatprep.subr.mxu0 0.0
      %4176 = vmatpush1.msra.mxu0 0.0
      %4177 = vmatprep.subr.mxu0 0.0
      %4178 = vmatpush1.msra.mxu0 0.0
      %4179 = vmatprep.subr.mxu0 0.0
      %4180 = vmatpush1.msra.mxu0 0.0
      %4181 = vmatprep.subr.mxu0 0.0
      %4182 = vmatpush1.msra.mxu0 %v2821
      %4183 = vmatprep.subr.mxu0 0.0
      %4184 = vmatpush2.msra.mxu0 0.0
      %4185 = vmatprep.subr.mxu0 0.0
      %4186 = vmatpush2.msra.mxu0 0.0
      %4187 = vmatprep.subr.mxu0 0.0
      %4188 = vmatpush2.msra.mxu0 0.0
      %4189 = vmatprep.subr.mxu0 0.0
      %4190 = vmatpush2.msra.mxu0 0.0
      %4191 = vmatprep.subr.mxu0 0.0
      %4192 = vmatpush2.msra.mxu0 0.0
      %4193 = vmatprep.subr.mxu0 0.0
      %4194 = vmatpush2.msra.mxu0 0.0
      %4195 = vmatprep.subr.mxu0 0.0
      %4196 = vmatpush2.msra.mxu0 0.0
      %4197 = vmatprep.subr.mxu0 0.0
      %4198 = vmatpush2.msra.mxu0 0.0
      %4199 = vmatprep.subr.mxu0 0.0
      %4200 = vmatpush2.msra.mxu0 0.0
      %4201 = vmatprep.subr.mxu0 0.0
      %4202 = vmatpush2.msra.mxu0 0.0
      %4203 = vmatprep.subr.mxu0 0.0
      %4204 = vmatpush2.msra.mxu0 0.0
      %4205 = vmatprep.subr.mxu0 0.0
      %4206 = vmatpush2.msra.mxu0 0.0
      %4207 = vmatprep.subr.mxu0 0.0
      %4208 = vmatpush2.msra.mxu0 0.0
      %4209 = vmatprep.subr.mxu0 0.0
      %4210 = vmatpush2.msra.mxu0 0.0
      %4211 = vmatprep.subr.mxu0 0.0
      %4212 = vmatpush2.msra.mxu0 0.0
      %4213 = vmatprep.subr.mxu0 0.0
      %4214 = vmatpush2.msra.mxu0 0.0
      %4215 = vmatprep.mubr.f32.mxu0 0.0
      %4216 = vmatmul.mubr.f32.gmra.mxu0 %v4007
      %v4217 = vpop.f32.mrf.mxu0
      %v4218 = vadd.f32 0.0, %v4217
      %v4219 = vpop.f32.mrf.mxu0
      %4220 = vmatprep.mubr.f32.mxu0 0.0
      %4221 = vmatmul.mubr.f32.gmra.mxu0 %v4009
      %v4222 = vpop.f32.mrf.mxu0
      %v4223 = vadd.f32 0.0, %v4222
      %v4224 = vpop.f32.mrf.mxu0
      %4225 = vdwg.mxu0
      %v4227 = vcombine.high %v4148, %v4148
      %v4229 = vunpack.c.l.s4 1966171168
      %v4230 = vunpack.c.0.s8 %v4229
      %v4231 = vlaneseq
      %v4232 = vshrl.u32 %v4231, 7
      %v4233 = vsub.s32 %v4230, %v4232
      %v4234 = vrot.slane %v4148, %v4233
      %v4236 = vunpack.c.l.s4 1966171168
      %v4237 = vunpack.c.0.s8 %v4236
      %v4238 = vlaneseq
      %v4239 = vshrl.u32 %v4238, 7
      %v4240 = vsub.s32 %v4237, %v4239
      %v4241 = vrot.slane %v4227, %v4240
      %v4242 = vcombine.high %v4234, %v4234
      %v4243 = vcombine.high %v4241, %v4241
      %v4245 = vunpack.c.l.s4 1966171168
      %v4246 = vunpack.c.0.s8 %v4245
      %v4247 = vlaneseq
      %v4248 = vshrl.u32 %v4247, 7
      %v4249 = vsub.s32 %v4246, %v4248
      %v4250 = vrot.slane %v4234, %v4249
      %v4252 = vunpack.c.l.s4 1966171168
      %v4253 = vunpack.c.0.s8 %v4252
      %v4254 = vlaneseq
      %v4255 = vshrl.u32 %v4254, 7
      %v4256 = vsub.s32 %v4253, %v4255
      %v4257 = vrot.slane %v4241, %v4256
      %v4259 = vunpack.c.l.s4 1966171168
      %v4260 = vunpack.c.0.s8 %v4259
      %v4261 = vlaneseq
      %v4262 = vshrl.u32 %v4261, 7
      %v4263 = vsub.s32 %v4260, %v4262
      %v4264 = vrot.slane %v4242, %v4263
      %v4266 = vunpack.c.l.s4 1966171168
      %v4267 = vunpack.c.0.s8 %v4266
      %v4268 = vlaneseq
      %v4269 = vshrl.u32 %v4268, 7
      %v4270 = vsub.s32 %v4267, %v4269
      %v4271 = vrot.slane %v4243, %v4270
      %v4272 = vcombine.high %v4250, %v4250
      %v4273 = vcombine.high %v4257, %v4257
      %v4274 = vcombine.high %v4264, %v4264
      %v4275 = vcombine.high %v4271, %v4271
      %v4276 = vlaneseq
      %v4277 = vshrl.u32 %v4276, 7
      %v4278 = vsub.s32 0, %v4277
      %v4279 = vrot.slane %v4250, %v4278
      %v4280 = vlaneseq
      %v4281 = vshrl.u32 %v4280, 7
      %v4282 = vsub.s32 0, %v4281
      %v4283 = vrot.slane %v4264, %v4282
      %v4284 = vlaneseq
      %v4285 = vshrl.u32 %v4284, 7
      %v4286 = vsub.s32 0, %v4285
      %v4287 = vrot.slane %v4272, %v4286
      %v4288 = vlaneseq
      %v4289 = vshrl.u32 %v4288, 7
      %v4290 = vsub.s32 0, %v4289
      %v4291 = vrot.slane %v4274, %v4290
      %v4292 = vlaneseq
      %v4293 = vshrl.u32 %v4292, 7
      %v4294 = vsub.s32 0, %v4293
      %v4295 = vrot.slane %v4257, %v4294
      %v4296 = vlaneseq
      %v4297 = vshrl.u32 %v4296, 7
      %v4298 = vsub.s32 0, %v4297
      %v4299 = vrot.slane %v4271, %v4298
      %v4300 = vlaneseq
      %v4301 = vshrl.u32 %v4300, 7
      %v4302 = vsub.s32 0, %v4301
      %v4303 = vrot.slane %v4273, %v4302
      %v4304 = vlaneseq
      %v4305 = vshrl.u32 %v4304, 7
      %v4306 = vsub.s32 0, %v4305
      %v4307 = vrot.slane %v4275, %v4306
      %v4316 = vmul.f32 %v4279, %v2800
      %v4317 = vmul.f32 %v4279, %v2801
      %v4318 = vmul.f32 %v4283, %v2802
      %v4319 = vmul.f32 %v4283, %v2803
      %v4320 = vmul.f32 %v4287, %v2804
      %v4321 = vmul.f32 %v4287, %v2805
      %v4322 = vmul.f32 %v4291, %v2806
      %v4323 = vmul.f32 %v4291, %v2807
      %v4324 = vmul.f32 %v4295, %v2808
      %v4325 = vmul.f32 %v4295, %v2809
      %v4326 = vmul.f32 %v4299, %v2810
      %v4327 = vmul.f32 %v4299, %v2811
      %v4328 = vmul.f32 %v4303, %v2812
      %v4329 = vmul.f32 %v4303, %v2813
      %v4330 = vmul.f32 %v4307, %v2814
      %v4331 = vmul.f32 %v4307, %v2815
      %v4332 = vsel %vm3244, %v4316, 0.0
      %4333 = vadd.xlane.f32.xlu0 %v4332
      %v4334 = vpop.xlane.xlu0 %4333
      %v4335 = vsel %vm3244, %v4317, 0.0
      %4336 = vadd.xlane.f32.xlu0 %v4335
      %v4337 = vpop.xlane.xlu0 %4336
      %v4338 = vsel %vm3244, %v4318, 0.0
      %4339 = vadd.xlane.f32.xlu0 %v4338
      %v4340 = vpop.xlane.xlu0 %4339
      %v4341 = vsel %vm3244, %v4319, 0.0
      %4342 = vadd.xlane.f32.xlu0 %v4341
      %v4343 = vpop.xlane.xlu0 %4342
      %v4344 = vsel %vm3244, %v4320, 0.0
      %4345 = vadd.xlane.f32.xlu0 %v4344
      %v4346 = vpop.xlane.xlu0 %4345
      %v4347 = vsel %vm3244, %v4321, 0.0
      %4348 = vadd.xlane.f32.xlu0 %v4347
      %v4349 = vpop.xlane.xlu0 %4348
      %v4350 = vsel %vm3244, %v4322, 0.0
      %4351 = vadd.xlane.f32.xlu0 %v4350
      %v4352 = vpop.xlane.xlu0 %4351
      %v4353 = vsel %vm3244, %v4323, 0.0
      %4354 = vadd.xlane.f32.xlu0 %v4353
      %v4355 = vpop.xlane.xlu0 %4354
      %v4356 = vsel %vm3244, %v4324, 0.0
      %4357 = vadd.xlane.f32.xlu0 %v4356
      %v4358 = vpop.xlane.xlu0 %4357
      %v4359 = vsel %vm3244, %v4325, 0.0
      %4360 = vadd.xlane.f32.xlu0 %v4359
      %v4361 = vpop.xlane.xlu0 %4360
      %v4362 = vsel %vm3244, %v4326, 0.0
      %4363 = vadd.xlane.f32.xlu0 %v4362
      %v4364 = vpop.xlane.xlu0 %4363
      %v4365 = vsel %vm3244, %v4327, 0.0
      %4366 = vadd.xlane.f32.xlu0 %v4365
      %v4367 = vpop.xlane.xlu0 %4366
      %v4368 = vsel %vm3244, %v4328, 0.0
      %4369 = vadd.xlane.f32.xlu0 %v4368
      %v4370 = vpop.xlane.xlu0 %4369
      %v4371 = vsel %vm3244, %v4329, 0.0
      %4372 = vadd.xlane.f32.xlu0 %v4371
      %v4373 = vpop.xlane.xlu0 %4372
      %v4374 = vsel %vm3244, %v4330, 0.0
      %4375 = vadd.xlane.f32.xlu0 %v4374
      %v4376 = vpop.xlane.xlu0 %4375
      %v4377 = vsel %vm3244, %v4331, 0.0
      %4378 = vadd.xlane.f32.xlu0 %v4377
      %v4379 = vpop.xlane.xlu0 %4378
      %v4396 = vlaneseq
      %v4397 = vshrl.u32 %v4396, 7
      %v4398 = vsub.s32 %v2434, %v4397
      %v4399 = vrot.slane %v4334, %v4398
      %v4400 = vlaneseq
      %v4401 = vshrl.u32 %v4400, 7
      %v4402 = vsub.s32 %v3313, %v4401
      %v4403 = vrot.slane %v4337, %v4402
      %v4404 = vsel %vm3318, %v4403, %v4399
      %v4405 = vlaneseq
      %v4406 = vshrl.u32 %v4405, 7
      %v4407 = vsub.s32 %v2434, %v4406
      %v4408 = vrot.slane %v4340, %v4407
      %v4409 = vlaneseq
      %v4410 = vshrl.u32 %v4409, 7
      %v4411 = vsub.s32 %v3313, %v4410
      %v4412 = vrot.slane %v4343, %v4411
      %v4413 = vsel %vm3318, %v4412, %v4408
      %v4414 = vlaneseq
      %v4415 = vshrl.u32 %v4414, 7
      %v4416 = vsub.s32 %v2434, %v4415
      %v4417 = vrot.slane %v4346, %v4416
      %v4418 = vlaneseq
      %v4419 = vshrl.u32 %v4418, 7
      %v4420 = vsub.s32 %v3313, %v4419
      %v4421 = vrot.slane %v4349, %v4420
      %v4422 = vsel %vm3318, %v4421, %v4417
      %v4423 = vlaneseq
      %v4424 = vshrl.u32 %v4423, 7
      %v4425 = vsub.s32 %v2434, %v4424
      %v4426 = vrot.slane %v4352, %v4425
      %v4427 = vlaneseq
      %v4428 = vshrl.u32 %v4427, 7
      %v4429 = vsub.s32 %v3313, %v4428
      %v4430 = vrot.slane %v4355, %v4429
      %v4431 = vsel %vm3318, %v4430, %v4426
      %v4432 = vlaneseq
      %v4433 = vshrl.u32 %v4432, 7
      %v4434 = vsub.s32 %v2434, %v4433
      %v4435 = vrot.slane %v4358, %v4434
      %v4436 = vlaneseq
      %v4437 = vshrl.u32 %v4436, 7
      %v4438 = vsub.s32 %v3313, %v4437
      %v4439 = vrot.slane %v4361, %v4438
      %v4440 = vsel %vm3318, %v4439, %v4435
      %v4441 = vlaneseq
      %v4442 = vshrl.u32 %v4441, 7
      %v4443 = vsub.s32 %v2434, %v4442
      %v4444 = vrot.slane %v4364, %v4443
      %v4445 = vlaneseq
      %v4446 = vshrl.u32 %v4445, 7
      %v4447 = vsub.s32 %v3313, %v4446
      %v4448 = vrot.slane %v4367, %v4447
      %v4449 = vsel %vm3318, %v4448, %v4444
      %v4450 = vlaneseq
      %v4451 = vshrl.u32 %v4450, 7
      %v4452 = vsub.s32 %v2434, %v4451
      %v4453 = vrot.slane %v4370, %v4452
      %v4454 = vlaneseq
      %v4455 = vshrl.u32 %v4454, 7
      %v4456 = vsub.s32 %v3313, %v4455
      %v4457 = vrot.slane %v4373, %v4456
      %v4458 = vsel %vm3318, %v4457, %v4453
      %v4459 = vlaneseq
      %v4460 = vshrl.u32 %v4459, 7
      %v4461 = vsub.s32 %v2434, %v4460
      %v4462 = vrot.slane %v4376, %v4461
      %v4463 = vlaneseq
      %v4464 = vshrl.u32 %v4463, 7
      %v4465 = vsub.s32 %v3313, %v4464
      %v4466 = vrot.slane %v4379, %v4465
      %v4467 = vsel %vm3318, %v4466, %v4462
      %v4468 = vsel %vm3383, %v4413, %v4404
      %v4469 = vsel %vm3385, %v4422, %v4468
      %v4470 = vsel %vm3387, %v4431, %v4469
      %v4471 = vsel %vm3389, %v4440, %v4470
      %v4472 = vsel %vm3391, %v4449, %v4471
      %v4473 = vsel %vm3393, %v4458, %v4472
      %v4474 = vsel %vm3395, %v4467, %v4473
      %v4476 = vadd.f32 %v4078, %v4474
      %v4477 = vmul.f32 %v4218, %v2800
      %v4478 = vmul.f32 %v4223, %v2801
      %v4479 = vmul.f32 %v4218, %v2802
      %v4480 = vmul.f32 %v4223, %v2803
      %v4481 = vmul.f32 %v4218, %v2804
      %v4482 = vmul.f32 %v4223, %v2805
      %v4483 = vmul.f32 %v4218, %v2806
      %v4484 = vmul.f32 %v4223, %v2807
      %v4485 = vmul.f32 %v4218, %v2808
      %v4486 = vmul.f32 %v4223, %v2809
      %v4487 = vmul.f32 %v4218, %v2810
      %v4488 = vmul.f32 %v4223, %v2811
      %v4489 = vmul.f32 %v4218, %v2812
      %v4490 = vmul.f32 %v4223, %v2813
      %v4491 = vmul.f32 %v4218, %v2814
      %v4492 = vmul.f32 %v4223, %v2815
      %v4493 = vsel %vm3244, %v4477, 0.0
      %4494 = vadd.xlane.f32.xlu0 %v4493
      %v4495 = vpop.xlane.xlu0 %4494
      %v4496 = vsel %vm3244, %v4478, 0.0
      %4497 = vadd.xlane.f32.xlu0 %v4496
      %v4498 = vpop.xlane.xlu0 %4497
      %v4499 = vsel %vm3244, %v4479, 0.0
      %4500 = vadd.xlane.f32.xlu0 %v4499
      %v4501 = vpop.xlane.xlu0 %4500
      %v4502 = vsel %vm3244, %v4480, 0.0
      %4503 = vadd.xlane.f32.xlu0 %v4502
      %v4504 = vpop.xlane.xlu0 %4503
      %v4505 = vsel %vm3244, %v4481, 0.0
      %4506 = vadd.xlane.f32.xlu0 %v4505
      %v4507 = vpop.xlane.xlu0 %4506
      %v4508 = vsel %vm3244, %v4482, 0.0
      %4509 = vadd.xlane.f32.xlu0 %v4508
      %v4510 = vpop.xlane.xlu0 %4509
      %v4511 = vsel %vm3244, %v4483, 0.0
      %4512 = vadd.xlane.f32.xlu0 %v4511
      %v4513 = vpop.xlane.xlu0 %4512
      %v4514 = vsel %vm3244, %v4484, 0.0
      %4515 = vadd.xlane.f32.xlu0 %v4514
      %v4516 = vpop.xlane.xlu0 %4515
      %v4517 = vsel %vm3244, %v4485, 0.0
      %4518 = vadd.xlane.f32.xlu0 %v4517
      %v4519 = vpop.xlane.xlu0 %4518
      %v4520 = vsel %vm3244, %v4486, 0.0
      %4521 = vadd.xlane.f32.xlu0 %v4520
      %v4522 = vpop.xlane.xlu0 %4521
      %v4523 = vsel %vm3244, %v4487, 0.0
      %4524 = vadd.xlane.f32.xlu0 %v4523
      %v4525 = vpop.xlane.xlu0 %4524
      %v4526 = vsel %vm3244, %v4488, 0.0
      %4527 = vadd.xlane.f32.xlu0 %v4526
      %v4528 = vpop.xlane.xlu0 %4527
      %v4529 = vsel %vm3244, %v4489, 0.0
      %4530 = vadd.xlane.f32.xlu0 %v4529
      %v4531 = vpop.xlane.xlu0 %4530
      %v4532 = vsel %vm3244, %v4490, 0.0
      %4533 = vadd.xlane.f32.xlu0 %v4532
      %v4534 = vpop.xlane.xlu0 %4533
      %v4535 = vsel %vm3244, %v4491, 0.0
      %4536 = vadd.xlane.f32.xlu0 %v4535
      %v4537 = vpop.xlane.xlu0 %4536
      %v4538 = vsel %vm3244, %v4492, 0.0
      %4539 = vadd.xlane.f32.xlu0 %v4538
      %v4540 = vpop.xlane.xlu0 %4539
      %v4557 = vlaneseq
      %v4558 = vshrl.u32 %v4557, 7
      %v4559 = vsub.s32 %v2434, %v4558
      %v4560 = vrot.slane %v4495, %v4559
      %v4561 = vlaneseq
      %v4562 = vshrl.u32 %v4561, 7
      %v4563 = vsub.s32 %v3313, %v4562
      %v4564 = vrot.slane %v4498, %v4563
      %v4565 = vsel %vm3318, %v4564, %v4560
      %v4566 = vlaneseq
      %v4567 = vshrl.u32 %v4566, 7
      %v4568 = vsub.s32 %v2434, %v4567
      %v4569 = vrot.slane %v4501, %v4568
      %v4570 = vlaneseq
      %v4571 = vshrl.u32 %v4570, 7
      %v4572 = vsub.s32 %v3313, %v4571
      %v4573 = vrot.slane %v4504, %v4572
      %v4574 = vsel %vm3318, %v4573, %v4569
      %v4575 = vlaneseq
      %v4576 = vshrl.u32 %v4575, 7
      %v4577 = vsub.s32 %v2434, %v4576
      %v4578 = vrot.slane %v4507, %v4577
      %v4579 = vlaneseq
      %v4580 = vshrl.u32 %v4579, 7
      %v4581 = vsub.s32 %v3313, %v4580
      %v4582 = vrot.slane %v4510, %v4581
      %v4583 = vsel %vm3318, %v4582, %v4578
      %v4584 = vlaneseq
      %v4585 = vshrl.u32 %v4584, 7
      %v4586 = vsub.s32 %v2434, %v4585
      %v4587 = vrot.slane %v4513, %v4586
      %v4588 = vlaneseq
      %v4589 = vshrl.u32 %v4588, 7
      %v4590 = vsub.s32 %v3313, %v4589
      %v4591 = vrot.slane %v4516, %v4590
      %v4592 = vsel %vm3318, %v4591, %v4587
      %v4593 = vlaneseq
      %v4594 = vshrl.u32 %v4593, 7
      %v4595 = vsub.s32 %v2434, %v4594
      %v4596 = vrot.slane %v4519, %v4595
      %v4597 = vlaneseq
      %v4598 = vshrl.u32 %v4597, 7
      %v4599 = vsub.s32 %v3313, %v4598
      %v4600 = vrot.slane %v4522, %v4599
      %v4601 = vsel %vm3318, %v4600, %v4596
      %v4602 = vlaneseq
      %v4603 = vshrl.u32 %v4602, 7
      %v4604 = vsub.s32 %v2434, %v4603
      %v4605 = vrot.slane %v4525, %v4604
      %v4606 = vlaneseq
      %v4607 = vshrl.u32 %v4606, 7
      %v4608 = vsub.s32 %v3313, %v4607
      %v4609 = vrot.slane %v4528, %v4608
      %v4610 = vsel %vm3318, %v4609, %v4605
      %v4611 = vlaneseq
      %v4612 = vshrl.u32 %v4611, 7
      %v4613 = vsub.s32 %v2434, %v4612
      %v4614 = vrot.slane %v4531, %v4613
      %v4615 = vlaneseq
      %v4616 = vshrl.u32 %v4615, 7
      %v4617 = vsub.s32 %v3313, %v4616
      %v4618 = vrot.slane %v4534, %v4617
      %v4619 = vsel %vm3318, %v4618, %v4614
      %v4620 = vlaneseq
      %v4621 = vshrl.u32 %v4620, 7
      %v4622 = vsub.s32 %v2434, %v4621
      %v4623 = vrot.slane %v4537, %v4622
      %v4624 = vlaneseq
      %v4625 = vshrl.u32 %v4624, 7
      %v4626 = vsub.s32 %v3313, %v4625
      %v4627 = vrot.slane %v4540, %v4626
      %v4628 = vsel %vm3318, %v4627, %v4623
      %v4629 = vsel %vm3383, %v4574, %v4565
      %v4630 = vsel %vm3385, %v4583, %v4629
      %v4631 = vsel %vm3387, %v4592, %v4630
      %v4632 = vsel %vm3389, %v4601, %v4631
      %v4633 = vsel %vm3391, %v4610, %v4632
      %v4634 = vsel %vm3393, %v4619, %v4633
      %v4635 = vsel %vm3395, %v4628, %v4634
      %v4637 = vadd.f32 %v4476, %v4635
      %v4638 = vsel %vm3560, %v4637, -inf
      %4639 = vmax.xlane.f32.xlu0 %v4638
      %v4640 = vpop.xlane.xlu0 %4639
      %v4641 = vsub.f32 %v4637, %v4640
      %v4642 = vmul.f32 %v4641, 1.442695
      %v4643 = vpow.pop %v4642
      %v4644 = vsel %vm3560, %v4643, 0.0
      %4645 = vadd.xlane.f32.xlu0 %v4644
      %v4646 = vpop.xlane.xlu0 %4645
      %v4647 = vrcp.pop %v4646
      %v4648 = vmul.f32 %v4643, %v4647
      %v4649 = vlaneseq
      %v4650 = vshrl.u32 %v4649, 7
      %v4651 = vsub.s32 0, %v4650
      %v4652 = vrot.slane %v4648, %v4651
      %4654 = vbcast.lane.b32.xlu0 %v4652, 256
      %v4655 = vpop.permute.xlu0 %4654
      %s4657 = sor.u32 256, 8
      %4658 = vbcast.lane.b32.xlu0 %v4652, %s4657
      %v4659 = vpop.permute.xlu0 %4658
      %v4660 = vlaneseq
      %v4661 = vshrl.u32 %v4660, 7
      %v4662 = vsub.s32 1, %v4661
      %v4663 = vrot.slane %v4648, %v4662
      %4665 = vbcast.lane.b32.xlu0 %v4663, 256
      %v4666 = vpop.permute.xlu0 %4665
      %s4668 = sor.u32 256, 8
      %4669 = vbcast.lane.b32.xlu0 %v4663, %s4668
      %v4670 = vpop.permute.xlu0 %4669
      %v4671 = vlaneseq
      %v4672 = vshrl.u32 %v4671, 7
      %v4673 = vsub.s32 2, %v4672
      %v4674 = vrot.slane %v4648, %v4673
      %4676 = vbcast.lane.b32.xlu0 %v4674, 256
      %v4677 = vpop.permute.xlu0 %4676
      %s4679 = sor.u32 256, 8
      %4680 = vbcast.lane.b32.xlu0 %v4674, %s4679
      %v4681 = vpop.permute.xlu0 %4680
      %v4682 = vlaneseq
      %v4683 = vshrl.u32 %v4682, 7
      %v4684 = vsub.s32 3, %v4683
      %v4685 = vrot.slane %v4648, %v4684
      %4687 = vbcast.lane.b32.xlu0 %v4685, 256
      %v4688 = vpop.permute.xlu0 %4687
      %s4690 = sor.u32 256, 8
      %4691 = vbcast.lane.b32.xlu0 %v4685, %s4690
      %v4692 = vpop.permute.xlu0 %4691
      %v4693 = vlaneseq
      %v4694 = vshrl.u32 %v4693, 7
      %v4695 = vsub.s32 4, %v4694
      %v4696 = vrot.slane %v4648, %v4695
      %4698 = vbcast.lane.b32.xlu0 %v4696, 256
      %v4699 = vpop.permute.xlu0 %4698
      %s4701 = sor.u32 256, 8
      %4702 = vbcast.lane.b32.xlu0 %v4696, %s4701
      %v4703 = vpop.permute.xlu0 %4702
      %v4704 = vlaneseq
      %v4705 = vshrl.u32 %v4704, 7
      %v4706 = vsub.s32 5, %v4705
      %v4707 = vrot.slane %v4648, %v4706
      %4709 = vbcast.lane.b32.xlu0 %v4707, 256
      %v4710 = vpop.permute.xlu0 %4709
      %s4712 = sor.u32 256, 8
      %4713 = vbcast.lane.b32.xlu0 %v4707, %s4712
      %v4714 = vpop.permute.xlu0 %4713
      %v4715 = vlaneseq
      %v4716 = vshrl.u32 %v4715, 7
      %v4717 = vsub.s32 6, %v4716
      %v4718 = vrot.slane %v4648, %v4717
      %4720 = vbcast.lane.b32.xlu0 %v4718, 256
      %v4721 = vpop.permute.xlu0 %4720
      %s4723 = sor.u32 256, 8
      %4724 = vbcast.lane.b32.xlu0 %v4718, %s4723
      %v4725 = vpop.permute.xlu0 %4724
      %v4726 = vlaneseq
      %v4727 = vshrl.u32 %v4726, 7
      %v4728 = vsub.s32 7, %v4727
      %v4729 = vrot.slane %v4648, %v4728
      %4731 = vbcast.lane.b32.xlu0 %v4729, 256
      %v4732 = vpop.permute.xlu0 %4731
      %s4734 = sor.u32 256, 8
      %4735 = vbcast.lane.b32.xlu0 %v4729, %s4734
      %v4736 = vpop.permute.xlu0 %4735
      %v4737 = vmul.f32 %v4655, %v2800
      %v4738 = vmul.f32 %v4659, %v2801
      %v4739 = vmul.f32 %v4666, %v2802
      %v4740 = vmul.f32 %v4670, %v2803
      %v4741 = vmul.f32 %v4677, %v2804
      %v4742 = vmul.f32 %v4681, %v2805
      %v4743 = vmul.f32 %v4688, %v2806
      %v4744 = vmul.f32 %v4692, %v2807
      %v4745 = vmul.f32 %v4699, %v2808
      %v4746 = vmul.f32 %v4703, %v2809
      %v4747 = vmul.f32 %v4710, %v2810
      %v4748 = vmul.f32 %v4714, %v2811
      %v4749 = vmul.f32 %v4721, %v2812
      %v4750 = vmul.f32 %v4725, %v2813
      %v4751 = vmul.f32 %v4732, %v2814
      %v4752 = vmul.f32 %v4736, %v2815
      %v4753 = vsel %vm3244, %v4737, 0.0
      %v4754 = vsel %vm3244, %v4738, 0.0
      %v4755 = vadd.f32 %v4753, %v4754
      %v4756 = vrot.slane %v4755, 4
      %v4757 = vadd.f32 %v4755, %v4756
      %v4758 = vrot.slane %v4757, 2
      %v4759 = vadd.f32 %v4757, %v4758
      %v4760 = vrot.slane %v4759, 1
      %v4761 = vadd.f32 %v4759, %v4760
      %v4762 = vsel %vm3244, %v4739, 0.0
      %v4763 = vsel %vm3244, %v4740, 0.0
      %v4764 = vadd.f32 %v4762, %v4763
      %v4765 = vrot.slane %v4764, 4
      %v4766 = vadd.f32 %v4764, %v4765
      %v4767 = vrot.slane %v4766, 2
      %v4768 = vadd.f32 %v4766, %v4767
      %v4769 = vrot.slane %v4768, 1
      %v4770 = vadd.f32 %v4768, %v4769
      %v4771 = vsel %vm3244, %v4741, 0.0
      %v4772 = vsel %vm3244, %v4742, 0.0
      %v4773 = vadd.f32 %v4771, %v4772
      %v4774 = vrot.slane %v4773, 4
      %v4775 = vadd.f32 %v4773, %v4774
      %v4776 = vrot.slane %v4775, 2
      %v4777 = vadd.f32 %v4775, %v4776
      %v4778 = vrot.slane %v4777, 1
      %v4779 = vadd.f32 %v4777, %v4778
      %v4780 = vsel %vm3244, %v4743, 0.0
      %v4781 = vsel %vm3244, %v4744, 0.0
      %v4782 = vadd.f32 %v4780, %v4781
      %v4783 = vrot.slane %v4782, 4
      %v4784 = vadd.f32 %v4782, %v4783
      %v4785 = vrot.slane %v4784, 2
      %v4786 = vadd.f32 %v4784, %v4785
      %v4787 = vrot.slane %v4786, 1
      %v4788 = vadd.f32 %v4786, %v4787
      %v4789 = vsel %vm3244, %v4745, 0.0
      %v4790 = vsel %vm3244, %v4746, 0.0
      %v4791 = vadd.f32 %v4789, %v4790
      %v4792 = vrot.slane %v4791, 4
      %v4793 = vadd.f32 %v4791, %v4792
      %v4794 = vrot.slane %v4793, 2
      %v4795 = vadd.f32 %v4793, %v4794
      %v4796 = vrot.slane %v4795, 1
      %v4797 = vadd.f32 %v4795, %v4796
      %v4798 = vsel %vm3244, %v4747, 0.0
      %v4799 = vsel %vm3244, %v4748, 0.0
      %v4800 = vadd.f32 %v4798, %v4799
      %v4801 = vrot.slane %v4800, 4
      %v4802 = vadd.f32 %v4800, %v4801
      %v4803 = vrot.slane %v4802, 2
      %v4804 = vadd.f32 %v4802, %v4803
      %v4805 = vrot.slane %v4804, 1
      %v4806 = vadd.f32 %v4804, %v4805
      %v4807 = vsel %vm3244, %v4749, 0.0
      %v4808 = vsel %vm3244, %v4750, 0.0
      %v4809 = vadd.f32 %v4807, %v4808
      %v4810 = vrot.slane %v4809, 4
      %v4811 = vadd.f32 %v4809, %v4810
      %v4812 = vrot.slane %v4811, 2
      %v4813 = vadd.f32 %v4811, %v4812
      %v4814 = vrot.slane %v4813, 1
      %v4815 = vadd.f32 %v4813, %v4814
      %v4816 = vsel %vm3244, %v4751, 0.0
      %v4817 = vsel %vm3244, %v4752, 0.0
      %v4818 = vadd.f32 %v4816, %v4817
      %v4819 = vrot.slane %v4818, 4
      %v4820 = vadd.f32 %v4818, %v4819
      %v4821 = vrot.slane %v4820, 2
      %v4822 = vadd.f32 %v4820, %v4821
      %v4823 = vrot.slane %v4822, 1
      %v4824 = vadd.f32 %v4822, %v4823
      %v4833 = vsel %vm3383, %v4770, %v4761
      %v4834 = vsel %vm3385, %v4779, %v4833
      %v4835 = vsel %vm3387, %v4788, %v4834
      %v4836 = vsel %vm3389, %v4797, %v4835
      %v4837 = vsel %vm3391, %v4806, %v4836
      %v4838 = vsel %vm3393, %v4815, %v4837
      %v4839 = vsel %vm3395, %v4824, %v4838
      %v4840 = vsel %vm3244, %v4839, 0
      %v4843 = vsel %vm3244, %v2825, 0
      %4845 = vmatprep.subr.mxu0 0.0
      %4846 = vmatpush1.xpose.msra.mxu0 0.0
      %4847 = vmatprep.subr.mxu0 0.0
      %4848 = vmatpush1.xpose.msra.mxu0 0.0
      %4849 = vmatprep.subr.mxu0 0.0
      %4850 = vmatpush1.xpose.msra.mxu0 0.0
      %4851 = vmatprep.subr.mxu0 0.0
      %4852 = vmatpush1.xpose.msra.mxu0 0.0
      %4853 = vmatprep.subr.mxu0 0.0
      %4854 = vmatpush1.xpose.msra.mxu0 0.0
      %4855 = vmatprep.subr.mxu0 0.0
      %4856 = vmatpush1.xpose.msra.mxu0 0.0
      %4857 = vmatprep.subr.mxu0 0.0
      %4858 = vmatpush1.xpose.msra.mxu0 0.0
      %4859 = vmatprep.subr.mxu0 0.0
      %4860 = vmatpush1.xpose.msra.mxu0 0.0
      %4861 = vmatprep.subr.mxu0 0.0
      %4862 = vmatpush1.xpose.msra.mxu0 0.0
      %4863 = vmatprep.subr.mxu0 0.0
      %4864 = vmatpush1.xpose.msra.mxu0 0.0
      %4865 = vmatprep.subr.mxu0 0.0
      %4866 = vmatpush1.xpose.msra.mxu0 0.0
      %4867 = vmatprep.subr.mxu0 0.0
      %4868 = vmatpush1.xpose.msra.mxu0 0.0
      %4869 = vmatprep.subr.mxu0 0.0
      %4870 = vmatpush1.xpose.msra.mxu0 0.0
      %4871 = vmatprep.subr.mxu0 0.0
      %4872 = vmatpush1.xpose.msra.mxu0 0.0
      %4873 = vmatprep.subr.mxu0 0.0
      %4874 = vmatpush1.xpose.msra.mxu0 0.0
      %4875 = vmatprep.subr.mxu0 0.0
      %4876 = vmatpush1.xpose.msra.mxu0 %v4843
      %4877 = vmatprep.subr.mxu0 0.0
      %4878 = vmatpush2.xpose.msra.mxu0 0.0
      %4879 = vmatprep.subr.mxu0 0.0
      %4880 = vmatpush2.xpose.msra.mxu0 0.0
      %4881 = vmatprep.subr.mxu0 0.0
      %4882 = vmatpush2.xpose.msra.mxu0 0.0
      %4883 = vmatprep.subr.mxu0 0.0
      %4884 = vmatpush2.xpose.msra.mxu0 0.0
      %4885 = vmatprep.subr.mxu0 0.0
      %4886 = vmatpush2.xpose.msra.mxu0 0.0
      %4887 = vmatprep.subr.mxu0 0.0
      %4888 = vmatpush2.xpose.msra.mxu0 0.0
      %4889 = vmatprep.subr.mxu0 0.0
      %4890 = vmatpush2.xpose.msra.mxu0 0.0
      %4891 = vmatprep.subr.mxu0 0.0
      %4892 = vmatpush2.xpose.msra.mxu0 0.0
      %4893 = vmatprep.subr.mxu0 0.0
      %4894 = vmatpush2.xpose.msra.mxu0 0.0
      %4895 = vmatprep.subr.mxu0 0.0
      %4896 = vmatpush2.xpose.msra.mxu0 0.0
      %4897 = vmatprep.subr.mxu0 0.0
      %4898 = vmatpush2.xpose.msra.mxu0 0.0
      %4899 = vmatprep.subr.mxu0 0.0
      %4900 = vmatpush2.xpose.msra.mxu0 0.0
      %4901 = vmatprep.subr.mxu0 0.0
      %4902 = vmatpush2.xpose.msra.mxu0 0.0
      %4903 = vmatprep.subr.mxu0 0.0
      %4904 = vmatpush2.xpose.msra.mxu0 0.0
      %4905 = vmatprep.subr.mxu0 0.0
      %4906 = vmatpush2.xpose.msra.mxu0 0.0
      %4907 = vmatprep.subr.mxu0 0.0
      %4908 = vmatpush2.xpose.msra.mxu0 0.0
      %4909 = vmatprep.mubr.f32.mxu0 0.0
      %4910 = vmatmul.mubr.f32.gmra.mxu0 %v4840
      %v4911 = vpop.f32.mrf.mxu0
      %v4912 = vadd.f32 0.0, %v4911
      %v4913 = vpop.f32.mrf.mxu0
      %4914 = vdwg.mxu0
      %4915 = vrot.lane.b32.xlu0 %v2431, 88
      %v4916 = vpop.permute.xlu0 %4915
      %4917 = vrot.lane.b32.xlu0 %v2432, 88
      %v4918 = vpop.permute.xlu0 %4917
      %v4922 = vsel %vm3560, %v4648, 0
      %4924 = vmatprep.subr.mxu0 0.0
      %4925 = vmatpush1.msra.mxu0 0.0
      %4926 = vmatprep.subr.mxu0 0.0
      %4927 = vmatpush1.msra.mxu0 0.0
      %4928 = vmatprep.subr.mxu0 0.0
      %4929 = vmatpush1.msra.mxu0 0.0
      %4930 = vmatprep.subr.mxu0 0.0
      %4931 = vmatpush1.msra.mxu0 0.0
      %4932 = vmatprep.subr.mxu0 0.0
      %4933 = vmatpush1.msra.mxu0 0.0
      %4934 = vmatprep.subr.mxu0 0.0
      %4935 = vmatpush1.msra.mxu0 0.0
      %4936 = vmatprep.subr.mxu0 0.0
      %4937 = vmatpush1.msra.mxu0 0.0
      %4938 = vmatprep.subr.mxu0 0.0
      %4939 = vmatpush1.msra.mxu0 0.0
      %4940 = vmatprep.subr.mxu0 0.0
      %4941 = vmatpush1.msra.mxu0 0.0
      %4942 = vmatprep.subr.mxu0 0.0
      %4943 = vmatpush1.msra.mxu0 0.0
      %4944 = vmatprep.subr.mxu0 0.0
      %4945 = vmatpush1.msra.mxu0 0.0
      %4946 = vmatprep.subr.mxu0 0.0
      %4947 = vmatpush1.msra.mxu0 0.0
      %4948 = vmatprep.subr.mxu0 0.0
      %4949 = vmatpush1.msra.mxu0 0.0
      %4950 = vmatprep.subr.mxu0 0.0
      %4951 = vmatpush1.msra.mxu0 0.0
      %4952 = vmatprep.subr.mxu0 0.0
      %4953 = vmatpush1.msra.mxu0 %v4918
      %4954 = vmatprep.subr.mxu0 0.0
      %4955 = vmatpush1.msra.mxu0 %v4916
      %4956 = vmatprep.subr.mxu0 0.0
      %4957 = vmatpush2.msra.mxu0 0.0
      %4958 = vmatprep.subr.mxu0 0.0
      %4959 = vmatpush2.msra.mxu0 0.0
      %4960 = vmatprep.subr.mxu0 0.0
      %4961 = vmatpush2.msra.mxu0 0.0
      %4962 = vmatprep.subr.mxu0 0.0
      %4963 = vmatpush2.msra.mxu0 0.0
      %4964 = vmatprep.subr.mxu0 0.0
      %4965 = vmatpush2.msra.mxu0 0.0
      %4966 = vmatprep.subr.mxu0 0.0
      %4967 = vmatpush2.msra.mxu0 0.0
      %4968 = vmatprep.subr.mxu0 0.0
      %4969 = vmatpush2.msra.mxu0 0.0
      %4970 = vmatprep.subr.mxu0 0.0
      %4971 = vmatpush2.msra.mxu0 0.0
      %4972 = vmatprep.subr.mxu0 0.0
      %4973 = vmatpush2.msra.mxu0 0.0
      %4974 = vmatprep.subr.mxu0 0.0
      %4975 = vmatpush2.msra.mxu0 0.0
      %4976 = vmatprep.subr.mxu0 0.0
      %4977 = vmatpush2.msra.mxu0 0.0
      %4978 = vmatprep.subr.mxu0 0.0
      %4979 = vmatpush2.msra.mxu0 0.0
      %4980 = vmatprep.subr.mxu0 0.0
      %4981 = vmatpush2.msra.mxu0 0.0
      %4982 = vmatprep.subr.mxu0 0.0
      %4983 = vmatpush2.msra.mxu0 0.0
      %4984 = vmatprep.subr.mxu0 0.0
      %4985 = vmatpush2.msra.mxu0 0.0
      %4986 = vmatprep.subr.mxu0 0.0
      %4987 = vmatpush2.msra.mxu0 0.0
      %4988 = vmatprep.mubr.f32.mxu0 0.0
      %4989 = vmatmul.mubr.f32.gmra.mxu0 %v4922
      %v4990 = vpop.f32.mrf.mxu0
      %v4991 = vadd.f32 %v4912, %v4990
      %v4992 = vpop.f32.mrf.mxu0
      %4993 = vdwg.mxu0
      %v4995 = vsel %vm1033, %v4991, 0
      %4997 = vmatprep.subr.mxu0 0.0
      %4998 = vmatpush1.msra.mxu0 0.0
      %4999 = vmatprep.subr.mxu0 0.0
      %5000 = vmatpush1.msra.mxu0 0.0
      %5001 = vmatprep.subr.mxu0 0.0
      %5002 = vmatpush1.msra.mxu0 0.0
      %5003 = vmatprep.subr.mxu0 0.0
      %5004 = vmatpush1.msra.mxu0 0.0
      %5005 = vmatprep.subr.mxu0 0.0
      %5006 = vmatpush1.msra.mxu0 0.0
      %5007 = vmatprep.subr.mxu0 0.0
      %5008 = vmatpush1.msra.mxu0 0.0
      %5009 = vmatprep.subr.mxu0 0.0
      %5010 = vmatpush1.msra.mxu0 0.0
      %5011 = vmatprep.subr.mxu0 0.0
      %5012 = vmatpush1.msra.mxu0 0.0
      %5013 = vmatprep.subr.mxu0 0.0
      %5014 = vmatpush1.msra.mxu0 0.0
      %5015 = vmatprep.subr.mxu0 0.0
      %5016 = vmatpush1.msra.mxu0 0.0
      %5017 = vmatprep.subr.mxu0 0.0
      %5018 = vmatpush1.msra.mxu0 0.0
      %5019 = vmatprep.subr.mxu0 0.0
      %5020 = vmatpush1.msra.mxu0 0.0
      %5021 = vmatprep.subr.mxu0 0.0
      %5022 = vmatpush1.msra.mxu0 0.0
      %5023 = vmatprep.subr.mxu0 0.0
      %5024 = vmatpush1.msra.mxu0 0.0
      %5025 = vmatprep.subr.mxu0 0.0
      %5026 = vmatpush1.msra.mxu0 0.0
      %5027 = vmatprep.subr.mxu0 0.0
      %5028 = vmatpush1.msra.mxu0 %v2829
      %5029 = vmatprep.subr.mxu0 0.0
      %5030 = vmatpush2.msra.mxu0 0.0
      %5031 = vmatprep.subr.mxu0 0.0
      %5032 = vmatpush2.msra.mxu0 0.0
      %5033 = vmatprep.subr.mxu0 0.0
      %5034 = vmatpush2.msra.mxu0 0.0
      %5035 = vmatprep.subr.mxu0 0.0
      %5036 = vmatpush2.msra.mxu0 0.0
      %5037 = vmatprep.subr.mxu0 0.0
      %5038 = vmatpush2.msra.mxu0 0.0
      %5039 = vmatprep.subr.mxu0 0.0
      %5040 = vmatpush2.msra.mxu0 0.0
      %5041 = vmatprep.subr.mxu0 0.0
      %5042 = vmatpush2.msra.mxu0 0.0
      %5043 = vmatprep.subr.mxu0 0.0
      %5044 = vmatpush2.msra.mxu0 0.0
      %5045 = vmatprep.subr.mxu0 0.0
      %5046 = vmatpush2.msra.mxu0 0.0
      %5047 = vmatprep.subr.mxu0 0.0
      %5048 = vmatpush2.msra.mxu0 0.0
      %5049 = vmatprep.subr.mxu0 0.0
      %5050 = vmatpush2.msra.mxu0 0.0
      %5051 = vmatprep.subr.mxu0 0.0
      %5052 = vmatpush2.msra.mxu0 0.0
      %5053 = vmatprep.subr.mxu0 0.0
      %5054 = vmatpush2.msra.mxu0 0.0
      %5055 = vmatprep.subr.mxu0 0.0
      %5056 = vmatpush2.msra.mxu0 0.0
      %5057 = vmatprep.subr.mxu0 0.0
      %5058 = vmatpush2.msra.mxu0 0.0
      %5059 = vmatprep.subr.mxu0 0.0
      %5060 = vmatpush2.msra.mxu0 0.0
      %5061 = vmatprep.mubr.f32.mxu0 0.0
      %5062 = vmatmul.mubr.f32.gmra.mxu0 %v4995
      %v5063 = vpop.f32.mrf.mxu0
      %v5064 = vadd.f32 0.0, %v5063
      %v5065 = vpop.f32.mrf.mxu0
      %5066 = vdwg.mxu0
      %v5068 = vsel %vm1033, %v3914, 0
      %5070 = vmatprep.subr.mxu0 0.0
      %5071 = vmatpush1.msra.mxu0 0.0
      %5072 = vmatprep.subr.mxu0 0.0
      %5073 = vmatpush1.msra.mxu0 0.0
      %5074 = vmatprep.subr.mxu0 0.0
      %5075 = vmatpush1.msra.mxu0 0.0
      %5076 = vmatprep.subr.mxu0 0.0
      %5077 = vmatpush1.msra.mxu0 0.0
      %5078 = vmatprep.subr.mxu0 0.0
      %5079 = vmatpush1.msra.mxu0 0.0
      %5080 = vmatprep.subr.mxu0 0.0
      %5081 = vmatpush1.msra.mxu0 0.0
      %5082 = vmatprep.subr.mxu0 0.0
      %5083 = vmatpush1.msra.mxu0 0.0
      %5084 = vmatprep.subr.mxu0 0.0
      %5085 = vmatpush1.msra.mxu0 0.0
      %5086 = vmatprep.subr.mxu0 0.0
      %5087 = vmatpush1.msra.mxu0 0.0
      %5088 = vmatprep.subr.mxu0 0.0
      %5089 = vmatpush1.msra.mxu0 0.0
      %5090 = vmatprep.subr.mxu0 0.0
      %5091 = vmatpush1.msra.mxu0 0.0
      %5092 = vmatprep.subr.mxu0 0.0
      %5093 = vmatpush1.msra.mxu0 0.0
      %5094 = vmatprep.subr.mxu0 0.0
      %5095 = vmatpush1.msra.mxu0 0.0
      %5096 = vmatprep.subr.mxu0 0.0
      %5097 = vmatpush1.msra.mxu0 0.0
      %5098 = vmatprep.subr.mxu0 0.0
      %5099 = vmatpush1.msra.mxu0 0.0
      %5100 = vmatprep.subr.mxu0 0.0
      %5101 = vmatpush1.msra.mxu0 %v2828
      %5102 = vmatprep.subr.mxu0 0.0
      %5103 = vmatpush2.msra.mxu0 0.0
      %5104 = vmatprep.subr.mxu0 0.0
      %5105 = vmatpush2.msra.mxu0 0.0
      %5106 = vmatprep.subr.mxu0 0.0
      %5107 = vmatpush2.msra.mxu0 0.0
      %5108 = vmatprep.subr.mxu0 0.0
      %5109 = vmatpush2.msra.mxu0 0.0
      %5110 = vmatprep.subr.mxu0 0.0
      %5111 = vmatpush2.msra.mxu0 0.0
      %5112 = vmatprep.subr.mxu0 0.0
      %5113 = vmatpush2.msra.mxu0 0.0
      %5114 = vmatprep.subr.mxu0 0.0
      %5115 = vmatpush2.msra.mxu0 0.0
      %5116 = vmatprep.subr.mxu0 0.0
      %5117 = vmatpush2.msra.mxu0 0.0
      %5118 = vmatprep.subr.mxu0 0.0
      %5119 = vmatpush2.msra.mxu0 0.0
      %5120 = vmatprep.subr.mxu0 0.0
      %5121 = vmatpush2.msra.mxu0 0.0
      %5122 = vmatprep.subr.mxu0 0.0
      %5123 = vmatpush2.msra.mxu0 0.0
      %5124 = vmatprep.subr.mxu0 0.0
      %5125 = vmatpush2.msra.mxu0 0.0
      %5126 = vmatprep.subr.mxu0 0.0
      %5127 = vmatpush2.msra.mxu0 0.0
      %5128 = vmatprep.subr.mxu0 0.0
      %5129 = vmatpush2.msra.mxu0 0.0
      %5130 = vmatprep.subr.mxu0 0.0
      %5131 = vmatpush2.msra.mxu0 0.0
      %5132 = vmatprep.subr.mxu0 0.0
      %5133 = vmatpush2.msra.mxu0 0.0
      %5134 = vmatprep.mubr.f32.mxu0 0.0
      %5135 = vmatmul.mubr.f32.gmra.mxu0 %v5068
      %v5136 = vpop.f32.mrf.mxu0
      %v5137 = vadd.f32 %v5064, %v5136
      %v5138 = vpop.f32.mrf.mxu0
      %5139 = vdwg.mxu0
      %5140 = vrot.lane.b32.xlu0 %v2253, 80
      %v5141 = vpop.permute.xlu0 %5140
      %5142 = vrot.lane.b32.xlu0 %v2431, 48
      %v5143 = vpop.permute.xlu0 %5142
      %5144 = vrot.lane.b32.xlu0 %v2432, 48
      %v5145 = vpop.permute.xlu0 %5144
      %v5146 = vsel %vm1033, %v5141, 0
      %v5148 = vsel %vm1033, %v5143, 0
      %v5150 = vsel %vm1033, %v5145, 0
      %5152 = vmatprep.subr.mxu0 0.0
      %5153 = vmatpush1.xpose.msra.mxu0 0.0
      %5154 = vmatprep.subr.mxu0 0.0
      %5155 = vmatpush1.xpose.msra.mxu0 0.0
      %5156 = vmatprep.subr.mxu0 0.0
      %5157 = vmatpush1.xpose.msra.mxu0 0.0
      %5158 = vmatprep.subr.mxu0 0.0
      %5159 = vmatpush1.xpose.msra.mxu0 0.0
      %5160 = vmatprep.subr.mxu0 0.0
      %5161 = vmatpush1.xpose.msra.mxu0 0.0
      %5162 = vmatprep.subr.mxu0 0.0
      %5163 = vmatpush1.xpose.msra.mxu0 0.0
      %5164 = vmatprep.subr.mxu0 0.0
      %5165 = vmatpush1.xpose.msra.mxu0 0.0
      %5166 = vmatprep.subr.mxu0 0.0
      %5167 = vmatpush1.xpose.msra.mxu0 0.0
      %5168 = vmatprep.subr.mxu0 0.0
      %5169 = vmatpush1.xpose.msra.mxu0 0.0
      %5170 = vmatprep.subr.mxu0 0.0
      %5171 = vmatpush1.xpose.msra.mxu0 0.0
      %5172 = vmatprep.subr.mxu0 0.0
      %5173 = vmatpush1.xpose.msra.mxu0 0.0
      %5174 = vmatprep.subr.mxu0 0.0
      %5175 = vmatpush1.xpose.msra.mxu0 0.0
      %5176 = vmatprep.subr.mxu0 0.0
      %5177 = vmatpush1.xpose.msra.mxu0 0.0
      %5178 = vmatprep.subr.mxu0 0.0
      %5179 = vmatpush1.xpose.msra.mxu0 0.0
      %5180 = vmatprep.subr.mxu0 0.0
      %5181 = vmatpush1.xpose.msra.mxu0 %v5150
      %5182 = vmatprep.subr.mxu0 0.0
      %5183 = vmatpush1.xpose.msra.mxu0 %v5148
      %5184 = vmatprep.subr.mxu0 0.0
      %5185 = vmatpush2.xpose.msra.mxu0 0.0
      %5186 = vmatprep.subr.mxu0 0.0
      %5187 = vmatpush2.xpose.msra.mxu0 0.0
      %5188 = vmatprep.subr.mxu0 0.0
      %5189 = vmatpush2.xpose.msra.mxu0 0.0
      %5190 = vmatprep.subr.mxu0 0.0
      %5191 = vmatpush2.xpose.msra.mxu0 0.0
      %5192 = vmatprep.subr.mxu0 0.0
      %5193 = vmatpush2.xpose.msra.mxu0 0.0
      %5194 = vmatprep.subr.mxu0 0.0
      %5195 = vmatpush2.xpose.msra.mxu0 0.0
      %5196 = vmatprep.subr.mxu0 0.0
      %5197 = vmatpush2.xpose.msra.mxu0 0.0
      %5198 = vmatprep.subr.mxu0 0.0
      %5199 = vmatpush2.xpose.msra.mxu0 0.0
      %5200 = vmatprep.subr.mxu0 0.0
      %5201 = vmatpush2.xpose.msra.mxu0 0.0
      %5202 = vmatprep.subr.mxu0 0.0
      %5203 = vmatpush2.xpose.msra.mxu0 0.0
      %5204 = vmatprep.subr.mxu0 0.0
      %5205 = vmatpush2.xpose.msra.mxu0 0.0
      %5206 = vmatprep.subr.mxu0 0.0
      %5207 = vmatpush2.xpose.msra.mxu0 0.0
      %5208 = vmatprep.subr.mxu0 0.0
      %5209 = vmatpush2.xpose.msra.mxu0 0.0
      %5210 = vmatprep.subr.mxu0 0.0
      %5211 = vmatpush2.xpose.msra.mxu0 0.0
      %5212 = vmatprep.subr.mxu0 0.0
      %5213 = vmatpush2.xpose.msra.mxu0 0.0
      %5214 = vmatprep.subr.mxu0 0.0
      %5215 = vmatpush2.xpose.msra.mxu0 0.0
      %5216 = vmatprep.mubr.f32.mxu0 0.0
      %5217 = vmatmul.mubr.f32.gmra.mxu0 %v5146
      %v5218 = vpop.f32.mrf.mxu0
      %v5219 = vadd.f32 0.0, %v5218
      %v5220 = vpop.f32.mrf.mxu0
      %5221 = vdwg.mxu0
      %5222 = vrot.lane.b32.xlu0 %v2253, 112
      %v5223 = vpop.permute.xlu0 %5222
      %5224 = vrot.lane.b32.xlu0 %v2431, 112
      %v5225 = vpop.permute.xlu0 %5224
      %5226 = vrot.lane.b32.xlu0 %v2432, 112
      %v5227 = vpop.permute.xlu0 %5226
      %v5228 = vsel %vm1033, %v5223, 0
      %v5230 = vsel %vm1033, %v5225, 0
      %v5232 = vsel %vm1033, %v5227, 0
      %5234 = vmatprep.subr.mxu0 0.0
      %5235 = vmatpush1.xpose.msra.mxu0 0.0
      %5236 = vmatprep.subr.mxu0 0.0
      %5237 = vmatpush1.xpose.msra.mxu0 0.0
      %5238 = vmatprep.subr.mxu0 0.0
      %5239 = vmatpush1.xpose.msra.mxu0 0.0
      %5240 = vmatprep.subr.mxu0 0.0
      %5241 = vmatpush1.xpose.msra.mxu0 0.0
      %5242 = vmatprep.subr.mxu0 0.0
      %5243 = vmatpush1.xpose.msra.mxu0 0.0
      %5244 = vmatprep.subr.mxu0 0.0
      %5245 = vmatpush1.xpose.msra.mxu0 0.0
      %5246 = vmatprep.subr.mxu0 0.0
      %5247 = vmatpush1.xpose.msra.mxu0 0.0
      %5248 = vmatprep.subr.mxu0 0.0
      %5249 = vmatpush1.xpose.msra.mxu0 0.0
      %5250 = vmatprep.subr.mxu0 0.0
      %5251 = vmatpush1.xpose.msra.mxu0 0.0
      %5252 = vmatprep.subr.mxu0 0.0
      %5253 = vmatpush1.xpose.msra.mxu0 0.0
      %5254 = vmatprep.subr.mxu0 0.0
      %5255 = vmatpush1.xpose.msra.mxu0 0.0
      %5256 = vmatprep.subr.mxu0 0.0
      %5257 = vmatpush1.xpose.msra.mxu0 0.0
      %5258 = vmatprep.subr.mxu0 0.0
      %5259 = vmatpush1.xpose.msra.mxu0 0.0
      %5260 = vmatprep.subr.mxu0 0.0
      %5261 = vmatpush1.xpose.msra.mxu0 0.0
      %5262 = vmatprep.subr.mxu0 0.0
      %5263 = vmatpush1.xpose.msra.mxu0 %v5232
      %5264 = vmatprep.subr.mxu0 0.0
      %5265 = vmatpush1.xpose.msra.mxu0 %v5230
      %5266 = vmatprep.subr.mxu0 0.0
      %5267 = vmatpush2.xpose.msra.mxu0 0.0
      %5268 = vmatprep.subr.mxu0 0.0
      %5269 = vmatpush2.xpose.msra.mxu0 0.0
      %5270 = vmatprep.subr.mxu0 0.0
      %5271 = vmatpush2.xpose.msra.mxu0 0.0
      %5272 = vmatprep.subr.mxu0 0.0
      %5273 = vmatpush2.xpose.msra.mxu0 0.0
      %5274 = vmatprep.subr.mxu0 0.0
      %5275 = vmatpush2.xpose.msra.mxu0 0.0
      %5276 = vmatprep.subr.mxu0 0.0
      %5277 = vmatpush2.xpose.msra.mxu0 0.0
      %5278 = vmatprep.subr.mxu0 0.0
      %5279 = vmatpush2.xpose.msra.mxu0 0.0
      %5280 = vmatprep.subr.mxu0 0.0
      %5281 = vmatpush2.xpose.msra.mxu0 0.0
      %5282 = vmatprep.subr.mxu0 0.0
      %5283 = vmatpush2.xpose.msra.mxu0 0.0
      %5284 = vmatprep.subr.mxu0 0.0
      %5285 = vmatpush2.xpose.msra.mxu0 0.0
      %5286 = vmatprep.subr.mxu0 0.0
      %5287 = vmatpush2.xpose.msra.mxu0 0.0
      %5288 = vmatprep.subr.mxu0 0.0
      %5289 = vmatpush2.xpose.msra.mxu0 0.0
      %5290 = vmatprep.subr.mxu0 0.0
      %5291 = vmatpush2.xpose.msra.mxu0 0.0
      %5292 = vmatprep.subr.mxu0 0.0
      %5293 = vmatpush2.xpose.msra.mxu0 0.0
      %5294 = vmatprep.subr.mxu0 0.0
      %5295 = vmatpush2.xpose.msra.mxu0 0.0
      %5296 = vmatprep.subr.mxu0 0.0
      %5297 = vmatpush2.xpose.msra.mxu0 0.0
      %5298 = vmatprep.mubr.f32.mxu0 0.0
      %5299 = vmatmul.mubr.f32.gmra.mxu0 %v5228
      %v5300 = vpop.f32.mrf.mxu0
      %v5301 = vadd.f32 %v5219, %v5300
      %v5302 = vpop.f32.mrf.mxu0
      %5303 = vdwg.mxu0
      %5304 = vmatprep.subr.mxu0 0.0
      %5305 = vmatpush1.msra.mxu0 0.0
      %5306 = vmatprep.subr.mxu0 0.0
      %5307 = vmatpush1.msra.mxu0 0.0
      %5308 = vmatprep.subr.mxu0 0.0
      %5309 = vmatpush1.msra.mxu0 0.0
      %5310 = vmatprep.subr.mxu0 0.0
      %5311 = vmatpush1.msra.mxu0 0.0
      %5312 = vmatprep.subr.mxu0 0.0
      %5313 = vmatpush1.msra.mxu0 0.0
      %5314 = vmatprep.subr.mxu0 0.0
      %5315 = vmatpush1.msra.mxu0 0.0
      %5316 = vmatprep.subr.mxu0 0.0
      %5317 = vmatpush1.msra.mxu0 0.0
      %5318 = vmatprep.subr.mxu0 0.0
      %5319 = vmatpush1.msra.mxu0 0.0
      %5320 = vmatprep.subr.mxu0 0.0
      %5321 = vmatpush1.msra.mxu0 0.0
      %5322 = vmatprep.subr.mxu0 0.0
      %5323 = vmatpush1.msra.mxu0 0.0
      %5324 = vmatprep.subr.mxu0 0.0
      %5325 = vmatpush1.msra.mxu0 0.0
      %5326 = vmatprep.subr.mxu0 0.0
      %5327 = vmatpush1.msra.mxu0 0.0
      %5328 = vmatprep.subr.mxu0 0.0
      %5329 = vmatpush1.msra.mxu0 0.0
      %5330 = vmatprep.subr.mxu0 0.0
      %5331 = vmatpush1.msra.mxu0 0.0
      %5332 = vmatprep.subr.mxu0 0.0
      %5333 = vmatpush1.msra.mxu0 0.0
      %5334 = vmatprep.subr.mxu0 0.0
      %5335 = vmatpush1.msra.mxu0 %v2818
      %5336 = vmatprep.subr.mxu0 0.0
      %5337 = vmatpush2.msra.mxu0 0.0
      %5338 = vmatprep.subr.mxu0 0.0
      %5339 = vmatpush2.msra.mxu0 0.0
      %5340 = vmatprep.subr.mxu0 0.0
      %5341 = vmatpush2.msra.mxu0 0.0
      %5342 = vmatprep.subr.mxu0 0.0
      %5343 = vmatpush2.msra.mxu0 0.0
      %5344 = vmatprep.subr.mxu0 0.0
      %5345 = vmatpush2.msra.mxu0 0.0
      %5346 = vmatprep.subr.mxu0 0.0
      %5347 = vmatpush2.msra.mxu0 0.0
      %5348 = vmatprep.subr.mxu0 0.0
      %5349 = vmatpush2.msra.mxu0 0.0
      %5350 = vmatprep.subr.mxu0 0.0
      %5351 = vmatpush2.msra.mxu0 0.0
      %5352 = vmatprep.subr.mxu0 0.0
      %5353 = vmatpush2.msra.mxu0 0.0
      %5354 = vmatprep.subr.mxu0 0.0
      %5355 = vmatpush2.msra.mxu0 0.0
      %5356 = vmatprep.subr.mxu0 0.0
      %5357 = vmatpush2.msra.mxu0 0.0
      %5358 = vmatprep.subr.mxu0 0.0
      %5359 = vmatpush2.msra.mxu0 0.0
      %5360 = vmatprep.subr.mxu0 0.0
      %5361 = vmatpush2.msra.mxu0 0.0
      %5362 = vmatprep.subr.mxu0 0.0
      %5363 = vmatpush2.msra.mxu0 0.0
      %5364 = vmatprep.subr.mxu0 0.0
      %5365 = vmatpush2.msra.mxu0 0.0
      %5366 = vmatprep.subr.mxu0 0.0
      %5367 = vmatpush2.msra.mxu0 0.0
      %5368 = vmatprep.mubr.f32.mxu0 0.0
      %5369 = vmatmul.mubr.f32.gmra.mxu0 %v5228
      %v5370 = vpop.f32.mrf.mxu0
      %v5371 = vadd.f32 0.0, %v5370
      %v5372 = vpop.f32.mrf.mxu0
      %5373 = vdwg.mxu0
      %5374 = vmatprep.subr.mxu0 0.0
      %5375 = vmatpush1.msra.mxu0 0.0
      %5376 = vmatprep.subr.mxu0 0.0
      %5377 = vmatpush1.msra.mxu0 0.0
      %5378 = vmatprep.subr.mxu0 0.0
      %5379 = vmatpush1.msra.mxu0 0.0
      %5380 = vmatprep.subr.mxu0 0.0
      %5381 = vmatpush1.msra.mxu0 0.0
      %5382 = vmatprep.subr.mxu0 0.0
      %5383 = vmatpush1.msra.mxu0 0.0
      %5384 = vmatprep.subr.mxu0 0.0
      %5385 = vmatpush1.msra.mxu0 0.0
      %5386 = vmatprep.subr.mxu0 0.0
      %5387 = vmatpush1.msra.mxu0 0.0
      %5388 = vmatprep.subr.mxu0 0.0
      %5389 = vmatpush1.msra.mxu0 0.0
      %5390 = vmatprep.subr.mxu0 0.0
      %5391 = vmatpush1.msra.mxu0 0.0
      %5392 = vmatprep.subr.mxu0 0.0
      %5393 = vmatpush1.msra.mxu0 0.0
      %5394 = vmatprep.subr.mxu0 0.0
      %5395 = vmatpush1.msra.mxu0 0.0
      %5396 = vmatprep.subr.mxu0 0.0
      %5397 = vmatpush1.msra.mxu0 0.0
      %5398 = vmatprep.subr.mxu0 0.0
      %5399 = vmatpush1.msra.mxu0 0.0
      %5400 = vmatprep.subr.mxu0 0.0
      %5401 = vmatpush1.msra.mxu0 0.0
      %5402 = vmatprep.subr.mxu0 0.0
      %5403 = vmatpush1.msra.mxu0 0.0
      %5404 = vmatprep.subr.mxu0 0.0
      %5405 = vmatpush1.msra.mxu0 %v2822
      %5406 = vmatprep.subr.mxu0 0.0
      %5407 = vmatpush2.msra.mxu0 0.0
      %5408 = vmatprep.subr.mxu0 0.0
      %5409 = vmatpush2.msra.mxu0 0.0
      %5410 = vmatprep.subr.mxu0 0.0
      %5411 = vmatpush2.msra.mxu0 0.0
      %5412 = vmatprep.subr.mxu0 0.0
      %5413 = vmatpush2.msra.mxu0 0.0
      %5414 = vmatprep.subr.mxu0 0.0
      %5415 = vmatpush2.msra.mxu0 0.0
      %5416 = vmatprep.subr.mxu0 0.0
      %5417 = vmatpush2.msra.mxu0 0.0
      %5418 = vmatprep.subr.mxu0 0.0
      %5419 = vmatpush2.msra.mxu0 0.0
      %5420 = vmatprep.subr.mxu0 0.0
      %5421 = vmatpush2.msra.mxu0 0.0
      %5422 = vmatprep.subr.mxu0 0.0
      %5423 = vmatpush2.msra.mxu0 0.0
      %5424 = vmatprep.subr.mxu0 0.0
      %5425 = vmatpush2.msra.mxu0 0.0
      %5426 = vmatprep.subr.mxu0 0.0
      %5427 = vmatpush2.msra.mxu0 0.0
      %5428 = vmatprep.subr.mxu0 0.0
      %5429 = vmatpush2.msra.mxu0 0.0
      %5430 = vmatprep.subr.mxu0 0.0
      %5431 = vmatpush2.msra.mxu0 0.0
      %5432 = vmatprep.subr.mxu0 0.0
      %5433 = vmatpush2.msra.mxu0 0.0
      %5434 = vmatprep.subr.mxu0 0.0
      %5435 = vmatpush2.msra.mxu0 0.0
      %5436 = vmatprep.subr.mxu0 0.0
      %5437 = vmatpush2.msra.mxu0 0.0
      %5438 = vmatprep.mubr.f32.mxu0 0.0
      %5439 = vmatmul.mubr.f32.gmra.mxu0 %v5230
      %v5440 = vpop.f32.mrf.mxu0
      %v5441 = vadd.f32 0.0, %v5440
      %v5442 = vpop.f32.mrf.mxu0
      %5443 = vmatprep.mubr.f32.mxu0 0.0
      %5444 = vmatmul.mubr.f32.gmra.mxu0 %v5232
      %v5445 = vpop.f32.mrf.mxu0
      %v5446 = vadd.f32 0.0, %v5445
      %v5447 = vpop.f32.mrf.mxu0
      %5448 = vdwg.mxu0
      %v5450 = vcombine.high %v5371, %v5371
      %v5452 = vunpack.c.l.s4 1966171168
      %v5453 = vunpack.c.0.s8 %v5452
      %v5454 = vlaneseq
      %v5455 = vshrl.u32 %v5454, 7
      %v5456 = vsub.s32 %v5453, %v5455
      %v5457 = vrot.slane %v5371, %v5456
      %v5459 = vunpack.c.l.s4 1966171168
      %v5460 = vunpack.c.0.s8 %v5459
      %v5461 = vlaneseq
      %v5462 = vshrl.u32 %v5461, 7
      %v5463 = vsub.s32 %v5460, %v5462
      %v5464 = vrot.slane %v5450, %v5463
      %v5465 = vcombine.high %v5457, %v5457
      %v5466 = vcombine.high %v5464, %v5464
      %v5468 = vunpack.c.l.s4 1966171168
      %v5469 = vunpack.c.0.s8 %v5468
      %v5470 = vlaneseq
      %v5471 = vshrl.u32 %v5470, 7
      %v5472 = vsub.s32 %v5469, %v5471
      %v5473 = vrot.slane %v5457, %v5472
      %v5475 = vunpack.c.l.s4 1966171168
      %v5476 = vunpack.c.0.s8 %v5475
      %v5477 = vlaneseq
      %v5478 = vshrl.u32 %v5477, 7
      %v5479 = vsub.s32 %v5476, %v5478
      %v5480 = vrot.slane %v5464, %v5479
      %v5482 = vunpack.c.l.s4 1966171168
      %v5483 = vunpack.c.0.s8 %v5482
      %v5484 = vlaneseq
      %v5485 = vshrl.u32 %v5484, 7
      %v5486 = vsub.s32 %v5483, %v5485
      %v5487 = vrot.slane %v5465, %v5486
      %v5489 = vunpack.c.l.s4 1966171168
      %v5490 = vunpack.c.0.s8 %v5489
      %v5491 = vlaneseq
      %v5492 = vshrl.u32 %v5491, 7
      %v5493 = vsub.s32 %v5490, %v5492
      %v5494 = vrot.slane %v5466, %v5493
      %v5495 = vcombine.high %v5473, %v5473
      %v5496 = vcombine.high %v5480, %v5480
      %v5497 = vcombine.high %v5487, %v5487
      %v5498 = vcombine.high %v5494, %v5494
      %v5499 = vlaneseq
      %v5500 = vshrl.u32 %v5499, 7
      %v5501 = vsub.s32 0, %v5500
      %v5502 = vrot.slane %v5473, %v5501
      %v5503 = vlaneseq
      %v5504 = vshrl.u32 %v5503, 7
      %v5505 = vsub.s32 0, %v5504
      %v5506 = vrot.slane %v5487, %v5505
      %v5507 = vlaneseq
      %v5508 = vshrl.u32 %v5507, 7
      %v5509 = vsub.s32 0, %v5508
      %v5510 = vrot.slane %v5495, %v5509
      %v5511 = vlaneseq
      %v5512 = vshrl.u32 %v5511, 7
      %v5513 = vsub.s32 0, %v5512
      %v5514 = vrot.slane %v5497, %v5513
      %v5515 = vlaneseq
      %v5516 = vshrl.u32 %v5515, 7
      %v5517 = vsub.s32 0, %v5516
      %v5518 = vrot.slane %v5480, %v5517
      %v5519 = vlaneseq
      %v5520 = vshrl.u32 %v5519, 7
      %v5521 = vsub.s32 0, %v5520
      %v5522 = vrot.slane %v5494, %v5521
      %v5523 = vlaneseq
      %v5524 = vshrl.u32 %v5523, 7
      %v5525 = vsub.s32 0, %v5524
      %v5526 = vrot.slane %v5496, %v5525
      %v5527 = vlaneseq
      %v5528 = vshrl.u32 %v5527, 7
      %v5529 = vsub.s32 0, %v5528
      %v5530 = vrot.slane %v5498, %v5529
      %v5539 = vmul.f32 %v5502, %v2800
      %v5540 = vmul.f32 %v5502, %v2801
      %v5541 = vmul.f32 %v5506, %v2802
      %v5542 = vmul.f32 %v5506, %v2803
      %v5543 = vmul.f32 %v5510, %v2804
      %v5544 = vmul.f32 %v5510, %v2805
      %v5545 = vmul.f32 %v5514, %v2806
      %v5546 = vmul.f32 %v5514, %v2807
      %v5547 = vmul.f32 %v5518, %v2808
      %v5548 = vmul.f32 %v5518, %v2809
      %v5549 = vmul.f32 %v5522, %v2810
      %v5550 = vmul.f32 %v5522, %v2811
      %v5551 = vmul.f32 %v5526, %v2812
      %v5552 = vmul.f32 %v5526, %v2813
      %v5553 = vmul.f32 %v5530, %v2814
      %v5554 = vmul.f32 %v5530, %v2815
      %v5555 = vsel %vm3244, %v5539, 0.0
      %5556 = vadd.xlane.f32.xlu0 %v5555
      %v5557 = vpop.xlane.xlu0 %5556
      %v5558 = vsel %vm3244, %v5540, 0.0
      %5559 = vadd.xlane.f32.xlu0 %v5558
      %v5560 = vpop.xlane.xlu0 %5559
      %v5561 = vsel %vm3244, %v5541, 0.0
      %5562 = vadd.xlane.f32.xlu0 %v5561
      %v5563 = vpop.xlane.xlu0 %5562
      %v5564 = vsel %vm3244, %v5542, 0.0
      %5565 = vadd.xlane.f32.xlu0 %v5564
      %v5566 = vpop.xlane.xlu0 %5565
      %v5567 = vsel %vm3244, %v5543, 0.0
      %5568 = vadd.xlane.f32.xlu0 %v5567
      %v5569 = vpop.xlane.xlu0 %5568
      %v5570 = vsel %vm3244, %v5544, 0.0
      %5571 = vadd.xlane.f32.xlu0 %v5570
      %v5572 = vpop.xlane.xlu0 %5571
      %v5573 = vsel %vm3244, %v5545, 0.0
      %5574 = vadd.xlane.f32.xlu0 %v5573
      %v5575 = vpop.xlane.xlu0 %5574
      %v5576 = vsel %vm3244, %v5546, 0.0
      %5577 = vadd.xlane.f32.xlu0 %v5576
      %v5578 = vpop.xlane.xlu0 %5577
      %v5579 = vsel %vm3244, %v5547, 0.0
      %5580 = vadd.xlane.f32.xlu0 %v5579
      %v5581 = vpop.xlane.xlu0 %5580
      %v5582 = vsel %vm3244, %v5548, 0.0
      %5583 = vadd.xlane.f32.xlu0 %v5582
      %v5584 = vpop.xlane.xlu0 %5583
      %v5585 = vsel %vm3244, %v5549, 0.0
      %5586 = vadd.xlane.f32.xlu0 %v5585
      %v5587 = vpop.xlane.xlu0 %5586
      %v5588 = vsel %vm3244, %v5550, 0.0
      %5589 = vadd.xlane.f32.xlu0 %v5588
      %v5590 = vpop.xlane.xlu0 %5589
      %v5591 = vsel %vm3244, %v5551, 0.0
      %5592 = vadd.xlane.f32.xlu0 %v5591
      %v5593 = vpop.xlane.xlu0 %5592
      %v5594 = vsel %vm3244, %v5552, 0.0
      %5595 = vadd.xlane.f32.xlu0 %v5594
      %v5596 = vpop.xlane.xlu0 %5595
      %v5597 = vsel %vm3244, %v5553, 0.0
      %5598 = vadd.xlane.f32.xlu0 %v5597
      %v5599 = vpop.xlane.xlu0 %5598
      %v5600 = vsel %vm3244, %v5554, 0.0
      %5601 = vadd.xlane.f32.xlu0 %v5600
      %v5602 = vpop.xlane.xlu0 %5601
      %v5619 = vlaneseq
      %v5620 = vshrl.u32 %v5619, 7
      %v5621 = vsub.s32 %v2434, %v5620
      %v5622 = vrot.slane %v5557, %v5621
      %v5623 = vlaneseq
      %v5624 = vshrl.u32 %v5623, 7
      %v5625 = vsub.s32 %v3313, %v5624
      %v5626 = vrot.slane %v5560, %v5625
      %v5627 = vsel %vm3318, %v5626, %v5622
      %v5628 = vlaneseq
      %v5629 = vshrl.u32 %v5628, 7
      %v5630 = vsub.s32 %v2434, %v5629
      %v5631 = vrot.slane %v5563, %v5630
      %v5632 = vlaneseq
      %v5633 = vshrl.u32 %v5632, 7
      %v5634 = vsub.s32 %v3313, %v5633
      %v5635 = vrot.slane %v5566, %v5634
      %v5636 = vsel %vm3318, %v5635, %v5631
      %v5637 = vlaneseq
      %v5638 = vshrl.u32 %v5637, 7
      %v5639 = vsub.s32 %v2434, %v5638
      %v5640 = vrot.slane %v5569, %v5639
      %v5641 = vlaneseq
      %v5642 = vshrl.u32 %v5641, 7
      %v5643 = vsub.s32 %v3313, %v5642
      %v5644 = vrot.slane %v5572, %v5643
      %v5645 = vsel %vm3318, %v5644, %v5640
      %v5646 = vlaneseq
      %v5647 = vshrl.u32 %v5646, 7
      %v5648 = vsub.s32 %v2434, %v5647
      %v5649 = vrot.slane %v5575, %v5648
      %v5650 = vlaneseq
      %v5651 = vshrl.u32 %v5650, 7
      %v5652 = vsub.s32 %v3313, %v5651
      %v5653 = vrot.slane %v5578, %v5652
      %v5654 = vsel %vm3318, %v5653, %v5649
      %v5655 = vlaneseq
      %v5656 = vshrl.u32 %v5655, 7
      %v5657 = vsub.s32 %v2434, %v5656
      %v5658 = vrot.slane %v5581, %v5657
      %v5659 = vlaneseq
      %v5660 = vshrl.u32 %v5659, 7
      %v5661 = vsub.s32 %v3313, %v5660
      %v5662 = vrot.slane %v5584, %v5661
      %v5663 = vsel %vm3318, %v5662, %v5658
      %v5664 = vlaneseq
      %v5665 = vshrl.u32 %v5664, 7
      %v5666 = vsub.s32 %v2434, %v5665
      %v5667 = vrot.slane %v5587, %v5666
      %v5668 = vlaneseq
      %v5669 = vshrl.u32 %v5668, 7
      %v5670 = vsub.s32 %v3313, %v5669
      %v5671 = vrot.slane %v5590, %v5670
      %v5672 = vsel %vm3318, %v5671, %v5667
      %v5673 = vlaneseq
      %v5674 = vshrl.u32 %v5673, 7
      %v5675 = vsub.s32 %v2434, %v5674
      %v5676 = vrot.slane %v5593, %v5675
      %v5677 = vlaneseq
      %v5678 = vshrl.u32 %v5677, 7
      %v5679 = vsub.s32 %v3313, %v5678
      %v5680 = vrot.slane %v5596, %v5679
      %v5681 = vsel %vm3318, %v5680, %v5676
      %v5682 = vlaneseq
      %v5683 = vshrl.u32 %v5682, 7
      %v5684 = vsub.s32 %v2434, %v5683
      %v5685 = vrot.slane %v5599, %v5684
      %v5686 = vlaneseq
      %v5687 = vshrl.u32 %v5686, 7
      %v5688 = vsub.s32 %v3313, %v5687
      %v5689 = vrot.slane %v5602, %v5688
      %v5690 = vsel %vm3318, %v5689, %v5685
      %v5691 = vsel %vm3383, %v5636, %v5627
      %v5692 = vsel %vm3385, %v5645, %v5691
      %v5693 = vsel %vm3387, %v5654, %v5692
      %v5694 = vsel %vm3389, %v5663, %v5693
      %v5695 = vsel %vm3391, %v5672, %v5694
      %v5696 = vsel %vm3393, %v5681, %v5695
      %v5697 = vsel %vm3395, %v5690, %v5696
      %v5699 = vadd.f32 %v5301, %v5697
      %v5700 = vmul.f32 %v5441, %v2800
      %v5701 = vmul.f32 %v5446, %v2801
      %v5702 = vmul.f32 %v5441, %v2802
      %v5703 = vmul.f32 %v5446, %v2803
      %v5704 = vmul.f32 %v5441, %v2804
      %v5705 = vmul.f32 %v5446, %v2805
      %v5706 = vmul.f32 %v5441, %v2806
      %v5707 = vmul.f32 %v5446, %v2807
      %v5708 = vmul.f32 %v5441, %v2808
      %v5709 = vmul.f32 %v5446, %v2809
      %v5710 = vmul.f32 %v5441, %v2810
      %v5711 = vmul.f32 %v5446, %v2811
      %v5712 = vmul.f32 %v5441, %v2812
      %v5713 = vmul.f32 %v5446, %v2813
      %v5714 = vmul.f32 %v5441, %v2814
      %v5715 = vmul.f32 %v5446, %v2815
      %v5716 = vsel %vm3244, %v5700, 0.0
      %5717 = vadd.xlane.f32.xlu0 %v5716
      %v5718 = vpop.xlane.xlu0 %5717
      %v5719 = vsel %vm3244, %v5701, 0.0
      %5720 = vadd.xlane.f32.xlu0 %v5719
      %v5721 = vpop.xlane.xlu0 %5720
      %v5722 = vsel %vm3244, %v5702, 0.0
      %5723 = vadd.xlane.f32.xlu0 %v5722
      %v5724 = vpop.xlane.xlu0 %5723
      %v5725 = vsel %vm3244, %v5703, 0.0
      %5726 = vadd.xlane.f32.xlu0 %v5725
      %v5727 = vpop.xlane.xlu0 %5726
      %v5728 = vsel %vm3244, %v5704, 0.0
      %5729 = vadd.xlane.f32.xlu0 %v5728
      %v5730 = vpop.xlane.xlu0 %5729
      %v5731 = vsel %vm3244, %v5705, 0.0
      %5732 = vadd.xlane.f32.xlu0 %v5731
      %v5733 = vpop.xlane.xlu0 %5732
      %v5734 = vsel %vm3244, %v5706, 0.0
      %5735 = vadd.xlane.f32.xlu0 %v5734
      %v5736 = vpop.xlane.xlu0 %5735
      %v5737 = vsel %vm3244, %v5707, 0.0
      %5738 = vadd.xlane.f32.xlu0 %v5737
      %v5739 = vpop.xlane.xlu0 %5738
      %v5740 = vsel %vm3244, %v5708, 0.0
      %5741 = vadd.xlane.f32.xlu0 %v5740
      %v5742 = vpop.xlane.xlu0 %5741
      %v5743 = vsel %vm3244, %v5709, 0.0
      %5744 = vadd.xlane.f32.xlu0 %v5743
      %v5745 = vpop.xlane.xlu0 %5744
      %v5746 = vsel %vm3244, %v5710, 0.0
      %5747 = vadd.xlane.f32.xlu0 %v5746
      %v5748 = vpop.xlane.xlu0 %5747
      %v5749 = vsel %vm3244, %v5711, 0.0
      %5750 = vadd.xlane.f32.xlu0 %v5749
      %v5751 = vpop.xlane.xlu0 %5750
      %v5752 = vsel %vm3244, %v5712, 0.0
      %5753 = vadd.xlane.f32.xlu0 %v5752
      %v5754 = vpop.xlane.xlu0 %5753
      %v5755 = vsel %vm3244, %v5713, 0.0
      %5756 = vadd.xlane.f32.xlu0 %v5755
      %v5757 = vpop.xlane.xlu0 %5756
      %v5758 = vsel %vm3244, %v5714, 0.0
      %5759 = vadd.xlane.f32.xlu0 %v5758
      %v5760 = vpop.xlane.xlu0 %5759
      %v5761 = vsel %vm3244, %v5715, 0.0
      %5762 = vadd.xlane.f32.xlu0 %v5761
      %v5763 = vpop.xlane.xlu0 %5762
      %v5780 = vlaneseq
      %v5781 = vshrl.u32 %v5780, 7
      %v5782 = vsub.s32 %v2434, %v5781
      %v5783 = vrot.slane %v5718, %v5782
      %v5784 = vlaneseq
      %v5785 = vshrl.u32 %v5784, 7
      %v5786 = vsub.s32 %v3313, %v5785
      %v5787 = vrot.slane %v5721, %v5786
      %v5788 = vsel %vm3318, %v5787, %v5783
      %v5789 = vlaneseq
      %v5790 = vshrl.u32 %v5789, 7
      %v5791 = vsub.s32 %v2434, %v5790
      %v5792 = vrot.slane %v5724, %v5791
      %v5793 = vlaneseq
      %v5794 = vshrl.u32 %v5793, 7
      %v5795 = vsub.s32 %v3313, %v5794
      %v5796 = vrot.slane %v5727, %v5795
      %v5797 = vsel %vm3318, %v5796, %v5792
      %v5798 = vlaneseq
      %v5799 = vshrl.u32 %v5798, 7
      %v5800 = vsub.s32 %v2434, %v5799
      %v5801 = vrot.slane %v5730, %v5800
      %v5802 = vlaneseq
      %v5803 = vshrl.u32 %v5802, 7
      %v5804 = vsub.s32 %v3313, %v5803
      %v5805 = vrot.slane %v5733, %v5804
      %v5806 = vsel %vm3318, %v5805, %v5801
      %v5807 = vlaneseq
      %v5808 = vshrl.u32 %v5807, 7
      %v5809 = vsub.s32 %v2434, %v5808
      %v5810 = vrot.slane %v5736, %v5809
      %v5811 = vlaneseq
      %v5812 = vshrl.u32 %v5811, 7
      %v5813 = vsub.s32 %v3313, %v5812
      %v5814 = vrot.slane %v5739, %v5813
      %v5815 = vsel %vm3318, %v5814, %v5810
      %v5816 = vlaneseq
      %v5817 = vshrl.u32 %v5816, 7
      %v5818 = vsub.s32 %v2434, %v5817
      %v5819 = vrot.slane %v5742, %v5818
      %v5820 = vlaneseq
      %v5821 = vshrl.u32 %v5820, 7
      %v5822 = vsub.s32 %v3313, %v5821
      %v5823 = vrot.slane %v5745, %v5822
      %v5824 = vsel %vm3318, %v5823, %v5819
      %v5825 = vlaneseq
      %v5826 = vshrl.u32 %v5825, 7
      %v5827 = vsub.s32 %v2434, %v5826
      %v5828 = vrot.slane %v5748, %v5827
      %v5829 = vlaneseq
      %v5830 = vshrl.u32 %v5829, 7
      %v5831 = vsub.s32 %v3313, %v5830
      %v5832 = vrot.slane %v5751, %v5831
      %v5833 = vsel %vm3318, %v5832, %v5828
      %v5834 = vlaneseq
      %v5835 = vshrl.u32 %v5834, 7
      %v5836 = vsub.s32 %v2434, %v5835
      %v5837 = vrot.slane %v5754, %v5836
      %v5838 = vlaneseq
      %v5839 = vshrl.u32 %v5838, 7
      %v5840 = vsub.s32 %v3313, %v5839
      %v5841 = vrot.slane %v5757, %v5840
      %v5842 = vsel %vm3318, %v5841, %v5837
      %v5843 = vlaneseq
      %v5844 = vshrl.u32 %v5843, 7
      %v5845 = vsub.s32 %v2434, %v5844
      %v5846 = vrot.slane %v5760, %v5845
      %v5847 = vlaneseq
      %v5848 = vshrl.u32 %v5847, 7
      %v5849 = vsub.s32 %v3313, %v5848
      %v5850 = vrot.slane %v5763, %v5849
      %v5851 = vsel %vm3318, %v5850, %v5846
      %v5852 = vsel %vm3383, %v5797, %v5788
      %v5853 = vsel %vm3385, %v5806, %v5852
      %v5854 = vsel %vm3387, %v5815, %v5853
      %v5855 = vsel %vm3389, %v5824, %v5854
      %v5856 = vsel %vm3391, %v5833, %v5855
      %v5857 = vsel %vm3393, %v5842, %v5856
      %v5858 = vsel %vm3395, %v5851, %v5857
      %v5860 = vadd.f32 %v5699, %v5858
      %v5861 = vsel %vm3560, %v5860, -inf
      %5862 = vmax.xlane.f32.xlu0 %v5861
      %v5863 = vpop.xlane.xlu0 %5862
      %v5864 = vsub.f32 %v5860, %v5863
      %v5865 = vmul.f32 %v5864, 1.442695
      %v5866 = vpow.pop %v5865
      %v5867 = vsel %vm3560, %v5866, 0.0
      %5868 = vadd.xlane.f32.xlu0 %v5867
      %v5869 = vpop.xlane.xlu0 %5868
      %v5870 = vrcp.pop %v5869
      %v5871 = vmul.f32 %v5866, %v5870
      %v5872 = vlaneseq
      %v5873 = vshrl.u32 %v5872, 7
      %v5874 = vsub.s32 0, %v5873
      %v5875 = vrot.slane %v5871, %v5874
      %5877 = vbcast.lane.b32.xlu0 %v5875, 256
      %v5878 = vpop.permute.xlu0 %5877
      %s5880 = sor.u32 256, 8
      %5881 = vbcast.lane.b32.xlu0 %v5875, %s5880
      %v5882 = vpop.permute.xlu0 %5881
      %v5883 = vlaneseq
      %v5884 = vshrl.u32 %v5883, 7
      %v5885 = vsub.s32 1, %v5884
      %v5886 = vrot.slane %v5871, %v5885
      %5888 = vbcast.lane.b32.xlu0 %v5886, 256
      %v5889 = vpop.permute.xlu0 %5888
      %s5891 = sor.u32 256, 8
      %5892 = vbcast.lane.b32.xlu0 %v5886, %s5891
      %v5893 = vpop.permute.xlu0 %5892
      %v5894 = vlaneseq
      %v5895 = vshrl.u32 %v5894, 7
      %v5896 = vsub.s32 2, %v5895
      %v5897 = vrot.slane %v5871, %v5896
      %5899 = vbcast.lane.b32.xlu0 %v5897, 256
      %v5900 = vpop.permute.xlu0 %5899
      %s5902 = sor.u32 256, 8
      %5903 = vbcast.lane.b32.xlu0 %v5897, %s5902
      %v5904 = vpop.permute.xlu0 %5903
      %v5905 = vlaneseq
      %v5906 = vshrl.u32 %v5905, 7
      %v5907 = vsub.s32 3, %v5906
      %v5908 = vrot.slane %v5871, %v5907
      %5910 = vbcast.lane.b32.xlu0 %v5908, 256
      %v5911 = vpop.permute.xlu0 %5910
      %s5913 = sor.u32 256, 8
      %5914 = vbcast.lane.b32.xlu0 %v5908, %s5913
      %v5915 = vpop.permute.xlu0 %5914
      %v5916 = vlaneseq
      %v5917 = vshrl.u32 %v5916, 7
      %v5918 = vsub.s32 4, %v5917
      %v5919 = vrot.slane %v5871, %v5918
      %5921 = vbcast.lane.b32.xlu0 %v5919, 256
      %v5922 = vpop.permute.xlu0 %5921
      %s5924 = sor.u32 256, 8
      %5925 = vbcast.lane.b32.xlu0 %v5919, %s5924
      %v5926 = vpop.permute.xlu0 %5925
      %v5927 = vlaneseq
      %v5928 = vshrl.u32 %v5927, 7
      %v5929 = vsub.s32 5, %v5928
      %v5930 = vrot.slane %v5871, %v5929
      %5932 = vbcast.lane.b32.xlu0 %v5930, 256
      %v5933 = vpop.permute.xlu0 %5932
      %s5935 = sor.u32 256, 8
      %5936 = vbcast.lane.b32.xlu0 %v5930, %s5935
      %v5937 = vpop.permute.xlu0 %5936
      %v5938 = vlaneseq
      %v5939 = vshrl.u32 %v5938, 7
      %v5940 = vsub.s32 6, %v5939
      %v5941 = vrot.slane %v5871, %v5940
      %5943 = vbcast.lane.b32.xlu0 %v5941, 256
      %v5944 = vpop.permute.xlu0 %5943
      %s5946 = sor.u32 256, 8
      %5947 = vbcast.lane.b32.xlu0 %v5941, %s5946
      %v5948 = vpop.permute.xlu0 %5947
      %v5949 = vlaneseq
      %v5950 = vshrl.u32 %v5949, 7
      %v5951 = vsub.s32 7, %v5950
      %v5952 = vrot.slane %v5871, %v5951
      %5954 = vbcast.lane.b32.xlu0 %v5952, 256
      %v5955 = vpop.permute.xlu0 %5954
      %s5957 = sor.u32 256, 8
      %5958 = vbcast.lane.b32.xlu0 %v5952, %s5957
      %v5959 = vpop.permute.xlu0 %5958
      %v5960 = vmul.f32 %v5878, %v2800
      %v5961 = vmul.f32 %v5882, %v2801
      %v5962 = vmul.f32 %v5889, %v2802
      %v5963 = vmul.f32 %v5893, %v2803
      %v5964 = vmul.f32 %v5900, %v2804
      %v5965 = vmul.f32 %v5904, %v2805
      %v5966 = vmul.f32 %v5911, %v2806
      %v5967 = vmul.f32 %v5915, %v2807
      %v5968 = vmul.f32 %v5922, %v2808
      %v5969 = vmul.f32 %v5926, %v2809
      %v5970 = vmul.f32 %v5933, %v2810
      %v5971 = vmul.f32 %v5937, %v2811
      %v5972 = vmul.f32 %v5944, %v2812
      %v5973 = vmul.f32 %v5948, %v2813
      %v5974 = vmul.f32 %v5955, %v2814
      %v5975 = vmul.f32 %v5959, %v2815
      %v5976 = vsel %vm3244, %v5960, 0.0
      %v5977 = vsel %vm3244, %v5961, 0.0
      %v5978 = vadd.f32 %v5976, %v5977
      %v5979 = vrot.slane %v5978, 4
      %v5980 = vadd.f32 %v5978, %v5979
      %v5981 = vrot.slane %v5980, 2
      %v5982 = vadd.f32 %v5980, %v5981
      %v5983 = vrot.slane %v5982, 1
      %v5984 = vadd.f32 %v5982, %v5983
      %v5985 = vsel %vm3244, %v5962, 0.0
      %v5986 = vsel %vm3244, %v5963, 0.0
      %v5987 = vadd.f32 %v5985, %v5986
      %v5988 = vrot.slane %v5987, 4
      %v5989 = vadd.f32 %v5987, %v5988
      %v5990 = vrot.slane %v5989, 2
      %v5991 = vadd.f32 %v5989, %v5990
      %v5992 = vrot.slane %v5991, 1
      %v5993 = vadd.f32 %v5991, %v5992
      %v5994 = vsel %vm3244, %v5964, 0.0
      %v5995 = vsel %vm3244, %v5965, 0.0
      %v5996 = vadd.f32 %v5994, %v5995
      %v5997 = vrot.slane %v5996, 4
      %v5998 = vadd.f32 %v5996, %v5997
      %v5999 = vrot.slane %v5998, 2
      %v6000 = vadd.f32 %v5998, %v5999
      %v6001 = vrot.slane %v6000, 1
      %v6002 = vadd.f32 %v6000, %v6001
      %v6003 = vsel %vm3244, %v5966, 0.0
      %v6004 = vsel %vm3244, %v5967, 0.0
      %v6005 = vadd.f32 %v6003, %v6004
      %v6006 = vrot.slane %v6005, 4
      %v6007 = vadd.f32 %v6005, %v6006
      %v6008 = vrot.slane %v6007, 2
      %v6009 = vadd.f32 %v6007, %v6008
      %v6010 = vrot.slane %v6009, 1
      %v6011 = vadd.f32 %v6009, %v6010
      %v6012 = vsel %vm3244, %v5968, 0.0
      %v6013 = vsel %vm3244, %v5969, 0.0
      %v6014 = vadd.f32 %v6012, %v6013
      %v6015 = vrot.slane %v6014, 4
      %v6016 = vadd.f32 %v6014, %v6015
      %v6017 = vrot.slane %v6016, 2
      %v6018 = vadd.f32 %v6016, %v6017
      %v6019 = vrot.slane %v6018, 1
      %v6020 = vadd.f32 %v6018, %v6019
      %v6021 = vsel %vm3244, %v5970, 0.0
      %v6022 = vsel %vm3244, %v5971, 0.0
      %v6023 = vadd.f32 %v6021, %v6022
      %v6024 = vrot.slane %v6023, 4
      %v6025 = vadd.f32 %v6023, %v6024
      %v6026 = vrot.slane %v6025, 2
      %v6027 = vadd.f32 %v6025, %v6026
      %v6028 = vrot.slane %v6027, 1
      %v6029 = vadd.f32 %v6027, %v6028
      %v6030 = vsel %vm3244, %v5972, 0.0
      %v6031 = vsel %vm3244, %v5973, 0.0
      %v6032 = vadd.f32 %v6030, %v6031
      %v6033 = vrot.slane %v6032, 4
      %v6034 = vadd.f32 %v6032, %v6033
      %v6035 = vrot.slane %v6034, 2
      %v6036 = vadd.f32 %v6034, %v6035
      %v6037 = vrot.slane %v6036, 1
      %v6038 = vadd.f32 %v6036, %v6037
      %v6039 = vsel %vm3244, %v5974, 0.0
      %v6040 = vsel %vm3244, %v5975, 0.0
      %v6041 = vadd.f32 %v6039, %v6040
      %v6042 = vrot.slane %v6041, 4
      %v6043 = vadd.f32 %v6041, %v6042
      %v6044 = vrot.slane %v6043, 2
      %v6045 = vadd.f32 %v6043, %v6044
      %v6046 = vrot.slane %v6045, 1
      %v6047 = vadd.f32 %v6045, %v6046
      %v6056 = vsel %vm3383, %v5993, %v5984
      %v6057 = vsel %vm3385, %v6002, %v6056
      %v6058 = vsel %vm3387, %v6011, %v6057
      %v6059 = vsel %vm3389, %v6020, %v6058
      %v6060 = vsel %vm3391, %v6029, %v6059
      %v6061 = vsel %vm3393, %v6038, %v6060
      %v6062 = vsel %vm3395, %v6047, %v6061
      %v6063 = vsel %vm3244, %v6062, 0
      %v6066 = vsel %vm3244, %v2826, 0
      %6068 = vmatprep.subr.mxu0 0.0
      %6069 = vmatpush1.xpose.msra.mxu0 0.0
      %6070 = vmatprep.subr.mxu0 0.0
      %6071 = vmatpush1.xpose.msra.mxu0 0.0
      %6072 = vmatprep.subr.mxu0 0.0
      %6073 = vmatpush1.xpose.msra.mxu0 0.0
      %6074 = vmatprep.subr.mxu0 0.0
      %6075 = vmatpush1.xpose.msra.mxu0 0.0
      %6076 = vmatprep.subr.mxu0 0.0
      %6077 = vmatpush1.xpose.msra.mxu0 0.0
      %6078 = vmatprep.subr.mxu0 0.0
      %6079 = vmatpush1.xpose.msra.mxu0 0.0
      %6080 = vmatprep.subr.mxu0 0.0
      %6081 = vmatpush1.xpose.msra.mxu0 0.0
      %6082 = vmatprep.subr.mxu0 0.0
      %6083 = vmatpush1.xpose.msra.mxu0 0.0
      %6084 = vmatprep.subr.mxu0 0.0
      %6085 = vmatpush1.xpose.msra.mxu0 0.0
      %6086 = vmatprep.subr.mxu0 0.0
      %6087 = vmatpush1.xpose.msra.mxu0 0.0
      %6088 = vmatprep.subr.mxu0 0.0
      %6089 = vmatpush1.xpose.msra.mxu0 0.0
      %6090 = vmatprep.subr.mxu0 0.0
      %6091 = vmatpush1.xpose.msra.mxu0 0.0
      %6092 = vmatprep.subr.mxu0 0.0
      %6093 = vmatpush1.xpose.msra.mxu0 0.0
      %6094 = vmatprep.subr.mxu0 0.0
      %6095 = vmatpush1.xpose.msra.mxu0 0.0
      %6096 = vmatprep.subr.mxu0 0.0
      %6097 = vmatpush1.xpose.msra.mxu0 0.0
      %6098 = vmatprep.subr.mxu0 0.0
      %6099 = vmatpush1.xpose.msra.mxu0 %v6066
      %6100 = vmatprep.subr.mxu0 0.0
      %6101 = vmatpush2.xpose.msra.mxu0 0.0
      %6102 = vmatprep.subr.mxu0 0.0
      %6103 = vmatpush2.xpose.msra.mxu0 0.0
      %6104 = vmatprep.subr.mxu0 0.0
      %6105 = vmatpush2.xpose.msra.mxu0 0.0
      %6106 = vmatprep.subr.mxu0 0.0
      %6107 = vmatpush2.xpose.msra.mxu0 0.0
      %6108 = vmatprep.subr.mxu0 0.0
      %6109 = vmatpush2.xpose.msra.mxu0 0.0
      %6110 = vmatprep.subr.mxu0 0.0
      %6111 = vmatpush2.xpose.msra.mxu0 0.0
      %6112 = vmatprep.subr.mxu0 0.0
      %6113 = vmatpush2.xpose.msra.mxu0 0.0
      %6114 = vmatprep.subr.mxu0 0.0
      %6115 = vmatpush2.xpose.msra.mxu0 0.0
      %6116 = vmatprep.subr.mxu0 0.0
      %6117 = vmatpush2.xpose.msra.mxu0 0.0
      %6118 = vmatprep.subr.mxu0 0.0
      %6119 = vmatpush2.xpose.msra.mxu0 0.0
      %6120 = vmatprep.subr.mxu0 0.0
      %6121 = vmatpush2.xpose.msra.mxu0 0.0
      %6122 = vmatprep.subr.mxu0 0.0
      %6123 = vmatpush2.xpose.msra.mxu0 0.0
      %6124 = vmatprep.subr.mxu0 0.0
      %6125 = vmatpush2.xpose.msra.mxu0 0.0
      %6126 = vmatprep.subr.mxu0 0.0
      %6127 = vmatpush2.xpose.msra.mxu0 0.0
      %6128 = vmatprep.subr.mxu0 0.0
      %6129 = vmatpush2.xpose.msra.mxu0 0.0
      %6130 = vmatprep.subr.mxu0 0.0
      %6131 = vmatpush2.xpose.msra.mxu0 0.0
      %6132 = vmatprep.mubr.f32.mxu0 0.0
      %6133 = vmatmul.mubr.f32.gmra.mxu0 %v6063
      %v6134 = vpop.f32.mrf.mxu0
      %v6135 = vadd.f32 0.0, %v6134
      %v6136 = vpop.f32.mrf.mxu0
      %6137 = vdwg.mxu0
      %6138 = vrot.lane.b32.xlu0 %v2431, 80
      %v6139 = vpop.permute.xlu0 %6138
      %6140 = vrot.lane.b32.xlu0 %v2432, 80
      %v6141 = vpop.permute.xlu0 %6140
      %v6145 = vsel %vm3560, %v5871, 0
      %6147 = vmatprep.subr.mxu0 0.0
      %6148 = vmatpush1.msra.mxu0 0.0
      %6149 = vmatprep.subr.mxu0 0.0
      %6150 = vmatpush1.msra.mxu0 0.0
      %6151 = vmatprep.subr.mxu0 0.0
      %6152 = vmatpush1.msra.mxu0 0.0
      %6153 = vmatprep.subr.mxu0 0.0
      %6154 = vmatpush1.msra.mxu0 0.0
      %6155 = vmatprep.subr.mxu0 0.0
      %6156 = vmatpush1.msra.mxu0 0.0
      %6157 = vmatprep.subr.mxu0 0.0
      %6158 = vmatpush1.msra.mxu0 0.0
      %6159 = vmatprep.subr.mxu0 0.0
      %6160 = vmatpush1.msra.mxu0 0.0
      %6161 = vmatprep.subr.mxu0 0.0
      %6162 = vmatpush1.msra.mxu0 0.0
      %6163 = vmatprep.subr.mxu0 0.0
      %6164 = vmatpush1.msra.mxu0 0.0
      %6165 = vmatprep.subr.mxu0 0.0
      %6166 = vmatpush1.msra.mxu0 0.0
      %6167 = vmatprep.subr.mxu0 0.0
      %6168 = vmatpush1.msra.mxu0 0.0
      %6169 = vmatprep.subr.mxu0 0.0
      %6170 = vmatpush1.msra.mxu0 0.0
      %6171 = vmatprep.subr.mxu0 0.0
      %6172 = vmatpush1.msra.mxu0 0.0
      %6173 = vmatprep.subr.mxu0 0.0
      %6174 = vmatpush1.msra.mxu0 0.0
      %6175 = vmatprep.subr.mxu0 0.0
      %6176 = vmatpush1.msra.mxu0 %v6141
      %6177 = vmatprep.subr.mxu0 0.0
      %6178 = vmatpush1.msra.mxu0 %v6139
      %6179 = vmatprep.subr.mxu0 0.0
      %6180 = vmatpush2.msra.mxu0 0.0
      %6181 = vmatprep.subr.mxu0 0.0
      %6182 = vmatpush2.msra.mxu0 0.0
      %6183 = vmatprep.subr.mxu0 0.0
      %6184 = vmatpush2.msra.mxu0 0.0
      %6185 = vmatprep.subr.mxu0 0.0
      %6186 = vmatpush2.msra.mxu0 0.0
      %6187 = vmatprep.subr.mxu0 0.0
      %6188 = vmatpush2.msra.mxu0 0.0
      %6189 = vmatprep.subr.mxu0 0.0
      %6190 = vmatpush2.msra.mxu0 0.0
      %6191 = vmatprep.subr.mxu0 0.0
      %6192 = vmatpush2.msra.mxu0 0.0
      %6193 = vmatprep.subr.mxu0 0.0
      %6194 = vmatpush2.msra.mxu0 0.0
      %6195 = vmatprep.subr.mxu0 0.0
      %6196 = vmatpush2.msra.mxu0 0.0
      %6197 = vmatprep.subr.mxu0 0.0
      %6198 = vmatpush2.msra.mxu0 0.0
      %6199 = vmatprep.subr.mxu0 0.0
      %6200 = vmatpush2.msra.mxu0 0.0
      %6201 = vmatprep.subr.mxu0 0.0
      %6202 = vmatpush2.msra.mxu0 0.0
      %6203 = vmatprep.subr.mxu0 0.0
      %6204 = vmatpush2.msra.mxu0 0.0
      %6205 = vmatprep.subr.mxu0 0.0
      %6206 = vmatpush2.msra.mxu0 0.0
      %6207 = vmatprep.subr.mxu0 0.0
      %6208 = vmatpush2.msra.mxu0 0.0
      %6209 = vmatprep.subr.mxu0 0.0
      %6210 = vmatpush2.msra.mxu0 0.0
      %6211 = vmatprep.mubr.f32.mxu0 0.0
      %6212 = vmatmul.mubr.f32.gmra.mxu0 %v6145
      %v6213 = vpop.f32.mrf.mxu0
      %v6214 = vadd.f32 %v6135, %v6213
      %v6215 = vpop.f32.mrf.mxu0
      %6216 = vdwg.mxu0
      %v6218 = vsel %vm1033, %v6214, 0
      %6220 = vmatprep.subr.mxu0 0.0
      %6221 = vmatpush1.msra.mxu0 0.0
      %6222 = vmatprep.subr.mxu0 0.0
      %6223 = vmatpush1.msra.mxu0 0.0
      %6224 = vmatprep.subr.mxu0 0.0
      %6225 = vmatpush1.msra.mxu0 0.0
      %6226 = vmatprep.subr.mxu0 0.0
      %6227 = vmatpush1.msra.mxu0 0.0
      %6228 = vmatprep.subr.mxu0 0.0
      %6229 = vmatpush1.msra.mxu0 0.0
      %6230 = vmatprep.subr.mxu0 0.0
      %6231 = vmatpush1.msra.mxu0 0.0
      %6232 = vmatprep.subr.mxu0 0.0
      %6233 = vmatpush1.msra.mxu0 0.0
      %6234 = vmatprep.subr.mxu0 0.0
      %6235 = vmatpush1.msra.mxu0 0.0
      %6236 = vmatprep.subr.mxu0 0.0
      %6237 = vmatpush1.msra.mxu0 0.0
      %6238 = vmatprep.subr.mxu0 0.0
      %6239 = vmatpush1.msra.mxu0 0.0
      %6240 = vmatprep.subr.mxu0 0.0
      %6241 = vmatpush1.msra.mxu0 0.0
      %6242 = vmatprep.subr.mxu0 0.0
      %6243 = vmatpush1.msra.mxu0 0.0
      %6244 = vmatprep.subr.mxu0 0.0
      %6245 = vmatpush1.msra.mxu0 0.0
      %6246 = vmatprep.subr.mxu0 0.0
      %6247 = vmatpush1.msra.mxu0 0.0
      %6248 = vmatprep.subr.mxu0 0.0
      %6249 = vmatpush1.msra.mxu0 0.0
      %6250 = vmatprep.subr.mxu0 0.0
      %6251 = vmatpush1.msra.mxu0 %v2830
      %6252 = vmatprep.subr.mxu0 0.0
      %6253 = vmatpush2.msra.mxu0 0.0
      %6254 = vmatprep.subr.mxu0 0.0
      %6255 = vmatpush2.msra.mxu0 0.0
      %6256 = vmatprep.subr.mxu0 0.0
      %6257 = vmatpush2.msra.mxu0 0.0
      %6258 = vmatprep.subr.mxu0 0.0
      %6259 = vmatpush2.msra.mxu0 0.0
      %6260 = vmatprep.subr.mxu0 0.0
      %6261 = vmatpush2.msra.mxu0 0.0
      %6262 = vmatprep.subr.mxu0 0.0
      %6263 = vmatpush2.msra.mxu0 0.0
      %6264 = vmatprep.subr.mxu0 0.0
      %6265 = vmatpush2.msra.mxu0 0.0
      %6266 = vmatprep.subr.mxu0 0.0
      %6267 = vmatpush2.msra.mxu0 0.0
      %6268 = vmatprep.subr.mxu0 0.0
      %6269 = vmatpush2.msra.mxu0 0.0
      %6270 = vmatprep.subr.mxu0 0.0
      %6271 = vmatpush2.msra.mxu0 0.0
      %6272 = vmatprep.subr.mxu0 0.0
      %6273 = vmatpush2.msra.mxu0 0.0
      %6274 = vmatprep.subr.mxu0 0.0
      %6275 = vmatpush2.msra.mxu0 0.0
      %6276 = vmatprep.subr.mxu0 0.0
      %6277 = vmatpush2.msra.mxu0 0.0
      %6278 = vmatprep.subr.mxu0 0.0
      %6279 = vmatpush2.msra.mxu0 0.0
      %6280 = vmatprep.subr.mxu0 0.0
      %6281 = vmatpush2.msra.mxu0 0.0
      %6282 = vmatprep.subr.mxu0 0.0
      %6283 = vmatpush2.msra.mxu0 0.0
      %6284 = vmatprep.mubr.f32.mxu0 0.0
      %6285 = vmatmul.mubr.f32.gmra.mxu0 %v6218
      %v6286 = vpop.f32.mrf.mxu0
      %v6287 = vadd.f32 0.0, %v6286
      %v6288 = vpop.f32.mrf.mxu0
      %6289 = vdwg.mxu0
      %v6290 = vadd.f32 %v5137, %v6287
      %6291 = vrot.lane.b32.xlu0 %v2253, 72
      %v6292 = vpop.permute.xlu0 %6291
      %6293 = vrot.lane.b32.xlu0 %v2431, 40
      %v6294 = vpop.permute.xlu0 %6293
      %6295 = vrot.lane.b32.xlu0 %v2432, 40
      %v6296 = vpop.permute.xlu0 %6295
      %v6297 = vsel %vm1033, %v6292, 0
      %v6299 = vsel %vm1033, %v6294, 0
      %v6301 = vsel %vm1033, %v6296, 0
      %6303 = vmatprep.subr.mxu0 0.0
      %6304 = vmatpush1.xpose.msra.mxu0 0.0
      %6305 = vmatprep.subr.mxu0 0.0
      %6306 = vmatpush1.xpose.msra.mxu0 0.0
      %6307 = vmatprep.subr.mxu0 0.0
      %6308 = vmatpush1.xpose.msra.mxu0 0.0
      %6309 = vmatprep.subr.mxu0 0.0
      %6310 = vmatpush1.xpose.msra.mxu0 0.0
      %6311 = vmatprep.subr.mxu0 0.0
      %6312 = vmatpush1.xpose.msra.mxu0 0.0
      %6313 = vmatprep.subr.mxu0 0.0
      %6314 = vmatpush1.xpose.msra.mxu0 0.0
      %6315 = vmatprep.subr.mxu0 0.0
      %6316 = vmatpush1.xpose.msra.mxu0 0.0
      %6317 = vmatprep.subr.mxu0 0.0
      %6318 = vmatpush1.xpose.msra.mxu0 0.0
      %6319 = vmatprep.subr.mxu0 0.0
      %6320 = vmatpush1.xpose.msra.mxu0 0.0
      %6321 = vmatprep.subr.mxu0 0.0
      %6322 = vmatpush1.xpose.msra.mxu0 0.0
      %6323 = vmatprep.subr.mxu0 0.0
      %6324 = vmatpush1.xpose.msra.mxu0 0.0
      %6325 = vmatprep.subr.mxu0 0.0
      %6326 = vmatpush1.xpose.msra.mxu0 0.0
      %6327 = vmatprep.subr.mxu0 0.0
      %6328 = vmatpush1.xpose.msra.mxu0 0.0
      %6329 = vmatprep.subr.mxu0 0.0
      %6330 = vmatpush1.xpose.msra.mxu0 0.0
      %6331 = vmatprep.subr.mxu0 0.0
      %6332 = vmatpush1.xpose.msra.mxu0 %v6301
      %6333 = vmatprep.subr.mxu0 0.0
      %6334 = vmatpush1.xpose.msra.mxu0 %v6299
      %6335 = vmatprep.subr.mxu0 0.0
      %6336 = vmatpush2.xpose.msra.mxu0 0.0
      %6337 = vmatprep.subr.mxu0 0.0
      %6338 = vmatpush2.xpose.msra.mxu0 0.0
      %6339 = vmatprep.subr.mxu0 0.0
      %6340 = vmatpush2.xpose.msra.mxu0 0.0
      %6341 = vmatprep.subr.mxu0 0.0
      %6342 = vmatpush2.xpose.msra.mxu0 0.0
      %6343 = vmatprep.subr.mxu0 0.0
      %6344 = vmatpush2.xpose.msra.mxu0 0.0
      %6345 = vmatprep.subr.mxu0 0.0
      %6346 = vmatpush2.xpose.msra.mxu0 0.0
      %6347 = vmatprep.subr.mxu0 0.0
      %6348 = vmatpush2.xpose.msra.mxu0 0.0
      %6349 = vmatprep.subr.mxu0 0.0
      %6350 = vmatpush2.xpose.msra.mxu0 0.0
      %6351 = vmatprep.subr.mxu0 0.0
      %6352 = vmatpush2.xpose.msra.mxu0 0.0
      %6353 = vmatprep.subr.mxu0 0.0
      %6354 = vmatpush2.xpose.msra.mxu0 0.0
      %6355 = vmatprep.subr.mxu0 0.0
      %6356 = vmatpush2.xpose.msra.mxu0 0.0
      %6357 = vmatprep.subr.mxu0 0.0
      %6358 = vmatpush2.xpose.msra.mxu0 0.0
      %6359 = vmatprep.subr.mxu0 0.0
      %6360 = vmatpush2.xpose.msra.mxu0 0.0
      %6361 = vmatprep.subr.mxu0 0.0
      %6362 = vmatpush2.xpose.msra.mxu0 0.0
      %6363 = vmatprep.subr.mxu0 0.0
      %6364 = vmatpush2.xpose.msra.mxu0 0.0
      %6365 = vmatprep.subr.mxu0 0.0
      %6366 = vmatpush2.xpose.msra.mxu0 0.0
      %6367 = vmatprep.mubr.f32.mxu0 0.0
      %6368 = vmatmul.mubr.f32.gmra.mxu0 %v6297
      %v6369 = vpop.f32.mrf.mxu0
      %v6370 = vadd.f32 0.0, %v6369
      %v6371 = vpop.f32.mrf.mxu0
      %6372 = vdwg.mxu0
      %6373 = vrot.lane.b32.xlu0 %v2253, 104
      %v6374 = vpop.permute.xlu0 %6373
      %6375 = vrot.lane.b32.xlu0 %v2431, 104
      %v6376 = vpop.permute.xlu0 %6375
      %6377 = vrot.lane.b32.xlu0 %v2432, 104
      %v6378 = vpop.permute.xlu0 %6377
      %v6379 = vsel %vm1033, %v6374, 0
      %v6381 = vsel %vm1033, %v6376, 0
      %v6383 = vsel %vm1033, %v6378, 0
      %6385 = vmatprep.subr.mxu0 0.0
      %6386 = vmatpush1.xpose.msra.mxu0 0.0
      %6387 = vmatprep.subr.mxu0 0.0
      %6388 = vmatpush1.xpose.msra.mxu0 0.0
      %6389 = vmatprep.subr.mxu0 0.0
      %6390 = vmatpush1.xpose.msra.mxu0 0.0
      %6391 = vmatprep.subr.mxu0 0.0
      %6392 = vmatpush1.xpose.msra.mxu0 0.0
      %6393 = vmatprep.subr.mxu0 0.0
      %6394 = vmatpush1.xpose.msra.mxu0 0.0
      %6395 = vmatprep.subr.mxu0 0.0
      %6396 = vmatpush1.xpose.msra.mxu0 0.0
      %6397 = vmatprep.subr.mxu0 0.0
      %6398 = vmatpush1.xpose.msra.mxu0 0.0
      %6399 = vmatprep.subr.mxu0 0.0
      %6400 = vmatpush1.xpose.msra.mxu0 0.0
      %6401 = vmatprep.subr.mxu0 0.0
      %6402 = vmatpush1.xpose.msra.mxu0 0.0
      %6403 = vmatprep.subr.mxu0 0.0
      %6404 = vmatpush1.xpose.msra.mxu0 0.0
      %6405 = vmatprep.subr.mxu0 0.0
      %6406 = vmatpush1.xpose.msra.mxu0 0.0
      %6407 = vmatprep.subr.mxu0 0.0
      %6408 = vmatpush1.xpose.msra.mxu0 0.0
      %6409 = vmatprep.subr.mxu0 0.0
      %6410 = vmatpush1.xpose.msra.mxu0 0.0
      %6411 = vmatprep.subr.mxu0 0.0
      %6412 = vmatpush1.xpose.msra.mxu0 0.0
      %6413 = vmatprep.subr.mxu0 0.0
      %6414 = vmatpush1.xpose.msra.mxu0 %v6383
      %6415 = vmatprep.subr.mxu0 0.0
      %6416 = vmatpush1.xpose.msra.mxu0 %v6381
      %6417 = vmatprep.subr.mxu0 0.0
      %6418 = vmatpush2.xpose.msra.mxu0 0.0
      %6419 = vmatprep.subr.mxu0 0.0
      %6420 = vmatpush2.xpose.msra.mxu0 0.0
      %6421 = vmatprep.subr.mxu0 0.0
      %6422 = vmatpush2.xpose.msra.mxu0 0.0
      %6423 = vmatprep.subr.mxu0 0.0
      %6424 = vmatpush2.xpose.msra.mxu0 0.0
      %6425 = vmatprep.subr.mxu0 0.0
      %6426 = vmatpush2.xpose.msra.mxu0 0.0
      %6427 = vmatprep.subr.mxu0 0.0
      %6428 = vmatpush2.xpose.msra.mxu0 0.0
      %6429 = vmatprep.subr.mxu0 0.0
      %6430 = vmatpush2.xpose.msra.mxu0 0.0
      %6431 = vmatprep.subr.mxu0 0.0
      %6432 = vmatpush2.xpose.msra.mxu0 0.0
      %6433 = vmatprep.subr.mxu0 0.0
      %6434 = vmatpush2.xpose.msra.mxu0 0.0
      %6435 = vmatprep.subr.mxu0 0.0
      %6436 = vmatpush2.xpose.msra.mxu0 0.0
      %6437 = vmatprep.subr.mxu0 0.0
      %6438 = vmatpush2.xpose.msra.mxu0 0.0
      %6439 = vmatprep.subr.mxu0 0.0
      %6440 = vmatpush2.xpose.msra.mxu0 0.0
      %6441 = vmatprep.subr.mxu0 0.0
      %6442 = vmatpush2.xpose.msra.mxu0 0.0
      %6443 = vmatprep.subr.mxu0 0.0
      %6444 = vmatpush2.xpose.msra.mxu0 0.0
      %6445 = vmatprep.subr.mxu0 0.0
      %6446 = vmatpush2.xpose.msra.mxu0 0.0
      %6447 = vmatprep.subr.mxu0 0.0
      %6448 = vmatpush2.xpose.msra.mxu0 0.0
      %6449 = vmatprep.mubr.f32.mxu0 0.0
      %6450 = vmatmul.mubr.f32.gmra.mxu0 %v6379
      %v6451 = vpop.f32.mrf.mxu0
      %v6452 = vadd.f32 %v6370, %v6451
      %v6453 = vpop.f32.mrf.mxu0
      %6454 = vdwg.mxu0
      %6455 = vmatprep.subr.mxu0 0.0
      %6456 = vmatpush1.msra.mxu0 0.0
      %6457 = vmatprep.subr.mxu0 0.0
      %6458 = vmatpush1.msra.mxu0 0.0
      %6459 = vmatprep.subr.mxu0 0.0
      %6460 = vmatpush1.msra.mxu0 0.0
      %6461 = vmatprep.subr.mxu0 0.0
      %6462 = vmatpush1.msra.mxu0 0.0
      %6463 = vmatprep.subr.mxu0 0.0
      %6464 = vmatpush1.msra.mxu0 0.0
      %6465 = vmatprep.subr.mxu0 0.0
      %6466 = vmatpush1.msra.mxu0 0.0
      %6467 = vmatprep.subr.mxu0 0.0
      %6468 = vmatpush1.msra.mxu0 0.0
      %6469 = vmatprep.subr.mxu0 0.0
      %6470 = vmatpush1.msra.mxu0 0.0
      %6471 = vmatprep.subr.mxu0 0.0
      %6472 = vmatpush1.msra.mxu0 0.0
      %6473 = vmatprep.subr.mxu0 0.0
      %6474 = vmatpush1.msra.mxu0 0.0
      %6475 = vmatprep.subr.mxu0 0.0
      %6476 = vmatpush1.msra.mxu0 0.0
      %6477 = vmatprep.subr.mxu0 0.0
      %6478 = vmatpush1.msra.mxu0 0.0
      %6479 = vmatprep.subr.mxu0 0.0
      %6480 = vmatpush1.msra.mxu0 0.0
      %6481 = vmatprep.subr.mxu0 0.0
      %6482 = vmatpush1.msra.mxu0 0.0
      %6483 = vmatprep.subr.mxu0 0.0
      %6484 = vmatpush1.msra.mxu0 0.0
      %6485 = vmatprep.subr.mxu0 0.0
      %6486 = vmatpush1.msra.mxu0 %v2819
      %6487 = vmatprep.subr.mxu0 0.0
      %6488 = vmatpush2.msra.mxu0 0.0
      %6489 = vmatprep.subr.mxu0 0.0
      %6490 = vmatpush2.msra.mxu0 0.0
      %6491 = vmatprep.subr.mxu0 0.0
      %6492 = vmatpush2.msra.mxu0 0.0
      %6493 = vmatprep.subr.mxu0 0.0
      %6494 = vmatpush2.msra.mxu0 0.0
      %6495 = vmatprep.subr.mxu0 0.0
      %6496 = vmatpush2.msra.mxu0 0.0
      %6497 = vmatprep.subr.mxu0 0.0
      %6498 = vmatpush2.msra.mxu0 0.0
      %6499 = vmatprep.subr.mxu0 0.0
      %6500 = vmatpush2.msra.mxu0 0.0
      %6501 = vmatprep.subr.mxu0 0.0
      %6502 = vmatpush2.msra.mxu0 0.0
      %6503 = vmatprep.subr.mxu0 0.0
      %6504 = vmatpush2.msra.mxu0 0.0
      %6505 = vmatprep.subr.mxu0 0.0
      %6506 = vmatpush2.msra.mxu0 0.0
      %6507 = vmatprep.subr.mxu0 0.0
      %6508 = vmatpush2.msra.mxu0 0.0
      %6509 = vmatprep.subr.mxu0 0.0
      %6510 = vmatpush2.msra.mxu0 0.0
      %6511 = vmatprep.subr.mxu0 0.0
      %6512 = vmatpush2.msra.mxu0 0.0
      %6513 = vmatprep.subr.mxu0 0.0
      %6514 = vmatpush2.msra.mxu0 0.0
      %6515 = vmatprep.subr.mxu0 0.0
      %6516 = vmatpush2.msra.mxu0 0.0
      %6517 = vmatprep.subr.mxu0 0.0
      %6518 = vmatpush2.msra.mxu0 0.0
      %6519 = vmatprep.mubr.f32.mxu0 0.0
      %6520 = vmatmul.mubr.f32.gmra.mxu0 %v6379
      %v6521 = vpop.f32.mrf.mxu0
      %v6522 = vadd.f32 0.0, %v6521
      %v6523 = vpop.f32.mrf.mxu0
      %6524 = vdwg.mxu0
      %6525 = vmatprep.subr.mxu0 0.0
      %6526 = vmatpush1.msra.mxu0 0.0
      %6527 = vmatprep.subr.mxu0 0.0
      %6528 = vmatpush1.msra.mxu0 0.0
      %6529 = vmatprep.subr.mxu0 0.0
      %6530 = vmatpush1.msra.mxu0 0.0
      %6531 = vmatprep.subr.mxu0 0.0
      %6532 = vmatpush1.msra.mxu0 0.0
      %6533 = vmatprep.subr.mxu0 0.0
      %6534 = vmatpush1.msra.mxu0 0.0
      %6535 = vmatprep.subr.mxu0 0.0
      %6536 = vmatpush1.msra.mxu0 0.0
      %6537 = vmatprep.subr.mxu0 0.0
      %6538 = vmatpush1.msra.mxu0 0.0
      %6539 = vmatprep.subr.mxu0 0.0
      %6540 = vmatpush1.msra.mxu0 0.0
      %6541 = vmatprep.subr.mxu0 0.0
      %6542 = vmatpush1.msra.mxu0 0.0
      %6543 = vmatprep.subr.mxu0 0.0
      %6544 = vmatpush1.msra.mxu0 0.0
      %6545 = vmatprep.subr.mxu0 0.0
      %6546 = vmatpush1.msra.mxu0 0.0
      %6547 = vmatprep.subr.mxu0 0.0
      %6548 = vmatpush1.msra.mxu0 0.0
      %6549 = vmatprep.subr.mxu0 0.0
      %6550 = vmatpush1.msra.mxu0 0.0
      %6551 = vmatprep.subr.mxu0 0.0
      %6552 = vmatpush1.msra.mxu0 0.0
      %6553 = vmatprep.subr.mxu0 0.0
      %6554 = vmatpush1.msra.mxu0 0.0
      %6555 = vmatprep.subr.mxu0 0.0
      %6556 = vmatpush1.msra.mxu0 %v2823
      %6557 = vmatprep.subr.mxu0 0.0
      %6558 = vmatpush2.msra.mxu0 0.0
      %6559 = vmatprep.subr.mxu0 0.0
      %6560 = vmatpush2.msra.mxu0 0.0
      %6561 = vmatprep.subr.mxu0 0.0
      %6562 = vmatpush2.msra.mxu0 0.0
      %6563 = vmatprep.subr.mxu0 0.0
      %6564 = vmatpush2.msra.mxu0 0.0
      %6565 = vmatprep.subr.mxu0 0.0
      %6566 = vmatpush2.msra.mxu0 0.0
      %6567 = vmatprep.subr.mxu0 0.0
      %6568 = vmatpush2.msra.mxu0 0.0
      %6569 = vmatprep.subr.mxu0 0.0
      %6570 = vmatpush2.msra.mxu0 0.0
      %6571 = vmatprep.subr.mxu0 0.0
      %6572 = vmatpush2.msra.mxu0 0.0
      %6573 = vmatprep.subr.mxu0 0.0
      %6574 = vmatpush2.msra.mxu0 0.0
      %6575 = vmatprep.subr.mxu0 0.0
      %6576 = vmatpush2.msra.mxu0 0.0
      %6577 = vmatprep.subr.mxu0 0.0
      %6578 = vmatpush2.msra.mxu0 0.0
      %6579 = vmatprep.subr.mxu0 0.0
      %6580 = vmatpush2.msra.mxu0 0.0
      %6581 = vmatprep.subr.mxu0 0.0
      %6582 = vmatpush2.msra.mxu0 0.0
      %6583 = vmatprep.subr.mxu0 0.0
      %6584 = vmatpush2.msra.mxu0 0.0
      %6585 = vmatprep.subr.mxu0 0.0
      %6586 = vmatpush2.msra.mxu0 0.0
      %6587 = vmatprep.subr.mxu0 0.0
      %6588 = vmatpush2.msra.mxu0 0.0
      %6589 = vmatprep.mubr.f32.mxu0 0.0
      %6590 = vmatmul.mubr.f32.gmra.mxu0 %v6381
      %v6591 = vpop.f32.mrf.mxu0
      %v6592 = vadd.f32 0.0, %v6591
      %v6593 = vpop.f32.mrf.mxu0
      %6594 = vmatprep.mubr.f32.mxu0 0.0
      %6595 = vmatmul.mubr.f32.gmra.mxu0 %v6383
      %v6596 = vpop.f32.mrf.mxu0
      %v6597 = vadd.f32 0.0, %v6596
      %v6598 = vpop.f32.mrf.mxu0
      %6599 = vdwg.mxu0
      %v6601 = vcombine.high %v6522, %v6522
      %v6603 = vunpack.c.l.s4 1966171168
      %v6604 = vunpack.c.0.s8 %v6603
      %v6605 = vlaneseq
      %v6606 = vshrl.u32 %v6605, 7
      %v6607 = vsub.s32 %v6604, %v6606
      %v6608 = vrot.slane %v6522, %v6607
      %v6610 = vunpack.c.l.s4 1966171168
      %v6611 = vunpack.c.0.s8 %v6610
      %v6612 = vlaneseq
      %v6613 = vshrl.u32 %v6612, 7
      %v6614 = vsub.s32 %v6611, %v6613
      %v6615 = vrot.slane %v6601, %v6614
      %v6616 = vcombine.high %v6608, %v6608
      %v6617 = vcombine.high %v6615, %v6615
      %v6619 = vunpack.c.l.s4 1966171168
      %v6620 = vunpack.c.0.s8 %v6619
      %v6621 = vlaneseq
      %v6622 = vshrl.u32 %v6621, 7
      %v6623 = vsub.s32 %v6620, %v6622
      %v6624 = vrot.slane %v6608, %v6623
      %v6626 = vunpack.c.l.s4 1966171168
      %v6627 = vunpack.c.0.s8 %v6626
      %v6628 = vlaneseq
      %v6629 = vshrl.u32 %v6628, 7
      %v6630 = vsub.s32 %v6627, %v6629
      %v6631 = vrot.slane %v6615, %v6630
      %v6633 = vunpack.c.l.s4 1966171168
      %v6634 = vunpack.c.0.s8 %v6633
      %v6635 = vlaneseq
      %v6636 = vshrl.u32 %v6635, 7
      %v6637 = vsub.s32 %v6634, %v6636
      %v6638 = vrot.slane %v6616, %v6637
      %v6640 = vunpack.c.l.s4 1966171168
      %v6641 = vunpack.c.0.s8 %v6640
      %v6642 = vlaneseq
      %v6643 = vshrl.u32 %v6642, 7
      %v6644 = vsub.s32 %v6641, %v6643
      %v6645 = vrot.slane %v6617, %v6644
      %v6646 = vcombine.high %v6624, %v6624
      %v6647 = vcombine.high %v6631, %v6631
      %v6648 = vcombine.high %v6638, %v6638
      %v6649 = vcombine.high %v6645, %v6645
      %v6650 = vlaneseq
      %v6651 = vshrl.u32 %v6650, 7
      %v6652 = vsub.s32 0, %v6651
      %v6653 = vrot.slane %v6624, %v6652
      %v6654 = vlaneseq
      %v6655 = vshrl.u32 %v6654, 7
      %v6656 = vsub.s32 0, %v6655
      %v6657 = vrot.slane %v6638, %v6656
      %v6658 = vlaneseq
      %v6659 = vshrl.u32 %v6658, 7
      %v6660 = vsub.s32 0, %v6659
      %v6661 = vrot.slane %v6646, %v6660
      %v6662 = vlaneseq
      %v6663 = vshrl.u32 %v6662, 7
      %v6664 = vsub.s32 0, %v6663
      %v6665 = vrot.slane %v6648, %v6664
      %v6666 = vlaneseq
      %v6667 = vshrl.u32 %v6666, 7
      %v6668 = vsub.s32 0, %v6667
      %v6669 = vrot.slane %v6631, %v6668
      %v6670 = vlaneseq
      %v6671 = vshrl.u32 %v6670, 7
      %v6672 = vsub.s32 0, %v6671
      %v6673 = vrot.slane %v6645, %v6672
      %v6674 = vlaneseq
      %v6675 = vshrl.u32 %v6674, 7
      %v6676 = vsub.s32 0, %v6675
      %v6677 = vrot.slane %v6647, %v6676
      %v6678 = vlaneseq
      %v6679 = vshrl.u32 %v6678, 7
      %v6680 = vsub.s32 0, %v6679
      %v6681 = vrot.slane %v6649, %v6680
      %v6690 = vmul.f32 %v6653, %v2800
      %v6691 = vmul.f32 %v6653, %v2801
      %v6692 = vmul.f32 %v6657, %v2802
      %v6693 = vmul.f32 %v6657, %v2803
      %v6694 = vmul.f32 %v6661, %v2804
      %v6695 = vmul.f32 %v6661, %v2805
      %v6696 = vmul.f32 %v6665, %v2806
      %v6697 = vmul.f32 %v6665, %v2807
      %v6698 = vmul.f32 %v6669, %v2808
      %v6699 = vmul.f32 %v6669, %v2809
      %v6700 = vmul.f32 %v6673, %v2810
      %v6701 = vmul.f32 %v6673, %v2811
      %v6702 = vmul.f32 %v6677, %v2812
      %v6703 = vmul.f32 %v6677, %v2813
      %v6704 = vmul.f32 %v6681, %v2814
      %v6705 = vmul.f32 %v6681, %v2815
      %v6706 = vsel %vm3244, %v6690, 0.0
      %6707 = vadd.xlane.f32.xlu0 %v6706
      %v6708 = vpop.xlane.xlu0 %6707
      %v6709 = vsel %vm3244, %v6691, 0.0
      %6710 = vadd.xlane.f32.xlu0 %v6709
      %v6711 = vpop.xlane.xlu0 %6710
      %v6712 = vsel %vm3244, %v6692, 0.0
      %6713 = vadd.xlane.f32.xlu0 %v6712
      %v6714 = vpop.xlane.xlu0 %6713
      %v6715 = vsel %vm3244, %v6693, 0.0
      %6716 = vadd.xlane.f32.xlu0 %v6715
      %v6717 = vpop.xlane.xlu0 %6716
      %v6718 = vsel %vm3244, %v6694, 0.0
      %6719 = vadd.xlane.f32.xlu0 %v6718
      %v6720 = vpop.xlane.xlu0 %6719
      %v6721 = vsel %vm3244, %v6695, 0.0
      %6722 = vadd.xlane.f32.xlu0 %v6721
      %v6723 = vpop.xlane.xlu0 %6722
      %v6724 = vsel %vm3244, %v6696, 0.0
      %6725 = vadd.xlane.f32.xlu0 %v6724
      %v6726 = vpop.xlane.xlu0 %6725
      %v6727 = vsel %vm3244, %v6697, 0.0
      %6728 = vadd.xlane.f32.xlu0 %v6727
      %v6729 = vpop.xlane.xlu0 %6728
      %v6730 = vsel %vm3244, %v6698, 0.0
      %6731 = vadd.xlane.f32.xlu0 %v6730
      %v6732 = vpop.xlane.xlu0 %6731
      %v6733 = vsel %vm3244, %v6699, 0.0
      %6734 = vadd.xlane.f32.xlu0 %v6733
      %v6735 = vpop.xlane.xlu0 %6734
      %v6736 = vsel %vm3244, %v6700, 0.0
      %6737 = vadd.xlane.f32.xlu0 %v6736
      %v6738 = vpop.xlane.xlu0 %6737
      %v6739 = vsel %vm3244, %v6701, 0.0
      %6740 = vadd.xlane.f32.xlu0 %v6739
      %v6741 = vpop.xlane.xlu0 %6740
      %v6742 = vsel %vm3244, %v6702, 0.0
      %6743 = vadd.xlane.f32.xlu0 %v6742
      %v6744 = vpop.xlane.xlu0 %6743
      %v6745 = vsel %vm3244, %v6703, 0.0
      %6746 = vadd.xlane.f32.xlu0 %v6745
      %v6747 = vpop.xlane.xlu0 %6746
      %v6748 = vsel %vm3244, %v6704, 0.0
      %6749 = vadd.xlane.f32.xlu0 %v6748
      %v6750 = vpop.xlane.xlu0 %6749
      %v6751 = vsel %vm3244, %v6705, 0.0
      %6752 = vadd.xlane.f32.xlu0 %v6751
      %v6753 = vpop.xlane.xlu0 %6752
      %v6770 = vlaneseq
      %v6771 = vshrl.u32 %v6770, 7
      %v6772 = vsub.s32 %v2434, %v6771
      %v6773 = vrot.slane %v6708, %v6772
      %v6774 = vlaneseq
      %v6775 = vshrl.u32 %v6774, 7
      %v6776 = vsub.s32 %v3313, %v6775
      %v6777 = vrot.slane %v6711, %v6776
      %v6778 = vsel %vm3318, %v6777, %v6773
      %v6779 = vlaneseq
      %v6780 = vshrl.u32 %v6779, 7
      %v6781 = vsub.s32 %v2434, %v6780
      %v6782 = vrot.slane %v6714, %v6781
      %v6783 = vlaneseq
      %v6784 = vshrl.u32 %v6783, 7
      %v6785 = vsub.s32 %v3313, %v6784
      %v6786 = vrot.slane %v6717, %v6785
      %v6787 = vsel %vm3318, %v6786, %v6782
      %v6788 = vlaneseq
      %v6789 = vshrl.u32 %v6788, 7
      %v6790 = vsub.s32 %v2434, %v6789
      %v6791 = vrot.slane %v6720, %v6790
      %v6792 = vlaneseq
      %v6793 = vshrl.u32 %v6792, 7
      %v6794 = vsub.s32 %v3313, %v6793
      %v6795 = vrot.slane %v6723, %v6794
      %v6796 = vsel %vm3318, %v6795, %v6791
      %v6797 = vlaneseq
      %v6798 = vshrl.u32 %v6797, 7
      %v6799 = vsub.s32 %v2434, %v6798
      %v6800 = vrot.slane %v6726, %v6799
      %v6801 = vlaneseq
      %v6802 = vshrl.u32 %v6801, 7
      %v6803 = vsub.s32 %v3313, %v6802
      %v6804 = vrot.slane %v6729, %v6803
      %v6805 = vsel %vm3318, %v6804, %v6800
      %v6806 = vlaneseq
      %v6807 = vshrl.u32 %v6806, 7
      %v6808 = vsub.s32 %v2434, %v6807
      %v6809 = vrot.slane %v6732, %v6808
      %v6810 = vlaneseq
      %v6811 = vshrl.u32 %v6810, 7
      %v6812 = vsub.s32 %v3313, %v6811
      %v6813 = vrot.slane %v6735, %v6812
      %v6814 = vsel %vm3318, %v6813, %v6809
      %v6815 = vlaneseq
      %v6816 = vshrl.u32 %v6815, 7
      %v6817 = vsub.s32 %v2434, %v6816
      %v6818 = vrot.slane %v6738, %v6817
      %v6819 = vlaneseq
      %v6820 = vshrl.u32 %v6819, 7
      %v6821 = vsub.s32 %v3313, %v6820
      %v6822 = vrot.slane %v6741, %v6821
      %v6823 = vsel %vm3318, %v6822, %v6818
      %v6824 = vlaneseq
      %v6825 = vshrl.u32 %v6824, 7
      %v6826 = vsub.s32 %v2434, %v6825
      %v6827 = vrot.slane %v6744, %v6826
      %v6828 = vlaneseq
      %v6829 = vshrl.u32 %v6828, 7
      %v6830 = vsub.s32 %v3313, %v6829
      %v6831 = vrot.slane %v6747, %v6830
      %v6832 = vsel %vm3318, %v6831, %v6827
      %v6833 = vlaneseq
      %v6834 = vshrl.u32 %v6833, 7
      %v6835 = vsub.s32 %v2434, %v6834
      %v6836 = vrot.slane %v6750, %v6835
      %v6837 = vlaneseq
      %v6838 = vshrl.u32 %v6837, 7
      %v6839 = vsub.s32 %v3313, %v6838
      %v6840 = vrot.slane %v6753, %v6839
      %v6841 = vsel %vm3318, %v6840, %v6836
      %v6842 = vsel %vm3383, %v6787, %v6778
      %v6843 = vsel %vm3385, %v6796, %v6842
      %v6844 = vsel %vm3387, %v6805, %v6843
      %v6845 = vsel %vm3389, %v6814, %v6844
      %v6846 = vsel %vm3391, %v6823, %v6845
      %v6847 = vsel %vm3393, %v6832, %v6846
      %v6848 = vsel %vm3395, %v6841, %v6847
      %v6850 = vadd.f32 %v6452, %v6848
      %v6851 = vmul.f32 %v6592, %v2800
      %v6852 = vmul.f32 %v6597, %v2801
      %v6853 = vmul.f32 %v6592, %v2802
      %v6854 = vmul.f32 %v6597, %v2803
      %v6855 = vmul.f32 %v6592, %v2804
      %v6856 = vmul.f32 %v6597, %v2805
      %v6857 = vmul.f32 %v6592, %v2806
      %v6858 = vmul.f32 %v6597, %v2807
      %v6859 = vmul.f32 %v6592, %v2808
      %v6860 = vmul.f32 %v6597, %v2809
      %v6861 = vmul.f32 %v6592, %v2810
      %v6862 = vmul.f32 %v6597, %v2811
      %v6863 = vmul.f32 %v6592, %v2812
      %v6864 = vmul.f32 %v6597, %v2813
      %v6865 = vmul.f32 %v6592, %v2814
      %v6866 = vmul.f32 %v6597, %v2815
      %v6867 = vsel %vm3244, %v6851, 0.0
      %6868 = vadd.xlane.f32.xlu0 %v6867
      %v6869 = vpop.xlane.xlu0 %6868
      %v6870 = vsel %vm3244, %v6852, 0.0
      %6871 = vadd.xlane.f32.xlu0 %v6870
      %v6872 = vpop.xlane.xlu0 %6871
      %v6873 = vsel %vm3244, %v6853, 0.0
      %6874 = vadd.xlane.f32.xlu0 %v6873
      %v6875 = vpop.xlane.xlu0 %6874
      %v6876 = vsel %vm3244, %v6854, 0.0
      %6877 = vadd.xlane.f32.xlu0 %v6876
      %v6878 = vpop.xlane.xlu0 %6877
      %v6879 = vsel %vm3244, %v6855, 0.0
      %6880 = vadd.xlane.f32.xlu0 %v6879
      %v6881 = vpop.xlane.xlu0 %6880
      %v6882 = vsel %vm3244, %v6856, 0.0
      %6883 = vadd.xlane.f32.xlu0 %v6882
      %v6884 = vpop.xlane.xlu0 %6883
      %v6885 = vsel %vm3244, %v6857, 0.0
      %6886 = vadd.xlane.f32.xlu0 %v6885
      %v6887 = vpop.xlane.xlu0 %6886
      %v6888 = vsel %vm3244, %v6858, 0.0
      %6889 = vadd.xlane.f32.xlu0 %v6888
      %v6890 = vpop.xlane.xlu0 %6889
      %v6891 = vsel %vm3244, %v6859, 0.0
      %6892 = vadd.xlane.f32.xlu0 %v6891
      %v6893 = vpop.xlane.xlu0 %6892
      %v6894 = vsel %vm3244, %v6860, 0.0
      %6895 = vadd.xlane.f32.xlu0 %v6894
      %v6896 = vpop.xlane.xlu0 %6895
      %v6897 = vsel %vm3244, %v6861, 0.0
      %6898 = vadd.xlane.f32.xlu0 %v6897
      %v6899 = vpop.xlane.xlu0 %6898
      %v6900 = vsel %vm3244, %v6862, 0.0
      %6901 = vadd.xlane.f32.xlu0 %v6900
      %v6902 = vpop.xlane.xlu0 %6901
      %v6903 = vsel %vm3244, %v6863, 0.0
      %6904 = vadd.xlane.f32.xlu0 %v6903
      %v6905 = vpop.xlane.xlu0 %6904
      %v6906 = vsel %vm3244, %v6864, 0.0
      %6907 = vadd.xlane.f32.xlu0 %v6906
      %v6908 = vpop.xlane.xlu0 %6907
      %v6909 = vsel %vm3244, %v6865, 0.0
      %6910 = vadd.xlane.f32.xlu0 %v6909
      %v6911 = vpop.xlane.xlu0 %6910
      %v6912 = vsel %vm3244, %v6866, 0.0
      %6913 = vadd.xlane.f32.xlu0 %v6912
      %v6914 = vpop.xlane.xlu0 %6913
      %v6931 = vlaneseq
      %v6932 = vshrl.u32 %v6931, 7
      %v6933 = vsub.s32 %v2434, %v6932
      %v6934 = vrot.slane %v6869, %v6933
      %v6935 = vlaneseq
      %v6936 = vshrl.u32 %v6935, 7
      %v6937 = vsub.s32 %v3313, %v6936
      %v6938 = vrot.slane %v6872, %v6937
      %v6939 = vsel %vm3318, %v6938, %v6934
      %v6940 = vlaneseq
      %v6941 = vshrl.u32 %v6940, 7
      %v6942 = vsub.s32 %v2434, %v6941
      %v6943 = vrot.slane %v6875, %v6942
      %v6944 = vlaneseq
      %v6945 = vshrl.u32 %v6944, 7
      %v6946 = vsub.s32 %v3313, %v6945
      %v6947 = vrot.slane %v6878, %v6946
      %v6948 = vsel %vm3318, %v6947, %v6943
      %v6949 = vlaneseq
      %v6950 = vshrl.u32 %v6949, 7
      %v6951 = vsub.s32 %v2434, %v6950
      %v6952 = vrot.slane %v6881, %v6951
      %v6953 = vlaneseq
      %v6954 = vshrl.u32 %v6953, 7
      %v6955 = vsub.s32 %v3313, %v6954
      %v6956 = vrot.slane %v6884, %v6955
      %v6957 = vsel %vm3318, %v6956, %v6952
      %v6958 = vlaneseq
      %v6959 = vshrl.u32 %v6958, 7
      %v6960 = vsub.s32 %v2434, %v6959
      %v6961 = vrot.slane %v6887, %v6960
      %v6962 = vlaneseq
      %v6963 = vshrl.u32 %v6962, 7
      %v6964 = vsub.s32 %v3313, %v6963
      %v6965 = vrot.slane %v6890, %v6964
      %v6966 = vsel %vm3318, %v6965, %v6961
      %v6967 = vlaneseq
      %v6968 = vshrl.u32 %v6967, 7
      %v6969 = vsub.s32 %v2434, %v6968
      %v6970 = vrot.slane %v6893, %v6969
      %v6971 = vlaneseq
      %v6972 = vshrl.u32 %v6971, 7
      %v6973 = vsub.s32 %v3313, %v6972
      %v6974 = vrot.slane %v6896, %v6973
      %v6975 = vsel %vm3318, %v6974, %v6970
      %v6976 = vlaneseq
      %v6977 = vshrl.u32 %v6976, 7
      %v6978 = vsub.s32 %v2434, %v6977
      %v6979 = vrot.slane %v6899, %v6978
      %v6980 = vlaneseq
      %v6981 = vshrl.u32 %v6980, 7
      %v6982 = vsub.s32 %v3313, %v6981
      %v6983 = vrot.slane %v6902, %v6982
      %v6984 = vsel %vm3318, %v6983, %v6979
      %v6985 = vlaneseq
      %v6986 = vshrl.u32 %v6985, 7
      %v6987 = vsub.s32 %v2434, %v6986
      %v6988 = vrot.slane %v6905, %v6987
      %v6989 = vlaneseq
      %v6990 = vshrl.u32 %v6989, 7
      %v6991 = vsub.s32 %v3313, %v6990
      %v6992 = vrot.slane %v6908, %v6991
      %v6993 = vsel %vm3318, %v6992, %v6988
      %v6994 = vlaneseq
      %v6995 = vshrl.u32 %v6994, 7
      %v6996 = vsub.s32 %v2434, %v6995
      %v6997 = vrot.slane %v6911, %v6996
      %v6998 = vlaneseq
      %v6999 = vshrl.u32 %v6998, 7
      %v7000 = vsub.s32 %v3313, %v6999
      %v7001 = vrot.slane %v6914, %v7000
      %v7002 = vsel %vm3318, %v7001, %v6997
      %v7003 = vsel %vm3383, %v6948, %v6939
      %v7004 = vsel %vm3385, %v6957, %v7003
      %v7005 = vsel %vm3387, %v6966, %v7004
      %v7006 = vsel %vm3389, %v6975, %v7005
      %v7007 = vsel %vm3391, %v6984, %v7006
      %v7008 = vsel %vm3393, %v6993, %v7007
      %v7009 = vsel %vm3395, %v7002, %v7008
      %v7011 = vadd.f32 %v6850, %v7009
      %v7012 = vsel %vm3560, %v7011, -inf
      %7013 = vmax.xlane.f32.xlu0 %v7012
      %v7014 = vpop.xlane.xlu0 %7013
      %v7015 = vsub.f32 %v7011, %v7014
      %v7016 = vmul.f32 %v7015, 1.442695
      %v7017 = vpow.pop %v7016
      %v7018 = vsel %vm3560, %v7017, 0.0
      %7019 = vadd.xlane.f32.xlu0 %v7018
      %v7020 = vpop.xlane.xlu0 %7019
      %v7021 = vrcp.pop %v7020
      %v7022 = vmul.f32 %v7017, %v7021
      %v7023 = vlaneseq
      %v7024 = vshrl.u32 %v7023, 7
      %v7025 = vsub.s32 0, %v7024
      %v7026 = vrot.slane %v7022, %v7025
      %7028 = vbcast.lane.b32.xlu0 %v7026, 256
      %v7029 = vpop.permute.xlu0 %7028
      %s7031 = sor.u32 256, 8
      %7032 = vbcast.lane.b32.xlu0 %v7026, %s7031
      %v7033 = vpop.permute.xlu0 %7032
      %v7034 = vlaneseq
      %v7035 = vshrl.u32 %v7034, 7
      %v7036 = vsub.s32 1, %v7035
      %v7037 = vrot.slane %v7022, %v7036
      %7039 = vbcast.lane.b32.xlu0 %v7037, 256
      %v7040 = vpop.permute.xlu0 %7039
      %s7042 = sor.u32 256, 8
      %7043 = vbcast.lane.b32.xlu0 %v7037, %s7042
      %v7044 = vpop.permute.xlu0 %7043
      %v7045 = vlaneseq
      %v7046 = vshrl.u32 %v7045, 7
      %v7047 = vsub.s32 2, %v7046
      %v7048 = vrot.slane %v7022, %v7047
      %7050 = vbcast.lane.b32.xlu0 %v7048, 256
      %v7051 = vpop.permute.xlu0 %7050
      %s7053 = sor.u32 256, 8
      %7054 = vbcast.lane.b32.xlu0 %v7048, %s7053
      %v7055 = vpop.permute.xlu0 %7054
      %v7056 = vlaneseq
      %v7057 = vshrl.u32 %v7056, 7
      %v7058 = vsub.s32 3, %v7057
      %v7059 = vrot.slane %v7022, %v7058
      %7061 = vbcast.lane.b32.xlu0 %v7059, 256
      %v7062 = vpop.permute.xlu0 %7061
      %s7064 = sor.u32 256, 8
      %7065 = vbcast.lane.b32.xlu0 %v7059, %s7064
      %v7066 = vpop.permute.xlu0 %7065
      %v7067 = vlaneseq
      %v7068 = vshrl.u32 %v7067, 7
      %v7069 = vsub.s32 4, %v7068
      %v7070 = vrot.slane %v7022, %v7069
      %7072 = vbcast.lane.b32.xlu0 %v7070, 256
      %v7073 = vpop.permute.xlu0 %7072
      %s7075 = sor.u32 256, 8
      %7076 = vbcast.lane.b32.xlu0 %v7070, %s7075
      %v7077 = vpop.permute.xlu0 %7076
      %v7078 = vlaneseq
      %v7079 = vshrl.u32 %v7078, 7
      %v7080 = vsub.s32 5, %v7079
      %v7081 = vrot.slane %v7022, %v7080
      %7083 = vbcast.lane.b32.xlu0 %v7081, 256
      %v7084 = vpop.permute.xlu0 %7083
      %s7086 = sor.u32 256, 8
      %7087 = vbcast.lane.b32.xlu0 %v7081, %s7086
      %v7088 = vpop.permute.xlu0 %7087
      %v7089 = vlaneseq
      %v7090 = vshrl.u32 %v7089, 7
      %v7091 = vsub.s32 6, %v7090
      %v7092 = vrot.slane %v7022, %v7091
      %7094 = vbcast.lane.b32.xlu0 %v7092, 256
      %v7095 = vpop.permute.xlu0 %7094
      %s7097 = sor.u32 256, 8
      %7098 = vbcast.lane.b32.xlu0 %v7092, %s7097
      %v7099 = vpop.permute.xlu0 %7098
      %v7100 = vlaneseq
      %v7101 = vshrl.u32 %v7100, 7
      %v7102 = vsub.s32 7, %v7101
      %v7103 = vrot.slane %v7022, %v7102
      %7105 = vbcast.lane.b32.xlu0 %v7103, 256
      %v7106 = vpop.permute.xlu0 %7105
      %s7108 = sor.u32 256, 8
      %7109 = vbcast.lane.b32.xlu0 %v7103, %s7108
      %v7110 = vpop.permute.xlu0 %7109
      %v7111 = vmul.f32 %v7029, %v2800
      %v7112 = vmul.f32 %v7033, %v2801
      %v7113 = vmul.f32 %v7040, %v2802
      %v7114 = vmul.f32 %v7044, %v2803
      %v7115 = vmul.f32 %v7051, %v2804
      %v7116 = vmul.f32 %v7055, %v2805
      %v7117 = vmul.f32 %v7062, %v2806
      %v7118 = vmul.f32 %v7066, %v2807
      %v7119 = vmul.f32 %v7073, %v2808
      %v7120 = vmul.f32 %v7077, %v2809
      %v7121 = vmul.f32 %v7084, %v2810
      %v7122 = vmul.f32 %v7088, %v2811
      %v7123 = vmul.f32 %v7095, %v2812
      %v7124 = vmul.f32 %v7099, %v2813
      %v7125 = vmul.f32 %v7106, %v2814
      %v7126 = vmul.f32 %v7110, %v2815
      %v7127 = vsel %vm3244, %v7111, 0.0
      %v7128 = vsel %vm3244, %v7112, 0.0
      %v7129 = vadd.f32 %v7127, %v7128
      %v7130 = vrot.slane %v7129, 4
      %v7131 = vadd.f32 %v7129, %v7130
      %v7132 = vrot.slane %v7131, 2
      %v7133 = vadd.f32 %v7131, %v7132
      %v7134 = vrot.slane %v7133, 1
      %v7135 = vadd.f32 %v7133, %v7134
      %v7136 = vsel %vm3244, %v7113, 0.0
      %v7137 = vsel %vm3244, %v7114, 0.0
      %v7138 = vadd.f32 %v7136, %v7137
      %v7139 = vrot.slane %v7138, 4
      %v7140 = vadd.f32 %v7138, %v7139
      %v7141 = vrot.slane %v7140, 2
      %v7142 = vadd.f32 %v7140, %v7141
      %v7143 = vrot.slane %v7142, 1
      %v7144 = vadd.f32 %v7142, %v7143
      %v7145 = vsel %vm3244, %v7115, 0.0
      %v7146 = vsel %vm3244, %v7116, 0.0
      %v7147 = vadd.f32 %v7145, %v7146
      %v7148 = vrot.slane %v7147, 4
      %v7149 = vadd.f32 %v7147, %v7148
      %v7150 = vrot.slane %v7149, 2
      %v7151 = vadd.f32 %v7149, %v7150
      %v7152 = vrot.slane %v7151, 1
      %v7153 = vadd.f32 %v7151, %v7152
      %v7154 = vsel %vm3244, %v7117, 0.0
      %v7155 = vsel %vm3244, %v7118, 0.0
      %v7156 = vadd.f32 %v7154, %v7155
      %v7157 = vrot.slane %v7156, 4
      %v7158 = vadd.f32 %v7156, %v7157
      %v7159 = vrot.slane %v7158, 2
      %v7160 = vadd.f32 %v7158, %v7159
      %v7161 = vrot.slane %v7160, 1
      %v7162 = vadd.f32 %v7160, %v7161
      %v7163 = vsel %vm3244, %v7119, 0.0
      %v7164 = vsel %vm3244, %v7120, 0.0
      %v7165 = vadd.f32 %v7163, %v7164
      %v7166 = vrot.slane %v7165, 4
      %v7167 = vadd.f32 %v7165, %v7166
      %v7168 = vrot.slane %v7167, 2
      %v7169 = vadd.f32 %v7167, %v7168
      %v7170 = vrot.slane %v7169, 1
      %v7171 = vadd.f32 %v7169, %v7170
      %v7172 = vsel %vm3244, %v7121, 0.0
      %v7173 = vsel %vm3244, %v7122, 0.0
      %v7174 = vadd.f32 %v7172, %v7173
      %v7175 = vrot.slane %v7174, 4
      %v7176 = vadd.f32 %v7174, %v7175
      %v7177 = vrot.slane %v7176, 2
      %v7178 = vadd.f32 %v7176, %v7177
      %v7179 = vrot.slane %v7178, 1
      %v7180 = vadd.f32 %v7178, %v7179
      %v7181 = vsel %vm3244, %v7123, 0.0
      %v7182 = vsel %vm3244, %v7124, 0.0
      %v7183 = vadd.f32 %v7181, %v7182
      %v7184 = vrot.slane %v7183, 4
      %v7185 = vadd.f32 %v7183, %v7184
      %v7186 = vrot.slane %v7185, 2
      %v7187 = vadd.f32 %v7185, %v7186
      %v7188 = vrot.slane %v7187, 1
      %v7189 = vadd.f32 %v7187, %v7188
      %v7190 = vsel %vm3244, %v7125, 0.0
      %v7191 = vsel %vm3244, %v7126, 0.0
      %v7192 = vadd.f32 %v7190, %v7191
      %v7193 = vrot.slane %v7192, 4
      %v7194 = vadd.f32 %v7192, %v7193
      %v7195 = vrot.slane %v7194, 2
      %v7196 = vadd.f32 %v7194, %v7195
      %v7197 = vrot.slane %v7196, 1
      %v7198 = vadd.f32 %v7196, %v7197
      %v7207 = vsel %vm3383, %v7144, %v7135
      %v7208 = vsel %vm3385, %v7153, %v7207
      %v7209 = vsel %vm3387, %v7162, %v7208
      %v7210 = vsel %vm3389, %v7171, %v7209
      %v7211 = vsel %vm3391, %v7180, %v7210
      %v7212 = vsel %vm3393, %v7189, %v7211
      %v7213 = vsel %vm3395, %v7198, %v7212
      %v7214 = vsel %vm3244, %v7213, 0
      %v7217 = vsel %vm3244, %v2827, 0
      %7219 = vmatprep.subr.mxu0 0.0
      %7220 = vmatpush1.xpose.msra.mxu0 0.0
      %7221 = vmatprep.subr.mxu0 0.0
      %7222 = vmatpush1.xpose.msra.mxu0 0.0
      %7223 = vmatprep.subr.mxu0 0.0
      %7224 = vmatpush1.xpose.msra.mxu0 0.0
      %7225 = vmatprep.subr.mxu0 0.0
      %7226 = vmatpush1.xpose.msra.mxu0 0.0
      %7227 = vmatprep.subr.mxu0 0.0
      %7228 = vmatpush1.xpose.msra.mxu0 0.0
      %7229 = vmatprep.subr.mxu0 0.0
      %7230 = vmatpush1.xpose.msra.mxu0 0.0
      %7231 = vmatprep.subr.mxu0 0.0
      %7232 = vmatpush1.xpose.msra.mxu0 0.0
      %7233 = vmatprep.subr.mxu0 0.0
      %7234 = vmatpush1.xpose.msra.mxu0 0.0
      %7235 = vmatprep.subr.mxu0 0.0
      %7236 = vmatpush1.xpose.msra.mxu0 0.0
      %7237 = vmatprep.subr.mxu0 0.0
      %7238 = vmatpush1.xpose.msra.mxu0 0.0
      %7239 = vmatprep.subr.mxu0 0.0
      %7240 = vmatpush1.xpose.msra.mxu0 0.0
      %7241 = vmatprep.subr.mxu0 0.0
      %7242 = vmatpush1.xpose.msra.mxu0 0.0
      %7243 = vmatprep.subr.mxu0 0.0
      %7244 = vmatpush1.xpose.msra.mxu0 0.0
      %7245 = vmatprep.subr.mxu0 0.0
      %7246 = vmatpush1.xpose.msra.mxu0 0.0
      %7247 = vmatprep.subr.mxu0 0.0
      %7248 = vmatpush1.xpose.msra.mxu0 0.0
      %7249 = vmatprep.subr.mxu0 0.0
      %7250 = vmatpush1.xpose.msra.mxu0 %v7217
      %7251 = vmatprep.subr.mxu0 0.0
      %7252 = vmatpush2.xpose.msra.mxu0 0.0
      %7253 = vmatprep.subr.mxu0 0.0
      %7254 = vmatpush2.xpose.msra.mxu0 0.0
      %7255 = vmatprep.subr.mxu0 0.0
      %7256 = vmatpush2.xpose.msra.mxu0 0.0
      %7257 = vmatprep.subr.mxu0 0.0
      %7258 = vmatpush2.xpose.msra.mxu0 0.0
      %7259 = vmatprep.subr.mxu0 0.0
      %7260 = vmatpush2.xpose.msra.mxu0 0.0
      %7261 = vmatprep.subr.mxu0 0.0
      %7262 = vmatpush2.xpose.msra.mxu0 0.0
      %7263 = vmatprep.subr.mxu0 0.0
      %7264 = vmatpush2.xpose.msra.mxu0 0.0
      %7265 = vmatprep.subr.mxu0 0.0
      %7266 = vmatpush2.xpose.msra.mxu0 0.0
      %7267 = vmatprep.subr.mxu0 0.0
      %7268 = vmatpush2.xpose.msra.mxu0 0.0
      %7269 = vmatprep.subr.mxu0 0.0
      %7270 = vmatpush2.xpose.msra.mxu0 0.0
      %7271 = vmatprep.subr.mxu0 0.0
      %7272 = vmatpush2.xpose.msra.mxu0 0.0
      %7273 = vmatprep.subr.mxu0 0.0
      %7274 = vmatpush2.xpose.msra.mxu0 0.0
      %7275 = vmatprep.subr.mxu0 0.0
      %7276 = vmatpush2.xpose.msra.mxu0 0.0
      %7277 = vmatprep.subr.mxu0 0.0
      %7278 = vmatpush2.xpose.msra.mxu0 0.0
      %7279 = vmatprep.subr.mxu0 0.0
      %7280 = vmatpush2.xpose.msra.mxu0 0.0
      %7281 = vmatprep.subr.mxu0 0.0
      %7282 = vmatpush2.xpose.msra.mxu0 0.0
      %7283 = vmatprep.mubr.f32.mxu0 0.0
      %7284 = vmatmul.mubr.f32.gmra.mxu0 %v7214
      %v7285 = vpop.f32.mrf.mxu0
      %v7286 = vadd.f32 0.0, %v7285
      %v7287 = vpop.f32.mrf.mxu0
      %7288 = vdwg.mxu0
      %7289 = vrot.lane.b32.xlu0 %v2431, 72
      %v7290 = vpop.permute.xlu0 %7289
      %7291 = vrot.lane.b32.xlu0 %v2432, 72
      %v7292 = vpop.permute.xlu0 %7291
      %v7296 = vsel %vm3560, %v7022, 0
      %7298 = vmatprep.subr.mxu0 0.0
      %7299 = vmatpush1.msra.mxu0 0.0
      %7300 = vmatprep.subr.mxu0 0.0
      %7301 = vmatpush1.msra.mxu0 0.0
      %7302 = vmatprep.subr.mxu0 0.0
      %7303 = vmatpush1.msra.mxu0 0.0
      %7304 = vmatprep.subr.mxu0 0.0
      %7305 = vmatpush1.msra.mxu0 0.0
      %7306 = vmatprep.subr.mxu0 0.0
      %7307 = vmatpush1.msra.mxu0 0.0
      %7308 = vmatprep.subr.mxu0 0.0
      %7309 = vmatpush1.msra.mxu0 0.0
      %7310 = vmatprep.subr.mxu0 0.0
      %7311 = vmatpush1.msra.mxu0 0.0
      %7312 = vmatprep.subr.mxu0 0.0
      %7313 = vmatpush1.msra.mxu0 0.0
      %7314 = vmatprep.subr.mxu0 0.0
      %7315 = vmatpush1.msra.mxu0 0.0
      %7316 = vmatprep.subr.mxu0 0.0
      %7317 = vmatpush1.msra.mxu0 0.0
      %7318 = vmatprep.subr.mxu0 0.0
      %7319 = vmatpush1.msra.mxu0 0.0
      %7320 = vmatprep.subr.mxu0 0.0
      %7321 = vmatpush1.msra.mxu0 0.0
      %7322 = vmatprep.subr.mxu0 0.0
      %7323 = vmatpush1.msra.mxu0 0.0
      %7324 = vmatprep.subr.mxu0 0.0
      %7325 = vmatpush1.msra.mxu0 0.0
      %7326 = vmatprep.subr.mxu0 0.0
      %7327 = vmatpush1.msra.mxu0 %v7292
      %7328 = vmatprep.subr.mxu0 0.0
      %7329 = vmatpush1.msra.mxu0 %v7290
      %7330 = vmatprep.subr.mxu0 0.0
      %7331 = vmatpush2.msra.mxu0 0.0
      %7332 = vmatprep.subr.mxu0 0.0
      %7333 = vmatpush2.msra.mxu0 0.0
      %7334 = vmatprep.subr.mxu0 0.0
      %7335 = vmatpush2.msra.mxu0 0.0
      %7336 = vmatprep.subr.mxu0 0.0
      %7337 = vmatpush2.msra.mxu0 0.0
      %7338 = vmatprep.subr.mxu0 0.0
      %7339 = vmatpush2.msra.mxu0 0.0
      %7340 = vmatprep.subr.mxu0 0.0
      %7341 = vmatpush2.msra.mxu0 0.0
      %7342 = vmatprep.subr.mxu0 0.0
      %7343 = vmatpush2.msra.mxu0 0.0
      %7344 = vmatprep.subr.mxu0 0.0
      %7345 = vmatpush2.msra.mxu0 0.0
      %7346 = vmatprep.subr.mxu0 0.0
      %7347 = vmatpush2.msra.mxu0 0.0
      %7348 = vmatprep.subr.mxu0 0.0
      %7349 = vmatpush2.msra.mxu0 0.0
      %7350 = vmatprep.subr.mxu0 0.0
      %7351 = vmatpush2.msra.mxu0 0.0
      %7352 = vmatprep.subr.mxu0 0.0
      %7353 = vmatpush2.msra.mxu0 0.0
      %7354 = vmatprep.subr.mxu0 0.0
      %7355 = vmatpush2.msra.mxu0 0.0
      %7356 = vmatprep.subr.mxu0 0.0
      %7357 = vmatpush2.msra.mxu0 0.0
      %7358 = vmatprep.subr.mxu0 0.0
      %7359 = vmatpush2.msra.mxu0 0.0
      %7360 = vmatprep.subr.mxu0 0.0
      %7361 = vmatpush2.msra.mxu0 0.0
      %7362 = vmatprep.mubr.f32.mxu0 0.0
      %7363 = vmatmul.mubr.f32.gmra.mxu0 %v7296
      %v7364 = vpop.f32.mrf.mxu0
      %v7365 = vadd.f32 %v7286, %v7364
      %v7366 = vpop.f32.mrf.mxu0
      %7367 = vdwg.mxu0
      %v7369 = vsel %vm1033, %v7365, 0
      %7371 = vmatprep.subr.mxu0 0.0
      %7372 = vmatpush1.msra.mxu0 0.0
      %7373 = vmatprep.subr.mxu0 0.0
      %7374 = vmatpush1.msra.mxu0 0.0
      %7375 = vmatprep.subr.mxu0 0.0
      %7376 = vmatpush1.msra.mxu0 0.0
      %7377 = vmatprep.subr.mxu0 0.0
      %7378 = vmatpush1.msra.mxu0 0.0
      %7379 = vmatprep.subr.mxu0 0.0
      %7380 = vmatpush1.msra.mxu0 0.0
      %7381 = vmatprep.subr.mxu0 0.0
      %7382 = vmatpush1.msra.mxu0 0.0
      %7383 = vmatprep.subr.mxu0 0.0
      %7384 = vmatpush1.msra.mxu0 0.0
      %7385 = vmatprep.subr.mxu0 0.0
      %7386 = vmatpush1.msra.mxu0 0.0
      %7387 = vmatprep.subr.mxu0 0.0
      %7388 = vmatpush1.msra.mxu0 0.0
      %7389 = vmatprep.subr.mxu0 0.0
      %7390 = vmatpush1.msra.mxu0 0.0
      %7391 = vmatprep.subr.mxu0 0.0
      %7392 = vmatpush1.msra.mxu0 0.0
      %7393 = vmatprep.subr.mxu0 0.0
      %7394 = vmatpush1.msra.mxu0 0.0
      %7395 = vmatprep.subr.mxu0 0.0
      %7396 = vmatpush1.msra.mxu0 0.0
      %7397 = vmatprep.subr.mxu0 0.0
      %7398 = vmatpush1.msra.mxu0 0.0
      %7399 = vmatprep.subr.mxu0 0.0
      %7400 = vmatpush1.msra.mxu0 0.0
      %7401 = vmatprep.subr.mxu0 0.0
      %7402 = vmatpush1.msra.mxu0 %v2831
      %7403 = vmatprep.subr.mxu0 0.0
      %7404 = vmatpush2.msra.mxu0 0.0
      %7405 = vmatprep.subr.mxu0 0.0
      %7406 = vmatpush2.msra.mxu0 0.0
      %7407 = vmatprep.subr.mxu0 0.0
      %7408 = vmatpush2.msra.mxu0 0.0
      %7409 = vmatprep.subr.mxu0 0.0
      %7410 = vmatpush2.msra.mxu0 0.0
      %7411 = vmatprep.subr.mxu0 0.0
      %7412 = vmatpush2.msra.mxu0 0.0
      %7413 = vmatprep.subr.mxu0 0.0
      %7414 = vmatpush2.msra.mxu0 0.0
      %7415 = vmatprep.subr.mxu0 0.0
      %7416 = vmatpush2.msra.mxu0 0.0
      %7417 = vmatprep.subr.mxu0 0.0
      %7418 = vmatpush2.msra.mxu0 0.0
      %7419 = vmatprep.subr.mxu0 0.0
      %7420 = vmatpush2.msra.mxu0 0.0
      %7421 = vmatprep.subr.mxu0 0.0
      %7422 = vmatpush2.msra.mxu0 0.0
      %7423 = vmatprep.subr.mxu0 0.0
      %7424 = vmatpush2.msra.mxu0 0.0
      %7425 = vmatprep.subr.mxu0 0.0
      %7426 = vmatpush2.msra.mxu0 0.0
      %7427 = vmatprep.subr.mxu0 0.0
      %7428 = vmatpush2.msra.mxu0 0.0
      %7429 = vmatprep.subr.mxu0 0.0
      %7430 = vmatpush2.msra.mxu0 0.0
      %7431 = vmatprep.subr.mxu0 0.0
      %7432 = vmatpush2.msra.mxu0 0.0
      %7433 = vmatprep.subr.mxu0 0.0
      %7434 = vmatpush2.msra.mxu0 0.0
      %7435 = vmatprep.mubr.f32.mxu0 0.0
      %7436 = vmatmul.mubr.f32.gmra.mxu0 %v7369
      %v7437 = vpop.f32.mrf.mxu0
      %v7438 = vadd.f32 0.0, %v7437
      %v7439 = vpop.f32.mrf.mxu0
      %7440 = vdwg.mxu0
      %v7441 = vadd.f32 %v6290, %v7438
      %v7442 = vadd.f32 %v2016, %v7441
      %v7443 = vld [vmem:[%s15] sm:$0x1]
      %v7445 = vlaneseq
      %v7446 = vshrl.u32 %v7445, 7
      %v7447 = vsub.s32 0, %v7446
      %v7448 = vrot.slane %v7443, %v7447
      %v7450 = vadd.f32 %v7442, %v7448
      %v7451 = vsel %vm871, %v7450, 0.0
      %7452 = vadd.xlane.f32.xlu0 %v7451
      %v7453 = vpop.xlane.xlu0 %7452
      %v7454 = vmul.f32 %v7453, %v1996
      %v7455 = vsub.f32 %v7450, %v7454
      %v7456 = vmul.f32 %v7455, %v7455
      %v7457 = vsel %vm871, %v7456, 0.0
      %7458 = vadd.xlane.f32.xlu0 %v7457
      %v7459 = vpop.xlane.xlu0 %7458
      %v7460 = vmul.f32 %v7459, %v1996
      %v7461 = vadd.f32 %v7460, 1e-05
      %v7462 = vrsqrt.pop %v7461
      %v7463 = vmul.f32 %v7455, %v7462
      %v7464 = vlaneseq
      %v7465 = vshrl.u32 %v7464, 7
      %v7466 = vsub.s32 1, %v7465
      %v7467 = vrot.slane %v854, %v7466
      %v7468 = vmul.f32 %v7463, %v7467
      %v7469 = vlaneseq
      %v7470 = vshrl.u32 %v7469, 7
      %v7471 = vsub.s32 1, %v7470
      %v7472 = vrot.slane %v855, %v7471
      %v7473 = vadd.f32 %v7468, %v7472
      %v7474 = vld [vmem:[%s19] sm:$0xff]
      %v7475 = vld [vmem:[%s19 + $0x8] sm:$0xff]
      %v7476 = vld [vmem:[%s19 + $0x10] sm:$0xff]
      %v7477 = vld [vmem:[%s19 + $0x18] sm:$0xff]
      %v7478 = vld [vmem:[%s20] sm:$0x1]
      %v7480 = vlaneseq
      %v7481 = vshrl.u32 %v7480, 7
      %v7482 = vsub.s32 0, %v7481
      %v7483 = vrot.slane %v7478, %v7482
      %v7486 = vsel %vm871, %v7473, 0
      %7488 = vmatprep.subr.mxu0 0.0
      %7489 = vmatpush1.msra.mxu0 0.0
      %7490 = vmatprep.subr.mxu0 0.0
      %7491 = vmatpush1.msra.mxu0 0.0
      %7492 = vmatprep.subr.mxu0 0.0
      %7493 = vmatpush1.msra.mxu0 0.0
      %7494 = vmatprep.subr.mxu0 0.0
      %7495 = vmatpush1.msra.mxu0 0.0
      %7496 = vmatprep.subr.mxu0 0.0
      %7497 = vmatpush1.msra.mxu0 0.0
      %7498 = vmatprep.subr.mxu0 0.0
      %7499 = vmatpush1.msra.mxu0 0.0
      %7500 = vmatprep.subr.mxu0 0.0
      %7501 = vmatpush1.msra.mxu0 0.0
      %7502 = vmatprep.subr.mxu0 0.0
      %7503 = vmatpush1.msra.mxu0 0.0
      %7504 = vmatprep.subr.mxu0 0.0
      %7505 = vmatpush1.msra.mxu0 0.0
      %7506 = vmatprep.subr.mxu0 0.0
      %7507 = vmatpush1.msra.mxu0 0.0
      %7508 = vmatprep.subr.mxu0 0.0
      %7509 = vmatpush1.msra.mxu0 0.0
      %7510 = vmatprep.subr.mxu0 0.0
      %7511 = vmatpush1.msra.mxu0 0.0
      %7512 = vmatprep.subr.mxu0 0.0
      %7513 = vmatpush1.msra.mxu0 %v7477
      %7514 = vmatprep.subr.mxu0 0.0
      %7515 = vmatpush1.msra.mxu0 %v7476
      %7516 = vmatprep.subr.mxu0 0.0
      %7517 = vmatpush1.msra.mxu0 %v7475
      %7518 = vmatprep.subr.mxu0 0.0
      %7519 = vmatpush1.msra.mxu0 %v7474
      %7520 = vmatprep.subr.mxu0 0.0
      %7521 = vmatpush2.msra.mxu0 0.0
      %7522 = vmatprep.subr.mxu0 0.0
      %7523 = vmatpush2.msra.mxu0 0.0
      %7524 = vmatprep.subr.mxu0 0.0
      %7525 = vmatpush2.msra.mxu0 0.0
      %7526 = vmatprep.subr.mxu0 0.0
      %7527 = vmatpush2.msra.mxu0 0.0
      %7528 = vmatprep.subr.mxu0 0.0
      %7529 = vmatpush2.msra.mxu0 0.0
      %7530 = vmatprep.subr.mxu0 0.0
      %7531 = vmatpush2.msra.mxu0 0.0
      %7532 = vmatprep.subr.mxu0 0.0
      %7533 = vmatpush2.msra.mxu0 0.0
      %7534 = vmatprep.subr.mxu0 0.0
      %7535 = vmatpush2.msra.mxu0 0.0
      %7536 = vmatprep.subr.mxu0 0.0
      %7537 = vmatpush2.msra.mxu0 0.0
      %7538 = vmatprep.subr.mxu0 0.0
      %7539 = vmatpush2.msra.mxu0 0.0
      %7540 = vmatprep.subr.mxu0 0.0
      %7541 = vmatpush2.msra.mxu0 0.0
      %7542 = vmatprep.subr.mxu0 0.0
      %7543 = vmatpush2.msra.mxu0 0.0
      %7544 = vmatprep.subr.mxu0 0.0
      %7545 = vmatpush2.msra.mxu0 0.0
      %7546 = vmatprep.subr.mxu0 0.0
      %7547 = vmatpush2.msra.mxu0 0.0
      %7548 = vmatprep.subr.mxu0 0.0
      %7549 = vmatpush2.msra.mxu0 0.0
      %7550 = vmatprep.subr.mxu0 0.0
      %7551 = vmatpush2.msra.mxu0 0.0
      %7552 = vmatprep.mubr.f32.mxu0 0.0
      %7553 = vmatmul.mubr.f32.gmra.mxu0 %v7486
      %v7554 = vpop.f32.mrf.mxu0
      %v7555 = vadd.f32 %v7483, %v7554
      %v7556 = vpop.f32.mrf.mxu0
      %7557 = vdwg.mxu0
      %v7558 = vmax.f32 %v7555, 0.0
      %v7559 = vld [vmem:[%s21] sm:$0xff]
      %v7560 = vld [vmem:[%s21 + $0x8] sm:$0xff]
      %v7561 = vld [vmem:[%s21 + $0x10] sm:$0xff]
      %v7562 = vld [vmem:[%s21 + $0x18] sm:$0xff]
      %v7563 = vld [vmem:[%s21 + $0x20] sm:$0xff]
      %v7564 = vld [vmem:[%s21 + $0x28] sm:$0xff]
      %v7565 = vld [vmem:[%s21 + $0x30] sm:$0xff]
      %v7566 = vld [vmem:[%s21 + $0x38] sm:$0xff]
      %vm7567 = vcmask 523264
      %v7569 = vsel %vm7567, %v7558, 0
      %7571 = vmatprep.subr.mxu0 0.0
      %7572 = vmatpush1.msra.mxu0 0.0
      %7573 = vmatprep.subr.mxu0 0.0
      %7574 = vmatpush1.msra.mxu0 0.0
      %7575 = vmatprep.subr.mxu0 0.0
      %7576 = vmatpush1.msra.mxu0 0.0
      %7577 = vmatprep.subr.mxu0 0.0
      %7578 = vmatpush1.msra.mxu0 0.0
      %7579 = vmatprep.subr.mxu0 0.0
      %7580 = vmatpush1.msra.mxu0 0.0
      %7581 = vmatprep.subr.mxu0 0.0
      %7582 = vmatpush1.msra.mxu0 0.0
      %7583 = vmatprep.subr.mxu0 0.0
      %7584 = vmatpush1.msra.mxu0 0.0
      %7585 = vmatprep.subr.mxu0 0.0
      %7586 = vmatpush1.msra.mxu0 0.0
      %7587 = vmatprep.subr.mxu0 0.0
      %7588 = vmatpush1.msra.mxu0 %v7566
      %7589 = vmatprep.subr.mxu0 0.0
      %7590 = vmatpush1.msra.mxu0 %v7565
      %7591 = vmatprep.subr.mxu0 0.0
      %7592 = vmatpush1.msra.mxu0 %v7564
      %7593 = vmatprep.subr.mxu0 0.0
      %7594 = vmatpush1.msra.mxu0 %v7563
      %7595 = vmatprep.subr.mxu0 0.0
      %7596 = vmatpush1.msra.mxu0 %v7562
      %7597 = vmatprep.subr.mxu0 0.0
      %7598 = vmatpush1.msra.mxu0 %v7561
      %7599 = vmatprep.subr.mxu0 0.0
      %7600 = vmatpush1.msra.mxu0 %v7560
      %7601 = vmatprep.subr.mxu0 0.0
      %7602 = vmatpush1.msra.mxu0 %v7559
      %7603 = vmatprep.subr.mxu0 0.0
      %7604 = vmatpush2.msra.mxu0 0.0
      %7605 = vmatprep.subr.mxu0 0.0
      %7606 = vmatpush2.msra.mxu0 0.0
      %7607 = vmatprep.subr.mxu0 0.0
      %7608 = vmatpush2.msra.mxu0 0.0
      %7609 = vmatprep.subr.mxu0 0.0
      %7610 = vmatpush2.msra.mxu0 0.0
      %7611 = vmatprep.subr.mxu0 0.0
      %7612 = vmatpush2.msra.mxu0 0.0
      %7613 = vmatprep.subr.mxu0 0.0
      %7614 = vmatpush2.msra.mxu0 0.0
      %7615 = vmatprep.subr.mxu0 0.0
      %7616 = vmatpush2.msra.mxu0 0.0
      %7617 = vmatprep.subr.mxu0 0.0
      %7618 = vmatpush2.msra.mxu0 0.0
      %7619 = vmatprep.subr.mxu0 0.0
      %7620 = vmatpush2.msra.mxu0 0.0
      %7621 = vmatprep.subr.mxu0 0.0
      %7622 = vmatpush2.msra.mxu0 0.0
      %7623 = vmatprep.subr.mxu0 0.0
      %7624 = vmatpush2.msra.mxu0 0.0
      %7625 = vmatprep.subr.mxu0 0.0
      %7626 = vmatpush2.msra.mxu0 0.0
      %7627 = vmatprep.subr.mxu0 0.0
      %7628 = vmatpush2.msra.mxu0 0.0
      %7629 = vmatprep.subr.mxu0 0.0
      %7630 = vmatpush2.msra.mxu0 0.0
      %7631 = vmatprep.subr.mxu0 0.0
      %7632 = vmatpush2.msra.mxu0 0.0
      %7633 = vmatprep.subr.mxu0 0.0
      %7634 = vmatpush2.msra.mxu0 0.0
      %7635 = vmatprep.mubr.f32.mxu0 0.0
      %7636 = vmatmul.mubr.f32.gmra.mxu0 %v7569
      %v7637 = vpop.f32.mrf.mxu0
      %v7638 = vadd.f32 0.0, %v7637
      %v7639 = vpop.f32.mrf.mxu0
      %7640 = vdwg.mxu0
      %v7641 = vadd.f32 %v7473, %v7638
      %v7642 = vld [vmem:[%s22] sm:$0x1]
      %v7644 = vlaneseq
      %v7645 = vshrl.u32 %v7644, 7
      %v7646 = vsub.s32 0, %v7645
      %v7647 = vrot.slane %v7642, %v7646
      %v7649 = vadd.f32 %v7641, %v7647
      %v7650 = vsel %vm871, %v7649, 0.0
      %7651 = vadd.xlane.f32.xlu0 %v7650
      %v7652 = vpop.xlane.xlu0 %7651
      %v7653 = vmul.f32 %v7652, %v1996
      %v7654 = vsub.f32 %v7649, %v7653
      %v7655 = vmul.f32 %v7654, %v7654
      %v7656 = vsel %vm871, %v7655, 0.0
      %7657 = vadd.xlane.f32.xlu0 %v7656
      %v7658 = vpop.xlane.xlu0 %7657
      %v7659 = vmul.f32 %v7658, %v1996
      %v7660 = vadd.f32 %v7659, 1e-05
      %v7661 = vrsqrt.pop %v7660
      %v7662 = vmul.f32 %v7654, %v7661
      %v7663 = vlaneseq
      %v7664 = vshrl.u32 %v7663, 7
      %v7665 = vsub.s32 2, %v7664
      %v7666 = vrot.slane %v854, %v7665
      %v7667 = vmul.f32 %v7662, %v7666
      %v7668 = vlaneseq
      %v7669 = vshrl.u32 %v7668, 7
      %v7670 = vsub.s32 2, %v7669
      %v7671 = vrot.slane %v855, %v7670
      %v7672 = vadd.f32 %v7667, %v7671
      %7673 = vst.msk [vmem:[%s853] sm:$0xff] %vm871, %v7672
      %p7674 = scmp.lt.s32.totalorder %s36, 1
      %s7675 = scalar_select %p7674, %s36, 1
      %s7676 = smul.addr %s7675, 8
      %s7677 = scalar_lea.vmem %s25, %s7676
      // Predicated region
      $region121: #{decoder_layer_forward.1} parent=119 // pred_check
        %p7678 = pneg %p609
      $region122: #{decoder_layer_forward.1} parent=119 // pred_check_branch
        %7680 = sbr.rel (%p7678) target = $region124
      $region123: #{decoder_layer_forward.1} parent=119 // pred_region
        _
      $region124: #{decoder_layer_forward.1} parent=119 // pred_fallthru
        _
    $region120: #{decoder_layer_forward.1} parent=5 // pred_fallthru
      _
    %p7681 = scmp.le.s32.totalorder 2, %s31
    // Predicated region
    $region125: #{decoder_layer_forward.1} parent=5 // pred_check
      %p7682 = pneg %p7681
    $region126: #{decoder_layer_forward.1} parent=5 // pred_check_branch
      %7684 = sbr.rel (%p7682) target = $region128
    $region127: #{decoder_layer_forward.1} parent=5 // pred_region
      %s7685 = ssub.s32 %s31, 2
      // Predicated region
      $region129: #{decoder_layer_forward.1} parent=127 // pred_check
        %p7686 = pneg %p615
      $region130: #{decoder_layer_forward.1} parent=127 // pred_check_branch
        %7688 = sbr.rel (%p7686) target = $region132
      $region131: #{decoder_layer_forward.1} parent=127 // pred_region
        %p7689 = scmp.lt.s32.totalorder %s37, 1
        %s7690 = scalar_select %p7689, %s37, 1
        %s7691 = smul.addr %s7690, 8
        %s7692 = scalar_lea.vmem %s25, %s7691
      $region132: #{decoder_layer_forward.1} parent=127 // pred_fallthru
        _
    $region128: #{decoder_layer_forward.1} parent=5 // pred_fallthru
      _
  $region6: #{decoder_layer_forward.1} parent=0 // loop_footer
    %s35 = sadd.s32 1, %s31
  $region7: #{decoder_layer_forward.1} parent=0 // loop_footer_branch
    %30 = sbr.rel target = $region3
  $region8: #{decoder_layer_forward.1} parent=0 // loop_exit
    _

</llo_original>
